<compile_context>
chip_gen: v5e
topology: v5e:2x2
jax: 0.10.0
libtpu: 0.0.40
codegen_flags: <defaults>
</compile_context>

<pallas_src>
import jax
import jax.numpy as jnp
from jax.experimental import pallas as pl
from jax.experimental.pallas import tpu as pltpu

# ----------------------- config (small synthetic ViLT) -----------------------
VOCAB = 100
VOCAB_PAD = 128            # word-emb table padded to 128 rows for the one-hot matmul
HIDDEN = 32
HEADS = 4
HEAD_DIM = HIDDEN // HEADS
LAYERS = 2
INTERMEDIATE = 64
MAX_TEXT_LEN = 16
IMG = 16
PATCH = 4
CHANNELS = 3
NUM_PATCHES = (IMG // PATCH) ** 2
NUM_LABELS = 5
LN_EPS = 1e-12
LANE = 128                 # lane-dense classifier output width (sliced back to NUM_LABELS)


# ------------------------------ fused Pallas kernel ---------------------------
def _vilt_fused_kernel(
    # data
    ids_ref, patches_ref, bias_ref, labels_ref, tpos_ref,
    # embedding params
    wemb_ref, tlg_ref, tlb_ref, pw_ref, pb_ref, cls_ref, vpp_ref,
    # stacked encoder params, all shaped (LAYERS, ...)
    ln1g_ref, ln1b_ref, qkvw_ref, qkvb_ref, aow_ref, aob_ref,
    ln2g_ref, ln2b_ref, f1w_ref, f1b_ref, f2w_ref, f2b_ref,
    # head params
    fing_ref, finb_ref, poolw_ref, poolb_ref, clsw_ref, clsb_ref,
    # outputs
    logits_ref, loss_ref,
):
    f32, bf16 = jnp.float32, jnp.bfloat16
    B, L = ids_ref.shape
    NP = patches_ref.shape[1]
    H = HIDDEN
    S_PAD = bias_ref.shape[2]
    seq_len = L + 1 + NP
    scale = 1.0 / (HEAD_DIM ** 0.5)

    def ln(x, g, b):
        mu = jnp.mean(x, axis=-1, keepdims=True)
        var = jnp.mean(jnp.square(x - mu), axis=-1, keepdims=True)
        return (x - mu) * jax.lax.rsqrt(var + LN_EPS) * g + b

    def erf(x):
        # Abramowitz & Stegun 7.1.26 rational approximation, |err| <= 1.5e-7.
        p_, a1, a2, a3, a4, a5 = (0.3275911, 0.254829592, -0.284496736,
                                  1.421413741, -1.453152027, 1.061405429)
        sgn = jnp.where(x >= 0.0, 1.0, -1.0)
        ax = jnp.abs(x)
        t = 1.0 / (1.0 + p_ * ax)
        poly = ((((a5 * t + a4) * t + a3) * t + a2) * t + a1) * t
        return sgn * (1.0 - poly * jnp.exp(-ax * ax))

    def gelu(x):
        # erf-GELU (matches HF ViLT "gelu") via the approximation above.
        return 0.5 * x * (1.0 + erf(x * 0.7071067811865476))

    # ---- text embeddings: in-kernel one-hot gather (MXU) + pos/type + LN ----
    ids = ids_ref[...]                                                   # (B, L) i32
    iota = jax.lax.broadcasted_iota(jnp.int32, (B, L, VOCAB_PAD), 2)
    onehot = jnp.where(iota == ids[:, :, None], 1.0, 0.0).astype(bf16)   # (B, L, 128)
    we = jnp.dot(onehot.reshape(B * L, VOCAB_PAD), wemb_ref[...],
                 preferred_element_type=f32).reshape(B, L, H)
    text = ln(we + tpos_ref[...][None], tlg_ref[...], tlb_ref[...])      # (B, L, H)

    # ---- patch projection (im2col matmul) + visual pos emb; cls row ----
    p2d = patches_ref[...].reshape(B * NP, CHANNELS * PATCH * PATCH).astype(bf16)
    proj = jnp.dot(p2d, pw_ref[...], preferred_element_type=f32) + pb_ref[...]
    img = proj.reshape(B, NP, H) + vpp_ref[...][None]                    # (B, NP, H)
    cls = jnp.broadcast_to(cls_ref[...][None], (B, 1, H))                # (B, 1, H)

    # ---- register-resident padded sequence [text | cls | patches | pad] ----
    x3 = jnp.concatenate(
        [text, cls, img, jnp.zeros((B, S_PAD - seq_len, H), f32)], axis=1)
    x = x3.reshape(B * S_PAD, H)                   # token-major 2-D activations

    # Hoist the attention-bias broadcast out of the layer/head loops.
    bias_full = jnp.broadcast_to(bias_ref[...], (B, S_PAD, S_PAD))       # f32

    # ---- encoder: all layers fused; fused QKV; one output-proj matmul/layer ----
    # TODO(synk): dropout omitted (eval-mode forward only).
    for l in range(LAYERS):
        hs = ln(x, ln1g_ref[l], ln1b_ref[l])
        qkv = (jnp.dot(hs.astype(bf16), qkvw_ref[l], preferred_element_type=f32)
               + qkvb_ref[l])                                            # (B*S, 3H)
        qkv3 = qkv.reshape(B, S_PAD, 3 * H)
        ctx_heads = []
        for hd in range(HEADS):
            lo = hd * HEAD_DIM
            q = qkv3[:, :, lo:lo + HEAD_DIM]
            k = qkv3[:, :, H + lo:H + lo + HEAD_DIM]
            v = qkv3[:, :, 2 * H + lo:2 * H + lo + HEAD_DIM]
            s = jnp.einsum("bqd,bkd->bqk", q, k,
                           preferred_element_type=f32) * scale + bias_full
            m = jnp.max(s, axis=-1, keepdims=True)
            p = jnp.exp(s - m)
            p = p / jnp.sum(p, axis=-1, keepdims=True)          # exact softmax
            ctx_heads.append(jnp.einsum("bqk,bkd->bqd", p, v,
                                        preferred_element_type=f32))
        # lane-concat the heads once, then a single (B*S, H) @ (H, H) MXU push
        ctx = jnp.concatenate(ctx_heads, axis=-1).reshape(B * S_PAD, H)
        attn = (jnp.dot(ctx.astype(bf16), aow_ref[l], preferred_element_type=f32)
                + aob_ref[l])
        x = x + attn                                                     # residual
        h2 = ln(x, ln2g_ref[l], ln2b_ref[l])
        ffn = gelu(jnp.dot(h2.astype(bf16), f1w_ref[l],
                           preferred_element_type=f32) + f1b_ref[l])
        x = x + jnp.dot(ffn.astype(bf16), f2w_ref[l],
                        preferred_element_type=f32) + f2b_ref[l]

    # ---- final LN, pooler (first token), classifier, BCE loss ----
    seq = ln(x, fing_ref[...], finb_ref[...])
    first = seq.reshape(B, S_PAD, H)[:, 0, :]                            # (B, H)
    pooled = jnp.tanh(jnp.dot(first.astype(bf16), poolw_ref[...],
                              preferred_element_type=f32) + poolb_ref[...])
    logits = (jnp.dot(pooled.astype(bf16), clsw_ref[...],
                      preferred_element_type=f32) + clsb_ref[...])
    logits_ref[...] = logits                                             # (B, 128)

    lg = logits[:, 0:NUM_LABELS]
    y = labels_ref[...]
    bce = jnp.maximum(lg, 0.0) - lg * y + jnp.log(1.0 + jnp.exp(-jnp.abs(lg)))
    loss_ref[...] = jnp.mean(bce, keepdims=True)


# ------------------------------ parameter init -------------------------------
def init_params(key):
    keys = iter(jax.random.split(key, 64))

    def nrm(shape, scale=0.02):
        return (scale * jax.random.normal(next(keys), shape)).astype(jnp.float32)

    zeros = lambda s: jnp.zeros(s, jnp.float32)
    ones = lambda s: jnp.ones(s, jnp.float32)

    params = dict(
        word_emb=nrm((VOCAB, HIDDEN)),
        text_pos_emb=nrm((MAX_TEXT_LEN, HIDDEN)),
        text_tok_type_emb=nrm((2, HIDDEN)),
        text_ln_g=ones((HIDDEN,)),
        text_ln_b=zeros((HIDDEN,)),
        cls_token=nrm((1, 1, HIDDEN)),
        # Conv2d(C, HIDDEN, kernel=PATCH, stride=PATCH) weight reshaped (C*p*p, HIDDEN)
        patch_w=nrm((CHANNELS * PATCH * PATCH, HIDDEN)),
        patch_b=zeros((HIDDEN,)),
        vis_pos_emb=nrm((1, NUM_PATCHES + 1, HIDDEN)),
        modality_emb=nrm((2, HIDDEN)),
        final_ln_g=ones((HIDDEN,)),
        final_ln_b=zeros((HIDDEN,)),
        pooler_w=nrm((HIDDEN, HIDDEN)),
        pooler_b=zeros((HIDDEN,)),
        cls_w=nrm((HIDDEN, NUM_LABELS)),
        cls_b=zeros((NUM_LABELS,)),
        layers=[],
    )
    for _ in range(LAYERS):
        params["layers"].append(dict(
            ln1_g=ones((HIDDEN,)), ln1_b=zeros((HIDDEN,)),
            q_w=nrm((HIDDEN, HIDDEN)), q_b=zeros((HIDDEN,)),
            k_w=nrm((HIDDEN, HIDDEN)), k_b=zeros((HIDDEN,)),
            v_w=nrm((HIDDEN, HIDDEN)), v_b=zeros((HIDDEN,)),
            ao_w=nrm((HIDDEN, HIDDEN)), ao_b=zeros((HIDDEN,)),
            ln2_g=ones((HIDDEN,)), ln2_b=zeros((HIDDEN,)),
            f1_w=nrm((HIDDEN, INTERMEDIATE)), f1_b=zeros((INTERMEDIATE,)),
            f2_w=nrm((INTERMEDIATE, HIDDEN)), f2_b=zeros((HIDDEN,)),
        ))
    return params


def pack_params(p):
    """Stack per-layer weights, fuse QKV, fold modality/token-type embeddings,
    pad word-emb/classifier, and store MXU weight operands in bf16."""
    bf16 = jnp.bfloat16
    ls = p["layers"]
    stk = lambda name: jnp.stack([l[name] for l in ls])
    row = lambda v: v.reshape(1, -1)
    qkv_w = jnp.stack(
        [jnp.concatenate([l["q_w"], l["k_w"], l["v_w"]], axis=1) for l in ls]).astype(bf16)
    qkv_b = jnp.stack(
        [jnp.concatenate([l["q_b"], l["k_b"], l["v_b"]])[None, :] for l in ls])
    cls_w = (jnp.zeros((HIDDEN, LANE), jnp.float32)
             .at[:, :NUM_LABELS].set(p["cls_w"]).astype(bf16))
    cls_b = jnp.zeros((1, LANE), jnp.float32).at[0, :NUM_LABELS].set(p["cls_b"])
    word_emb_pad = (jnp.zeros((VOCAB_PAD, HIDDEN), jnp.float32)
                    .at[:VOCAB].set(p["word_emb"]).astype(bf16))
    return dict(
        word_emb=word_emb_pad,
        # token-type-0 embedding folded into the text positional embedding
        text_pos=p["text_pos_emb"] + p["text_tok_type_emb"][0][None, :],
        text_ln_g=row(p["text_ln_g"]),
        # modality-type embedding for text folded into the text-LN bias
        text_ln_b=row(p["text_ln_b"] + p["modality_emb"][0]),
        patch_w=p["patch_w"].astype(bf16),
        # modality-type embedding for image folded into the patch-projection bias
        patch_b=row(p["patch_b"] + p["modality_emb"][1]),
        cls_row=(p["cls_token"].reshape(1, HIDDEN)
                 + p["vis_pos_emb"][0, 0][None, :]
                 + p["modality_emb"][1][None, :]),
        vis_pos_p=p["vis_pos_emb"][0, 1:],
        ln1_g=stk("ln1_g")[:, None, :], ln1_b=stk("ln1_b")[:, None, :],
        qkv_w=qkv_w, qkv_b=qkv_b,
        ao_w=stk("ao_w").astype(bf16), ao_b=stk("ao_b")[:, None, :],
        ln2_g=stk("ln2_g")[:, None, :], ln2_b=stk("ln2_b")[:, None, :],
        f1_w=stk("f1_w").astype(bf16), f1_b=stk("f1_b")[:, None, :],
        f2_w=stk("f2_w").astype(bf16), f2_b=stk("f2_b")[:, None, :],
        fin_g=row(p["final_ln_g"]), fin_b=row(p["final_ln_b"]),
        pool_w=p["pooler_w"].astype(bf16), pool_b=row(p["pooler_b"]),
        cls_w=cls_w, cls_b=cls_b,
    )


# --------------------------------- forward -----------------------------------
def vilt_forward(pk, input_ids, pixel_values, attention_mask, labels=None):
    B, L = input_ids.shape

    # --- im2col for the patch conv (kernel == stride == PATCH); XLA glue ---
    # TODO(synk): ViLT's variable-resolution pos-embedding interpolation /
    # pixel-mask patch-selection path of visual_embed is not implemented
    # (full-image, all-ones pixel_mask path only).
    hp = IMG // PATCH
    patches = pixel_values.reshape(B, CHANNELS, hp, PATCH, hp, PATCH)
    patches = patches.transpose(0, 2, 4, 1, 3, 5).reshape(
        B, NUM_PATCHES, CHANNELS * PATCH * PATCH)

    # --- padded sequence length + additive attention bias (finite constant) ---
    seq_len = L + 1 + NUM_PATCHES
    s_pad = ((seq_len + 7) // 8) * 8
    mask = jnp.concatenate(
        [attention_mask.astype(jnp.float32),
         jnp.ones((B, NUM_PATCHES + 1), jnp.float32),
         jnp.zeros((B, s_pad - seq_len), jnp.float32)], axis=1)
    bias = ((1.0 - mask) * (-1e9))[:, None, :]                       # (B, 1, s_pad)

    labels_in = labels if labels is not None else jnp.zeros((B, NUM_LABELS), jnp.float32)
    text_pos = pk["text_pos"][:L]                                    # (L, H), static slice

    args = (input_ids.astype(jnp.int32), patches, bias, labels_in, text_pos,
            pk["word_emb"], pk["text_ln_g"], pk["text_ln_b"],
            pk["patch_w"], pk["patch_b"], pk["cls_row"], pk["vis_pos_p"],
            pk["ln1_g"], pk["ln1_b"], pk["qkv_w"], pk["qkv_b"],
            pk["ao_w"], pk["ao_b"], pk["ln2_g"], pk["ln2_b"],
            pk["f1_w"], pk["f1_b"], pk["f2_w"], pk["f2_b"],
            pk["fin_g"], pk["fin_b"], pk["pool_w"], pk["pool_b"],
            pk["cls_w"], pk["cls_b"])

    logits_pad, loss_mat = pl.pallas_call(
        _vilt_fused_kernel,
        out_shape=(jax.ShapeDtypeStruct((B, LANE), jnp.float32),
                   jax.ShapeDtypeStruct((1, 1), jnp.float32)),
    )(*args)

    logits = logits_pad[:, :NUM_LABELS]
    loss = loss_mat[0, 0] if labels is not None else None
    return logits, loss


# ----------------------------------- main -------------------------------------
if __name__ == "__main__":
    key = jax.random.PRNGKey(0)
    kp, kid, kpix, klab = jax.random.split(key, 4)
    params = init_params(kp)
    packed = pack_params(params)

    B, L = 2, 8
    input_ids = jax.random.randint(kid, (B, L), 0, VOCAB, dtype=jnp.int32)
    pixel_values = jax.random.normal(kpix, (B, CHANNELS, IMG, IMG), dtype=jnp.float32)
    attention_mask = jnp.ones((B, L), jnp.float32)
    labels = (jax.random.uniform(klab, (B, NUM_LABELS)) > 0.5).astype(jnp.float32)

    fwd = jax.jit(vilt_forward)
    logits, loss = fwd(packed, input_ids, pixel_values, attention_mask, labels)
    jax.block_until_ready((logits, loss))
    assert logits.shape == (B, NUM_LABELS) and loss.shape == ()
    print("KERNEL_OK")
</pallas_src>

<mosaic_0001>
module attributes {stable_mosaic.version = 11 : i64} {
  func.func @_vilt_fused_kernel(%arg0: memref<2x8xi32, #tpu.memory_space<vmem>>, %arg1: memref<2x16x48xf32, #tpu.memory_space<vmem>>, %arg2: memref<2x1x32xf32, #tpu.memory_space<vmem>>, %arg3: memref<2x5xf32, #tpu.memory_space<vmem>>, %arg4: memref<8x32xf32, #tpu.memory_space<vmem>>, %arg5: memref<128x32xbf16, #tpu.memory_space<vmem>>, %arg6: memref<1x32xf32, #tpu.memory_space<vmem>>, %arg7: memref<1x32xf32, #tpu.memory_space<vmem>>, %arg8: memref<48x32xbf16, #tpu.memory_space<vmem>>, %arg9: memref<1x32xf32, #tpu.memory_space<vmem>>, %arg10: memref<1x32xf32, #tpu.memory_space<vmem>>, %arg11: memref<16x32xf32, #tpu.memory_space<vmem>>, %arg12: memref<2x1x32xf32, #tpu.memory_space<vmem>>, %arg13: memref<2x1x32xf32, #tpu.memory_space<vmem>>, %arg14: memref<2x32x96xbf16, #tpu.memory_space<vmem>>, %arg15: memref<2x1x96xf32, #tpu.memory_space<vmem>>, %arg16: memref<2x32x32xbf16, #tpu.memory_space<vmem>>, %arg17: memref<2x1x32xf32, #tpu.memory_space<vmem>>, %arg18: memref<2x1x32xf32, #tpu.memory_space<vmem>>, %arg19: memref<2x1x32xf32, #tpu.memory_space<vmem>>, %arg20: memref<2x32x64xbf16, #tpu.memory_space<vmem>>, %arg21: memref<2x1x64xf32, #tpu.memory_space<vmem>>, %arg22: memref<2x64x32xbf16, #tpu.memory_space<vmem>>, %arg23: memref<2x1x32xf32, #tpu.memory_space<vmem>>, %arg24: memref<1x32xf32, #tpu.memory_space<vmem>>, %arg25: memref<1x32xf32, #tpu.memory_space<vmem>>, %arg26: memref<32x32xbf16, #tpu.memory_space<vmem>>, %arg27: memref<1x32xf32, #tpu.memory_space<vmem>>, %arg28: memref<32x128xbf16, #tpu.memory_space<vmem>>, %arg29: memref<1x128xf32, #tpu.memory_space<vmem>>, %arg30: memref<2x128xf32, #tpu.memory_space<vmem>>, %arg31: memref<1x1xf32, #tpu.memory_space<vmem>>) attributes {dimension_semantics = [], scalar_prefetch = 0 : i64, scratch_operands = 0 : i64, tpu.core_type = #tpu.core_type<tc>} {
    %c0 = arith.constant 0 : index
    %c0_0 = arith.constant 0 : index
    %0 = vector.load %arg0[%c0, %c0_0] : memref<2x8xi32, #tpu.memory_space<vmem>>, vector<2x8xi32>
    %1 = tpu.iota {dimensions = array<i32: 2>} : vector<2x8x128xi32>
    %2 = vector.shape_cast %0 : vector<2x8xi32> to vector<2x8x1xi32>
    %3 = vector.broadcast %2 : vector<2x8x1xi32> to vector<2x8x128xi32>
    %4 = arith.cmpi eq, %1, %3 : vector<2x8x128xi32>
    %cst = arith.constant 1.000000e+00 : f32
    %cst_1 = arith.constant 0.000000e+00 : f32
    %5 = vector.broadcast %cst : f32 to vector<2x8x128xf32>
    %6 = vector.broadcast %cst_1 : f32 to vector<2x8x128xf32>
    %7 = arith.select %4, %5, %6 : vector<2x8x128xi1>, vector<2x8x128xf32>
    %8 = arith.truncf %7 : vector<2x8x128xf32> to vector<2x8x128xbf16>
    %9 = vector.shape_cast %8 : vector<2x8x128xbf16> to vector<16x128xbf16>
    %c0_2 = arith.constant 0 : index
    %c0_3 = arith.constant 0 : index
    %10 = vector.load %arg5[%c0_2, %c0_3] : memref<128x32xbf16, #tpu.memory_space<vmem>>, vector<128x32xbf16>
    %cst_4 = arith.constant dense<0.000000e+00> : vector<16x32xf32>
    %11 = tpu.matmul %9, %10, %cst_4 {dimension_numbers = #tpu.dot_dimension_numbers<[1], [0], [0], [1], [0, 0, 1, 1], [], []>} : vector<16x128xbf16>, vector<128x32xbf16>, vector<16x32xf32> -> vector<16x32xf32>
    %12 = vector.shape_cast %11 : vector<16x32xf32> to vector<2x8x32xf32>
    %c0_5 = arith.constant 0 : index
    %c0_6 = arith.constant 0 : index
    %13 = vector.load %arg4[%c0_5, %c0_6] : memref<8x32xf32, #tpu.memory_space<vmem>>, vector<8x32xf32>
    %14 = vector.shape_cast %13 : vector<8x32xf32> to vector<1x8x32xf32>
    %15 = vector.broadcast %14 : vector<1x8x32xf32> to vector<2x8x32xf32>
    %16 = arith.addf %12, %15 : vector<2x8x32xf32>
    %c0_7 = arith.constant 0 : index
    %c0_8 = arith.constant 0 : index
    %17 = vector.load %arg6[%c0_7, %c0_8] : memref<1x32xf32, #tpu.memory_space<vmem>>, vector<1x32xf32>
    %c0_9 = arith.constant 0 : index
    %c0_10 = arith.constant 0 : index
    %18 = vector.load %arg7[%c0_9, %c0_10] : memref<1x32xf32, #tpu.memory_space<vmem>>, vector<1x32xf32>
    %cst_11 = arith.constant dense<0.000000e+00> : vector<2x8xf32>
    %19 = vector.multi_reduction <add>, %16, %cst_11 [2] : vector<2x8x32xf32> to vector<2x8xf32>
    %20 = vector.shape_cast %19 : vector<2x8xf32> to vector<2x8x1xf32>
    %cst_12 = arith.constant 3.200000e+01 : f32
    %21 = vector.broadcast %cst_12 : f32 to vector<2x8x1xf32>
    %22 = arith.divf %20, %21 : vector<2x8x1xf32>
    %23 = vector.broadcast %22 : vector<2x8x1xf32> to vector<2x8x32xf32>
    %24 = arith.subf %16, %23 : vector<2x8x32xf32>
    %25 = arith.mulf %24, %24 : vector<2x8x32xf32>
    %cst_13 = arith.constant dense<0.000000e+00> : vector<2x8xf32>
    %26 = vector.multi_reduction <add>, %25, %cst_13 [2] : vector<2x8x32xf32> to vector<2x8xf32>
    %27 = vector.shape_cast %26 : vector<2x8xf32> to vector<2x8x1xf32>
    %cst_14 = arith.constant 3.200000e+01 : f32
    %28 = vector.broadcast %cst_14 : f32 to vector<2x8x1xf32>
    %29 = arith.divf %27, %28 : vector<2x8x1xf32>
    %30 = vector.broadcast %22 : vector<2x8x1xf32> to vector<2x8x32xf32>
    %31 = arith.subf %16, %30 : vector<2x8x32xf32>
    %cst_15 = arith.constant 9.99999996E-13 : f32
    %32 = vector.broadcast %cst_15 : f32 to vector<2x8x1xf32>
    %33 = arith.addf %29, %32 : vector<2x8x1xf32>
    %34 = math.rsqrt %33 : vector<2x8x1xf32>
    %35 = vector.broadcast %34 : vector<2x8x1xf32> to vector<2x8x32xf32>
    %36 = arith.mulf %31, %35 : vector<2x8x32xf32>
    %37 = vector.shape_cast %17 : vector<1x32xf32> to vector<1x1x32xf32>
    %38 = vector.broadcast %37 : vector<1x1x32xf32> to vector<2x8x32xf32>
    %39 = arith.mulf %36, %38 : vector<2x8x32xf32>
    %40 = vector.shape_cast %18 : vector<1x32xf32> to vector<1x1x32xf32>
    %41 = vector.broadcast %40 : vector<1x1x32xf32> to vector<2x8x32xf32>
    %42 = arith.addf %39, %41 : vector<2x8x32xf32>
    %c0_16 = arith.constant 0 : index
    %c0_17 = arith.constant 0 : index
    %c0_18 = arith.constant 0 : index
    %43 = vector.load %arg1[%c0_16, %c0_17, %c0_18] : memref<2x16x48xf32, #tpu.memory_space<vmem>>, vector<2x16x48xf32>
    %44 = vector.shape_cast %43 : vector<2x16x48xf32> to vector<32x48xf32>
    %45 = arith.truncf %44 : vector<32x48xf32> to vector<32x48xbf16>
    %c0_19 = arith.constant 0 : index
    %c0_20 = arith.constant 0 : index
    %46 = vector.load %arg8[%c0_19, %c0_20] : memref<48x32xbf16, #tpu.memory_space<vmem>>, vector<48x32xbf16>
    %cst_21 = arith.constant dense<0.000000e+00> : vector<32x32xf32>
    %47 = tpu.matmul %45, %46, %cst_21 {dimension_numbers = #tpu.dot_dimension_numbers<[1], [0], [0], [1], [0, 0, 1, 1], [], []>} : vector<32x48xbf16>, vector<48x32xbf16>, vector<32x32xf32> -> vector<32x32xf32>
    %c0_22 = arith.constant 0 : index
    %c0_23 = arith.constant 0 : index
    %48 = vector.load %arg9[%c0_22, %c0_23] : memref<1x32xf32, #tpu.memory_space<vmem>>, vector<1x32xf32>
    %49 = vector.broadcast %48 : vector<1x32xf32> to vector<32x32xf32>
    %50 = arith.addf %47, %49 : vector<32x32xf32>
    %51 = vector.shape_cast %50 : vector<32x32xf32> to vector<2x16x32xf32>
    %c0_24 = arith.constant 0 : index
    %c0_25 = arith.constant 0 : index
    %52 = vector.load %arg11[%c0_24, %c0_25] : memref<16x32xf32, #tpu.memory_space<vmem>>, vector<16x32xf32>
    %53 = vector.shape_cast %52 : vector<16x32xf32> to vector<1x16x32xf32>
    %54 = vector.broadcast %53 : vector<1x16x32xf32> to vector<2x16x32xf32>
    %55 = arith.addf %51, %54 : vector<2x16x32xf32>
    %c0_26 = arith.constant 0 : index
    %c0_27 = arith.constant 0 : index
    %56 = vector.load %arg10[%c0_26, %c0_27] : memref<1x32xf32, #tpu.memory_space<vmem>>, vector<1x32xf32>
    %57 = vector.shape_cast %56 : vector<1x32xf32> to vector<1x1x32xf32>
    %58 = vector.shape_cast %57 : vector<1x1x32xf32> to vector<1x1x32xf32>
    %59 = vector.broadcast %58 : vector<1x1x32xf32> to vector<2x1x32xf32>
    %cst_28 = arith.constant 0.000000e+00 : f32
    %60 = vector.broadcast %cst_28 : f32 to vector<2x7x32xf32>
    %61 = tpu.concatenate %42, %59, %55, %60 in 1 : vector<2x8x32xf32>, vector<2x1x32xf32>, vector<2x16x32xf32>, vector<2x7x32xf32> -> vector<2x32x32xf32>
    %62 = vector.shape_cast %61 : vector<2x32x32xf32> to vector<64x32xf32>
    %c0_29 = arith.constant 0 : index
    %c0_30 = arith.constant 0 : index
    %c0_31 = arith.constant 0 : index
    %63 = vector.load %arg2[%c0_29, %c0_30, %c0_31] : memref<2x1x32xf32, #tpu.memory_space<vmem>>, vector<2x1x32xf32>
    %64 = vector.shape_cast %63 : vector<2x1x32xf32> to vector<2x1x32xf32>
    %65 = vector.broadcast %64 : vector<2x1x32xf32> to vector<2x32x32xf32>
    %c0_32 = arith.constant 0 : index
    %c0_33 = arith.constant 0 : index
    %c0_34 = arith.constant 0 : index
    %66 = vector.load %arg12[%c0_32, %c0_33, %c0_34] : memref<2x1x32xf32, #tpu.memory_space<vmem>>, vector<1x1x32xf32>
    %67 = vector.shape_cast %66 : vector<1x1x32xf32> to vector<1x32xf32>
    %c0_35 = arith.constant 0 : index
    %c0_36 = arith.constant 0 : index
    %c0_37 = arith.constant 0 : index
    %68 = vector.load %arg13[%c0_35, %c0_36, %c0_37] : memref<2x1x32xf32, #tpu.memory_space<vmem>>, vector<1x1x32xf32>
    %69 = vector.shape_cast %68 : vector<1x1x32xf32> to vector<1x32xf32>
    %cst_38 = arith.constant dense<0.000000e+00> : vector<64xf32>
    %70 = vector.multi_reduction <add>, %62, %cst_38 [1] : vector<64x32xf32> to vector<64xf32>
    %71 = vector.shape_cast %70 : vector<64xf32> to vector<64x1xf32>
    %cst_39 = arith.constant 3.200000e+01 : f32
    %72 = vector.broadcast %cst_39 : f32 to vector<64x1xf32>
    %73 = arith.divf %71, %72 : vector<64x1xf32>
    %74 = vector.broadcast %73 : vector<64x1xf32> to vector<64x32xf32>
    %75 = arith.subf %62, %74 : vector<64x32xf32>
    %76 = arith.mulf %75, %75 : vector<64x32xf32>
    %cst_40 = arith.constant dense<0.000000e+00> : vector<64xf32>
    %77 = vector.multi_reduction <add>, %76, %cst_40 [1] : vector<64x32xf32> to vector<64xf32>
    %78 = vector.shape_cast %77 : vector<64xf32> to vector<64x1xf32>
    %cst_41 = arith.constant 3.200000e+01 : f32
    %79 = vector.broadcast %cst_41 : f32 to vector<64x1xf32>
    %80 = arith.divf %78, %79 : vector<64x1xf32>
    %81 = vector.broadcast %73 : vector<64x1xf32> to vector<64x32xf32>
    %82 = arith.subf %62, %81 : vector<64x32xf32>
    %cst_42 = arith.constant 9.99999996E-13 : f32
    %83 = vector.broadcast %cst_42 : f32 to vector<64x1xf32>
    %84 = arith.addf %80, %83 : vector<64x1xf32>
    %85 = math.rsqrt %84 : vector<64x1xf32>
    %86 = vector.broadcast %85 : vector<64x1xf32> to vector<64x32xf32>
    %87 = arith.mulf %82, %86 : vector<64x32xf32>
    %88 = vector.broadcast %67 : vector<1x32xf32> to vector<64x32xf32>
    %89 = arith.mulf %87, %88 : vector<64x32xf32>
    %90 = vector.broadcast %69 : vector<1x32xf32> to vector<64x32xf32>
    %91 = arith.addf %89, %90 : vector<64x32xf32>
    %92 = arith.truncf %91 : vector<64x32xf32> to vector<64x32xbf16>
    %c0_43 = arith.constant 0 : index
    %c0_44 = arith.constant 0 : index
    %c0_45 = arith.constant 0 : index
    %93 = vector.load %arg14[%c0_43, %c0_44, %c0_45] : memref<2x32x96xbf16, #tpu.memory_space<vmem>>, vector<1x32x96xbf16>
    %94 = vector.shape_cast %93 : vector<1x32x96xbf16> to vector<32x96xbf16>
    %cst_46 = arith.constant dense<0.000000e+00> : vector<64x96xf32>
    %95 = tpu.matmul %92, %94, %cst_46 {dimension_numbers = #tpu.dot_dimension_numbers<[1], [0], [0], [1], [0, 0, 1, 1], [], []>} : vector<64x32xbf16>, vector<32x96xbf16>, vector<64x96xf32> -> vector<64x96xf32>
    %c0_47 = arith.constant 0 : index
    %c0_48 = arith.constant 0 : index
    %c0_49 = arith.constant 0 : index
    %96 = vector.load %arg15[%c0_47, %c0_48, %c0_49] : memref<2x1x96xf32, #tpu.memory_space<vmem>>, vector<1x1x96xf32>
    %97 = vector.shape_cast %96 : vector<1x1x96xf32> to vector<1x96xf32>
    %98 = vector.broadcast %97 : vector<1x96xf32> to vector<64x96xf32>
    %99 = arith.addf %95, %98 : vector<64x96xf32>
    %100 = vector.shape_cast %99 : vector<64x96xf32> to vector<2x32x96xf32>
    %101 = vector.extract_strided_slice %100 {offsets = [0, 0, 0], sizes = [2, 32, 8], strides = [1, 1, 1]} : vector<2x32x96xf32> to vector<2x32x8xf32>
    %102 = vector.extract_strided_slice %100 {offsets = [0, 0, 32], sizes = [2, 32, 8], strides = [1, 1, 1]} : vector<2x32x96xf32> to vector<2x32x8xf32>
    %103 = vector.extract_strided_slice %100 {offsets = [0, 0, 64], sizes = [2, 32, 8], strides = [1, 1, 1]} : vector<2x32x96xf32> to vector<2x32x8xf32>
    "tpu.trace_start"() <{level = 10 : i32, message = "bqd,bkd->bqk"}> : () -> ()
    %cst_50 = arith.constant dense<0.000000e+00> : vector<2x32x32xf32>
    %104 = tpu.matmul %101, %102, %cst_50 {dimension_numbers = #tpu.dot_dimension_numbers<[2], [2], [1], [1], [0, 0, 0, 1, 1, 1], [0], [0]>} : vector<2x32x8xf32>, vector<2x32x8xf32>, vector<2x32x32xf32> -> vector<2x32x32xf32>
    "tpu.trace_stop"() : () -> ()
    %cst_51 = arith.constant 0.353553385 : f32
    %105 = vector.broadcast %cst_51 : f32 to vector<2x32x32xf32>
    %106 = arith.mulf %104, %105 : vector<2x32x32xf32>
    %107 = arith.addf %106, %65 : vector<2x32x32xf32>
    %cst_52 = arith.constant dense<0xFF800000> : vector<2x32xf32>
    %108 = vector.multi_reduction <maximumf>, %107, %cst_52 [2] : vector<2x32x32xf32> to vector<2x32xf32>
    %109 = vector.shape_cast %108 : vector<2x32xf32> to vector<2x32x1xf32>
    %110 = vector.broadcast %109 : vector<2x32x1xf32> to vector<2x32x32xf32>
    %111 = arith.subf %107, %110 : vector<2x32x32xf32>
    %112 = math.exp %111 : vector<2x32x32xf32>
    %cst_53 = arith.constant dense<0.000000e+00> : vector<2x32xf32>
    %113 = vector.multi_reduction <add>, %112, %cst_53 [2] : vector<2x32x32xf32> to vector<2x32xf32>
    %114 = vector.shape_cast %113 : vector<2x32xf32> to vector<2x32x1xf32>
    %115 = vector.broadcast %114 : vector<2x32x1xf32> to vector<2x32x32xf32>
    %116 = arith.divf %112, %115 : vector<2x32x32xf32>
    "tpu.trace_start"() <{level = 10 : i32, message = "bqk,bkd->bqd"}> : () -> ()
    %cst_54 = arith.constant dense<0.000000e+00> : vector<2x32x8xf32>
    %117 = tpu.matmul %116, %103, %cst_54 {dimension_numbers = #tpu.dot_dimension_numbers<[2], [1], [1], [2], [0, 0, 0, 1, 1, 2], [0], [0]>} : vector<2x32x32xf32>, vector<2x32x8xf32>, vector<2x32x8xf32> -> vector<2x32x8xf32>
    "tpu.trace_stop"() : () -> ()
    %118 = vector.extract_strided_slice %100 {offsets = [0, 0, 8], sizes = [2, 32, 8], strides = [1, 1, 1]} : vector<2x32x96xf32> to vector<2x32x8xf32>
    %119 = vector.extract_strided_slice %100 {offsets = [0, 0, 40], sizes = [2, 32, 8], strides = [1, 1, 1]} : vector<2x32x96xf32> to vector<2x32x8xf32>
    %120 = vector.extract_strided_slice %100 {offsets = [0, 0, 72], sizes = [2, 32, 8], strides = [1, 1, 1]} : vector<2x32x96xf32> to vector<2x32x8xf32>
    "tpu.trace_start"() <{level = 10 : i32, message = "bqd,bkd->bqk"}> : () -> ()
    %cst_55 = arith.constant dense<0.000000e+00> : vector<2x32x32xf32>
    %121 = tpu.matmul %118, %119, %cst_55 {dimension_numbers = #tpu.dot_dimension_numbers<[2], [2], [1], [1], [0, 0, 0, 1, 1, 1], [0], [0]>} : vector<2x32x8xf32>, vector<2x32x8xf32>, vector<2x32x32xf32> -> vector<2x32x32xf32>
    "tpu.trace_stop"() : () -> ()
    %cst_56 = arith.constant 0.353553385 : f32
    %122 = vector.broadcast %cst_56 : f32 to vector<2x32x32xf32>
    %123 = arith.mulf %121, %122 : vector<2x32x32xf32>
    %124 = arith.addf %123, %65 : vector<2x32x32xf32>
    %cst_57 = arith.constant dense<0xFF800000> : vector<2x32xf32>
    %125 = vector.multi_reduction <maximumf>, %124, %cst_57 [2] : vector<2x32x32xf32> to vector<2x32xf32>
    %126 = vector.shape_cast %125 : vector<2x32xf32> to vector<2x32x1xf32>
    %127 = vector.broadcast %126 : vector<2x32x1xf32> to vector<2x32x32xf32>
    %128 = arith.subf %124, %127 : vector<2x32x32xf32>
    %129 = math.exp %128 : vector<2x32x32xf32>
    %cst_58 = arith.constant dense<0.000000e+00> : vector<2x32xf32>
    %130 = vector.multi_reduction <add>, %129, %cst_58 [2] : vector<2x32x32xf32> to vector<2x32xf32>
    %131 = vector.shape_cast %130 : vector<2x32xf32> to vector<2x32x1xf32>
    %132 = vector.broadcast %131 : vector<2x32x1xf32> to vector<2x32x32xf32>
    %133 = arith.divf %129, %132 : vector<2x32x32xf32>
    "tpu.trace_start"() <{level = 10 : i32, message = "bqk,bkd->bqd"}> : () -> ()
    %cst_59 = arith.constant dense<0.000000e+00> : vector<2x32x8xf32>
    %134 = tpu.matmul %133, %120, %cst_59 {dimension_numbers = #tpu.dot_dimension_numbers<[2], [1], [1], [2], [0, 0, 0, 1, 1, 2], [0], [0]>} : vector<2x32x32xf32>, vector<2x32x8xf32>, vector<2x32x8xf32> -> vector<2x32x8xf32>
    "tpu.trace_stop"() : () -> ()
    %135 = vector.extract_strided_slice %100 {offsets = [0, 0, 16], sizes = [2, 32, 8], strides = [1, 1, 1]} : vector<2x32x96xf32> to vector<2x32x8xf32>
    %136 = vector.extract_strided_slice %100 {offsets = [0, 0, 48], sizes = [2, 32, 8], strides = [1, 1, 1]} : vector<2x32x96xf32> to vector<2x32x8xf32>
    %137 = vector.extract_strided_slice %100 {offsets = [0, 0, 80], sizes = [2, 32, 8], strides = [1, 1, 1]} : vector<2x32x96xf32> to vector<2x32x8xf32>
    "tpu.trace_start"() <{level = 10 : i32, message = "bqd,bkd->bqk"}> : () -> ()
    %cst_60 = arith.constant dense<0.000000e+00> : vector<2x32x32xf32>
    %138 = tpu.matmul %135, %136, %cst_60 {dimension_numbers = #tpu.dot_dimension_numbers<[2], [2], [1], [1], [0, 0, 0, 1, 1, 1], [0], [0]>} : vector<2x32x8xf32>, vector<2x32x8xf32>, vector<2x32x32xf32> -> vector<2x32x32xf32>
    "tpu.trace_stop"() : () -> ()
    %cst_61 = arith.constant 0.353553385 : f32
    %139 = vector.broadcast %cst_61 : f32 to vector<2x32x32xf32>
    %140 = arith.mulf %138, %139 : vector<2x32x32xf32>
    %141 = arith.addf %140, %65 : vector<2x32x32xf32>
    %cst_62 = arith.constant dense<0xFF800000> : vector<2x32xf32>
    %142 = vector.multi_reduction <maximumf>, %141, %cst_62 [2] : vector<2x32x32xf32> to vector<2x32xf32>
    %143 = vector.shape_cast %142 : vector<2x32xf32> to vector<2x32x1xf32>
    %144 = vector.broadcast %143 : vector<2x32x1xf32> to vector<2x32x32xf32>
    %145 = arith.subf %141, %144 : vector<2x32x32xf32>
    %146 = math.exp %145 : vector<2x32x32xf32>
    %cst_63 = arith.constant dense<0.000000e+00> : vector<2x32xf32>
    %147 = vector.multi_reduction <add>, %146, %cst_63 [2] : vector<2x32x32xf32> to vector<2x32xf32>
    %148 = vector.shape_cast %147 : vector<2x32xf32> to vector<2x32x1xf32>
    %149 = vector.broadcast %148 : vector<2x32x1xf32> to vector<2x32x32xf32>
    %150 = arith.divf %146, %149 : vector<2x32x32xf32>
    "tpu.trace_start"() <{level = 10 : i32, message = "bqk,bkd->bqd"}> : () -> ()
    %cst_64 = arith.constant dense<0.000000e+00> : vector<2x32x8xf32>
    %151 = tpu.matmul %150, %137, %cst_64 {dimension_numbers = #tpu.dot_dimension_numbers<[2], [1], [1], [2], [0, 0, 0, 1, 1, 2], [0], [0]>} : vector<2x32x32xf32>, vector<2x32x8xf32>, vector<2x32x8xf32> -> vector<2x32x8xf32>
    "tpu.trace_stop"() : () -> ()
    %152 = vector.extract_strided_slice %100 {offsets = [0, 0, 24], sizes = [2, 32, 8], strides = [1, 1, 1]} : vector<2x32x96xf32> to vector<2x32x8xf32>
    %153 = vector.extract_strided_slice %100 {offsets = [0, 0, 56], sizes = [2, 32, 8], strides = [1, 1, 1]} : vector<2x32x96xf32> to vector<2x32x8xf32>
    %154 = vector.extract_strided_slice %100 {offsets = [0, 0, 88], sizes = [2, 32, 8], strides = [1, 1, 1]} : vector<2x32x96xf32> to vector<2x32x8xf32>
    "tpu.trace_start"() <{level = 10 : i32, message = "bqd,bkd->bqk"}> : () -> ()
    %cst_65 = arith.constant dense<0.000000e+00> : vector<2x32x32xf32>
    %155 = tpu.matmul %152, %153, %cst_65 {dimension_numbers = #tpu.dot_dimension_numbers<[2], [2], [1], [1], [0, 0, 0, 1, 1, 1], [0], [0]>} : vector<2x32x8xf32>, vector<2x32x8xf32>, vector<2x32x32xf32> -> vector<2x32x32xf32>
    "tpu.trace_stop"() : () -> ()
    %cst_66 = arith.constant 0.353553385 : f32
    %156 = vector.broadcast %cst_66 : f32 to vector<2x32x32xf32>
    %157 = arith.mulf %155, %156 : vector<2x32x32xf32>
    %158 = arith.addf %157, %65 : vector<2x32x32xf32>
    %cst_67 = arith.constant dense<0xFF800000> : vector<2x32xf32>
    %159 = vector.multi_reduction <maximumf>, %158, %cst_67 [2] : vector<2x32x32xf32> to vector<2x32xf32>
    %160 = vector.shape_cast %159 : vector<2x32xf32> to vector<2x32x1xf32>
    %161 = vector.broadcast %160 : vector<2x32x1xf32> to vector<2x32x32xf32>
    %162 = arith.subf %158, %161 : vector<2x32x32xf32>
    %163 = math.exp %162 : vector<2x32x32xf32>
    %cst_68 = arith.constant dense<0.000000e+00> : vector<2x32xf32>
    %164 = vector.multi_reduction <add>, %163, %cst_68 [2] : vector<2x32x32xf32> to vector<2x32xf32>
    %165 = vector.shape_cast %164 : vector<2x32xf32> to vector<2x32x1xf32>
    %166 = vector.broadcast %165 : vector<2x32x1xf32> to vector<2x32x32xf32>
    %167 = arith.divf %163, %166 : vector<2x32x32xf32>
    "tpu.trace_start"() <{level = 10 : i32, message = "bqk,bkd->bqd"}> : () -> ()
    %cst_69 = arith.constant dense<0.000000e+00> : vector<2x32x8xf32>
    %168 = tpu.matmul %167, %154, %cst_69 {dimension_numbers = #tpu.dot_dimension_numbers<[2], [1], [1], [2], [0, 0, 0, 1, 1, 2], [0], [0]>} : vector<2x32x32xf32>, vector<2x32x8xf32>, vector<2x32x8xf32> -> vector<2x32x8xf32>
    "tpu.trace_stop"() : () -> ()
    %169 = tpu.concatenate %117, %134, %151, %168 in 2 : vector<2x32x8xf32>, vector<2x32x8xf32>, vector<2x32x8xf32>, vector<2x32x8xf32> -> vector<2x32x32xf32>
    %170 = vector.shape_cast %169 : vector<2x32x32xf32> to vector<64x32xf32>
    %171 = arith.truncf %170 : vector<64x32xf32> to vector<64x32xbf16>
    %c0_70 = arith.constant 0 : index
    %c0_71 = arith.constant 0 : index
    %c0_72 = arith.constant 0 : index
    %172 = vector.load %arg16[%c0_70, %c0_71, %c0_72] : memref<2x32x32xbf16, #tpu.memory_space<vmem>>, vector<1x32x32xbf16>
    %173 = vector.shape_cast %172 : vector<1x32x32xbf16> to vector<32x32xbf16>
    %cst_73 = arith.constant dense<0.000000e+00> : vector<64x32xf32>
    %174 = tpu.matmul %171, %173, %cst_73 {dimension_numbers = #tpu.dot_dimension_numbers<[1], [0], [0], [1], [0, 0, 1, 1], [], []>} : vector<64x32xbf16>, vector<32x32xbf16>, vector<64x32xf32> -> vector<64x32xf32>
    %c0_74 = arith.constant 0 : index
    %c0_75 = arith.constant 0 : index
    %c0_76 = arith.constant 0 : index
    %175 = vector.load %arg17[%c0_74, %c0_75, %c0_76] : memref<2x1x32xf32, #tpu.memory_space<vmem>>, vector<1x1x32xf32>
    %176 = vector.shape_cast %175 : vector<1x1x32xf32> to vector<1x32xf32>
    %177 = vector.broadcast %176 : vector<1x32xf32> to vector<64x32xf32>
    %178 = arith.addf %174, %177 : vector<64x32xf32>
    %179 = arith.addf %62, %178 : vector<64x32xf32>
    %c0_77 = arith.constant 0 : index
    %c0_78 = arith.constant 0 : index
    %c0_79 = arith.constant 0 : index
    %180 = vector.load %arg18[%c0_77, %c0_78, %c0_79] : memref<2x1x32xf32, #tpu.memory_space<vmem>>, vector<1x1x32xf32>
    %181 = vector.shape_cast %180 : vector<1x1x32xf32> to vector<1x32xf32>
    %c0_80 = arith.constant 0 : index
    %c0_81 = arith.constant 0 : index
    %c0_82 = arith.constant 0 : index
    %182 = vector.load %arg19[%c0_80, %c0_81, %c0_82] : memref<2x1x32xf32, #tpu.memory_space<vmem>>, vector<1x1x32xf32>
    %183 = vector.shape_cast %182 : vector<1x1x32xf32> to vector<1x32xf32>
    %cst_83 = arith.constant dense<0.000000e+00> : vector<64xf32>
    %184 = vector.multi_reduction <add>, %179, %cst_83 [1] : vector<64x32xf32> to vector<64xf32>
    %185 = vector.shape_cast %184 : vector<64xf32> to vector<64x1xf32>
    %cst_84 = arith.constant 3.200000e+01 : f32
    %186 = vector.broadcast %cst_84 : f32 to vector<64x1xf32>
    %187 = arith.divf %185, %186 : vector<64x1xf32>
    %188 = vector.broadcast %187 : vector<64x1xf32> to vector<64x32xf32>
    %189 = arith.subf %179, %188 : vector<64x32xf32>
    %190 = arith.mulf %189, %189 : vector<64x32xf32>
    %cst_85 = arith.constant dense<0.000000e+00> : vector<64xf32>
    %191 = vector.multi_reduction <add>, %190, %cst_85 [1] : vector<64x32xf32> to vector<64xf32>
    %192 = vector.shape_cast %191 : vector<64xf32> to vector<64x1xf32>
    %cst_86 = arith.constant 3.200000e+01 : f32
    %193 = vector.broadcast %cst_86 : f32 to vector<64x1xf32>
    %194 = arith.divf %192, %193 : vector<64x1xf32>
    %195 = vector.broadcast %187 : vector<64x1xf32> to vector<64x32xf32>
    %196 = arith.subf %179, %195 : vector<64x32xf32>
    %cst_87 = arith.constant 9.99999996E-13 : f32
    %197 = vector.broadcast %cst_87 : f32 to vector<64x1xf32>
    %198 = arith.addf %194, %197 : vector<64x1xf32>
    %199 = math.rsqrt %198 : vector<64x1xf32>
    %200 = vector.broadcast %199 : vector<64x1xf32> to vector<64x32xf32>
    %201 = arith.mulf %196, %200 : vector<64x32xf32>
    %202 = vector.broadcast %181 : vector<1x32xf32> to vector<64x32xf32>
    %203 = arith.mulf %201, %202 : vector<64x32xf32>
    %204 = vector.broadcast %183 : vector<1x32xf32> to vector<64x32xf32>
    %205 = arith.addf %203, %204 : vector<64x32xf32>
    %206 = arith.truncf %205 : vector<64x32xf32> to vector<64x32xbf16>
    %c0_88 = arith.constant 0 : index
    %c0_89 = arith.constant 0 : index
    %c0_90 = arith.constant 0 : index
    %207 = vector.load %arg20[%c0_88, %c0_89, %c0_90] : memref<2x32x64xbf16, #tpu.memory_space<vmem>>, vector<1x32x64xbf16>
    %208 = vector.shape_cast %207 : vector<1x32x64xbf16> to vector<32x64xbf16>
    %cst_91 = arith.constant dense<0.000000e+00> : vector<64x64xf32>
    %209 = tpu.matmul %206, %208, %cst_91 {dimension_numbers = #tpu.dot_dimension_numbers<[1], [0], [0], [1], [0, 0, 1, 1], [], []>} : vector<64x32xbf16>, vector<32x64xbf16>, vector<64x64xf32> -> vector<64x64xf32>
    %c0_92 = arith.constant 0 : index
    %c0_93 = arith.constant 0 : index
    %c0_94 = arith.constant 0 : index
    %210 = vector.load %arg21[%c0_92, %c0_93, %c0_94] : memref<2x1x64xf32, #tpu.memory_space<vmem>>, vector<1x1x64xf32>
    %211 = vector.shape_cast %210 : vector<1x1x64xf32> to vector<1x64xf32>
    %212 = vector.broadcast %211 : vector<1x64xf32> to vector<64x64xf32>
    %213 = arith.addf %209, %212 : vector<64x64xf32>
    %cst_95 = arith.constant 5.000000e-01 : f32
    %214 = vector.broadcast %cst_95 : f32 to vector<64x64xf32>
    %215 = arith.mulf %214, %213 : vector<64x64xf32>
    %cst_96 = arith.constant 0.707106769 : f32
    %216 = vector.broadcast %cst_96 : f32 to vector<64x64xf32>
    %217 = arith.mulf %213, %216 : vector<64x64xf32>
    %cst_97 = arith.constant 0.000000e+00 : f32
    %218 = vector.broadcast %cst_97 : f32 to vector<64x64xf32>
    %219 = arith.cmpf oge, %217, %218 : vector<64x64xf32>
    %cst_98 = arith.constant 1.000000e+00 : f32
    %cst_99 = arith.constant -1.000000e+00 : f32
    %220 = vector.broadcast %cst_98 : f32 to vector<64x64xf32>
    %221 = vector.broadcast %cst_99 : f32 to vector<64x64xf32>
    %222 = arith.select %219, %220, %221 : vector<64x64xi1>, vector<64x64xf32>
    %223 = math.absf %217 : vector<64x64xf32>
    %cst_100 = arith.constant 0.327591091 : f32
    %224 = vector.broadcast %cst_100 : f32 to vector<64x64xf32>
    %225 = arith.mulf %224, %223 : vector<64x64xf32>
    %cst_101 = arith.constant 1.000000e+00 : f32
    %226 = vector.broadcast %cst_101 : f32 to vector<64x64xf32>
    %227 = arith.addf %226, %225 : vector<64x64xf32>
    %cst_102 = arith.constant 1.000000e+00 : f32
    %228 = vector.broadcast %cst_102 : f32 to vector<64x64xf32>
    %229 = arith.divf %228, %227 : vector<64x64xf32>
    %cst_103 = arith.constant 1.06140542 : f32
    %230 = vector.broadcast %cst_103 : f32 to vector<64x64xf32>
    %231 = arith.mulf %230, %229 : vector<64x64xf32>
    %cst_104 = arith.constant -1.45315206 : f32
    %232 = vector.broadcast %cst_104 : f32 to vector<64x64xf32>
    %233 = arith.addf %231, %232 : vector<64x64xf32>
    %234 = arith.mulf %233, %229 : vector<64x64xf32>
    %cst_105 = arith.constant 1.42141378 : f32
    %235 = vector.broadcast %cst_105 : f32 to vector<64x64xf32>
    %236 = arith.addf %234, %235 : vector<64x64xf32>
    %237 = arith.mulf %236, %229 : vector<64x64xf32>
    %cst_106 = arith.constant -0.284496725 : f32
    %238 = vector.broadcast %cst_106 : f32 to vector<64x64xf32>
    %239 = arith.addf %237, %238 : vector<64x64xf32>
    %240 = arith.mulf %239, %229 : vector<64x64xf32>
    %cst_107 = arith.constant 0.254829586 : f32
    %241 = vector.broadcast %cst_107 : f32 to vector<64x64xf32>
    %242 = arith.addf %240, %241 : vector<64x64xf32>
    %243 = arith.mulf %242, %229 : vector<64x64xf32>
    %cst_108 = arith.constant 0.000000e+00 : f32
    %244 = vector.broadcast %cst_108 : f32 to vector<64x64xf32>
    %245 = arith.subf %244, %223 : vector<64x64xf32>
    %246 = arith.mulf %245, %223 : vector<64x64xf32>
    %247 = math.exp %246 : vector<64x64xf32>
    %248 = arith.mulf %243, %247 : vector<64x64xf32>
    %cst_109 = arith.constant 1.000000e+00 : f32
    %249 = vector.broadcast %cst_109 : f32 to vector<64x64xf32>
    %250 = arith.subf %249, %248 : vector<64x64xf32>
    %251 = arith.mulf %222, %250 : vector<64x64xf32>
    %cst_110 = arith.constant 1.000000e+00 : f32
    %252 = vector.broadcast %cst_110 : f32 to vector<64x64xf32>
    %253 = arith.addf %252, %251 : vector<64x64xf32>
    %254 = arith.mulf %215, %253 : vector<64x64xf32>
    %255 = arith.truncf %254 : vector<64x64xf32> to vector<64x64xbf16>
    %c0_111 = arith.constant 0 : index
    %c0_112 = arith.constant 0 : index
    %c0_113 = arith.constant 0 : index
    %256 = vector.load %arg22[%c0_111, %c0_112, %c0_113] : memref<2x64x32xbf16, #tpu.memory_space<vmem>>, vector<1x64x32xbf16>
    %257 = vector.shape_cast %256 : vector<1x64x32xbf16> to vector<64x32xbf16>
    %cst_114 = arith.constant dense<0.000000e+00> : vector<64x32xf32>
    %258 = tpu.matmul %255, %257, %cst_114 {dimension_numbers = #tpu.dot_dimension_numbers<[1], [0], [0], [1], [0, 0, 1, 1], [], []>} : vector<64x64xbf16>, vector<64x32xbf16>, vector<64x32xf32> -> vector<64x32xf32>
    %259 = arith.addf %179, %258 : vector<64x32xf32>
    %c0_115 = arith.constant 0 : index
    %c0_116 = arith.constant 0 : index
    %c0_117 = arith.constant 0 : index
    %260 = vector.load %arg23[%c0_115, %c0_116, %c0_117] : memref<2x1x32xf32, #tpu.memory_space<vmem>>, vector<1x1x32xf32>
    %261 = vector.shape_cast %260 : vector<1x1x32xf32> to vector<1x32xf32>
    %262 = vector.broadcast %261 : vector<1x32xf32> to vector<64x32xf32>
    %263 = arith.addf %259, %262 : vector<64x32xf32>
    %c1 = arith.constant 1 : index
    %c0_118 = arith.constant 0 : index
    %c0_119 = arith.constant 0 : index
    %264 = vector.load %arg12[%c1, %c0_118, %c0_119] : memref<2x1x32xf32, #tpu.memory_space<vmem>>, vector<1x1x32xf32>
    %265 = vector.shape_cast %264 : vector<1x1x32xf32> to vector<1x32xf32>
    %c1_120 = arith.constant 1 : index
    %c0_121 = arith.constant 0 : index
    %c0_122 = arith.constant 0 : index
    %266 = vector.load %arg13[%c1_120, %c0_121, %c0_122] : memref<2x1x32xf32, #tpu.memory_space<vmem>>, vector<1x1x32xf32>
    %267 = vector.shape_cast %266 : vector<1x1x32xf32> to vector<1x32xf32>
    %cst_123 = arith.constant dense<0.000000e+00> : vector<64xf32>
    %268 = vector.multi_reduction <add>, %263, %cst_123 [1] : vector<64x32xf32> to vector<64xf32>
    %269 = vector.shape_cast %268 : vector<64xf32> to vector<64x1xf32>
    %cst_124 = arith.constant 3.200000e+01 : f32
    %270 = vector.broadcast %cst_124 : f32 to vector<64x1xf32>
    %271 = arith.divf %269, %270 : vector<64x1xf32>
    %272 = vector.broadcast %271 : vector<64x1xf32> to vector<64x32xf32>
    %273 = arith.subf %263, %272 : vector<64x32xf32>
    %274 = arith.mulf %273, %273 : vector<64x32xf32>
    %cst_125 = arith.constant dense<0.000000e+00> : vector<64xf32>
    %275 = vector.multi_reduction <add>, %274, %cst_125 [1] : vector<64x32xf32> to vector<64xf32>
    %276 = vector.shape_cast %275 : vector<64xf32> to vector<64x1xf32>
    %cst_126 = arith.constant 3.200000e+01 : f32
    %277 = vector.broadcast %cst_126 : f32 to vector<64x1xf32>
    %278 = arith.divf %276, %277 : vector<64x1xf32>
    %279 = vector.broadcast %271 : vector<64x1xf32> to vector<64x32xf32>
    %280 = arith.subf %263, %279 : vector<64x32xf32>
    %cst_127 = arith.constant 9.99999996E-13 : f32
    %281 = vector.broadcast %cst_127 : f32 to vector<64x1xf32>
    %282 = arith.addf %278, %281 : vector<64x1xf32>
    %283 = math.rsqrt %282 : vector<64x1xf32>
    %284 = vector.broadcast %283 : vector<64x1xf32> to vector<64x32xf32>
    %285 = arith.mulf %280, %284 : vector<64x32xf32>
    %286 = vector.broadcast %265 : vector<1x32xf32> to vector<64x32xf32>
    %287 = arith.mulf %285, %286 : vector<64x32xf32>
    %288 = vector.broadcast %267 : vector<1x32xf32> to vector<64x32xf32>
    %289 = arith.addf %287, %288 : vector<64x32xf32>
    %290 = arith.truncf %289 : vector<64x32xf32> to vector<64x32xbf16>
    %c1_128 = arith.constant 1 : index
    %c0_129 = arith.constant 0 : index
    %c0_130 = arith.constant 0 : index
    %291 = vector.load %arg14[%c1_128, %c0_129, %c0_130] : memref<2x32x96xbf16, #tpu.memory_space<vmem>>, vector<1x32x96xbf16>
    %292 = vector.shape_cast %291 : vector<1x32x96xbf16> to vector<32x96xbf16>
    %cst_131 = arith.constant dense<0.000000e+00> : vector<64x96xf32>
    %293 = tpu.matmul %290, %292, %cst_131 {dimension_numbers = #tpu.dot_dimension_numbers<[1], [0], [0], [1], [0, 0, 1, 1], [], []>} : vector<64x32xbf16>, vector<32x96xbf16>, vector<64x96xf32> -> vector<64x96xf32>
    %c1_132 = arith.constant 1 : index
    %c0_133 = arith.constant 0 : index
    %c0_134 = arith.constant 0 : index
    %294 = vector.load %arg15[%c1_132, %c0_133, %c0_134] : memref<2x1x96xf32, #tpu.memory_space<vmem>>, vector<1x1x96xf32>
    %295 = vector.shape_cast %294 : vector<1x1x96xf32> to vector<1x96xf32>
    %296 = vector.broadcast %295 : vector<1x96xf32> to vector<64x96xf32>
    %297 = arith.addf %293, %296 : vector<64x96xf32>
    %298 = vector.shape_cast %297 : vector<64x96xf32> to vector<2x32x96xf32>
    %299 = vector.extract_strided_slice %298 {offsets = [0, 0, 0], sizes = [2, 32, 8], strides = [1, 1, 1]} : vector<2x32x96xf32> to vector<2x32x8xf32>
    %300 = vector.extract_strided_slice %298 {offsets = [0, 0, 32], sizes = [2, 32, 8], strides = [1, 1, 1]} : vector<2x32x96xf32> to vector<2x32x8xf32>
    %301 = vector.extract_strided_slice %298 {offsets = [0, 0, 64], sizes = [2, 32, 8], strides = [1, 1, 1]} : vector<2x32x96xf32> to vector<2x32x8xf32>
    "tpu.trace_start"() <{level = 10 : i32, message = "bqd,bkd->bqk"}> : () -> ()
    %cst_135 = arith.constant dense<0.000000e+00> : vector<2x32x32xf32>
    %302 = tpu.matmul %299, %300, %cst_135 {dimension_numbers = #tpu.dot_dimension_numbers<[2], [2], [1], [1], [0, 0, 0, 1, 1, 1], [0], [0]>} : vector<2x32x8xf32>, vector<2x32x8xf32>, vector<2x32x32xf32> -> vector<2x32x32xf32>
    "tpu.trace_stop"() : () -> ()
    %cst_136 = arith.constant 0.353553385 : f32
    %303 = vector.broadcast %cst_136 : f32 to vector<2x32x32xf32>
    %304 = arith.mulf %302, %303 : vector<2x32x32xf32>
    %305 = arith.addf %304, %65 : vector<2x32x32xf32>
    %cst_137 = arith.constant dense<0xFF800000> : vector<2x32xf32>
    %306 = vector.multi_reduction <maximumf>, %305, %cst_137 [2] : vector<2x32x32xf32> to vector<2x32xf32>
    %307 = vector.shape_cast %306 : vector<2x32xf32> to vector<2x32x1xf32>
    %308 = vector.broadcast %307 : vector<2x32x1xf32> to vector<2x32x32xf32>
    %309 = arith.subf %305, %308 : vector<2x32x32xf32>
    %310 = math.exp %309 : vector<2x32x32xf32>
    %cst_138 = arith.constant dense<0.000000e+00> : vector<2x32xf32>
    %311 = vector.multi_reduction <add>, %310, %cst_138 [2] : vector<2x32x32xf32> to vector<2x32xf32>
    %312 = vector.shape_cast %311 : vector<2x32xf32> to vector<2x32x1xf32>
    %313 = vector.broadcast %312 : vector<2x32x1xf32> to vector<2x32x32xf32>
    %314 = arith.divf %310, %313 : vector<2x32x32xf32>
    "tpu.trace_start"() <{level = 10 : i32, message = "bqk,bkd->bqd"}> : () -> ()
    %cst_139 = arith.constant dense<0.000000e+00> : vector<2x32x8xf32>
    %315 = tpu.matmul %314, %301, %cst_139 {dimension_numbers = #tpu.dot_dimension_numbers<[2], [1], [1], [2], [0, 0, 0, 1, 1, 2], [0], [0]>} : vector<2x32x32xf32>, vector<2x32x8xf32>, vector<2x32x8xf32> -> vector<2x32x8xf32>
    "tpu.trace_stop"() : () -> ()
    %316 = vector.extract_strided_slice %298 {offsets = [0, 0, 8], sizes = [2, 32, 8], strides = [1, 1, 1]} : vector<2x32x96xf32> to vector<2x32x8xf32>
    %317 = vector.extract_strided_slice %298 {offsets = [0, 0, 40], sizes = [2, 32, 8], strides = [1, 1, 1]} : vector<2x32x96xf32> to vector<2x32x8xf32>
    %318 = vector.extract_strided_slice %298 {offsets = [0, 0, 72], sizes = [2, 32, 8], strides = [1, 1, 1]} : vector<2x32x96xf32> to vector<2x32x8xf32>
    "tpu.trace_start"() <{level = 10 : i32, message = "bqd,bkd->bqk"}> : () -> ()
    %cst_140 = arith.constant dense<0.000000e+00> : vector<2x32x32xf32>
    %319 = tpu.matmul %316, %317, %cst_140 {dimension_numbers = #tpu.dot_dimension_numbers<[2], [2], [1], [1], [0, 0, 0, 1, 1, 1], [0], [0]>} : vector<2x32x8xf32>, vector<2x32x8xf32>, vector<2x32x32xf32> -> vector<2x32x32xf32>
    "tpu.trace_stop"() : () -> ()
    %cst_141 = arith.constant 0.353553385 : f32
    %320 = vector.broadcast %cst_141 : f32 to vector<2x32x32xf32>
    %321 = arith.mulf %319, %320 : vector<2x32x32xf32>
    %322 = arith.addf %321, %65 : vector<2x32x32xf32>
    %cst_142 = arith.constant dense<0xFF800000> : vector<2x32xf32>
    %323 = vector.multi_reduction <maximumf>, %322, %cst_142 [2] : vector<2x32x32xf32> to vector<2x32xf32>
    %324 = vector.shape_cast %323 : vector<2x32xf32> to vector<2x32x1xf32>
    %325 = vector.broadcast %324 : vector<2x32x1xf32> to vector<2x32x32xf32>
    %326 = arith.subf %322, %325 : vector<2x32x32xf32>
    %327 = math.exp %326 : vector<2x32x32xf32>
    %cst_143 = arith.constant dense<0.000000e+00> : vector<2x32xf32>
    %328 = vector.multi_reduction <add>, %327, %cst_143 [2] : vector<2x32x32xf32> to vector<2x32xf32>
    %329 = vector.shape_cast %328 : vector<2x32xf32> to vector<2x32x1xf32>
    %330 = vector.broadcast %329 : vector<2x32x1xf32> to vector<2x32x32xf32>
    %331 = arith.divf %327, %330 : vector<2x32x32xf32>
    "tpu.trace_start"() <{level = 10 : i32, message = "bqk,bkd->bqd"}> : () -> ()
    %cst_144 = arith.constant dense<0.000000e+00> : vector<2x32x8xf32>
    %332 = tpu.matmul %331, %318, %cst_144 {dimension_numbers = #tpu.dot_dimension_numbers<[2], [1], [1], [2], [0, 0, 0, 1, 1, 2], [0], [0]>} : vector<2x32x32xf32>, vector<2x32x8xf32>, vector<2x32x8xf32> -> vector<2x32x8xf32>
    "tpu.trace_stop"() : () -> ()
    %333 = vector.extract_strided_slice %298 {offsets = [0, 0, 16], sizes = [2, 32, 8], strides = [1, 1, 1]} : vector<2x32x96xf32> to vector<2x32x8xf32>
    %334 = vector.extract_strided_slice %298 {offsets = [0, 0, 48], sizes = [2, 32, 8], strides = [1, 1, 1]} : vector<2x32x96xf32> to vector<2x32x8xf32>
    %335 = vector.extract_strided_slice %298 {offsets = [0, 0, 80], sizes = [2, 32, 8], strides = [1, 1, 1]} : vector<2x32x96xf32> to vector<2x32x8xf32>
    "tpu.trace_start"() <{level = 10 : i32, message = "bqd,bkd->bqk"}> : () -> ()
    %cst_145 = arith.constant dense<0.000000e+00> : vector<2x32x32xf32>
    %336 = tpu.matmul %333, %334, %cst_145 {dimension_numbers = #tpu.dot_dimension_numbers<[2], [2], [1], [1], [0, 0, 0, 1, 1, 1], [0], [0]>} : vector<2x32x8xf32>, vector<2x32x8xf32>, vector<2x32x32xf32> -> vector<2x32x32xf32>
    "tpu.trace_stop"() : () -> ()
    %cst_146 = arith.constant 0.353553385 : f32
    %337 = vector.broadcast %cst_146 : f32 to vector<2x32x32xf32>
    %338 = arith.mulf %336, %337 : vector<2x32x32xf32>
    %339 = arith.addf %338, %65 : vector<2x32x32xf32>
    %cst_147 = arith.constant dense<0xFF800000> : vector<2x32xf32>
    %340 = vector.multi_reduction <maximumf>, %339, %cst_147 [2] : vector<2x32x32xf32> to vector<2x32xf32>
    %341 = vector.shape_cast %340 : vector<2x32xf32> to vector<2x32x1xf32>
    %342 = vector.broadcast %341 : vector<2x32x1xf32> to vector<2x32x32xf32>
    %343 = arith.subf %339, %342 : vector<2x32x32xf32>
    %344 = math.exp %343 : vector<2x32x32xf32>
    %cst_148 = arith.constant dense<0.000000e+00> : vector<2x32xf32>
    %345 = vector.multi_reduction <add>, %344, %cst_148 [2] : vector<2x32x32xf32> to vector<2x32xf32>
    %346 = vector.shape_cast %345 : vector<2x32xf32> to vector<2x32x1xf32>
    %347 = vector.broadcast %346 : vector<2x32x1xf32> to vector<2x32x32xf32>
    %348 = arith.divf %344, %347 : vector<2x32x32xf32>
    "tpu.trace_start"() <{level = 10 : i32, message = "bqk,bkd->bqd"}> : () -> ()
    %cst_149 = arith.constant dense<0.000000e+00> : vector<2x32x8xf32>
    %349 = tpu.matmul %348, %335, %cst_149 {dimension_numbers = #tpu.dot_dimension_numbers<[2], [1], [1], [2], [0, 0, 0, 1, 1, 2], [0], [0]>} : vector<2x32x32xf32>, vector<2x32x8xf32>, vector<2x32x8xf32> -> vector<2x32x8xf32>
    "tpu.trace_stop"() : () -> ()
    %350 = vector.extract_strided_slice %298 {offsets = [0, 0, 24], sizes = [2, 32, 8], strides = [1, 1, 1]} : vector<2x32x96xf32> to vector<2x32x8xf32>
    %351 = vector.extract_strided_slice %298 {offsets = [0, 0, 56], sizes = [2, 32, 8], strides = [1, 1, 1]} : vector<2x32x96xf32> to vector<2x32x8xf32>
    %352 = vector.extract_strided_slice %298 {offsets = [0, 0, 88], sizes = [2, 32, 8], strides = [1, 1, 1]} : vector<2x32x96xf32> to vector<2x32x8xf32>
    "tpu.trace_start"() <{level = 10 : i32, message = "bqd,bkd->bqk"}> : () -> ()
    %cst_150 = arith.constant dense<0.000000e+00> : vector<2x32x32xf32>
    %353 = tpu.matmul %350, %351, %cst_150 {dimension_numbers = #tpu.dot_dimension_numbers<[2], [2], [1], [1], [0, 0, 0, 1, 1, 1], [0], [0]>} : vector<2x32x8xf32>, vector<2x32x8xf32>, vector<2x32x32xf32> -> vector<2x32x32xf32>
    "tpu.trace_stop"() : () -> ()
    %cst_151 = arith.constant 0.353553385 : f32
    %354 = vector.broadcast %cst_151 : f32 to vector<2x32x32xf32>
    %355 = arith.mulf %353, %354 : vector<2x32x32xf32>
    %356 = arith.addf %355, %65 : vector<2x32x32xf32>
    %cst_152 = arith.constant dense<0xFF800000> : vector<2x32xf32>
    %357 = vector.multi_reduction <maximumf>, %356, %cst_152 [2] : vector<2x32x32xf32> to vector<2x32xf32>
    %358 = vector.shape_cast %357 : vector<2x32xf32> to vector<2x32x1xf32>
    %359 = vector.broadcast %358 : vector<2x32x1xf32> to vector<2x32x32xf32>
    %360 = arith.subf %356, %359 : vector<2x32x32xf32>
    %361 = math.exp %360 : vector<2x32x32xf32>
    %cst_153 = arith.constant dense<0.000000e+00> : vector<2x32xf32>
    %362 = vector.multi_reduction <add>, %361, %cst_153 [2] : vector<2x32x32xf32> to vector<2x32xf32>
    %363 = vector.shape_cast %362 : vector<2x32xf32> to vector<2x32x1xf32>
    %364 = vector.broadcast %363 : vector<2x32x1xf32> to vector<2x32x32xf32>
    %365 = arith.divf %361, %364 : vector<2x32x32xf32>
    "tpu.trace_start"() <{level = 10 : i32, message = "bqk,bkd->bqd"}> : () -> ()
    %cst_154 = arith.constant dense<0.000000e+00> : vector<2x32x8xf32>
    %366 = tpu.matmul %365, %352, %cst_154 {dimension_numbers = #tpu.dot_dimension_numbers<[2], [1], [1], [2], [0, 0, 0, 1, 1, 2], [0], [0]>} : vector<2x32x32xf32>, vector<2x32x8xf32>, vector<2x32x8xf32> -> vector<2x32x8xf32>
    "tpu.trace_stop"() : () -> ()
    %367 = tpu.concatenate %315, %332, %349, %366 in 2 : vector<2x32x8xf32>, vector<2x32x8xf32>, vector<2x32x8xf32>, vector<2x32x8xf32> -> vector<2x32x32xf32>
    %368 = vector.shape_cast %367 : vector<2x32x32xf32> to vector<64x32xf32>
    %369 = arith.truncf %368 : vector<64x32xf32> to vector<64x32xbf16>
    %c1_155 = arith.constant 1 : index
    %c0_156 = arith.constant 0 : index
    %c0_157 = arith.constant 0 : index
    %370 = vector.load %arg16[%c1_155, %c0_156, %c0_157] : memref<2x32x32xbf16, #tpu.memory_space<vmem>>, vector<1x32x32xbf16>
    %371 = vector.shape_cast %370 : vector<1x32x32xbf16> to vector<32x32xbf16>
    %cst_158 = arith.constant dense<0.000000e+00> : vector<64x32xf32>
    %372 = tpu.matmul %369, %371, %cst_158 {dimension_numbers = #tpu.dot_dimension_numbers<[1], [0], [0], [1], [0, 0, 1, 1], [], []>} : vector<64x32xbf16>, vector<32x32xbf16>, vector<64x32xf32> -> vector<64x32xf32>
    %c1_159 = arith.constant 1 : index
    %c0_160 = arith.constant 0 : index
    %c0_161 = arith.constant 0 : index
    %373 = vector.load %arg17[%c1_159, %c0_160, %c0_161] : memref<2x1x32xf32, #tpu.memory_space<vmem>>, vector<1x1x32xf32>
    %374 = vector.shape_cast %373 : vector<1x1x32xf32> to vector<1x32xf32>
    %375 = vector.broadcast %374 : vector<1x32xf32> to vector<64x32xf32>
    %376 = arith.addf %372, %375 : vector<64x32xf32>
    %377 = arith.addf %263, %376 : vector<64x32xf32>
    %c1_162 = arith.constant 1 : index
    %c0_163 = arith.constant 0 : index
    %c0_164 = arith.constant 0 : index
    %378 = vector.load %arg18[%c1_162, %c0_163, %c0_164] : memref<2x1x32xf32, #tpu.memory_space<vmem>>, vector<1x1x32xf32>
    %379 = vector.shape_cast %378 : vector<1x1x32xf32> to vector<1x32xf32>
    %c1_165 = arith.constant 1 : index
    %c0_166 = arith.constant 0 : index
    %c0_167 = arith.constant 0 : index
    %380 = vector.load %arg19[%c1_165, %c0_166, %c0_167] : memref<2x1x32xf32, #tpu.memory_space<vmem>>, vector<1x1x32xf32>
    %381 = vector.shape_cast %380 : vector<1x1x32xf32> to vector<1x32xf32>
    %cst_168 = arith.constant dense<0.000000e+00> : vector<64xf32>
    %382 = vector.multi_reduction <add>, %377, %cst_168 [1] : vector<64x32xf32> to vector<64xf32>
    %383 = vector.shape_cast %382 : vector<64xf32> to vector<64x1xf32>
    %cst_169 = arith.constant 3.200000e+01 : f32
    %384 = vector.broadcast %cst_169 : f32 to vector<64x1xf32>
    %385 = arith.divf %383, %384 : vector<64x1xf32>
    %386 = vector.broadcast %385 : vector<64x1xf32> to vector<64x32xf32>
    %387 = arith.subf %377, %386 : vector<64x32xf32>
    %388 = arith.mulf %387, %387 : vector<64x32xf32>
    %cst_170 = arith.constant dense<0.000000e+00> : vector<64xf32>
    %389 = vector.multi_reduction <add>, %388, %cst_170 [1] : vector<64x32xf32> to vector<64xf32>
    %390 = vector.shape_cast %389 : vector<64xf32> to vector<64x1xf32>
    %cst_171 = arith.constant 3.200000e+01 : f32
    %391 = vector.broadcast %cst_171 : f32 to vector<64x1xf32>
    %392 = arith.divf %390, %391 : vector<64x1xf32>
    %393 = vector.broadcast %385 : vector<64x1xf32> to vector<64x32xf32>
    %394 = arith.subf %377, %393 : vector<64x32xf32>
    %cst_172 = arith.constant 9.99999996E-13 : f32
    %395 = vector.broadcast %cst_172 : f32 to vector<64x1xf32>
    %396 = arith.addf %392, %395 : vector<64x1xf32>
    %397 = math.rsqrt %396 : vector<64x1xf32>
    %398 = vector.broadcast %397 : vector<64x1xf32> to vector<64x32xf32>
    %399 = arith.mulf %394, %398 : vector<64x32xf32>
    %400 = vector.broadcast %379 : vector<1x32xf32> to vector<64x32xf32>
    %401 = arith.mulf %399, %400 : vector<64x32xf32>
    %402 = vector.broadcast %381 : vector<1x32xf32> to vector<64x32xf32>
    %403 = arith.addf %401, %402 : vector<64x32xf32>
    %404 = arith.truncf %403 : vector<64x32xf32> to vector<64x32xbf16>
    %c1_173 = arith.constant 1 : index
    %c0_174 = arith.constant 0 : index
    %c0_175 = arith.constant 0 : index
    %405 = vector.load %arg20[%c1_173, %c0_174, %c0_175] : memref<2x32x64xbf16, #tpu.memory_space<vmem>>, vector<1x32x64xbf16>
    %406 = vector.shape_cast %405 : vector<1x32x64xbf16> to vector<32x64xbf16>
    %cst_176 = arith.constant dense<0.000000e+00> : vector<64x64xf32>
    %407 = tpu.matmul %404, %406, %cst_176 {dimension_numbers = #tpu.dot_dimension_numbers<[1], [0], [0], [1], [0, 0, 1, 1], [], []>} : vector<64x32xbf16>, vector<32x64xbf16>, vector<64x64xf32> -> vector<64x64xf32>
    %c1_177 = arith.constant 1 : index
    %c0_178 = arith.constant 0 : index
    %c0_179 = arith.constant 0 : index
    %408 = vector.load %arg21[%c1_177, %c0_178, %c0_179] : memref<2x1x64xf32, #tpu.memory_space<vmem>>, vector<1x1x64xf32>
    %409 = vector.shape_cast %408 : vector<1x1x64xf32> to vector<1x64xf32>
    %410 = vector.broadcast %409 : vector<1x64xf32> to vector<64x64xf32>
    %411 = arith.addf %407, %410 : vector<64x64xf32>
    %cst_180 = arith.constant 5.000000e-01 : f32
    %412 = vector.broadcast %cst_180 : f32 to vector<64x64xf32>
    %413 = arith.mulf %412, %411 : vector<64x64xf32>
    %cst_181 = arith.constant 0.707106769 : f32
    %414 = vector.broadcast %cst_181 : f32 to vector<64x64xf32>
    %415 = arith.mulf %411, %414 : vector<64x64xf32>
    %cst_182 = arith.constant 0.000000e+00 : f32
    %416 = vector.broadcast %cst_182 : f32 to vector<64x64xf32>
    %417 = arith.cmpf oge, %415, %416 : vector<64x64xf32>
    %cst_183 = arith.constant 1.000000e+00 : f32
    %cst_184 = arith.constant -1.000000e+00 : f32
    %418 = vector.broadcast %cst_183 : f32 to vector<64x64xf32>
    %419 = vector.broadcast %cst_184 : f32 to vector<64x64xf32>
    %420 = arith.select %417, %418, %419 : vector<64x64xi1>, vector<64x64xf32>
    %421 = math.absf %415 : vector<64x64xf32>
    %cst_185 = arith.constant 0.327591091 : f32
    %422 = vector.broadcast %cst_185 : f32 to vector<64x64xf32>
    %423 = arith.mulf %422, %421 : vector<64x64xf32>
    %cst_186 = arith.constant 1.000000e+00 : f32
    %424 = vector.broadcast %cst_186 : f32 to vector<64x64xf32>
    %425 = arith.addf %424, %423 : vector<64x64xf32>
    %cst_187 = arith.constant 1.000000e+00 : f32
    %426 = vector.broadcast %cst_187 : f32 to vector<64x64xf32>
    %427 = arith.divf %426, %425 : vector<64x64xf32>
    %cst_188 = arith.constant 1.06140542 : f32
    %428 = vector.broadcast %cst_188 : f32 to vector<64x64xf32>
    %429 = arith.mulf %428, %427 : vector<64x64xf32>
    %cst_189 = arith.constant -1.45315206 : f32
    %430 = vector.broadcast %cst_189 : f32 to vector<64x64xf32>
    %431 = arith.addf %429, %430 : vector<64x64xf32>
    %432 = arith.mulf %431, %427 : vector<64x64xf32>
    %cst_190 = arith.constant 1.42141378 : f32
    %433 = vector.broadcast %cst_190 : f32 to vector<64x64xf32>
    %434 = arith.addf %432, %433 : vector<64x64xf32>
    %435 = arith.mulf %434, %427 : vector<64x64xf32>
    %cst_191 = arith.constant -0.284496725 : f32
    %436 = vector.broadcast %cst_191 : f32 to vector<64x64xf32>
    %437 = arith.addf %435, %436 : vector<64x64xf32>
    %438 = arith.mulf %437, %427 : vector<64x64xf32>
    %cst_192 = arith.constant 0.254829586 : f32
    %439 = vector.broadcast %cst_192 : f32 to vector<64x64xf32>
    %440 = arith.addf %438, %439 : vector<64x64xf32>
    %441 = arith.mulf %440, %427 : vector<64x64xf32>
    %cst_193 = arith.constant 0.000000e+00 : f32
    %442 = vector.broadcast %cst_193 : f32 to vector<64x64xf32>
    %443 = arith.subf %442, %421 : vector<64x64xf32>
    %444 = arith.mulf %443, %421 : vector<64x64xf32>
    %445 = math.exp %444 : vector<64x64xf32>
    %446 = arith.mulf %441, %445 : vector<64x64xf32>
    %cst_194 = arith.constant 1.000000e+00 : f32
    %447 = vector.broadcast %cst_194 : f32 to vector<64x64xf32>
    %448 = arith.subf %447, %446 : vector<64x64xf32>
    %449 = arith.mulf %420, %448 : vector<64x64xf32>
    %cst_195 = arith.constant 1.000000e+00 : f32
    %450 = vector.broadcast %cst_195 : f32 to vector<64x64xf32>
    %451 = arith.addf %450, %449 : vector<64x64xf32>
    %452 = arith.mulf %413, %451 : vector<64x64xf32>
    %453 = arith.truncf %452 : vector<64x64xf32> to vector<64x64xbf16>
    %c1_196 = arith.constant 1 : index
    %c0_197 = arith.constant 0 : index
    %c0_198 = arith.constant 0 : index
    %454 = vector.load %arg22[%c1_196, %c0_197, %c0_198] : memref<2x64x32xbf16, #tpu.memory_space<vmem>>, vector<1x64x32xbf16>
    %455 = vector.shape_cast %454 : vector<1x64x32xbf16> to vector<64x32xbf16>
    %cst_199 = arith.constant dense<0.000000e+00> : vector<64x32xf32>
    %456 = tpu.matmul %453, %455, %cst_199 {dimension_numbers = #tpu.dot_dimension_numbers<[1], [0], [0], [1], [0, 0, 1, 1], [], []>} : vector<64x64xbf16>, vector<64x32xbf16>, vector<64x32xf32> -> vector<64x32xf32>
    %457 = arith.addf %377, %456 : vector<64x32xf32>
    %c1_200 = arith.constant 1 : index
    %c0_201 = arith.constant 0 : index
    %c0_202 = arith.constant 0 : index
    %458 = vector.load %arg23[%c1_200, %c0_201, %c0_202] : memref<2x1x32xf32, #tpu.memory_space<vmem>>, vector<1x1x32xf32>
    %459 = vector.shape_cast %458 : vector<1x1x32xf32> to vector<1x32xf32>
    %460 = vector.broadcast %459 : vector<1x32xf32> to vector<64x32xf32>
    %461 = arith.addf %457, %460 : vector<64x32xf32>
    %c0_203 = arith.constant 0 : index
    %c0_204 = arith.constant 0 : index
    %462 = vector.load %arg24[%c0_203, %c0_204] : memref<1x32xf32, #tpu.memory_space<vmem>>, vector<1x32xf32>
    %c0_205 = arith.constant 0 : index
    %c0_206 = arith.constant 0 : index
    %463 = vector.load %arg25[%c0_205, %c0_206] : memref<1x32xf32, #tpu.memory_space<vmem>>, vector<1x32xf32>
    %cst_207 = arith.constant dense<0.000000e+00> : vector<64xf32>
    %464 = vector.multi_reduction <add>, %461, %cst_207 [1] : vector<64x32xf32> to vector<64xf32>
    %465 = vector.shape_cast %464 : vector<64xf32> to vector<64x1xf32>
    %cst_208 = arith.constant 3.200000e+01 : f32
    %466 = vector.broadcast %cst_208 : f32 to vector<64x1xf32>
    %467 = arith.divf %465, %466 : vector<64x1xf32>
    %468 = vector.broadcast %467 : vector<64x1xf32> to vector<64x32xf32>
    %469 = arith.subf %461, %468 : vector<64x32xf32>
    %470 = arith.mulf %469, %469 : vector<64x32xf32>
    %cst_209 = arith.constant dense<0.000000e+00> : vector<64xf32>
    %471 = vector.multi_reduction <add>, %470, %cst_209 [1] : vector<64x32xf32> to vector<64xf32>
    %472 = vector.shape_cast %471 : vector<64xf32> to vector<64x1xf32>
    %cst_210 = arith.constant 3.200000e+01 : f32
    %473 = vector.broadcast %cst_210 : f32 to vector<64x1xf32>
    %474 = arith.divf %472, %473 : vector<64x1xf32>
    %475 = vector.broadcast %467 : vector<64x1xf32> to vector<64x32xf32>
    %476 = arith.subf %461, %475 : vector<64x32xf32>
    %cst_211 = arith.constant 9.99999996E-13 : f32
    %477 = vector.broadcast %cst_211 : f32 to vector<64x1xf32>
    %478 = arith.addf %474, %477 : vector<64x1xf32>
    %479 = math.rsqrt %478 : vector<64x1xf32>
    %480 = vector.broadcast %479 : vector<64x1xf32> to vector<64x32xf32>
    %481 = arith.mulf %476, %480 : vector<64x32xf32>
    %482 = vector.broadcast %462 : vector<1x32xf32> to vector<64x32xf32>
    %483 = arith.mulf %481, %482 : vector<64x32xf32>
    %484 = vector.broadcast %463 : vector<1x32xf32> to vector<64x32xf32>
    %485 = arith.addf %483, %484 : vector<64x32xf32>
    %486 = vector.shape_cast %485 : vector<64x32xf32> to vector<2x32x32xf32>
    %487 = vector.extract_strided_slice %486 {offsets = [0, 0, 0], sizes = [2, 1, 32], strides = [1, 1, 1]} : vector<2x32x32xf32> to vector<2x1x32xf32>
    %488 = vector.shape_cast %487 : vector<2x1x32xf32> to vector<2x32xf32>
    %489 = arith.truncf %488 : vector<2x32xf32> to vector<2x32xbf16>
    %c0_212 = arith.constant 0 : index
    %c0_213 = arith.constant 0 : index
    %490 = vector.load %arg26[%c0_212, %c0_213] : memref<32x32xbf16, #tpu.memory_space<vmem>>, vector<32x32xbf16>
    %cst_214 = arith.constant dense<0.000000e+00> : vector<2x32xf32>
    %491 = tpu.matmul %489, %490, %cst_214 {dimension_numbers = #tpu.dot_dimension_numbers<[1], [0], [0], [1], [0, 0, 1, 1], [], []>} : vector<2x32xbf16>, vector<32x32xbf16>, vector<2x32xf32> -> vector<2x32xf32>
    %c0_215 = arith.constant 0 : index
    %c0_216 = arith.constant 0 : index
    %492 = vector.load %arg27[%c0_215, %c0_216] : memref<1x32xf32, #tpu.memory_space<vmem>>, vector<1x32xf32>
    %493 = vector.broadcast %492 : vector<1x32xf32> to vector<2x32xf32>
    %494 = arith.addf %491, %493 : vector<2x32xf32>
    %495 = math.tanh %494 : vector<2x32xf32>
    %496 = arith.truncf %495 : vector<2x32xf32> to vector<2x32xbf16>
    %c0_217 = arith.constant 0 : index
    %c0_218 = arith.constant 0 : index
    %497 = vector.load %arg28[%c0_217, %c0_218] : memref<32x128xbf16, #tpu.memory_space<vmem>>, vector<32x128xbf16>
    %cst_219 = arith.constant dense<0.000000e+00> : vector<2x128xf32>
    %498 = tpu.matmul %496, %497, %cst_219 {dimension_numbers = #tpu.dot_dimension_numbers<[1], [0], [0], [1], [0, 0, 1, 1], [], []>} : vector<2x32xbf16>, vector<32x128xbf16>, vector<2x128xf32> -> vector<2x128xf32>
    %c0_220 = arith.constant 0 : index
    %c0_221 = arith.constant 0 : index
    %499 = vector.load %arg29[%c0_220, %c0_221] : memref<1x128xf32, #tpu.memory_space<vmem>>, vector<1x128xf32>
    %500 = vector.broadcast %499 : vector<1x128xf32> to vector<2x128xf32>
    %501 = arith.addf %498, %500 : vector<2x128xf32>
    %c0_222 = arith.constant 0 : index
    %c0_223 = arith.constant 0 : index
    %502 = vector.load %arg30[%c0_222, %c0_223] : memref<2x128xf32, #tpu.memory_space<vmem>>, vector<2x128xf32>
    tpu.vector_store %arg30[%c0_222, %c0_223], %501 {strides = array<i32>} : memref<2x128xf32, #tpu.memory_space<vmem>>, vector<2x128xf32>,
    %503 = vector.extract_strided_slice %501 {offsets = [0, 0], sizes = [2, 5], strides = [1, 1]} : vector<2x128xf32> to vector<2x5xf32>
    %c0_224 = arith.constant 0 : index
    %c0_225 = arith.constant 0 : index
    %504 = vector.load %arg3[%c0_224, %c0_225] : memref<2x5xf32, #tpu.memory_space<vmem>>, vector<2x5xf32>
    %cst_226 = arith.constant 0.000000e+00 : f32
    %505 = vector.broadcast %cst_226 : f32 to vector<2x5xf32>
    %506 = arith.maximumf %503, %505 : vector<2x5xf32>
    %507 = arith.mulf %503, %504 : vector<2x5xf32>
    %508 = arith.subf %506, %507 : vector<2x5xf32>
    %509 = math.absf %503 : vector<2x5xf32>
    %cst_227 = arith.constant 0.000000e+00 : f32
    %510 = vector.broadcast %cst_227 : f32 to vector<2x5xf32>
    %511 = arith.subf %510, %509 : vector<2x5xf32>
    %512 = math.exp %511 : vector<2x5xf32>
    %cst_228 = arith.constant 1.000000e+00 : f32
    %513 = vector.broadcast %cst_228 : f32 to vector<2x5xf32>
    %514 = arith.addf %513, %512 : vector<2x5xf32>
    %515 = math.log %514 : vector<2x5xf32>
    %516 = arith.addf %508, %515 : vector<2x5xf32>
    %517 = vector.shape_cast %516 : vector<2x5xf32> to vector<1x2x5xf32>
    %cst_229 = arith.constant dense<0.000000e+00> : vector<1xf32>
    %518 = vector.multi_reduction <add>, %517, %cst_229 [1, 2] : vector<1x2x5xf32> to vector<1xf32>
    %519 = vector.shape_cast %518 : vector<1xf32> to vector<1x1x1xf32>
    %520 = vector.extract %519[0, 0, 0] : f32 from vector<1x1x1xf32>
    %521 = vector.broadcast %520 : f32 to vector<1x1xf32>
    %cst_230 = arith.constant 1.000000e+01 : f32
    %522 = vector.broadcast %cst_230 : f32 to vector<1x1xf32>
    %523 = arith.divf %521, %522 : vector<1x1xf32>
    %c0_231 = arith.constant 0 : index
    %c0_232 = arith.constant 0 : index
    %524 = vector.load %arg31[%c0_231, %c0_232] : memref<1x1xf32, #tpu.memory_space<vmem>>, vector<1x1xf32>
    tpu.vector_store %arg31[%c0_231, %c0_232], %523 {strides = array<i32>} : memref<1x1xf32, #tpu.memory_space<vmem>>, vector<1x1xf32>,
    return
  }
}

</mosaic_0001>

<llo_original>
// kernel: vilt_forward.1
$region0: #{vilt_forward.1}
  #allocation0 [shape = 'u32[]', space=smem, size = 0x4, offset = 0x4, fixed_abs, tag = 'smem constant byte address 0x4 - core index']
  #allocation1 [shape = 'u32[72,128]{1,0:T(1,128)}', space=vmem, size = 0x9000, scoped, tag = 'internal scratch']
  %s0 = inlined_call_operand.smem [shape: u32[32], index: -1, kind: input, shape index: {}]
  %s1 = sld [smem:[%s0]]
  %s2 = scalar_lea.smem %s0, 1
  %s3 = sld [smem:[%s2]]
  %s4 = scalar_lea.smem %s0, 2
  %s5 = sld [smem:[%s4]]
  %s6 = scalar_lea.smem %s0, 3
  %s7 = sld [smem:[%s6]]
  %s8 = scalar_lea.smem %s0, 4
  %s9 = sld [smem:[%s8]]
  %s10 = scalar_lea.smem %s0, 5
  %s11 = sld [smem:[%s10]]
  %s12 = scalar_lea.smem %s0, 6
  %s13 = sld [smem:[%s12]]
  %s14 = scalar_lea.smem %s0, 7
  %s15 = sld [smem:[%s14]]
  %s16 = scalar_lea.smem %s0, 8
  %s17 = sld [smem:[%s16]]
  %s18 = scalar_lea.smem %s0, 9
  %s19 = sld [smem:[%s18]]
  %s20 = scalar_lea.smem %s0, 10
  %s21 = sld [smem:[%s20]]
  %s22 = scalar_lea.smem %s0, 11
  %s23 = sld [smem:[%s22]]
  %s24 = scalar_lea.smem %s0, 12
  %s25 = sld [smem:[%s24]]
  %s26 = scalar_lea.smem %s0, 13
  %s27 = sld [smem:[%s26]]
  %s28 = scalar_lea.smem %s0, 14
  %s29 = sld [smem:[%s28]]
  %s30 = scalar_lea.smem %s0, 15
  %s31 = sld [smem:[%s30]]
  %s32 = scalar_lea.smem %s0, 16
  %s33 = sld [smem:[%s32]]
  %s34 = scalar_lea.smem %s0, 17
  %s35 = sld [smem:[%s34]]
  %s36 = scalar_lea.smem %s0, 18
  %s37 = sld [smem:[%s36]]
  %s38 = scalar_lea.smem %s0, 19
  %s39 = sld [smem:[%s38]]
  %s40 = scalar_lea.smem %s0, 20
  %s41 = sld [smem:[%s40]]
  %s42 = scalar_lea.smem %s0, 21
  %s43 = sld [smem:[%s42]]
  %s44 = scalar_lea.smem %s0, 22
  %s45 = sld [smem:[%s44]]
  %s46 = scalar_lea.smem %s0, 23
  %s47 = sld [smem:[%s46]]
  %s48 = scalar_lea.smem %s0, 24
  %s49 = sld [smem:[%s48]]
  %s50 = scalar_lea.smem %s0, 25
  %s51 = sld [smem:[%s50]]
  %s52 = scalar_lea.smem %s0, 26
  %s53 = sld [smem:[%s52]]
  %s54 = scalar_lea.smem %s0, 27
  %s55 = sld [smem:[%s54]]
  %s56 = scalar_lea.smem %s0, 28
  %s57 = sld [smem:[%s56]]
  %s58 = scalar_lea.smem %s0, 29
  %s59 = sld [smem:[%s58]]
  %s60 = scalar_lea.smem %s0, 30
  %s61 = sld [smem:[%s60]]
  %s62 = scalar_lea.smem %s0, 31
  %s63 = sld [smem:[%s62]]
  %64 = xla_tuple %s61, %s63
  %s65 = sld [smem:[#allocation0]]
  $region138: #{vilt_forward.1} parent=0
    _
  %s67 = ssub.s32 1, %s65
  %s68 = scalar_select 0, %s67, %s65
  $region1: #{vilt_forward.1} parent=0
    #allocation2 [shape = 'u8[1024]{0}', space=vmem, size = 0x400, scoped, tag = 'output window, operand 0, single buffered']
    #allocation3 [shape = 's32[1]{0}', space=sflag, size = 0x4, scoped, tag = 'scoped memory for vilt_forward.1']
    #allocation4 [shape = 'u8[512]{0}', space=vmem, size = 0x400, scoped, tag = 'output window, operand 1, single buffered']
    #allocation5 [shape = 's32[1]{0}', space=sflag, size = 0x4, scoped, tag = 'scoped memory for vilt_forward.1']
    %69 = vsyncpa [#allocation3], 0
    %70 = vsyncpa [#allocation5], 0
    // Predicated region
    $region2: #{vilt_forward.1} parent=1 // pred_check
      _
    $region3: #{vilt_forward.1} parent=1 // pred_check_branch
      %72 = sbr.rel (0) target = $region5
    $region4: #{vilt_forward.1} parent=1 // pred_region
      _
    $region5: #{vilt_forward.1} parent=1 // pred_fallthru
      _
    // Predicated region
    $region6: #{vilt_forward.1} parent=1 // pred_check
      _
    $region7: #{vilt_forward.1} parent=1 // pred_check_branch
      %74 = sbr.rel (0) target = $region9
    $region8: #{vilt_forward.1} parent=1 // pred_region
      _
    $region9: #{vilt_forward.1} parent=1 // pred_fallthru
      _
    // Predicated region
    $region10: #{vilt_forward.1} parent=1 // pred_check
      _
    $region11: #{vilt_forward.1} parent=1 // pred_check_branch
      %76 = sbr.rel (0) target = $region13
    $region12: #{vilt_forward.1} parent=1 // pred_region
      _
    $region13: #{vilt_forward.1} parent=1 // pred_fallthru
      _
    // Predicated region
    $region14: #{vilt_forward.1} parent=1 // pred_check
      _
    $region15: #{vilt_forward.1} parent=1 // pred_check_branch
      %78 = sbr.rel (0) target = $region17
    $region16: #{vilt_forward.1} parent=1 // pred_region
      _
    $region17: #{vilt_forward.1} parent=1 // pred_fallthru
      _
    // Predicated region
    $region18: #{vilt_forward.1} parent=1 // pred_check
      _
    $region19: #{vilt_forward.1} parent=1 // pred_check_branch
      %80 = sbr.rel (0) target = $region21
    $region20: #{vilt_forward.1} parent=1 // pred_region
      _
    $region21: #{vilt_forward.1} parent=1 // pred_fallthru
      _
    // Predicated region
    $region22: #{vilt_forward.1} parent=1 // pred_check
      _
    $region23: #{vilt_forward.1} parent=1 // pred_check_branch
      %82 = sbr.rel (0) target = $region25
    $region24: #{vilt_forward.1} parent=1 // pred_region
      _
    $region25: #{vilt_forward.1} parent=1 // pred_fallthru
      _
    // Predicated region
    $region26: #{vilt_forward.1} parent=1 // pred_check
      _
    $region27: #{vilt_forward.1} parent=1 // pred_check_branch
      %84 = sbr.rel (0) target = $region29
    $region28: #{vilt_forward.1} parent=1 // pred_region
      _
    $region29: #{vilt_forward.1} parent=1 // pred_fallthru
      _
    // Predicated region
    $region30: #{vilt_forward.1} parent=1 // pred_check
      _
    $region31: #{vilt_forward.1} parent=1 // pred_check_branch
      %86 = sbr.rel (0) target = $region33
    $region32: #{vilt_forward.1} parent=1 // pred_region
      _
    $region33: #{vilt_forward.1} parent=1 // pred_fallthru
      _
    // Predicated region
    $region34: #{vilt_forward.1} parent=1 // pred_check
      _
    $region35: #{vilt_forward.1} parent=1 // pred_check_branch
      %88 = sbr.rel (0) target = $region37
    $region36: #{vilt_forward.1} parent=1 // pred_region
      _
    $region37: #{vilt_forward.1} parent=1 // pred_fallthru
      _
    // Predicated region
    $region38: #{vilt_forward.1} parent=1 // pred_check
      _
    $region39: #{vilt_forward.1} parent=1 // pred_check_branch
      %90 = sbr.rel (0) target = $region41
    $region40: #{vilt_forward.1} parent=1 // pred_region
      _
    $region41: #{vilt_forward.1} parent=1 // pred_fallthru
      _
    // Predicated region
    $region42: #{vilt_forward.1} parent=1 // pred_check
      _
    $region43: #{vilt_forward.1} parent=1 // pred_check_branch
      %92 = sbr.rel (0) target = $region45
    $region44: #{vilt_forward.1} parent=1 // pred_region
      _
    $region45: #{vilt_forward.1} parent=1 // pred_fallthru
      _
    // Predicated region
    $region46: #{vilt_forward.1} parent=1 // pred_check
      _
    $region47: #{vilt_forward.1} parent=1 // pred_check_branch
      %94 = sbr.rel (0) target = $region49
    $region48: #{vilt_forward.1} parent=1 // pred_region
      _
    $region49: #{vilt_forward.1} parent=1 // pred_fallthru
      _
    // Predicated region
    $region50: #{vilt_forward.1} parent=1 // pred_check
      _
    $region51: #{vilt_forward.1} parent=1 // pred_check_branch
      %96 = sbr.rel (0) target = $region53
    $region52: #{vilt_forward.1} parent=1 // pred_region
      _
    $region53: #{vilt_forward.1} parent=1 // pred_fallthru
      _
    // Predicated region
    $region54: #{vilt_forward.1} parent=1 // pred_check
      _
    $region55: #{vilt_forward.1} parent=1 // pred_check_branch
      %98 = sbr.rel (0) target = $region57
    $region56: #{vilt_forward.1} parent=1 // pred_region
      _
    $region57: #{vilt_forward.1} parent=1 // pred_fallthru
      _
    // Predicated region
    $region58: #{vilt_forward.1} parent=1 // pred_check
      _
    $region59: #{vilt_forward.1} parent=1 // pred_check_branch
      %100 = sbr.rel (0) target = $region61
    $region60: #{vilt_forward.1} parent=1 // pred_region
      _
    $region61: #{vilt_forward.1} parent=1 // pred_fallthru
      _
    // Predicated region
    $region62: #{vilt_forward.1} parent=1 // pred_check
      _
    $region63: #{vilt_forward.1} parent=1 // pred_check_branch
      %102 = sbr.rel (0) target = $region65
    $region64: #{vilt_forward.1} parent=1 // pred_region
      _
    $region65: #{vilt_forward.1} parent=1 // pred_fallthru
      _
    // Predicated region
    $region66: #{vilt_forward.1} parent=1 // pred_check
      _
    $region67: #{vilt_forward.1} parent=1 // pred_check_branch
      %104 = sbr.rel (0) target = $region69
    $region68: #{vilt_forward.1} parent=1 // pred_region
      _
    $region69: #{vilt_forward.1} parent=1 // pred_fallthru
      _
    // Predicated region
    $region70: #{vilt_forward.1} parent=1 // pred_check
      _
    $region71: #{vilt_forward.1} parent=1 // pred_check_branch
      %106 = sbr.rel (0) target = $region73
    $region72: #{vilt_forward.1} parent=1 // pred_region
      _
    $region73: #{vilt_forward.1} parent=1 // pred_fallthru
      _
    // Predicated region
    $region74: #{vilt_forward.1} parent=1 // pred_check
      _
    $region75: #{vilt_forward.1} parent=1 // pred_check_branch
      %108 = sbr.rel (0) target = $region77
    $region76: #{vilt_forward.1} parent=1 // pred_region
      _
    $region77: #{vilt_forward.1} parent=1 // pred_fallthru
      _
    // Predicated region
    $region78: #{vilt_forward.1} parent=1 // pred_check
      _
    $region79: #{vilt_forward.1} parent=1 // pred_check_branch
      %110 = sbr.rel (0) target = $region81
    $region80: #{vilt_forward.1} parent=1 // pred_region
      _
    $region81: #{vilt_forward.1} parent=1 // pred_fallthru
      _
    // Predicated region
    $region82: #{vilt_forward.1} parent=1 // pred_check
      _
    $region83: #{vilt_forward.1} parent=1 // pred_check_branch
      %112 = sbr.rel (0) target = $region85
    $region84: #{vilt_forward.1} parent=1 // pred_region
      _
    $region85: #{vilt_forward.1} parent=1 // pred_fallthru
      _
    // Predicated region
    $region86: #{vilt_forward.1} parent=1 // pred_check
      _
    $region87: #{vilt_forward.1} parent=1 // pred_check_branch
      %114 = sbr.rel (0) target = $region89
    $region88: #{vilt_forward.1} parent=1 // pred_region
      _
    $region89: #{vilt_forward.1} parent=1 // pred_fallthru
      _
    // Predicated region
    $region90: #{vilt_forward.1} parent=1 // pred_check
      _
    $region91: #{vilt_forward.1} parent=1 // pred_check_branch
      %116 = sbr.rel (0) target = $region93
    $region92: #{vilt_forward.1} parent=1 // pred_region
      _
    $region93: #{vilt_forward.1} parent=1 // pred_fallthru
      _
    // Predicated region
    $region94: #{vilt_forward.1} parent=1 // pred_check
      _
    $region95: #{vilt_forward.1} parent=1 // pred_check_branch
      %118 = sbr.rel (0) target = $region97
    $region96: #{vilt_forward.1} parent=1 // pred_region
      _
    $region97: #{vilt_forward.1} parent=1 // pred_fallthru
      _
    // Predicated region
    $region98: #{vilt_forward.1} parent=1 // pred_check
      _
    $region99: #{vilt_forward.1} parent=1 // pred_check_branch
      %120 = sbr.rel (0) target = $region101
    $region100: #{vilt_forward.1} parent=1 // pred_region
      _
    $region101: #{vilt_forward.1} parent=1 // pred_fallthru
      _
    // Predicated region
    $region102: #{vilt_forward.1} parent=1 // pred_check
      _
    $region103: #{vilt_forward.1} parent=1 // pred_check_branch
      %122 = sbr.rel (0) target = $region105
    $region104: #{vilt_forward.1} parent=1 // pred_region
      _
    $region105: #{vilt_forward.1} parent=1 // pred_fallthru
      _
    // Predicated region
    $region106: #{vilt_forward.1} parent=1 // pred_check
      _
    $region107: #{vilt_forward.1} parent=1 // pred_check_branch
      %124 = sbr.rel (0) target = $region109
    $region108: #{vilt_forward.1} parent=1 // pred_region
      _
    $region109: #{vilt_forward.1} parent=1 // pred_fallthru
      _
    // Predicated region
    $region110: #{vilt_forward.1} parent=1 // pred_check
      _
    $region111: #{vilt_forward.1} parent=1 // pred_check_branch
      %126 = sbr.rel (0) target = $region113
    $region112: #{vilt_forward.1} parent=1 // pred_region
      _
    $region113: #{vilt_forward.1} parent=1 // pred_fallthru
      _
    // Predicated region
    $region114: #{vilt_forward.1} parent=1 // pred_check
      _
    $region115: #{vilt_forward.1} parent=1 // pred_check_branch
      %128 = sbr.rel (0) target = $region117
    $region116: #{vilt_forward.1} parent=1 // pred_region
      _
    $region117: #{vilt_forward.1} parent=1 // pred_fallthru
      _
    // Predicated region
    $region118: #{vilt_forward.1} parent=1 // pred_check
      _
    $region119: #{vilt_forward.1} parent=1 // pred_check_branch
      %130 = sbr.rel (0) target = $region121
    $region120: #{vilt_forward.1} parent=1 // pred_region
      _
    $region121: #{vilt_forward.1} parent=1 // pred_fallthru
      _
    %v132 = vld [vmem:[%s1] sm:$0x3]
    %v133 = vlaneseq
    %v134 = vand.u32 %v133, 127
    %v135 = vperm.slane %v132, 0
    %v136 = vlaneseq
    %v137 = vshrl.u32 %v136, 7
    %139 = vset.pattern.permute.xlu0 %v137
    %140 = vperm.xlu0 %139, %v135
    %v141 = vpop.permute.xlu0 %140
    %v142 = vperm.slane %v132, 1
    %v143 = vlaneseq
    %v144 = vshrl.u32 %v143, 7
    %146 = vset.pattern.permute.xlu0 %v144
    %147 = vperm.xlu0 %146, %v142
    %v148 = vpop.permute.xlu0 %147
    %vm149 = vcmp.eq.s32.totalorder %v134, %v141
    %vm150 = vcmp.eq.s32.totalorder %v134, %v148
    %v151 = vsel %vm149, 1.0, 0.0
    %v152 = vsel %vm150, 1.0, 0.0
    %v153 = vpack.c.bf16 %v151, %v151
    %v154 = vpack.c.bf16 %v152, %v152
    %v155 = vld [vmem:[%s11] sm:$0xf]
    %v156 = vld [vmem:[%s11 + $0x4] sm:$0xf]
    %v157 = vld [vmem:[%s11 + $0x8] sm:$0xf]
    %v158 = vld [vmem:[%s11 + $0xc] sm:$0xf]
    %v159 = vld [vmem:[%s11 + $0x10] sm:$0xf]
    %v160 = vld [vmem:[%s11 + $0x14] sm:$0xf]
    %v161 = vld [vmem:[%s11 + $0x18] sm:$0xf]
    %v162 = vld [vmem:[%s11 + $0x1c] sm:$0xf]
    %v163 = vld [vmem:[%s11 + $0x20] sm:$0xf]
    %v164 = vld [vmem:[%s11 + $0x24] sm:$0xf]
    %v165 = vld [vmem:[%s11 + $0x28] sm:$0xf]
    %v166 = vld [vmem:[%s11 + $0x2c] sm:$0xf]
    %v167 = vld [vmem:[%s11 + $0x30] sm:$0xf]
    %v168 = vld [vmem:[%s11 + $0x34] sm:$0xf]
    %v169 = vld [vmem:[%s11 + $0x38] sm:$0xf]
    %v170 = vld [vmem:[%s11 + $0x3c] sm:$0xf]
    %v173 = vunpack.c.l.b16 %v153
    %v174 = vunpack.c.l.b16 %v154
    %v175 = vpack.c.b16 %v174, %v173
    %v193 = vunpack.c.l.b16 %v155
    %v194 = vunpack.c.l.b16 %v156
    %v195 = vunpack.c.l.b16 %v157
    %v196 = vunpack.c.l.b16 %v158
    %v197 = vunpack.c.l.b16 %v159
    %v198 = vunpack.c.l.b16 %v160
    %v199 = vunpack.c.l.b16 %v161
    %v200 = vunpack.c.l.b16 %v162
    %v201 = vunpack.c.l.b16 %v163
    %v202 = vunpack.c.l.b16 %v164
    %v203 = vunpack.c.l.b16 %v165
    %v204 = vunpack.c.l.b16 %v166
    %v205 = vunpack.c.l.b16 %v167
    %v206 = vunpack.c.l.b16 %v168
    %v207 = vunpack.c.l.b16 %v169
    %v208 = vunpack.c.l.b16 %v170
    %v209 = vpack.c.b16 %v194, %v193
    %v210 = vpack.c.b16 %v196, %v195
    %v211 = vpack.c.b16 %v198, %v197
    %v212 = vpack.c.b16 %v200, %v199
    %v213 = vpack.c.b16 %v202, %v201
    %v214 = vpack.c.b16 %v204, %v203
    %v215 = vpack.c.b16 %v206, %v205
    %v216 = vpack.c.b16 %v208, %v207
    %225 = vmatpush.bf16.msra.mxu0 %v216
    %226 = vmatpush.bf16.msra.mxu0 %v215
    %227 = vmatpush.bf16.msra.mxu0 %v214
    %228 = vmatpush.bf16.msra.mxu0 %v213
    %229 = vmatpush.bf16.msra.mxu0 %v212
    %230 = vmatpush.bf16.msra.mxu0 %v211
    %231 = vmatpush.bf16.msra.mxu0 %v210
    %232 = vmatpush.bf16.msra.mxu0 %v209
    %233 = vmatmul.bf16.gmra.mxu0 %v175
    %v234 = vpop.f32.mrf.mxu0
    %v235 = vadd.f32 0.0, %v234
    %v236 = vpop.f32.mrf.mxu0
    %v237 = vadd.f32 0.0, %v236
    %238 = vdwg.mxu0
    %v239 = vld [vmem:[%s9] sm:$0xff]
    %v240 = vadd.f32 %v235, %v239
    %v241 = vadd.f32 %v237, %v239
    %v242 = vld [vmem:[%s13] sm:$0x1]
    %v243 = vld [vmem:[%s15] sm:$0x1]
    %vm244 = vcmask 261120
    %v245 = vsel %vm244, %v240, 0.0
    %246 = vadd.xlane.f32.xlu0 %v245
    %v247 = vpop.xlane.xlu0 %246
    %v248 = vsel %vm244, %v241, 0.0
    %249 = vadd.xlane.f32.xlu0 %v248
    %v250 = vpop.xlane.xlu0 %249
    %v251 = vrcp.pop 32.0
    %v252 = vmul.f32 32.0, %v251
    %v253 = vsub.f32 1.0, %v252
    %v254 = vmul.f32 %v251, %v253
    %v255 = vadd.f32 %v251, %v254
    %vm256 = vweird.f32 %v251
    %v257 = vsel %vm256, %v251, %v255
    %v258 = vmul.f32 %v247, %v257
    %v259 = vmul.f32 %v250, %v257
    %v260 = vsub.f32 %v240, %v258
    %v261 = vsub.f32 %v241, %v259
    %v262 = vmul.f32 %v260, %v260
    %v263 = vmul.f32 %v261, %v261
    %v264 = vsel %vm244, %v262, 0.0
    %265 = vadd.xlane.f32.xlu0 %v264
    %v266 = vpop.xlane.xlu0 %265
    %v267 = vsel %vm244, %v263, 0.0
    %268 = vadd.xlane.f32.xlu0 %v267
    %v269 = vpop.xlane.xlu0 %268
    %v270 = vmul.f32 %v266, %v257
    %v271 = vmul.f32 %v269, %v257
    %v272 = vadd.f32 %v270, 1e-12
    %v273 = vadd.f32 %v271, 1e-12
    %v274 = vrsqrt.pop %v272
    %v275 = vmul.f32 %v274, %v272
    %v276 = vmul.f32 %v275, %v274
    %v277 = vmul.f32 0.5, %v276
    %v278 = vsub.f32 1.5, %v277
    %v279 = vmul.f32 %v274, %v278
    %vm280 = vweird.f32 %v272
    %vm281 = vweird.f32 %v274
    %vm282 = vmor %vm280, %vm281
    %v283 = vsel %vm282, %v274, %v279
    %v284 = vrsqrt.pop %v273
    %v285 = vmul.f32 %v284, %v273
    %v286 = vmul.f32 %v285, %v284
    %v287 = vmul.f32 0.5, %v286
    %v288 = vsub.f32 1.5, %v287
    %v289 = vmul.f32 %v284, %v288
    %vm290 = vweird.f32 %v273
    %vm291 = vweird.f32 %v284
    %vm292 = vmor %vm290, %vm291
    %v293 = vsel %vm292, %v284, %v289
    %v294 = vmul.f32 %v260, %v283
    %v295 = vmul.f32 %v261, %v293
    %v297 = vperm.slane %v242, 0
    %v299 = vmul.f32 %v294, %v297
    %v300 = vmul.f32 %v295, %v297
    %v302 = vperm.slane %v243, 0
    %v304 = vadd.f32 %v299, %v302
    %v305 = vadd.f32 %v300, %v302
    %v306 = vld [vmem:[%s3] sm:$0xff]
    %v307 = vld [vmem:[%s3 + $0x8] sm:$0xff]
    %v308 = vld [vmem:[%s3 + $0x10] sm:$0xff]
    %v309 = vld [vmem:[%s3 + $0x18] sm:$0xff]
    %v310 = vpack.c.bf16 %v307, %v306
    %v311 = vpack.c.bf16 %v309, %v308
    %v312 = vld [vmem:[%s17] sm:$0xf]
    %v313 = vld [vmem:[%s17 + $0x4] sm:$0xf]
    %v314 = vld [vmem:[%s17 + $0x8] sm:$0xf]
    %v315 = vld [vmem:[%s17 + $0xc] sm:$0xf]
    %v316 = vld [vmem:[%s17 + $0x10] sm:$0xf]
    %v317 = vld [vmem:[%s17 + $0x14] sm:$0xf]
    %v318 = vld [vmem:[%s19] sm:$0x1]
    %v320 = vperm.slane %v318, 0
    %v328 = vunpack.c.l.b16 %v312
    %v329 = vunpack.c.l.b16 %v313
    %v330 = vunpack.c.l.b16 %v314
    %v331 = vunpack.c.l.b16 %v315
    %v332 = vunpack.c.l.b16 %v316
    %v333 = vunpack.c.l.b16 %v317
    %v334 = vpack.c.b16 %v329, %v328
    %v335 = vpack.c.b16 %v331, %v330
    %v336 = vpack.c.b16 %v333, %v332
    %vm340 = vcmask 392192
    %v342 = vsel %vm340, %v310, 0
    %v345 = vsel %vm340, %v311, 0
    %347 = vmatpush.bf16.msra.mxu0 0
    %348 = vmatpush.bf16.msra.mxu0 0
    %349 = vmatpush.bf16.msra.mxu0 0
    %350 = vmatpush.bf16.msra.mxu0 0
    %351 = vmatpush.bf16.msra.mxu0 0
    %352 = vmatpush.bf16.msra.mxu0 %v336
    %353 = vmatpush.bf16.msra.mxu0 %v335
    %354 = vmatpush.bf16.msra.mxu0 %v334
    %355 = vmatmul.bf16.gmra.mxu0 %v342
    %v356 = vpop.f32.mrf.mxu0
    %v357 = vadd.f32 %v320, %v356
    %v358 = vpop.f32.mrf.mxu0
    %v359 = vadd.f32 %v320, %v358
    %360 = vmatmul.bf16.gmra.mxu0 %v345
    %v361 = vpop.f32.mrf.mxu0
    %v362 = vadd.f32 %v320, %v361
    %v363 = vpop.f32.mrf.mxu0
    %v364 = vadd.f32 %v320, %v363
    %365 = vdwg.mxu0
    %v366 = vld [vmem:[%s23] sm:$0xff]
    %v367 = vld [vmem:[%s23 + $0x8] sm:$0xff]
    %v368 = vadd.f32 %v357, %v366
    %v369 = vadd.f32 %v359, %v367
    %v370 = vadd.f32 %v362, %v366
    %v371 = vadd.f32 %v364, %v367
    %v372 = vld [vmem:[%s21] sm:$0x1]
    %vm377 = vcmask 1040384
    %v378 = vrot.slane %v368, 7
    %v379 = vrot.slane %v369, 7
    %v380 = vsel %vm377, %v378, %v379
    %v381 = vrot.slane %v370, 7
    %v382 = vrot.slane %v371, 7
    %v383 = vsel %vm377, %v381, %v382
    %v390 = vsel %vm377, %v372, %v378
    %v391 = vsel %vm377, %v372, %v381
    %v392 = vsel %vm377, %v379, 0.0
    %v393 = vsel %vm377, %v382, 0.0
    %v394 = vld [vmem:[%s5] sm:$0x1]
    %v395 = vld [vmem:[%s5 + $0x1] sm:$0x1]
    %v398 = vperm.slane %v394, 0
    %v399 = vperm.slane %v395, 0
    %v402 = vld [vmem:[%s25] sm:$0x1]
    %v403 = vld [vmem:[%s27] sm:$0x1]
    %v404 = vsel %vm244, %v304, 0.0
    %405 = vadd.xlane.f32.xlu0 %v404
    %v406 = vpop.xlane.xlu0 %405
    %v407 = vsel %vm244, %v390, 0.0
    %408 = vadd.xlane.f32.xlu0 %v407
    %v409 = vpop.xlane.xlu0 %408
    %v410 = vsel %vm244, %v380, 0.0
    %411 = vadd.xlane.f32.xlu0 %v410
    %v412 = vpop.xlane.xlu0 %411
    %v413 = vsel %vm244, %v392, 0.0
    %414 = vadd.xlane.f32.xlu0 %v413
    %v415 = vpop.xlane.xlu0 %414
    %v416 = vsel %vm244, %v305, 0.0
    %417 = vadd.xlane.f32.xlu0 %v416
    %v418 = vpop.xlane.xlu0 %417
    %v419 = vsel %vm244, %v391, 0.0
    %420 = vadd.xlane.f32.xlu0 %v419
    %v421 = vpop.xlane.xlu0 %420
    %v422 = vsel %vm244, %v383, 0.0
    %423 = vadd.xlane.f32.xlu0 %v422
    %v424 = vpop.xlane.xlu0 %423
    %v425 = vsel %vm244, %v393, 0.0
    %426 = vadd.xlane.f32.xlu0 %v425
    %v427 = vpop.xlane.xlu0 %426
    %v428 = vmul.f32 %v406, %v257
    %v429 = vmul.f32 %v409, %v257
    %v430 = vmul.f32 %v412, %v257
    %v431 = vmul.f32 %v415, %v257
    %v432 = vmul.f32 %v418, %v257
    %v433 = vmul.f32 %v421, %v257
    %v434 = vmul.f32 %v424, %v257
    %v435 = vmul.f32 %v427, %v257
    %v436 = vsub.f32 %v304, %v428
    %v437 = vsub.f32 %v390, %v429
    %v438 = vsub.f32 %v380, %v430
    %v439 = vsub.f32 %v392, %v431
    %v440 = vsub.f32 %v305, %v432
    %v441 = vsub.f32 %v391, %v433
    %v442 = vsub.f32 %v383, %v434
    %v443 = vsub.f32 %v393, %v435
    %v444 = vmul.f32 %v436, %v436
    %v445 = vmul.f32 %v437, %v437
    %v446 = vmul.f32 %v438, %v438
    %v447 = vmul.f32 %v439, %v439
    %v448 = vmul.f32 %v440, %v440
    %v449 = vmul.f32 %v441, %v441
    %v450 = vmul.f32 %v442, %v442
    %v451 = vmul.f32 %v443, %v443
    %v452 = vsel %vm244, %v444, 0.0
    %453 = vadd.xlane.f32.xlu0 %v452
    %v454 = vpop.xlane.xlu0 %453
    %v455 = vsel %vm244, %v445, 0.0
    %456 = vadd.xlane.f32.xlu0 %v455
    %v457 = vpop.xlane.xlu0 %456
    %v458 = vsel %vm244, %v446, 0.0
    %459 = vadd.xlane.f32.xlu0 %v458
    %v460 = vpop.xlane.xlu0 %459
    %v461 = vsel %vm244, %v447, 0.0
    %462 = vadd.xlane.f32.xlu0 %v461
    %v463 = vpop.xlane.xlu0 %462
    %v464 = vsel %vm244, %v448, 0.0
    %465 = vadd.xlane.f32.xlu0 %v464
    %v466 = vpop.xlane.xlu0 %465
    %v467 = vsel %vm244, %v449, 0.0
    %468 = vadd.xlane.f32.xlu0 %v467
    %v469 = vpop.xlane.xlu0 %468
    %v470 = vsel %vm244, %v450, 0.0
    %471 = vadd.xlane.f32.xlu0 %v470
    %v472 = vpop.xlane.xlu0 %471
    %v473 = vsel %vm244, %v451, 0.0
    %474 = vadd.xlane.f32.xlu0 %v473
    %v475 = vpop.xlane.xlu0 %474
    %v476 = vmul.f32 %v454, %v257
    %v477 = vmul.f32 %v457, %v257
    %v478 = vmul.f32 %v460, %v257
    %v479 = vmul.f32 %v463, %v257
    %v480 = vmul.f32 %v466, %v257
    %v481 = vmul.f32 %v469, %v257
    %v482 = vmul.f32 %v472, %v257
    %v483 = vmul.f32 %v475, %v257
    %v484 = vadd.f32 %v476, 1e-12
    %v485 = vadd.f32 %v477, 1e-12
    %v486 = vadd.f32 %v478, 1e-12
    %v487 = vadd.f32 %v479, 1e-12
    %v488 = vadd.f32 %v480, 1e-12
    %v489 = vadd.f32 %v481, 1e-12
    %v490 = vadd.f32 %v482, 1e-12
    %v491 = vadd.f32 %v483, 1e-12
    %v492 = vrsqrt.pop %v484
    %v493 = vmul.f32 %v492, %v484
    %v494 = vmul.f32 %v493, %v492
    %v495 = vmul.f32 0.5, %v494
    %v496 = vsub.f32 1.5, %v495
    %v497 = vmul.f32 %v492, %v496
    %vm498 = vweird.f32 %v484
    %vm499 = vweird.f32 %v492
    %vm500 = vmor %vm498, %vm499
    %v501 = vsel %vm500, %v492, %v497
    %v502 = vrsqrt.pop %v485
    %v503 = vmul.f32 %v502, %v485
    %v504 = vmul.f32 %v503, %v502
    %v505 = vmul.f32 0.5, %v504
    %v506 = vsub.f32 1.5, %v505
    %v507 = vmul.f32 %v502, %v506
    %vm508 = vweird.f32 %v485
    %vm509 = vweird.f32 %v502
    %vm510 = vmor %vm508, %vm509
    %v511 = vsel %vm510, %v502, %v507
    %v512 = vrsqrt.pop %v486
    %v513 = vmul.f32 %v512, %v486
    %v514 = vmul.f32 %v513, %v512
    %v515 = vmul.f32 0.5, %v514
    %v516 = vsub.f32 1.5, %v515
    %v517 = vmul.f32 %v512, %v516
    %vm518 = vweird.f32 %v486
    %vm519 = vweird.f32 %v512
    %vm520 = vmor %vm518, %vm519
    %v521 = vsel %vm520, %v512, %v517
    %v522 = vrsqrt.pop %v487
    %v523 = vmul.f32 %v522, %v487
    %v524 = vmul.f32 %v523, %v522
    %v525 = vmul.f32 0.5, %v524
    %v526 = vsub.f32 1.5, %v525
    %v527 = vmul.f32 %v522, %v526
    %vm528 = vweird.f32 %v487
    %vm529 = vweird.f32 %v522
    %vm530 = vmor %vm528, %vm529
    %v531 = vsel %vm530, %v522, %v527
    %v532 = vrsqrt.pop %v488
    %v533 = vmul.f32 %v532, %v488
    %v534 = vmul.f32 %v533, %v532
    %v535 = vmul.f32 0.5, %v534
    %v536 = vsub.f32 1.5, %v535
    %v537 = vmul.f32 %v532, %v536
    %vm538 = vweird.f32 %v488
    %vm539 = vweird.f32 %v532
    %vm540 = vmor %vm538, %vm539
    %v541 = vsel %vm540, %v532, %v537
    %v542 = vrsqrt.pop %v489
    %v543 = vmul.f32 %v542, %v489
    %v544 = vmul.f32 %v543, %v542
    %v545 = vmul.f32 0.5, %v544
    %v546 = vsub.f32 1.5, %v545
    %v547 = vmul.f32 %v542, %v546
    %vm548 = vweird.f32 %v489
    %vm549 = vweird.f32 %v542
    %vm550 = vmor %vm548, %vm549
    %v551 = vsel %vm550, %v542, %v547
    %v552 = vrsqrt.pop %v490
    %v553 = vmul.f32 %v552, %v490
    %v554 = vmul.f32 %v553, %v552
    %v555 = vmul.f32 0.5, %v554
    %v556 = vsub.f32 1.5, %v555
    %v557 = vmul.f32 %v552, %v556
    %vm558 = vweird.f32 %v490
    %vm559 = vweird.f32 %v552
    %vm560 = vmor %vm558, %vm559
    %v561 = vsel %vm560, %v552, %v557
    %v562 = vrsqrt.pop %v491
    %v563 = vmul.f32 %v562, %v491
    %v564 = vmul.f32 %v563, %v562
    %v565 = vmul.f32 0.5, %v564
    %v566 = vsub.f32 1.5, %v565
    %v567 = vmul.f32 %v562, %v566
    %vm568 = vweird.f32 %v491
    %vm569 = vweird.f32 %v562
    %vm570 = vmor %vm568, %vm569
    %v571 = vsel %vm570, %v562, %v567
    %v572 = vmul.f32 %v436, %v501
    %v573 = vmul.f32 %v437, %v511
    %v574 = vmul.f32 %v438, %v521
    %v575 = vmul.f32 %v439, %v531
    %v576 = vmul.f32 %v440, %v541
    %v577 = vmul.f32 %v441, %v551
    %v578 = vmul.f32 %v442, %v561
    %v579 = vmul.f32 %v443, %v571
    %v581 = vperm.slane %v402, 0
    %v583 = vmul.f32 %v572, %v581
    %v584 = vmul.f32 %v573, %v581
    %v585 = vmul.f32 %v574, %v581
    %v586 = vmul.f32 %v575, %v581
    %v587 = vmul.f32 %v576, %v581
    %v588 = vmul.f32 %v577, %v581
    %v589 = vmul.f32 %v578, %v581
    %v590 = vmul.f32 %v579, %v581
    %v592 = vperm.slane %v403, 0
    %v594 = vadd.f32 %v583, %v592
    %v595 = vadd.f32 %v584, %v592
    %v596 = vadd.f32 %v585, %v592
    %v597 = vadd.f32 %v586, %v592
    %v598 = vadd.f32 %v587, %v592
    %v599 = vadd.f32 %v588, %v592
    %v600 = vadd.f32 %v589, %v592
    %v601 = vadd.f32 %v590, %v592
    %v602 = vpack.c.bf16 %v595, %v594
    %v603 = vpack.c.bf16 %v597, %v596
    %v604 = vpack.c.bf16 %v599, %v598
    %v605 = vpack.c.bf16 %v601, %v600
    %v606 = vld [vmem:[%s29] sm:$0xf]
    %v607 = vld [vmem:[%s29 + $0x4] sm:$0xf]
    %v608 = vld [vmem:[%s29 + $0x8] sm:$0xf]
    %v609 = vld [vmem:[%s29 + $0xc] sm:$0xf]
    %v610 = vld [vmem:[%s31] sm:$0x1]
    %v612 = vperm.slane %v610, 0
    %v618 = vunpack.c.l.b16 %v606
    %v619 = vunpack.c.l.b16 %v607
    %v620 = vunpack.c.l.b16 %v608
    %v621 = vunpack.c.l.b16 %v609
    %v622 = vpack.c.b16 %v619, %v618
    %v623 = vpack.c.b16 %v621, %v620
    %v627 = vsel %vm244, %v602, 0
    %v630 = vsel %vm244, %v603, 0
    %v633 = vsel %vm244, %v604, 0
    %v636 = vsel %vm244, %v605, 0
    %638 = vmatpush.bf16.msra.mxu0 0
    %639 = vmatpush.bf16.msra.mxu0 0
    %640 = vmatpush.bf16.msra.mxu0 0
    %641 = vmatpush.bf16.msra.mxu0 0
    %642 = vmatpush.bf16.msra.mxu0 0
    %643 = vmatpush.bf16.msra.mxu0 0
    %644 = vmatpush.bf16.msra.mxu0 %v623
    %645 = vmatpush.bf16.msra.mxu0 %v622
    %646 = vmatmul.bf16.gmra.mxu0 %v627
    %v647 = vpop.f32.mrf.mxu0
    %v648 = vadd.f32 %v612, %v647
    %v649 = vpop.f32.mrf.mxu0
    %v650 = vadd.f32 %v612, %v649
    %651 = vmatmul.bf16.gmra.mxu0 %v630
    %v652 = vpop.f32.mrf.mxu0
    %v653 = vadd.f32 %v612, %v652
    %v654 = vpop.f32.mrf.mxu0
    %v655 = vadd.f32 %v612, %v654
    %656 = vmatmul.bf16.gmra.mxu0 %v633
    %v657 = vpop.f32.mrf.mxu0
    %v658 = vadd.f32 %v612, %v657
    %v659 = vpop.f32.mrf.mxu0
    %v660 = vadd.f32 %v612, %v659
    %661 = vmatmul.bf16.gmra.mxu0 %v636
    %v662 = vpop.f32.mrf.mxu0
    %v663 = vadd.f32 %v612, %v662
    %v664 = vpop.f32.mrf.mxu0
    %v665 = vadd.f32 %v612, %v664
    %666 = vdwg.mxu0
    %671 = vrot.lane.b32.xlu0 %v648, 96
    %v672 = vpop.permute.xlu0 %671
    %673 = vrot.lane.b32.xlu0 %v650, 96
    %v674 = vpop.permute.xlu0 %673
    %675 = vrot.lane.b32.xlu0 %v653, 96
    %v676 = vpop.permute.xlu0 %675
    %677 = vrot.lane.b32.xlu0 %v655, 96
    %v678 = vpop.permute.xlu0 %677
    %vm679 = vcmask 64512
    %v680 = vsel %vm679, %v648, 0
    %v682 = vsel %vm679, %v650, 0
    %v684 = vsel %vm679, %v653, 0
    %v686 = vsel %vm679, %v655, 0
    %v688 = vsel %vm679, %v672, 0
    %v690 = vsel %vm679, %v674, 0
    %v692 = vsel %vm679, %v676, 0
    %v694 = vsel %vm679, %v678, 0
    %696 = vmatpush.xpose.msra.mxu0 0.0
    %697 = vmatpush.xpose.msra.mxu0 0.0
    %698 = vmatpush.xpose.msra.mxu0 0.0
    %699 = vmatpush.xpose.msra.mxu0 0.0
    %700 = vmatpush.xpose.msra.mxu0 0.0
    %701 = vmatpush.xpose.msra.mxu0 0.0
    %702 = vmatpush.xpose.msra.mxu0 0.0
    %703 = vmatpush.xpose.msra.mxu0 0.0
    %704 = vmatpush.xpose.msra.mxu0 0.0
    %705 = vmatpush.xpose.msra.mxu0 0.0
    %706 = vmatpush.xpose.msra.mxu0 0.0
    %707 = vmatpush.xpose.msra.mxu0 0.0
    %708 = vmatpush.xpose.msra.mxu0 %v694
    %709 = vmatpush.xpose.msra.mxu0 %v692
    %710 = vmatpush.xpose.msra.mxu0 %v690
    %711 = vmatpush.xpose.msra.mxu0 %v688
    %712 = vmatmul.f32.gmra.mxu0 %v680
    %v713 = vpop.f32.mrf.mxu0
    %v714 = vadd.f32 0.0, %v713
    %715 = vmatmul.f32.gmra.mxu0 %v682
    %v716 = vpop.f32.mrf.mxu0
    %v717 = vadd.f32 0.0, %v716
    %718 = vmatmul.f32.gmra.mxu0 %v684
    %v719 = vpop.f32.mrf.mxu0
    %v720 = vadd.f32 0.0, %v719
    %721 = vmatmul.f32.gmra.mxu0 %v686
    %v722 = vpop.f32.mrf.mxu0
    %v723 = vadd.f32 0.0, %v722
    %724 = vdwg.mxu0
    %729 = vrot.lane.b32.xlu0 %v658, 96
    %v730 = vpop.permute.xlu0 %729
    %731 = vrot.lane.b32.xlu0 %v660, 96
    %v732 = vpop.permute.xlu0 %731
    %733 = vrot.lane.b32.xlu0 %v663, 96
    %v734 = vpop.permute.xlu0 %733
    %735 = vrot.lane.b32.xlu0 %v665, 96
    %v736 = vpop.permute.xlu0 %735
    %v737 = vsel %vm679, %v658, 0
    %v739 = vsel %vm679, %v660, 0
    %v741 = vsel %vm679, %v663, 0
    %v743 = vsel %vm679, %v665, 0
    %v745 = vsel %vm679, %v730, 0
    %v747 = vsel %vm679, %v732, 0
    %v749 = vsel %vm679, %v734, 0
    %v751 = vsel %vm679, %v736, 0
    %753 = vmatpush.xpose.msra.mxu0 0.0
    %754 = vmatpush.xpose.msra.mxu0 0.0
    %755 = vmatpush.xpose.msra.mxu0 0.0
    %756 = vmatpush.xpose.msra.mxu0 0.0
    %757 = vmatpush.xpose.msra.mxu0 0.0
    %758 = vmatpush.xpose.msra.mxu0 0.0
    %759 = vmatpush.xpose.msra.mxu0 0.0
    %760 = vmatpush.xpose.msra.mxu0 0.0
    %761 = vmatpush.xpose.msra.mxu0 0.0
    %762 = vmatpush.xpose.msra.mxu0 0.0
    %763 = vmatpush.xpose.msra.mxu0 0.0
    %764 = vmatpush.xpose.msra.mxu0 0.0
    %765 = vmatpush.xpose.msra.mxu0 %v751
    %766 = vmatpush.xpose.msra.mxu0 %v749
    %767 = vmatpush.xpose.msra.mxu0 %v747
    %768 = vmatpush.xpose.msra.mxu0 %v745
    %769 = vmatmul.f32.gmra.mxu0 %v737
    %v770 = vpop.f32.mrf.mxu0
    %v771 = vadd.f32 0.0, %v770
    %772 = vmatmul.f32.gmra.mxu0 %v739
    %v773 = vpop.f32.mrf.mxu0
    %v774 = vadd.f32 0.0, %v773
    %775 = vmatmul.f32.gmra.mxu0 %v741
    %v776 = vpop.f32.mrf.mxu0
    %v777 = vadd.f32 0.0, %v776
    %778 = vmatmul.f32.gmra.mxu0 %v743
    %v779 = vpop.f32.mrf.mxu0
    %v780 = vadd.f32 0.0, %v779
    %781 = vdwg.mxu0
    %v782 = vmul.f32 %v714, 0.35355338
    %v783 = vmul.f32 %v717, 0.35355338
    %v784 = vmul.f32 %v720, 0.35355338
    %v785 = vmul.f32 %v723, 0.35355338
    %v786 = vmul.f32 %v771, 0.35355338
    %v787 = vmul.f32 %v774, 0.35355338
    %v788 = vmul.f32 %v777, 0.35355338
    %v789 = vmul.f32 %v780, 0.35355338
    %v790 = vadd.f32 %v782, %v398
    %v791 = vadd.f32 %v783, %v398
    %v792 = vadd.f32 %v784, %v398
    %v793 = vadd.f32 %v785, %v398
    %v794 = vadd.f32 %v786, %v399
    %v795 = vadd.f32 %v787, %v399
    %v796 = vadd.f32 %v788, %v399
    %v797 = vadd.f32 %v789, %v399
    %v798 = vsel %vm244, %v790, -inf
    %799 = vmax.xlane.f32.xlu0 %v798
    %v800 = vpop.xlane.xlu0 %799
    %v801 = vsel %vm244, %v791, -inf
    %802 = vmax.xlane.f32.xlu0 %v801
    %v803 = vpop.xlane.xlu0 %802
    %v804 = vsel %vm244, %v792, -inf
    %805 = vmax.xlane.f32.xlu0 %v804
    %v806 = vpop.xlane.xlu0 %805
    %v807 = vsel %vm244, %v793, -inf
    %808 = vmax.xlane.f32.xlu0 %v807
    %v809 = vpop.xlane.xlu0 %808
    %v810 = vsel %vm244, %v794, -inf
    %811 = vmax.xlane.f32.xlu0 %v810
    %v812 = vpop.xlane.xlu0 %811
    %v813 = vsel %vm244, %v795, -inf
    %814 = vmax.xlane.f32.xlu0 %v813
    %v815 = vpop.xlane.xlu0 %814
    %v816 = vsel %vm244, %v796, -inf
    %817 = vmax.xlane.f32.xlu0 %v816
    %v818 = vpop.xlane.xlu0 %817
    %v819 = vsel %vm244, %v797, -inf
    %820 = vmax.xlane.f32.xlu0 %v819
    %v821 = vpop.xlane.xlu0 %820
    %v822 = vsub.f32 %v790, %v800
    %v823 = vsub.f32 %v791, %v803
    %v824 = vsub.f32 %v792, %v806
    %v825 = vsub.f32 %v793, %v809
    %v826 = vsub.f32 %v794, %v812
    %v827 = vsub.f32 %v795, %v815
    %v828 = vsub.f32 %v796, %v818
    %v829 = vsub.f32 %v797, %v821
    %v830 = vmul.f32 %v822, 1.442695
    %v831 = vpow.pop %v830
    %v832 = vmul.f32 %v823, 1.442695
    %v833 = vpow.pop %v832
    %v834 = vmul.f32 %v824, 1.442695
    %v835 = vpow.pop %v834
    %v836 = vmul.f32 %v825, 1.442695
    %v837 = vpow.pop %v836
    %v838 = vmul.f32 %v826, 1.442695
    %v839 = vpow.pop %v838
    %v840 = vmul.f32 %v827, 1.442695
    %v841 = vpow.pop %v840
    %v842 = vmul.f32 %v828, 1.442695
    %v843 = vpow.pop %v842
    %v844 = vmul.f32 %v829, 1.442695
    %v845 = vpow.pop %v844
    %v846 = vsel %vm244, %v831, 0.0
    %847 = vadd.xlane.f32.xlu0 %v846
    %v848 = vpop.xlane.xlu0 %847
    %v849 = vsel %vm244, %v833, 0.0
    %850 = vadd.xlane.f32.xlu0 %v849
    %v851 = vpop.xlane.xlu0 %850
    %v852 = vsel %vm244, %v835, 0.0
    %853 = vadd.xlane.f32.xlu0 %v852
    %v854 = vpop.xlane.xlu0 %853
    %v855 = vsel %vm244, %v837, 0.0
    %856 = vadd.xlane.f32.xlu0 %v855
    %v857 = vpop.xlane.xlu0 %856
    %v858 = vsel %vm244, %v839, 0.0
    %859 = vadd.xlane.f32.xlu0 %v858
    %v860 = vpop.xlane.xlu0 %859
    %v861 = vsel %vm244, %v841, 0.0
    %862 = vadd.xlane.f32.xlu0 %v861
    %v863 = vpop.xlane.xlu0 %862
    %v864 = vsel %vm244, %v843, 0.0
    %865 = vadd.xlane.f32.xlu0 %v864
    %v866 = vpop.xlane.xlu0 %865
    %v867 = vsel %vm244, %v845, 0.0
    %868 = vadd.xlane.f32.xlu0 %v867
    %v869 = vpop.xlane.xlu0 %868
    %v870 = vrcp.pop %v848
    %v871 = vmul.f32 %v848, %v870
    %v872 = vsub.f32 1.0, %v871
    %v873 = vmul.f32 %v870, %v872
    %v874 = vadd.f32 %v870, %v873
    %vm875 = vweird.f32 %v848
    %vm876 = vweird.f32 %v870
    %vm877 = vmor %vm875, %vm876
    %v878 = vsel %vm877, %v870, %v874
    %v879 = vand.u32 2147483647, %v848
    %vm880 = vcmp.eq.f32.partialorder %v879, 8.507059e+37
    %v881 = vand.u32 %v848, 2147483648
    %v882 = vor.u32 1.1754944e-38, %v881
    %v883 = vsel %vm880, %v882, %v878
    %v884 = vmul.f32 %v831, %v883
    %v885 = vrcp.pop %v851
    %v886 = vmul.f32 %v851, %v885
    %v887 = vsub.f32 1.0, %v886
    %v888 = vmul.f32 %v885, %v887
    %v889 = vadd.f32 %v885, %v888
    %vm890 = vweird.f32 %v851
    %vm891 = vweird.f32 %v885
    %vm892 = vmor %vm890, %vm891
    %v893 = vsel %vm892, %v885, %v889
    %v894 = vand.u32 2147483647, %v851
    %vm895 = vcmp.eq.f32.partialorder %v894, 8.507059e+37
    %v896 = vand.u32 %v851, 2147483648
    %v897 = vor.u32 1.1754944e-38, %v896
    %v898 = vsel %vm895, %v897, %v893
    %v899 = vmul.f32 %v833, %v898
    %v900 = vrcp.pop %v854
    %v901 = vmul.f32 %v854, %v900
    %v902 = vsub.f32 1.0, %v901
    %v903 = vmul.f32 %v900, %v902
    %v904 = vadd.f32 %v900, %v903
    %vm905 = vweird.f32 %v854
    %vm906 = vweird.f32 %v900
    %vm907 = vmor %vm905, %vm906
    %v908 = vsel %vm907, %v900, %v904
    %v909 = vand.u32 2147483647, %v854
    %vm910 = vcmp.eq.f32.partialorder %v909, 8.507059e+37
    %v911 = vand.u32 %v854, 2147483648
    %v912 = vor.u32 1.1754944e-38, %v911
    %v913 = vsel %vm910, %v912, %v908
    %v914 = vmul.f32 %v835, %v913
    %v915 = vrcp.pop %v857
    %v916 = vmul.f32 %v857, %v915
    %v917 = vsub.f32 1.0, %v916
    %v918 = vmul.f32 %v915, %v917
    %v919 = vadd.f32 %v915, %v918
    %vm920 = vweird.f32 %v857
    %vm921 = vweird.f32 %v915
    %vm922 = vmor %vm920, %vm921
    %v923 = vsel %vm922, %v915, %v919
    %v924 = vand.u32 2147483647, %v857
    %vm925 = vcmp.eq.f32.partialorder %v924, 8.507059e+37
    %v926 = vand.u32 %v857, 2147483648
    %v927 = vor.u32 1.1754944e-38, %v926
    %v928 = vsel %vm925, %v927, %v923
    %v929 = vmul.f32 %v837, %v928
    %v930 = vrcp.pop %v860
    %v931 = vmul.f32 %v860, %v930
    %v932 = vsub.f32 1.0, %v931
    %v933 = vmul.f32 %v930, %v932
    %v934 = vadd.f32 %v930, %v933
    %vm935 = vweird.f32 %v860
    %vm936 = vweird.f32 %v930
    %vm937 = vmor %vm935, %vm936
    %v938 = vsel %vm937, %v930, %v934
    %v939 = vand.u32 2147483647, %v860
    %vm940 = vcmp.eq.f32.partialorder %v939, 8.507059e+37
    %v941 = vand.u32 %v860, 2147483648
    %v942 = vor.u32 1.1754944e-38, %v941
    %v943 = vsel %vm940, %v942, %v938
    %v944 = vmul.f32 %v839, %v943
    %v945 = vrcp.pop %v863
    %v946 = vmul.f32 %v863, %v945
    %v947 = vsub.f32 1.0, %v946
    %v948 = vmul.f32 %v945, %v947
    %v949 = vadd.f32 %v945, %v948
    %vm950 = vweird.f32 %v863
    %vm951 = vweird.f32 %v945
    %vm952 = vmor %vm950, %vm951
    %v953 = vsel %vm952, %v945, %v949
    %v954 = vand.u32 2147483647, %v863
    %vm955 = vcmp.eq.f32.partialorder %v954, 8.507059e+37
    %v956 = vand.u32 %v863, 2147483648
    %v957 = vor.u32 1.1754944e-38, %v956
    %v958 = vsel %vm955, %v957, %v953
    %v959 = vmul.f32 %v841, %v958
    %v960 = vrcp.pop %v866
    %v961 = vmul.f32 %v866, %v960
    %v962 = vsub.f32 1.0, %v961
    %v963 = vmul.f32 %v960, %v962
    %v964 = vadd.f32 %v960, %v963
    %vm965 = vweird.f32 %v866
    %vm966 = vweird.f32 %v960
    %vm967 = vmor %vm965, %vm966
    %v968 = vsel %vm967, %v960, %v964
    %v969 = vand.u32 2147483647, %v866
    %vm970 = vcmp.eq.f32.partialorder %v969, 8.507059e+37
    %v971 = vand.u32 %v866, 2147483648
    %v972 = vor.u32 1.1754944e-38, %v971
    %v973 = vsel %vm970, %v972, %v968
    %v974 = vmul.f32 %v843, %v973
    %v975 = vrcp.pop %v869
    %v976 = vmul.f32 %v869, %v975
    %v977 = vsub.f32 1.0, %v976
    %v978 = vmul.f32 %v975, %v977
    %v979 = vadd.f32 %v975, %v978
    %vm980 = vweird.f32 %v869
    %vm981 = vweird.f32 %v975
    %vm982 = vmor %vm980, %vm981
    %v983 = vsel %vm982, %v975, %v979
    %v984 = vand.u32 2147483647, %v869
    %vm985 = vcmp.eq.f32.partialorder %v984, 8.507059e+37
    %v986 = vand.u32 %v869, 2147483648
    %v987 = vor.u32 1.1754944e-38, %v986
    %v988 = vsel %vm985, %v987, %v983
    %v989 = vmul.f32 %v845, %v988
    %990 = vrot.lane.b32.xlu0 %v648, 64
    %v991 = vpop.permute.xlu0 %990
    %992 = vrot.lane.b32.xlu0 %v650, 64
    %v993 = vpop.permute.xlu0 %992
    %994 = vrot.lane.b32.xlu0 %v653, 64
    %v995 = vpop.permute.xlu0 %994
    %996 = vrot.lane.b32.xlu0 %v655, 64
    %v997 = vpop.permute.xlu0 %996
    %v1003 = vsel %vm244, %v884, 0
    %v1006 = vsel %vm244, %v899, 0
    %v1009 = vsel %vm244, %v914, 0
    %v1012 = vsel %vm244, %v929, 0
    %1014 = vmatpush.msra.mxu0 0.0
    %1015 = vmatpush.msra.mxu0 0.0
    %1016 = vmatpush.msra.mxu0 0.0
    %1017 = vmatpush.msra.mxu0 0.0
    %1018 = vmatpush.msra.mxu0 0.0
    %1019 = vmatpush.msra.mxu0 0.0
    %1020 = vmatpush.msra.mxu0 0.0
    %1021 = vmatpush.msra.mxu0 0.0
    %1022 = vmatpush.msra.mxu0 0.0
    %1023 = vmatpush.msra.mxu0 0.0
    %1024 = vmatpush.msra.mxu0 0.0
    %1025 = vmatpush.msra.mxu0 0.0
    %1026 = vmatpush.msra.mxu0 %v997
    %1027 = vmatpush.msra.mxu0 %v995
    %1028 = vmatpush.msra.mxu0 %v993
    %1029 = vmatpush.msra.mxu0 %v991
    %1030 = vmatmul.f32.gmra.mxu0 %v1003
    %v1031 = vpop.f32.mrf.mxu0
    %v1032 = vadd.f32 0.0, %v1031
    %1033 = vmatmul.f32.gmra.mxu0 %v1006
    %v1034 = vpop.f32.mrf.mxu0
    %v1035 = vadd.f32 0.0, %v1034
    %1036 = vmatmul.f32.gmra.mxu0 %v1009
    %v1037 = vpop.f32.mrf.mxu0
    %v1038 = vadd.f32 0.0, %v1037
    %1039 = vmatmul.f32.gmra.mxu0 %v1012
    %v1040 = vpop.f32.mrf.mxu0
    %v1041 = vadd.f32 0.0, %v1040
    %1042 = vdwg.mxu0
    %1043 = vrot.lane.b32.xlu0 %v658, 64
    %v1044 = vpop.permute.xlu0 %1043
    %1045 = vrot.lane.b32.xlu0 %v660, 64
    %v1046 = vpop.permute.xlu0 %1045
    %1047 = vrot.lane.b32.xlu0 %v663, 64
    %v1048 = vpop.permute.xlu0 %1047
    %1049 = vrot.lane.b32.xlu0 %v665, 64
    %v1050 = vpop.permute.xlu0 %1049
    %v1056 = vsel %vm244, %v944, 0
    %v1059 = vsel %vm244, %v959, 0
    %v1062 = vsel %vm244, %v974, 0
    %v1065 = vsel %vm244, %v989, 0
    %1067 = vmatpush.msra.mxu0 0.0
    %1068 = vmatpush.msra.mxu0 0.0
    %1069 = vmatpush.msra.mxu0 0.0
    %1070 = vmatpush.msra.mxu0 0.0
    %1071 = vmatpush.msra.mxu0 0.0
    %1072 = vmatpush.msra.mxu0 0.0
    %1073 = vmatpush.msra.mxu0 0.0
    %1074 = vmatpush.msra.mxu0 0.0
    %1075 = vmatpush.msra.mxu0 0.0
    %1076 = vmatpush.msra.mxu0 0.0
    %1077 = vmatpush.msra.mxu0 0.0
    %1078 = vmatpush.msra.mxu0 0.0
    %1079 = vmatpush.msra.mxu0 %v1050
    %1080 = vmatpush.msra.mxu0 %v1048
    %1081 = vmatpush.msra.mxu0 %v1046
    %1082 = vmatpush.msra.mxu0 %v1044
    %1083 = vmatmul.f32.gmra.mxu0 %v1056
    %v1084 = vpop.f32.mrf.mxu0
    %v1085 = vadd.f32 0.0, %v1084
    %1086 = vmatmul.f32.gmra.mxu0 %v1059
    %v1087 = vpop.f32.mrf.mxu0
    %v1088 = vadd.f32 0.0, %v1087
    %1089 = vmatmul.f32.gmra.mxu0 %v1062
    %v1090 = vpop.f32.mrf.mxu0
    %v1091 = vadd.f32 0.0, %v1090
    %1092 = vmatmul.f32.gmra.mxu0 %v1065
    %v1093 = vpop.f32.mrf.mxu0
    %v1094 = vadd.f32 0.0, %v1093
    %1095 = vdwg.mxu0
    %1096 = vrot.lane.b32.xlu0 %v648, 120
    %v1097 = vpop.permute.xlu0 %1096
    %1098 = vrot.lane.b32.xlu0 %v650, 120
    %v1099 = vpop.permute.xlu0 %1098
    %1100 = vrot.lane.b32.xlu0 %v653, 120
    %v1101 = vpop.permute.xlu0 %1100
    %1102 = vrot.lane.b32.xlu0 %v655, 120
    %v1103 = vpop.permute.xlu0 %1102
    %1104 = vrot.lane.b32.xlu0 %v648, 88
    %v1105 = vpop.permute.xlu0 %1104
    %1106 = vrot.lane.b32.xlu0 %v650, 88
    %v1107 = vpop.permute.xlu0 %1106
    %1108 = vrot.lane.b32.xlu0 %v653, 88
    %v1109 = vpop.permute.xlu0 %1108
    %1110 = vrot.lane.b32.xlu0 %v655, 88
    %v1111 = vpop.permute.xlu0 %1110
    %v1112 = vsel %vm679, %v1097, 0
    %v1114 = vsel %vm679, %v1099, 0
    %v1116 = vsel %vm679, %v1101, 0
    %v1118 = vsel %vm679, %v1103, 0
    %v1120 = vsel %vm679, %v1105, 0
    %v1122 = vsel %vm679, %v1107, 0
    %v1124 = vsel %vm679, %v1109, 0
    %v1126 = vsel %vm679, %v1111, 0
    %1128 = vmatpush.xpose.msra.mxu0 0.0
    %1129 = vmatpush.xpose.msra.mxu0 0.0
    %1130 = vmatpush.xpose.msra.mxu0 0.0
    %1131 = vmatpush.xpose.msra.mxu0 0.0
    %1132 = vmatpush.xpose.msra.mxu0 0.0
    %1133 = vmatpush.xpose.msra.mxu0 0.0
    %1134 = vmatpush.xpose.msra.mxu0 0.0
    %1135 = vmatpush.xpose.msra.mxu0 0.0
    %1136 = vmatpush.xpose.msra.mxu0 0.0
    %1137 = vmatpush.xpose.msra.mxu0 0.0
    %1138 = vmatpush.xpose.msra.mxu0 0.0
    %1139 = vmatpush.xpose.msra.mxu0 0.0
    %1140 = vmatpush.xpose.msra.mxu0 %v1126
    %1141 = vmatpush.xpose.msra.mxu0 %v1124
    %1142 = vmatpush.xpose.msra.mxu0 %v1122
    %1143 = vmatpush.xpose.msra.mxu0 %v1120
    %1144 = vmatmul.f32.gmra.mxu0 %v1112
    %v1145 = vpop.f32.mrf.mxu0
    %v1146 = vadd.f32 0.0, %v1145
    %1147 = vmatmul.f32.gmra.mxu0 %v1114
    %v1148 = vpop.f32.mrf.mxu0
    %v1149 = vadd.f32 0.0, %v1148
    %1150 = vmatmul.f32.gmra.mxu0 %v1116
    %v1151 = vpop.f32.mrf.mxu0
    %v1152 = vadd.f32 0.0, %v1151
    %1153 = vmatmul.f32.gmra.mxu0 %v1118
    %v1154 = vpop.f32.mrf.mxu0
    %v1155 = vadd.f32 0.0, %v1154
    %1156 = vdwg.mxu0
    %1157 = vrot.lane.b32.xlu0 %v658, 120
    %v1158 = vpop.permute.xlu0 %1157
    %1159 = vrot.lane.b32.xlu0 %v660, 120
    %v1160 = vpop.permute.xlu0 %1159
    %1161 = vrot.lane.b32.xlu0 %v663, 120
    %v1162 = vpop.permute.xlu0 %1161
    %1163 = vrot.lane.b32.xlu0 %v665, 120
    %v1164 = vpop.permute.xlu0 %1163
    %1165 = vrot.lane.b32.xlu0 %v658, 88
    %v1166 = vpop.permute.xlu0 %1165
    %1167 = vrot.lane.b32.xlu0 %v660, 88
    %v1168 = vpop.permute.xlu0 %1167
    %1169 = vrot.lane.b32.xlu0 %v663, 88
    %v1170 = vpop.permute.xlu0 %1169
    %1171 = vrot.lane.b32.xlu0 %v665, 88
    %v1172 = vpop.permute.xlu0 %1171
    %v1173 = vsel %vm679, %v1158, 0
    %v1175 = vsel %vm679, %v1160, 0
    %v1177 = vsel %vm679, %v1162, 0
    %v1179 = vsel %vm679, %v1164, 0
    %v1181 = vsel %vm679, %v1166, 0
    %v1183 = vsel %vm679, %v1168, 0
    %v1185 = vsel %vm679, %v1170, 0
    %v1187 = vsel %vm679, %v1172, 0
    %1189 = vmatpush.xpose.msra.mxu0 0.0
    %1190 = vmatpush.xpose.msra.mxu0 0.0
    %1191 = vmatpush.xpose.msra.mxu0 0.0
    %1192 = vmatpush.xpose.msra.mxu0 0.0
    %1193 = vmatpush.xpose.msra.mxu0 0.0
    %1194 = vmatpush.xpose.msra.mxu0 0.0
    %1195 = vmatpush.xpose.msra.mxu0 0.0
    %1196 = vmatpush.xpose.msra.mxu0 0.0
    %1197 = vmatpush.xpose.msra.mxu0 0.0
    %1198 = vmatpush.xpose.msra.mxu0 0.0
    %1199 = vmatpush.xpose.msra.mxu0 0.0
    %1200 = vmatpush.xpose.msra.mxu0 0.0
    %1201 = vmatpush.xpose.msra.mxu0 %v1187
    %1202 = vmatpush.xpose.msra.mxu0 %v1185
    %1203 = vmatpush.xpose.msra.mxu0 %v1183
    %1204 = vmatpush.xpose.msra.mxu0 %v1181
    %1205 = vmatmul.f32.gmra.mxu0 %v1173
    %v1206 = vpop.f32.mrf.mxu0
    %v1207 = vadd.f32 0.0, %v1206
    %1208 = vmatmul.f32.gmra.mxu0 %v1175
    %v1209 = vpop.f32.mrf.mxu0
    %v1210 = vadd.f32 0.0, %v1209
    %1211 = vmatmul.f32.gmra.mxu0 %v1177
    %v1212 = vpop.f32.mrf.mxu0
    %v1213 = vadd.f32 0.0, %v1212
    %1214 = vmatmul.f32.gmra.mxu0 %v1179
    %v1215 = vpop.f32.mrf.mxu0
    %v1216 = vadd.f32 0.0, %v1215
    %1217 = vdwg.mxu0
    %v1218 = vmul.f32 %v1146, 0.35355338
    %v1219 = vmul.f32 %v1149, 0.35355338
    %v1220 = vmul.f32 %v1152, 0.35355338
    %v1221 = vmul.f32 %v1155, 0.35355338
    %v1222 = vmul.f32 %v1207, 0.35355338
    %v1223 = vmul.f32 %v1210, 0.35355338
    %v1224 = vmul.f32 %v1213, 0.35355338
    %v1225 = vmul.f32 %v1216, 0.35355338
    %v1226 = vadd.f32 %v1218, %v398
    %v1227 = vadd.f32 %v1219, %v398
    %v1228 = vadd.f32 %v1220, %v398
    %v1229 = vadd.f32 %v1221, %v398
    %v1230 = vadd.f32 %v1222, %v399
    %v1231 = vadd.f32 %v1223, %v399
    %v1232 = vadd.f32 %v1224, %v399
    %v1233 = vadd.f32 %v1225, %v399
    %v1234 = vsel %vm244, %v1226, -inf
    %1235 = vmax.xlane.f32.xlu0 %v1234
    %v1236 = vpop.xlane.xlu0 %1235
    %v1237 = vsel %vm244, %v1227, -inf
    %1238 = vmax.xlane.f32.xlu0 %v1237
    %v1239 = vpop.xlane.xlu0 %1238
    %v1240 = vsel %vm244, %v1228, -inf
    %1241 = vmax.xlane.f32.xlu0 %v1240
    %v1242 = vpop.xlane.xlu0 %1241
    %v1243 = vsel %vm244, %v1229, -inf
    %1244 = vmax.xlane.f32.xlu0 %v1243
    %v1245 = vpop.xlane.xlu0 %1244
    %v1246 = vsel %vm244, %v1230, -inf
    %1247 = vmax.xlane.f32.xlu0 %v1246
    %v1248 = vpop.xlane.xlu0 %1247
    %v1249 = vsel %vm244, %v1231, -inf
    %1250 = vmax.xlane.f32.xlu0 %v1249
    %v1251 = vpop.xlane.xlu0 %1250
    %v1252 = vsel %vm244, %v1232, -inf
    %1253 = vmax.xlane.f32.xlu0 %v1252
    %v1254 = vpop.xlane.xlu0 %1253
    %v1255 = vsel %vm244, %v1233, -inf
    %1256 = vmax.xlane.f32.xlu0 %v1255
    %v1257 = vpop.xlane.xlu0 %1256
    %v1258 = vsub.f32 %v1226, %v1236
    %v1259 = vsub.f32 %v1227, %v1239
    %v1260 = vsub.f32 %v1228, %v1242
    %v1261 = vsub.f32 %v1229, %v1245
    %v1262 = vsub.f32 %v1230, %v1248
    %v1263 = vsub.f32 %v1231, %v1251
    %v1264 = vsub.f32 %v1232, %v1254
    %v1265 = vsub.f32 %v1233, %v1257
    %v1266 = vmul.f32 %v1258, 1.442695
    %v1267 = vpow.pop %v1266
    %v1268 = vmul.f32 %v1259, 1.442695
    %v1269 = vpow.pop %v1268
    %v1270 = vmul.f32 %v1260, 1.442695
    %v1271 = vpow.pop %v1270
    %v1272 = vmul.f32 %v1261, 1.442695
    %v1273 = vpow.pop %v1272
    %v1274 = vmul.f32 %v1262, 1.442695
    %v1275 = vpow.pop %v1274
    %v1276 = vmul.f32 %v1263, 1.442695
    %v1277 = vpow.pop %v1276
    %v1278 = vmul.f32 %v1264, 1.442695
    %v1279 = vpow.pop %v1278
    %v1280 = vmul.f32 %v1265, 1.442695
    %v1281 = vpow.pop %v1280
    %v1282 = vsel %vm244, %v1267, 0.0
    %1283 = vadd.xlane.f32.xlu0 %v1282
    %v1284 = vpop.xlane.xlu0 %1283
    %v1285 = vsel %vm244, %v1269, 0.0
    %1286 = vadd.xlane.f32.xlu0 %v1285
    %v1287 = vpop.xlane.xlu0 %1286
    %v1288 = vsel %vm244, %v1271, 0.0
    %1289 = vadd.xlane.f32.xlu0 %v1288
    %v1290 = vpop.xlane.xlu0 %1289
    %v1291 = vsel %vm244, %v1273, 0.0
    %1292 = vadd.xlane.f32.xlu0 %v1291
    %v1293 = vpop.xlane.xlu0 %1292
    %v1294 = vsel %vm244, %v1275, 0.0
    %1295 = vadd.xlane.f32.xlu0 %v1294
    %v1296 = vpop.xlane.xlu0 %1295
    %v1297 = vsel %vm244, %v1277, 0.0
    %1298 = vadd.xlane.f32.xlu0 %v1297
    %v1299 = vpop.xlane.xlu0 %1298
    %v1300 = vsel %vm244, %v1279, 0.0
    %1301 = vadd.xlane.f32.xlu0 %v1300
    %v1302 = vpop.xlane.xlu0 %1301
    %v1303 = vsel %vm244, %v1281, 0.0
    %1304 = vadd.xlane.f32.xlu0 %v1303
    %v1305 = vpop.xlane.xlu0 %1304
    %v1306 = vrcp.pop %v1284
    %v1307 = vmul.f32 %v1284, %v1306
    %v1308 = vsub.f32 1.0, %v1307
    %v1309 = vmul.f32 %v1306, %v1308
    %v1310 = vadd.f32 %v1306, %v1309
    %vm1311 = vweird.f32 %v1284
    %vm1312 = vweird.f32 %v1306
    %vm1313 = vmor %vm1311, %vm1312
    %v1314 = vsel %vm1313, %v1306, %v1310
    %v1315 = vand.u32 2147483647, %v1284
    %vm1316 = vcmp.eq.f32.partialorder %v1315, 8.507059e+37
    %v1317 = vand.u32 %v1284, 2147483648
    %v1318 = vor.u32 1.1754944e-38, %v1317
    %v1319 = vsel %vm1316, %v1318, %v1314
    %v1320 = vmul.f32 %v1267, %v1319
    %v1321 = vrcp.pop %v1287
    %v1322 = vmul.f32 %v1287, %v1321
    %v1323 = vsub.f32 1.0, %v1322
    %v1324 = vmul.f32 %v1321, %v1323
    %v1325 = vadd.f32 %v1321, %v1324
    %vm1326 = vweird.f32 %v1287
    %vm1327 = vweird.f32 %v1321
    %vm1328 = vmor %vm1326, %vm1327
    %v1329 = vsel %vm1328, %v1321, %v1325
    %v1330 = vand.u32 2147483647, %v1287
    %vm1331 = vcmp.eq.f32.partialorder %v1330, 8.507059e+37
    %v1332 = vand.u32 %v1287, 2147483648
    %v1333 = vor.u32 1.1754944e-38, %v1332
    %v1334 = vsel %vm1331, %v1333, %v1329
    %v1335 = vmul.f32 %v1269, %v1334
    %v1336 = vrcp.pop %v1290
    %v1337 = vmul.f32 %v1290, %v1336
    %v1338 = vsub.f32 1.0, %v1337
    %v1339 = vmul.f32 %v1336, %v1338
    %v1340 = vadd.f32 %v1336, %v1339
    %vm1341 = vweird.f32 %v1290
    %vm1342 = vweird.f32 %v1336
    %vm1343 = vmor %vm1341, %vm1342
    %v1344 = vsel %vm1343, %v1336, %v1340
    %v1345 = vand.u32 2147483647, %v1290
    %vm1346 = vcmp.eq.f32.partialorder %v1345, 8.507059e+37
    %v1347 = vand.u32 %v1290, 2147483648
    %v1348 = vor.u32 1.1754944e-38, %v1347
    %v1349 = vsel %vm1346, %v1348, %v1344
    %v1350 = vmul.f32 %v1271, %v1349
    %v1351 = vrcp.pop %v1293
    %v1352 = vmul.f32 %v1293, %v1351
    %v1353 = vsub.f32 1.0, %v1352
    %v1354 = vmul.f32 %v1351, %v1353
    %v1355 = vadd.f32 %v1351, %v1354
    %vm1356 = vweird.f32 %v1293
    %vm1357 = vweird.f32 %v1351
    %vm1358 = vmor %vm1356, %vm1357
    %v1359 = vsel %vm1358, %v1351, %v1355
    %v1360 = vand.u32 2147483647, %v1293
    %vm1361 = vcmp.eq.f32.partialorder %v1360, 8.507059e+37
    %v1362 = vand.u32 %v1293, 2147483648
    %v1363 = vor.u32 1.1754944e-38, %v1362
    %v1364 = vsel %vm1361, %v1363, %v1359
    %v1365 = vmul.f32 %v1273, %v1364
    %v1366 = vrcp.pop %v1296
    %v1367 = vmul.f32 %v1296, %v1366
    %v1368 = vsub.f32 1.0, %v1367
    %v1369 = vmul.f32 %v1366, %v1368
    %v1370 = vadd.f32 %v1366, %v1369
    %vm1371 = vweird.f32 %v1296
    %vm1372 = vweird.f32 %v1366
    %vm1373 = vmor %vm1371, %vm1372
    %v1374 = vsel %vm1373, %v1366, %v1370
    %v1375 = vand.u32 2147483647, %v1296
    %vm1376 = vcmp.eq.f32.partialorder %v1375, 8.507059e+37
    %v1377 = vand.u32 %v1296, 2147483648
    %v1378 = vor.u32 1.1754944e-38, %v1377
    %v1379 = vsel %vm1376, %v1378, %v1374
    %v1380 = vmul.f32 %v1275, %v1379
    %v1381 = vrcp.pop %v1299
    %v1382 = vmul.f32 %v1299, %v1381
    %v1383 = vsub.f32 1.0, %v1382
    %v1384 = vmul.f32 %v1381, %v1383
    %v1385 = vadd.f32 %v1381, %v1384
    %vm1386 = vweird.f32 %v1299
    %vm1387 = vweird.f32 %v1381
    %vm1388 = vmor %vm1386, %vm1387
    %v1389 = vsel %vm1388, %v1381, %v1385
    %v1390 = vand.u32 2147483647, %v1299
    %vm1391 = vcmp.eq.f32.partialorder %v1390, 8.507059e+37
    %v1392 = vand.u32 %v1299, 2147483648
    %v1393 = vor.u32 1.1754944e-38, %v1392
    %v1394 = vsel %vm1391, %v1393, %v1389
    %v1395 = vmul.f32 %v1277, %v1394
    %v1396 = vrcp.pop %v1302
    %v1397 = vmul.f32 %v1302, %v1396
    %v1398 = vsub.f32 1.0, %v1397
    %v1399 = vmul.f32 %v1396, %v1398
    %v1400 = vadd.f32 %v1396, %v1399
    %vm1401 = vweird.f32 %v1302
    %vm1402 = vweird.f32 %v1396
    %vm1403 = vmor %vm1401, %vm1402
    %v1404 = vsel %vm1403, %v1396, %v1400
    %v1405 = vand.u32 2147483647, %v1302
    %vm1406 = vcmp.eq.f32.partialorder %v1405, 8.507059e+37
    %v1407 = vand.u32 %v1302, 2147483648
    %v1408 = vor.u32 1.1754944e-38, %v1407
    %v1409 = vsel %vm1406, %v1408, %v1404
    %v1410 = vmul.f32 %v1279, %v1409
    %v1411 = vrcp.pop %v1305
    %v1412 = vmul.f32 %v1305, %v1411
    %v1413 = vsub.f32 1.0, %v1412
    %v1414 = vmul.f32 %v1411, %v1413
    %v1415 = vadd.f32 %v1411, %v1414
    %vm1416 = vweird.f32 %v1305
    %vm1417 = vweird.f32 %v1411
    %vm1418 = vmor %vm1416, %vm1417
    %v1419 = vsel %vm1418, %v1411, %v1415
    %v1420 = vand.u32 2147483647, %v1305
    %vm1421 = vcmp.eq.f32.partialorder %v1420, 8.507059e+37
    %v1422 = vand.u32 %v1305, 2147483648
    %v1423 = vor.u32 1.1754944e-38, %v1422
    %v1424 = vsel %vm1421, %v1423, %v1419
    %v1425 = vmul.f32 %v1281, %v1424
    %1426 = vrot.lane.b32.xlu0 %v648, 56
    %v1427 = vpop.permute.xlu0 %1426
    %1428 = vrot.lane.b32.xlu0 %v650, 56
    %v1429 = vpop.permute.xlu0 %1428
    %1430 = vrot.lane.b32.xlu0 %v653, 56
    %v1431 = vpop.permute.xlu0 %1430
    %1432 = vrot.lane.b32.xlu0 %v655, 56
    %v1433 = vpop.permute.xlu0 %1432
    %v1439 = vsel %vm244, %v1320, 0
    %v1442 = vsel %vm244, %v1335, 0
    %v1445 = vsel %vm244, %v1350, 0
    %v1448 = vsel %vm244, %v1365, 0
    %1450 = vmatpush.msra.mxu0 0.0
    %1451 = vmatpush.msra.mxu0 0.0
    %1452 = vmatpush.msra.mxu0 0.0
    %1453 = vmatpush.msra.mxu0 0.0
    %1454 = vmatpush.msra.mxu0 0.0
    %1455 = vmatpush.msra.mxu0 0.0
    %1456 = vmatpush.msra.mxu0 0.0
    %1457 = vmatpush.msra.mxu0 0.0
    %1458 = vmatpush.msra.mxu0 0.0
    %1459 = vmatpush.msra.mxu0 0.0
    %1460 = vmatpush.msra.mxu0 0.0
    %1461 = vmatpush.msra.mxu0 0.0
    %1462 = vmatpush.msra.mxu0 %v1433
    %1463 = vmatpush.msra.mxu0 %v1431
    %1464 = vmatpush.msra.mxu0 %v1429
    %1465 = vmatpush.msra.mxu0 %v1427
    %1466 = vmatmul.f32.gmra.mxu0 %v1439
    %v1467 = vpop.f32.mrf.mxu0
    %v1468 = vadd.f32 0.0, %v1467
    %1469 = vmatmul.f32.gmra.mxu0 %v1442
    %v1470 = vpop.f32.mrf.mxu0
    %v1471 = vadd.f32 0.0, %v1470
    %1472 = vmatmul.f32.gmra.mxu0 %v1445
    %v1473 = vpop.f32.mrf.mxu0
    %v1474 = vadd.f32 0.0, %v1473
    %1475 = vmatmul.f32.gmra.mxu0 %v1448
    %v1476 = vpop.f32.mrf.mxu0
    %v1477 = vadd.f32 0.0, %v1476
    %1478 = vdwg.mxu0
    %1479 = vrot.lane.b32.xlu0 %v658, 56
    %v1480 = vpop.permute.xlu0 %1479
    %1481 = vrot.lane.b32.xlu0 %v660, 56
    %v1482 = vpop.permute.xlu0 %1481
    %1483 = vrot.lane.b32.xlu0 %v663, 56
    %v1484 = vpop.permute.xlu0 %1483
    %1485 = vrot.lane.b32.xlu0 %v665, 56
    %v1486 = vpop.permute.xlu0 %1485
    %v1492 = vsel %vm244, %v1380, 0
    %v1495 = vsel %vm244, %v1395, 0
    %v1498 = vsel %vm244, %v1410, 0
    %v1501 = vsel %vm244, %v1425, 0
    %1503 = vmatpush.msra.mxu0 0.0
    %1504 = vmatpush.msra.mxu0 0.0
    %1505 = vmatpush.msra.mxu0 0.0
    %1506 = vmatpush.msra.mxu0 0.0
    %1507 = vmatpush.msra.mxu0 0.0
    %1508 = vmatpush.msra.mxu0 0.0
    %1509 = vmatpush.msra.mxu0 0.0
    %1510 = vmatpush.msra.mxu0 0.0
    %1511 = vmatpush.msra.mxu0 0.0
    %1512 = vmatpush.msra.mxu0 0.0
    %1513 = vmatpush.msra.mxu0 0.0
    %1514 = vmatpush.msra.mxu0 0.0
    %1515 = vmatpush.msra.mxu0 %v1486
    %1516 = vmatpush.msra.mxu0 %v1484
    %1517 = vmatpush.msra.mxu0 %v1482
    %1518 = vmatpush.msra.mxu0 %v1480
    %1519 = vmatmul.f32.gmra.mxu0 %v1492
    %v1520 = vpop.f32.mrf.mxu0
    %v1521 = vadd.f32 0.0, %v1520
    %1522 = vmatmul.f32.gmra.mxu0 %v1495
    %v1523 = vpop.f32.mrf.mxu0
    %v1524 = vadd.f32 0.0, %v1523
    %1525 = vmatmul.f32.gmra.mxu0 %v1498
    %v1526 = vpop.f32.mrf.mxu0
    %v1527 = vadd.f32 0.0, %v1526
    %1528 = vmatmul.f32.gmra.mxu0 %v1501
    %v1529 = vpop.f32.mrf.mxu0
    %v1530 = vadd.f32 0.0, %v1529
    %1531 = vdwg.mxu0
    %1532 = vrot.lane.b32.xlu0 %v648, 112
    %v1533 = vpop.permute.xlu0 %1532
    %1534 = vrot.lane.b32.xlu0 %v650, 112
    %v1535 = vpop.permute.xlu0 %1534
    %1536 = vrot.lane.b32.xlu0 %v653, 112
    %v1537 = vpop.permute.xlu0 %1536
    %1538 = vrot.lane.b32.xlu0 %v655, 112
    %v1539 = vpop.permute.xlu0 %1538
    %1540 = vrot.lane.b32.xlu0 %v648, 80
    %v1541 = vpop.permute.xlu0 %1540
    %1542 = vrot.lane.b32.xlu0 %v650, 80
    %v1543 = vpop.permute.xlu0 %1542
    %1544 = vrot.lane.b32.xlu0 %v653, 80
    %v1545 = vpop.permute.xlu0 %1544
    %1546 = vrot.lane.b32.xlu0 %v655, 80
    %v1547 = vpop.permute.xlu0 %1546
    %v1548 = vsel %vm679, %v1533, 0
    %v1550 = vsel %vm679, %v1535, 0
    %v1552 = vsel %vm679, %v1537, 0
    %v1554 = vsel %vm679, %v1539, 0
    %v1556 = vsel %vm679, %v1541, 0
    %v1558 = vsel %vm679, %v1543, 0
    %v1560 = vsel %vm679, %v1545, 0
    %v1562 = vsel %vm679, %v1547, 0
    %1564 = vmatpush.xpose.msra.mxu0 0.0
    %1565 = vmatpush.xpose.msra.mxu0 0.0
    %1566 = vmatpush.xpose.msra.mxu0 0.0
    %1567 = vmatpush.xpose.msra.mxu0 0.0
    %1568 = vmatpush.xpose.msra.mxu0 0.0
    %1569 = vmatpush.xpose.msra.mxu0 0.0
    %1570 = vmatpush.xpose.msra.mxu0 0.0
    %1571 = vmatpush.xpose.msra.mxu0 0.0
    %1572 = vmatpush.xpose.msra.mxu0 0.0
    %1573 = vmatpush.xpose.msra.mxu0 0.0
    %1574 = vmatpush.xpose.msra.mxu0 0.0
    %1575 = vmatpush.xpose.msra.mxu0 0.0
    %1576 = vmatpush.xpose.msra.mxu0 %v1562
    %1577 = vmatpush.xpose.msra.mxu0 %v1560
    %1578 = vmatpush.xpose.msra.mxu0 %v1558
    %1579 = vmatpush.xpose.msra.mxu0 %v1556
    %1580 = vmatmul.f32.gmra.mxu0 %v1548
    %v1581 = vpop.f32.mrf.mxu0
    %v1582 = vadd.f32 0.0, %v1581
    %1583 = vmatmul.f32.gmra.mxu0 %v1550
    %v1584 = vpop.f32.mrf.mxu0
    %v1585 = vadd.f32 0.0, %v1584
    %1586 = vmatmul.f32.gmra.mxu0 %v1552
    %v1587 = vpop.f32.mrf.mxu0
    %v1588 = vadd.f32 0.0, %v1587
    %1589 = vmatmul.f32.gmra.mxu0 %v1554
    %v1590 = vpop.f32.mrf.mxu0
    %v1591 = vadd.f32 0.0, %v1590
    %1592 = vdwg.mxu0
    %1593 = vrot.lane.b32.xlu0 %v658, 112
    %v1594 = vpop.permute.xlu0 %1593
    %1595 = vrot.lane.b32.xlu0 %v660, 112
    %v1596 = vpop.permute.xlu0 %1595
    %1597 = vrot.lane.b32.xlu0 %v663, 112
    %v1598 = vpop.permute.xlu0 %1597
    %1599 = vrot.lane.b32.xlu0 %v665, 112
    %v1600 = vpop.permute.xlu0 %1599
    %1601 = vrot.lane.b32.xlu0 %v658, 80
    %v1602 = vpop.permute.xlu0 %1601
    %1603 = vrot.lane.b32.xlu0 %v660, 80
    %v1604 = vpop.permute.xlu0 %1603
    %1605 = vrot.lane.b32.xlu0 %v663, 80
    %v1606 = vpop.permute.xlu0 %1605
    %1607 = vrot.lane.b32.xlu0 %v665, 80
    %v1608 = vpop.permute.xlu0 %1607
    %v1609 = vsel %vm679, %v1594, 0
    %v1611 = vsel %vm679, %v1596, 0
    %v1613 = vsel %vm679, %v1598, 0
    %v1615 = vsel %vm679, %v1600, 0
    %v1617 = vsel %vm679, %v1602, 0
    %v1619 = vsel %vm679, %v1604, 0
    %v1621 = vsel %vm679, %v1606, 0
    %v1623 = vsel %vm679, %v1608, 0
    %1625 = vmatpush.xpose.msra.mxu0 0.0
    %1626 = vmatpush.xpose.msra.mxu0 0.0
    %1627 = vmatpush.xpose.msra.mxu0 0.0
    %1628 = vmatpush.xpose.msra.mxu0 0.0
    %1629 = vmatpush.xpose.msra.mxu0 0.0
    %1630 = vmatpush.xpose.msra.mxu0 0.0
    %1631 = vmatpush.xpose.msra.mxu0 0.0
    %1632 = vmatpush.xpose.msra.mxu0 0.0
    %1633 = vmatpush.xpose.msra.mxu0 0.0
    %1634 = vmatpush.xpose.msra.mxu0 0.0
    %1635 = vmatpush.xpose.msra.mxu0 0.0
    %1636 = vmatpush.xpose.msra.mxu0 0.0
    %1637 = vmatpush.xpose.msra.mxu0 %v1623
    %1638 = vmatpush.xpose.msra.mxu0 %v1621
    %1639 = vmatpush.xpose.msra.mxu0 %v1619
    %1640 = vmatpush.xpose.msra.mxu0 %v1617
    %1641 = vmatmul.f32.gmra.mxu0 %v1609
    %v1642 = vpop.f32.mrf.mxu0
    %v1643 = vadd.f32 0.0, %v1642
    %1644 = vmatmul.f32.gmra.mxu0 %v1611
    %v1645 = vpop.f32.mrf.mxu0
    %v1646 = vadd.f32 0.0, %v1645
    %1647 = vmatmul.f32.gmra.mxu0 %v1613
    %v1648 = vpop.f32.mrf.mxu0
    %v1649 = vadd.f32 0.0, %v1648
    %1650 = vmatmul.f32.gmra.mxu0 %v1615
    %v1651 = vpop.f32.mrf.mxu0
    %v1652 = vadd.f32 0.0, %v1651
    %1653 = vdwg.mxu0
    %v1654 = vmul.f32 %v1582, 0.35355338
    %v1655 = vmul.f32 %v1585, 0.35355338
    %v1656 = vmul.f32 %v1588, 0.35355338
    %v1657 = vmul.f32 %v1591, 0.35355338
    %v1658 = vmul.f32 %v1643, 0.35355338
    %v1659 = vmul.f32 %v1646, 0.35355338
    %v1660 = vmul.f32 %v1649, 0.35355338
    %v1661 = vmul.f32 %v1652, 0.35355338
    %v1662 = vadd.f32 %v1654, %v398
    %v1663 = vadd.f32 %v1655, %v398
    %v1664 = vadd.f32 %v1656, %v398
    %v1665 = vadd.f32 %v1657, %v398
    %v1666 = vadd.f32 %v1658, %v399
    %v1667 = vadd.f32 %v1659, %v399
    %v1668 = vadd.f32 %v1660, %v399
    %v1669 = vadd.f32 %v1661, %v399
    %v1670 = vsel %vm244, %v1662, -inf
    %1671 = vmax.xlane.f32.xlu0 %v1670
    %v1672 = vpop.xlane.xlu0 %1671
    %v1673 = vsel %vm244, %v1663, -inf
    %1674 = vmax.xlane.f32.xlu0 %v1673
    %v1675 = vpop.xlane.xlu0 %1674
    %v1676 = vsel %vm244, %v1664, -inf
    %1677 = vmax.xlane.f32.xlu0 %v1676
    %v1678 = vpop.xlane.xlu0 %1677
    %v1679 = vsel %vm244, %v1665, -inf
    %1680 = vmax.xlane.f32.xlu0 %v1679
    %v1681 = vpop.xlane.xlu0 %1680
    %v1682 = vsel %vm244, %v1666, -inf
    %1683 = vmax.xlane.f32.xlu0 %v1682
    %v1684 = vpop.xlane.xlu0 %1683
    %v1685 = vsel %vm244, %v1667, -inf
    %1686 = vmax.xlane.f32.xlu0 %v1685
    %v1687 = vpop.xlane.xlu0 %1686
    %v1688 = vsel %vm244, %v1668, -inf
    %1689 = vmax.xlane.f32.xlu0 %v1688
    %v1690 = vpop.xlane.xlu0 %1689
    %v1691 = vsel %vm244, %v1669, -inf
    %1692 = vmax.xlane.f32.xlu0 %v1691
    %v1693 = vpop.xlane.xlu0 %1692
    %v1694 = vsub.f32 %v1662, %v1672
    %v1695 = vsub.f32 %v1663, %v1675
    %v1696 = vsub.f32 %v1664, %v1678
    %v1697 = vsub.f32 %v1665, %v1681
    %v1698 = vsub.f32 %v1666, %v1684
    %v1699 = vsub.f32 %v1667, %v1687
    %v1700 = vsub.f32 %v1668, %v1690
    %v1701 = vsub.f32 %v1669, %v1693
    %v1702 = vmul.f32 %v1694, 1.442695
    %v1703 = vpow.pop %v1702
    %v1704 = vmul.f32 %v1695, 1.442695
    %v1705 = vpow.pop %v1704
    %v1706 = vmul.f32 %v1696, 1.442695
    %v1707 = vpow.pop %v1706
    %v1708 = vmul.f32 %v1697, 1.442695
    %v1709 = vpow.pop %v1708
    %v1710 = vmul.f32 %v1698, 1.442695
    %v1711 = vpow.pop %v1710
    %v1712 = vmul.f32 %v1699, 1.442695
    %v1713 = vpow.pop %v1712
    %v1714 = vmul.f32 %v1700, 1.442695
    %v1715 = vpow.pop %v1714
    %v1716 = vmul.f32 %v1701, 1.442695
    %v1717 = vpow.pop %v1716
    %v1718 = vsel %vm244, %v1703, 0.0
    %1719 = vadd.xlane.f32.xlu0 %v1718
    %v1720 = vpop.xlane.xlu0 %1719
    %v1721 = vsel %vm244, %v1705, 0.0
    %1722 = vadd.xlane.f32.xlu0 %v1721
    %v1723 = vpop.xlane.xlu0 %1722
    %v1724 = vsel %vm244, %v1707, 0.0
    %1725 = vadd.xlane.f32.xlu0 %v1724
    %v1726 = vpop.xlane.xlu0 %1725
    %v1727 = vsel %vm244, %v1709, 0.0
    %1728 = vadd.xlane.f32.xlu0 %v1727
    %v1729 = vpop.xlane.xlu0 %1728
    %v1730 = vsel %vm244, %v1711, 0.0
    %1731 = vadd.xlane.f32.xlu0 %v1730
    %v1732 = vpop.xlane.xlu0 %1731
    %v1733 = vsel %vm244, %v1713, 0.0
    %1734 = vadd.xlane.f32.xlu0 %v1733
    %v1735 = vpop.xlane.xlu0 %1734
    %v1736 = vsel %vm244, %v1715, 0.0
    %1737 = vadd.xlane.f32.xlu0 %v1736
    %v1738 = vpop.xlane.xlu0 %1737
    %v1739 = vsel %vm244, %v1717, 0.0
    %1740 = vadd.xlane.f32.xlu0 %v1739
    %v1741 = vpop.xlane.xlu0 %1740
    %v1742 = vrcp.pop %v1720
    %v1743 = vmul.f32 %v1720, %v1742
    %v1744 = vsub.f32 1.0, %v1743
    %v1745 = vmul.f32 %v1742, %v1744
    %v1746 = vadd.f32 %v1742, %v1745
    %vm1747 = vweird.f32 %v1720
    %vm1748 = vweird.f32 %v1742
    %vm1749 = vmor %vm1747, %vm1748
    %v1750 = vsel %vm1749, %v1742, %v1746
    %v1751 = vand.u32 2147483647, %v1720
    %vm1752 = vcmp.eq.f32.partialorder %v1751, 8.507059e+37
    %v1753 = vand.u32 %v1720, 2147483648
    %v1754 = vor.u32 1.1754944e-38, %v1753
    %v1755 = vsel %vm1752, %v1754, %v1750
    %v1756 = vmul.f32 %v1703, %v1755
    %v1757 = vrcp.pop %v1723
    %v1758 = vmul.f32 %v1723, %v1757
    %v1759 = vsub.f32 1.0, %v1758
    %v1760 = vmul.f32 %v1757, %v1759
    %v1761 = vadd.f32 %v1757, %v1760
    %vm1762 = vweird.f32 %v1723
    %vm1763 = vweird.f32 %v1757
    %vm1764 = vmor %vm1762, %vm1763
    %v1765 = vsel %vm1764, %v1757, %v1761
    %v1766 = vand.u32 2147483647, %v1723
    %vm1767 = vcmp.eq.f32.partialorder %v1766, 8.507059e+37
    %v1768 = vand.u32 %v1723, 2147483648
    %v1769 = vor.u32 1.1754944e-38, %v1768
    %v1770 = vsel %vm1767, %v1769, %v1765
    %v1771 = vmul.f32 %v1705, %v1770
    %v1772 = vrcp.pop %v1726
    %v1773 = vmul.f32 %v1726, %v1772
    %v1774 = vsub.f32 1.0, %v1773
    %v1775 = vmul.f32 %v1772, %v1774
    %v1776 = vadd.f32 %v1772, %v1775
    %vm1777 = vweird.f32 %v1726
    %vm1778 = vweird.f32 %v1772
    %vm1779 = vmor %vm1777, %vm1778
    %v1780 = vsel %vm1779, %v1772, %v1776
    %v1781 = vand.u32 2147483647, %v1726
    %vm1782 = vcmp.eq.f32.partialorder %v1781, 8.507059e+37
    %v1783 = vand.u32 %v1726, 2147483648
    %v1784 = vor.u32 1.1754944e-38, %v1783
    %v1785 = vsel %vm1782, %v1784, %v1780
    %v1786 = vmul.f32 %v1707, %v1785
    %v1787 = vrcp.pop %v1729
    %v1788 = vmul.f32 %v1729, %v1787
    %v1789 = vsub.f32 1.0, %v1788
    %v1790 = vmul.f32 %v1787, %v1789
    %v1791 = vadd.f32 %v1787, %v1790
    %vm1792 = vweird.f32 %v1729
    %vm1793 = vweird.f32 %v1787
    %vm1794 = vmor %vm1792, %vm1793
    %v1795 = vsel %vm1794, %v1787, %v1791
    %v1796 = vand.u32 2147483647, %v1729
    %vm1797 = vcmp.eq.f32.partialorder %v1796, 8.507059e+37
    %v1798 = vand.u32 %v1729, 2147483648
    %v1799 = vor.u32 1.1754944e-38, %v1798
    %v1800 = vsel %vm1797, %v1799, %v1795
    %v1801 = vmul.f32 %v1709, %v1800
    %v1802 = vrcp.pop %v1732
    %v1803 = vmul.f32 %v1732, %v1802
    %v1804 = vsub.f32 1.0, %v1803
    %v1805 = vmul.f32 %v1802, %v1804
    %v1806 = vadd.f32 %v1802, %v1805
    %vm1807 = vweird.f32 %v1732
    %vm1808 = vweird.f32 %v1802
    %vm1809 = vmor %vm1807, %vm1808
    %v1810 = vsel %vm1809, %v1802, %v1806
    %v1811 = vand.u32 2147483647, %v1732
    %vm1812 = vcmp.eq.f32.partialorder %v1811, 8.507059e+37
    %v1813 = vand.u32 %v1732, 2147483648
    %v1814 = vor.u32 1.1754944e-38, %v1813
    %v1815 = vsel %vm1812, %v1814, %v1810
    %v1816 = vmul.f32 %v1711, %v1815
    %v1817 = vrcp.pop %v1735
    %v1818 = vmul.f32 %v1735, %v1817
    %v1819 = vsub.f32 1.0, %v1818
    %v1820 = vmul.f32 %v1817, %v1819
    %v1821 = vadd.f32 %v1817, %v1820
    %vm1822 = vweird.f32 %v1735
    %vm1823 = vweird.f32 %v1817
    %vm1824 = vmor %vm1822, %vm1823
    %v1825 = vsel %vm1824, %v1817, %v1821
    %v1826 = vand.u32 2147483647, %v1735
    %vm1827 = vcmp.eq.f32.partialorder %v1826, 8.507059e+37
    %v1828 = vand.u32 %v1735, 2147483648
    %v1829 = vor.u32 1.1754944e-38, %v1828
    %v1830 = vsel %vm1827, %v1829, %v1825
    %v1831 = vmul.f32 %v1713, %v1830
    %v1832 = vrcp.pop %v1738
    %v1833 = vmul.f32 %v1738, %v1832
    %v1834 = vsub.f32 1.0, %v1833
    %v1835 = vmul.f32 %v1832, %v1834
    %v1836 = vadd.f32 %v1832, %v1835
    %vm1837 = vweird.f32 %v1738
    %vm1838 = vweird.f32 %v1832
    %vm1839 = vmor %vm1837, %vm1838
    %v1840 = vsel %vm1839, %v1832, %v1836
    %v1841 = vand.u32 2147483647, %v1738
    %vm1842 = vcmp.eq.f32.partialorder %v1841, 8.507059e+37
    %v1843 = vand.u32 %v1738, 2147483648
    %v1844 = vor.u32 1.1754944e-38, %v1843
    %v1845 = vsel %vm1842, %v1844, %v1840
    %v1846 = vmul.f32 %v1715, %v1845
    %v1847 = vrcp.pop %v1741
    %v1848 = vmul.f32 %v1741, %v1847
    %v1849 = vsub.f32 1.0, %v1848
    %v1850 = vmul.f32 %v1847, %v1849
    %v1851 = vadd.f32 %v1847, %v1850
    %vm1852 = vweird.f32 %v1741
    %vm1853 = vweird.f32 %v1847
    %vm1854 = vmor %vm1852, %vm1853
    %v1855 = vsel %vm1854, %v1847, %v1851
    %v1856 = vand.u32 2147483647, %v1741
    %vm1857 = vcmp.eq.f32.partialorder %v1856, 8.507059e+37
    %v1858 = vand.u32 %v1741, 2147483648
    %v1859 = vor.u32 1.1754944e-38, %v1858
    %v1860 = vsel %vm1857, %v1859, %v1855
    %v1861 = vmul.f32 %v1717, %v1860
    %1862 = vrot.lane.b32.xlu0 %v648, 48
    %v1863 = vpop.permute.xlu0 %1862
    %1864 = vrot.lane.b32.xlu0 %v650, 48
    %v1865 = vpop.permute.xlu0 %1864
    %1866 = vrot.lane.b32.xlu0 %v653, 48
    %v1867 = vpop.permute.xlu0 %1866
    %1868 = vrot.lane.b32.xlu0 %v655, 48
    %v1869 = vpop.permute.xlu0 %1868
    %v1875 = vsel %vm244, %v1756, 0
    %v1878 = vsel %vm244, %v1771, 0
    %v1881 = vsel %vm244, %v1786, 0
    %v1884 = vsel %vm244, %v1801, 0
    %1886 = vmatpush.msra.mxu0 0.0
    %1887 = vmatpush.msra.mxu0 0.0
    %1888 = vmatpush.msra.mxu0 0.0
    %1889 = vmatpush.msra.mxu0 0.0
    %1890 = vmatpush.msra.mxu0 0.0
    %1891 = vmatpush.msra.mxu0 0.0
    %1892 = vmatpush.msra.mxu0 0.0
    %1893 = vmatpush.msra.mxu0 0.0
    %1894 = vmatpush.msra.mxu0 0.0
    %1895 = vmatpush.msra.mxu0 0.0
    %1896 = vmatpush.msra.mxu0 0.0
    %1897 = vmatpush.msra.mxu0 0.0
    %1898 = vmatpush.msra.mxu0 %v1869
    %1899 = vmatpush.msra.mxu0 %v1867
    %1900 = vmatpush.msra.mxu0 %v1865
    %1901 = vmatpush.msra.mxu0 %v1863
    %1902 = vmatmul.f32.gmra.mxu0 %v1875
    %v1903 = vpop.f32.mrf.mxu0
    %v1904 = vadd.f32 0.0, %v1903
    %1905 = vmatmul.f32.gmra.mxu0 %v1878
    %v1906 = vpop.f32.mrf.mxu0
    %v1907 = vadd.f32 0.0, %v1906
    %1908 = vmatmul.f32.gmra.mxu0 %v1881
    %v1909 = vpop.f32.mrf.mxu0
    %v1910 = vadd.f32 0.0, %v1909
    %1911 = vmatmul.f32.gmra.mxu0 %v1884
    %v1912 = vpop.f32.mrf.mxu0
    %v1913 = vadd.f32 0.0, %v1912
    %1914 = vdwg.mxu0
    %1915 = vrot.lane.b32.xlu0 %v658, 48
    %v1916 = vpop.permute.xlu0 %1915
    %1917 = vrot.lane.b32.xlu0 %v660, 48
    %v1918 = vpop.permute.xlu0 %1917
    %1919 = vrot.lane.b32.xlu0 %v663, 48
    %v1920 = vpop.permute.xlu0 %1919
    %1921 = vrot.lane.b32.xlu0 %v665, 48
    %v1922 = vpop.permute.xlu0 %1921
    %v1928 = vsel %vm244, %v1816, 0
    %v1931 = vsel %vm244, %v1831, 0
    %v1934 = vsel %vm244, %v1846, 0
    %v1937 = vsel %vm244, %v1861, 0
    %1939 = vmatpush.msra.mxu0 0.0
    %1940 = vmatpush.msra.mxu0 0.0
    %1941 = vmatpush.msra.mxu0 0.0
    %1942 = vmatpush.msra.mxu0 0.0
    %1943 = vmatpush.msra.mxu0 0.0
    %1944 = vmatpush.msra.mxu0 0.0
    %1945 = vmatpush.msra.mxu0 0.0
    %1946 = vmatpush.msra.mxu0 0.0
    %1947 = vmatpush.msra.mxu0 0.0
    %1948 = vmatpush.msra.mxu0 0.0
    %1949 = vmatpush.msra.mxu0 0.0
    %1950 = vmatpush.msra.mxu0 0.0
    %1951 = vmatpush.msra.mxu0 %v1922
    %1952 = vmatpush.msra.mxu0 %v1920
    %1953 = vmatpush.msra.mxu0 %v1918
    %1954 = vmatpush.msra.mxu0 %v1916
    %1955 = vmatmul.f32.gmra.mxu0 %v1928
    %v1956 = vpop.f32.mrf.mxu0
    %v1957 = vadd.f32 0.0, %v1956
    %1958 = vmatmul.f32.gmra.mxu0 %v1931
    %v1959 = vpop.f32.mrf.mxu0
    %v1960 = vadd.f32 0.0, %v1959
    %1961 = vmatmul.f32.gmra.mxu0 %v1934
    %v1962 = vpop.f32.mrf.mxu0
    %v1963 = vadd.f32 0.0, %v1962
    %1964 = vmatmul.f32.gmra.mxu0 %v1937
    %v1965 = vpop.f32.mrf.mxu0
    %v1966 = vadd.f32 0.0, %v1965
    %1967 = vdwg.mxu0
    %1968 = vrot.lane.b32.xlu0 %v648, 104
    %v1969 = vpop.permute.xlu0 %1968
    %1970 = vrot.lane.b32.xlu0 %v650, 104
    %v1971 = vpop.permute.xlu0 %1970
    %1972 = vrot.lane.b32.xlu0 %v653, 104
    %v1973 = vpop.permute.xlu0 %1972
    %1974 = vrot.lane.b32.xlu0 %v655, 104
    %v1975 = vpop.permute.xlu0 %1974
    %1976 = vrot.lane.b32.xlu0 %v648, 72
    %v1977 = vpop.permute.xlu0 %1976
    %1978 = vrot.lane.b32.xlu0 %v650, 72
    %v1979 = vpop.permute.xlu0 %1978
    %1980 = vrot.lane.b32.xlu0 %v653, 72
    %v1981 = vpop.permute.xlu0 %1980
    %1982 = vrot.lane.b32.xlu0 %v655, 72
    %v1983 = vpop.permute.xlu0 %1982
    %v1984 = vsel %vm679, %v1969, 0
    %v1986 = vsel %vm679, %v1971, 0
    %v1988 = vsel %vm679, %v1973, 0
    %v1990 = vsel %vm679, %v1975, 0
    %v1992 = vsel %vm679, %v1977, 0
    %v1994 = vsel %vm679, %v1979, 0
    %v1996 = vsel %vm679, %v1981, 0
    %v1998 = vsel %vm679, %v1983, 0
    %2000 = vmatpush.xpose.msra.mxu0 0.0
    %2001 = vmatpush.xpose.msra.mxu0 0.0
    %2002 = vmatpush.xpose.msra.mxu0 0.0
    %2003 = vmatpush.xpose.msra.mxu0 0.0
    %2004 = vmatpush.xpose.msra.mxu0 0.0
    %2005 = vmatpush.xpose.msra.mxu0 0.0
    %2006 = vmatpush.xpose.msra.mxu0 0.0
    %2007 = vmatpush.xpose.msra.mxu0 0.0
    %2008 = vmatpush.xpose.msra.mxu0 0.0
    %2009 = vmatpush.xpose.msra.mxu0 0.0
    %2010 = vmatpush.xpose.msra.mxu0 0.0
    %2011 = vmatpush.xpose.msra.mxu0 0.0
    %2012 = vmatpush.xpose.msra.mxu0 %v1998
    %2013 = vmatpush.xpose.msra.mxu0 %v1996
    %2014 = vmatpush.xpose.msra.mxu0 %v1994
    %2015 = vmatpush.xpose.msra.mxu0 %v1992
    %2016 = vmatmul.f32.gmra.mxu0 %v1984
    %v2017 = vpop.f32.mrf.mxu0
    %v2018 = vadd.f32 0.0, %v2017
    %2019 = vmatmul.f32.gmra.mxu0 %v1986
    %v2020 = vpop.f32.mrf.mxu0
    %v2021 = vadd.f32 0.0, %v2020
    %2022 = vmatmul.f32.gmra.mxu0 %v1988
    %v2023 = vpop.f32.mrf.mxu0
    %v2024 = vadd.f32 0.0, %v2023
    %2025 = vmatmul.f32.gmra.mxu0 %v1990
    %v2026 = vpop.f32.mrf.mxu0
    %v2027 = vadd.f32 0.0, %v2026
    %2028 = vdwg.mxu0
    %2029 = vrot.lane.b32.xlu0 %v658, 104
    %v2030 = vpop.permute.xlu0 %2029
    %2031 = vrot.lane.b32.xlu0 %v660, 104
    %v2032 = vpop.permute.xlu0 %2031
    %2033 = vrot.lane.b32.xlu0 %v663, 104
    %v2034 = vpop.permute.xlu0 %2033
    %2035 = vrot.lane.b32.xlu0 %v665, 104
    %v2036 = vpop.permute.xlu0 %2035
    %2037 = vrot.lane.b32.xlu0 %v658, 72
    %v2038 = vpop.permute.xlu0 %2037
    %2039 = vrot.lane.b32.xlu0 %v660, 72
    %v2040 = vpop.permute.xlu0 %2039
    %2041 = vrot.lane.b32.xlu0 %v663, 72
    %v2042 = vpop.permute.xlu0 %2041
    %2043 = vrot.lane.b32.xlu0 %v665, 72
    %v2044 = vpop.permute.xlu0 %2043
    %v2045 = vsel %vm679, %v2030, 0
    %v2047 = vsel %vm679, %v2032, 0
    %v2049 = vsel %vm679, %v2034, 0
    %v2051 = vsel %vm679, %v2036, 0
    %v2053 = vsel %vm679, %v2038, 0
    %v2055 = vsel %vm679, %v2040, 0
    %v2057 = vsel %vm679, %v2042, 0
    %v2059 = vsel %vm679, %v2044, 0
    %2061 = vmatpush.xpose.msra.mxu0 0.0
    %2062 = vmatpush.xpose.msra.mxu0 0.0
    %2063 = vmatpush.xpose.msra.mxu0 0.0
    %2064 = vmatpush.xpose.msra.mxu0 0.0
    %2065 = vmatpush.xpose.msra.mxu0 0.0
    %2066 = vmatpush.xpose.msra.mxu0 0.0
    %2067 = vmatpush.xpose.msra.mxu0 0.0
    %2068 = vmatpush.xpose.msra.mxu0 0.0
    %2069 = vmatpush.xpose.msra.mxu0 0.0
    %2070 = vmatpush.xpose.msra.mxu0 0.0
    %2071 = vmatpush.xpose.msra.mxu0 0.0
    %2072 = vmatpush.xpose.msra.mxu0 0.0
    %2073 = vmatpush.xpose.msra.mxu0 %v2059
    %2074 = vmatpush.xpose.msra.mxu0 %v2057
    %2075 = vmatpush.xpose.msra.mxu0 %v2055
    %2076 = vmatpush.xpose.msra.mxu0 %v2053
    %2077 = vmatmul.f32.gmra.mxu0 %v2045
    %v2078 = vpop.f32.mrf.mxu0
    %v2079 = vadd.f32 0.0, %v2078
    %2080 = vmatmul.f32.gmra.mxu0 %v2047
    %v2081 = vpop.f32.mrf.mxu0
    %v2082 = vadd.f32 0.0, %v2081
    %2083 = vmatmul.f32.gmra.mxu0 %v2049
    %v2084 = vpop.f32.mrf.mxu0
    %v2085 = vadd.f32 0.0, %v2084
    %2086 = vmatmul.f32.gmra.mxu0 %v2051
    %v2087 = vpop.f32.mrf.mxu0
    %v2088 = vadd.f32 0.0, %v2087
    %2089 = vdwg.mxu0
    %v2090 = vmul.f32 %v2018, 0.35355338
    %v2091 = vmul.f32 %v2021, 0.35355338
    %v2092 = vmul.f32 %v2024, 0.35355338
    %v2093 = vmul.f32 %v2027, 0.35355338
    %v2094 = vmul.f32 %v2079, 0.35355338
    %v2095 = vmul.f32 %v2082, 0.35355338
    %v2096 = vmul.f32 %v2085, 0.35355338
    %v2097 = vmul.f32 %v2088, 0.35355338
    %v2098 = vadd.f32 %v2090, %v398
    %v2099 = vadd.f32 %v2091, %v398
    %v2100 = vadd.f32 %v2092, %v398
    %v2101 = vadd.f32 %v2093, %v398
    %v2102 = vadd.f32 %v2094, %v399
    %v2103 = vadd.f32 %v2095, %v399
    %v2104 = vadd.f32 %v2096, %v399
    %v2105 = vadd.f32 %v2097, %v399
    %v2106 = vsel %vm244, %v2098, -inf
    %2107 = vmax.xlane.f32.xlu0 %v2106
    %v2108 = vpop.xlane.xlu0 %2107
    %v2109 = vsel %vm244, %v2099, -inf
    %2110 = vmax.xlane.f32.xlu0 %v2109
    %v2111 = vpop.xlane.xlu0 %2110
    %v2112 = vsel %vm244, %v2100, -inf
    %2113 = vmax.xlane.f32.xlu0 %v2112
    %v2114 = vpop.xlane.xlu0 %2113
    %v2115 = vsel %vm244, %v2101, -inf
    %2116 = vmax.xlane.f32.xlu0 %v2115
    %v2117 = vpop.xlane.xlu0 %2116
    %v2118 = vsel %vm244, %v2102, -inf
    %2119 = vmax.xlane.f32.xlu0 %v2118
    %v2120 = vpop.xlane.xlu0 %2119
    %v2121 = vsel %vm244, %v2103, -inf
    %2122 = vmax.xlane.f32.xlu0 %v2121
    %v2123 = vpop.xlane.xlu0 %2122
    %v2124 = vsel %vm244, %v2104, -inf
    %2125 = vmax.xlane.f32.xlu0 %v2124
    %v2126 = vpop.xlane.xlu0 %2125
    %v2127 = vsel %vm244, %v2105, -inf
    %2128 = vmax.xlane.f32.xlu0 %v2127
    %v2129 = vpop.xlane.xlu0 %2128
    %v2130 = vsub.f32 %v2098, %v2108
    %v2131 = vsub.f32 %v2099, %v2111
    %v2132 = vsub.f32 %v2100, %v2114
    %v2133 = vsub.f32 %v2101, %v2117
    %v2134 = vsub.f32 %v2102, %v2120
    %v2135 = vsub.f32 %v2103, %v2123
    %v2136 = vsub.f32 %v2104, %v2126
    %v2137 = vsub.f32 %v2105, %v2129
    %v2138 = vmul.f32 %v2130, 1.442695
    %v2139 = vpow.pop %v2138
    %v2140 = vmul.f32 %v2131, 1.442695
    %v2141 = vpow.pop %v2140
    %v2142 = vmul.f32 %v2132, 1.442695
    %v2143 = vpow.pop %v2142
    %v2144 = vmul.f32 %v2133, 1.442695
    %v2145 = vpow.pop %v2144
    %v2146 = vmul.f32 %v2134, 1.442695
    %v2147 = vpow.pop %v2146
    %v2148 = vmul.f32 %v2135, 1.442695
    %v2149 = vpow.pop %v2148
    %v2150 = vmul.f32 %v2136, 1.442695
    %v2151 = vpow.pop %v2150
    %v2152 = vmul.f32 %v2137, 1.442695
    %v2153 = vpow.pop %v2152
    %v2154 = vsel %vm244, %v2139, 0.0
    %2155 = vadd.xlane.f32.xlu0 %v2154
    %v2156 = vpop.xlane.xlu0 %2155
    %v2157 = vsel %vm244, %v2141, 0.0
    %2158 = vadd.xlane.f32.xlu0 %v2157
    %v2159 = vpop.xlane.xlu0 %2158
    %v2160 = vsel %vm244, %v2143, 0.0
    %2161 = vadd.xlane.f32.xlu0 %v2160
    %v2162 = vpop.xlane.xlu0 %2161
    %v2163 = vsel %vm244, %v2145, 0.0
    %2164 = vadd.xlane.f32.xlu0 %v2163
    %v2165 = vpop.xlane.xlu0 %2164
    %v2166 = vsel %vm244, %v2147, 0.0
    %2167 = vadd.xlane.f32.xlu0 %v2166
    %v2168 = vpop.xlane.xlu0 %2167
    %v2169 = vsel %vm244, %v2149, 0.0
    %2170 = vadd.xlane.f32.xlu0 %v2169
    %v2171 = vpop.xlane.xlu0 %2170
    %v2172 = vsel %vm244, %v2151, 0.0
    %2173 = vadd.xlane.f32.xlu0 %v2172
    %v2174 = vpop.xlane.xlu0 %2173
    %v2175 = vsel %vm244, %v2153, 0.0
    %2176 = vadd.xlane.f32.xlu0 %v2175
    %v2177 = vpop.xlane.xlu0 %2176
    %v2178 = vrcp.pop %v2156
    %v2179 = vmul.f32 %v2156, %v2178
    %v2180 = vsub.f32 1.0, %v2179
    %v2181 = vmul.f32 %v2178, %v2180
    %v2182 = vadd.f32 %v2178, %v2181
    %vm2183 = vweird.f32 %v2156
    %vm2184 = vweird.f32 %v2178
    %vm2185 = vmor %vm2183, %vm2184
    %v2186 = vsel %vm2185, %v2178, %v2182
    %v2187 = vand.u32 2147483647, %v2156
    %vm2188 = vcmp.eq.f32.partialorder %v2187, 8.507059e+37
    %v2189 = vand.u32 %v2156, 2147483648
    %v2190 = vor.u32 1.1754944e-38, %v2189
    %v2191 = vsel %vm2188, %v2190, %v2186
    %v2192 = vmul.f32 %v2139, %v2191
    %v2193 = vrcp.pop %v2159
    %v2194 = vmul.f32 %v2159, %v2193
    %v2195 = vsub.f32 1.0, %v2194
    %v2196 = vmul.f32 %v2193, %v2195
    %v2197 = vadd.f32 %v2193, %v2196
    %vm2198 = vweird.f32 %v2159
    %vm2199 = vweird.f32 %v2193
    %vm2200 = vmor %vm2198, %vm2199
    %v2201 = vsel %vm2200, %v2193, %v2197
    %v2202 = vand.u32 2147483647, %v2159
    %vm2203 = vcmp.eq.f32.partialorder %v2202, 8.507059e+37
    %v2204 = vand.u32 %v2159, 2147483648
    %v2205 = vor.u32 1.1754944e-38, %v2204
    %v2206 = vsel %vm2203, %v2205, %v2201
    %v2207 = vmul.f32 %v2141, %v2206
    %v2208 = vrcp.pop %v2162
    %v2209 = vmul.f32 %v2162, %v2208
    %v2210 = vsub.f32 1.0, %v2209
    %v2211 = vmul.f32 %v2208, %v2210
    %v2212 = vadd.f32 %v2208, %v2211
    %vm2213 = vweird.f32 %v2162
    %vm2214 = vweird.f32 %v2208
    %vm2215 = vmor %vm2213, %vm2214
    %v2216 = vsel %vm2215, %v2208, %v2212
    %v2217 = vand.u32 2147483647, %v2162
    %vm2218 = vcmp.eq.f32.partialorder %v2217, 8.507059e+37
    %v2219 = vand.u32 %v2162, 2147483648
    %v2220 = vor.u32 1.1754944e-38, %v2219
    %v2221 = vsel %vm2218, %v2220, %v2216
    %v2222 = vmul.f32 %v2143, %v2221
    %v2223 = vrcp.pop %v2165
    %v2224 = vmul.f32 %v2165, %v2223
    %v2225 = vsub.f32 1.0, %v2224
    %v2226 = vmul.f32 %v2223, %v2225
    %v2227 = vadd.f32 %v2223, %v2226
    %vm2228 = vweird.f32 %v2165
    %vm2229 = vweird.f32 %v2223
    %vm2230 = vmor %vm2228, %vm2229
    %v2231 = vsel %vm2230, %v2223, %v2227
    %v2232 = vand.u32 2147483647, %v2165
    %vm2233 = vcmp.eq.f32.partialorder %v2232, 8.507059e+37
    %v2234 = vand.u32 %v2165, 2147483648
    %v2235 = vor.u32 1.1754944e-38, %v2234
    %v2236 = vsel %vm2233, %v2235, %v2231
    %v2237 = vmul.f32 %v2145, %v2236
    %v2238 = vrcp.pop %v2168
    %v2239 = vmul.f32 %v2168, %v2238
    %v2240 = vsub.f32 1.0, %v2239
    %v2241 = vmul.f32 %v2238, %v2240
    %v2242 = vadd.f32 %v2238, %v2241
    %vm2243 = vweird.f32 %v2168
    %vm2244 = vweird.f32 %v2238
    %vm2245 = vmor %vm2243, %vm2244
    %v2246 = vsel %vm2245, %v2238, %v2242
    %v2247 = vand.u32 2147483647, %v2168
    %vm2248 = vcmp.eq.f32.partialorder %v2247, 8.507059e+37
    %v2249 = vand.u32 %v2168, 2147483648
    %v2250 = vor.u32 1.1754944e-38, %v2249
    %v2251 = vsel %vm2248, %v2250, %v2246
    %v2252 = vmul.f32 %v2147, %v2251
    %v2253 = vrcp.pop %v2171
    %v2254 = vmul.f32 %v2171, %v2253
    %v2255 = vsub.f32 1.0, %v2254
    %v2256 = vmul.f32 %v2253, %v2255
    %v2257 = vadd.f32 %v2253, %v2256
    %vm2258 = vweird.f32 %v2171
    %vm2259 = vweird.f32 %v2253
    %vm2260 = vmor %vm2258, %vm2259
    %v2261 = vsel %vm2260, %v2253, %v2257
    %v2262 = vand.u32 2147483647, %v2171
    %vm2263 = vcmp.eq.f32.partialorder %v2262, 8.507059e+37
    %v2264 = vand.u32 %v2171, 2147483648
    %v2265 = vor.u32 1.1754944e-38, %v2264
    %v2266 = vsel %vm2263, %v2265, %v2261
    %v2267 = vmul.f32 %v2149, %v2266
    %v2268 = vrcp.pop %v2174
    %v2269 = vmul.f32 %v2174, %v2268
    %v2270 = vsub.f32 1.0, %v2269
    %v2271 = vmul.f32 %v2268, %v2270
    %v2272 = vadd.f32 %v2268, %v2271
    %vm2273 = vweird.f32 %v2174
    %vm2274 = vweird.f32 %v2268
    %vm2275 = vmor %vm2273, %vm2274
    %v2276 = vsel %vm2275, %v2268, %v2272
    %v2277 = vand.u32 2147483647, %v2174
    %vm2278 = vcmp.eq.f32.partialorder %v2277, 8.507059e+37
    %v2279 = vand.u32 %v2174, 2147483648
    %v2280 = vor.u32 1.1754944e-38, %v2279
    %v2281 = vsel %vm2278, %v2280, %v2276
    %v2282 = vmul.f32 %v2151, %v2281
    %v2283 = vrcp.pop %v2177
    %v2284 = vmul.f32 %v2177, %v2283
    %v2285 = vsub.f32 1.0, %v2284
    %v2286 = vmul.f32 %v2283, %v2285
    %v2287 = vadd.f32 %v2283, %v2286
    %vm2288 = vweird.f32 %v2177
    %vm2289 = vweird.f32 %v2283
    %vm2290 = vmor %vm2288, %vm2289
    %v2291 = vsel %vm2290, %v2283, %v2287
    %v2292 = vand.u32 2147483647, %v2177
    %vm2293 = vcmp.eq.f32.partialorder %v2292, 8.507059e+37
    %v2294 = vand.u32 %v2177, 2147483648
    %v2295 = vor.u32 1.1754944e-38, %v2294
    %v2296 = vsel %vm2293, %v2295, %v2291
    %v2297 = vmul.f32 %v2153, %v2296
    %2298 = vrot.lane.b32.xlu0 %v648, 40
    %v2299 = vpop.permute.xlu0 %2298
    %2300 = vrot.lane.b32.xlu0 %v650, 40
    %v2301 = vpop.permute.xlu0 %2300
    %2302 = vrot.lane.b32.xlu0 %v653, 40
    %v2303 = vpop.permute.xlu0 %2302
    %2304 = vrot.lane.b32.xlu0 %v655, 40
    %v2305 = vpop.permute.xlu0 %2304
    %v2311 = vsel %vm244, %v2192, 0
    %v2314 = vsel %vm244, %v2207, 0
    %v2317 = vsel %vm244, %v2222, 0
    %v2320 = vsel %vm244, %v2237, 0
    %2322 = vmatpush.msra.mxu0 0.0
    %2323 = vmatpush.msra.mxu0 0.0
    %2324 = vmatpush.msra.mxu0 0.0
    %2325 = vmatpush.msra.mxu0 0.0
    %2326 = vmatpush.msra.mxu0 0.0
    %2327 = vmatpush.msra.mxu0 0.0
    %2328 = vmatpush.msra.mxu0 0.0
    %2329 = vmatpush.msra.mxu0 0.0
    %2330 = vmatpush.msra.mxu0 0.0
    %2331 = vmatpush.msra.mxu0 0.0
    %2332 = vmatpush.msra.mxu0 0.0
    %2333 = vmatpush.msra.mxu0 0.0
    %2334 = vmatpush.msra.mxu0 %v2305
    %2335 = vmatpush.msra.mxu0 %v2303
    %2336 = vmatpush.msra.mxu0 %v2301
    %2337 = vmatpush.msra.mxu0 %v2299
    %2338 = vmatmul.f32.gmra.mxu0 %v2311
    %v2339 = vpop.f32.mrf.mxu0
    %v2340 = vadd.f32 0.0, %v2339
    %2341 = vmatmul.f32.gmra.mxu0 %v2314
    %v2342 = vpop.f32.mrf.mxu0
    %v2343 = vadd.f32 0.0, %v2342
    %2344 = vmatmul.f32.gmra.mxu0 %v2317
    %v2345 = vpop.f32.mrf.mxu0
    %v2346 = vadd.f32 0.0, %v2345
    %2347 = vmatmul.f32.gmra.mxu0 %v2320
    %v2348 = vpop.f32.mrf.mxu0
    %v2349 = vadd.f32 0.0, %v2348
    %2350 = vdwg.mxu0
    %2351 = vrot.lane.b32.xlu0 %v658, 40
    %v2352 = vpop.permute.xlu0 %2351
    %2353 = vrot.lane.b32.xlu0 %v660, 40
    %v2354 = vpop.permute.xlu0 %2353
    %2355 = vrot.lane.b32.xlu0 %v663, 40
    %v2356 = vpop.permute.xlu0 %2355
    %2357 = vrot.lane.b32.xlu0 %v665, 40
    %v2358 = vpop.permute.xlu0 %2357
    %v2364 = vsel %vm244, %v2252, 0
    %v2367 = vsel %vm244, %v2267, 0
    %v2370 = vsel %vm244, %v2282, 0
    %v2373 = vsel %vm244, %v2297, 0
    %2375 = vmatpush.msra.mxu0 0.0
    %2376 = vmatpush.msra.mxu0 0.0
    %2377 = vmatpush.msra.mxu0 0.0
    %2378 = vmatpush.msra.mxu0 0.0
    %2379 = vmatpush.msra.mxu0 0.0
    %2380 = vmatpush.msra.mxu0 0.0
    %2381 = vmatpush.msra.mxu0 0.0
    %2382 = vmatpush.msra.mxu0 0.0
    %2383 = vmatpush.msra.mxu0 0.0
    %2384 = vmatpush.msra.mxu0 0.0
    %2385 = vmatpush.msra.mxu0 0.0
    %2386 = vmatpush.msra.mxu0 0.0
    %2387 = vmatpush.msra.mxu0 %v2358
    %2388 = vmatpush.msra.mxu0 %v2356
    %2389 = vmatpush.msra.mxu0 %v2354
    %2390 = vmatpush.msra.mxu0 %v2352
    %2391 = vmatmul.f32.gmra.mxu0 %v2364
    %v2392 = vpop.f32.mrf.mxu0
    %v2393 = vadd.f32 0.0, %v2392
    %2394 = vmatmul.f32.gmra.mxu0 %v2367
    %v2395 = vpop.f32.mrf.mxu0
    %v2396 = vadd.f32 0.0, %v2395
    %2397 = vmatmul.f32.gmra.mxu0 %v2370
    %v2398 = vpop.f32.mrf.mxu0
    %v2399 = vadd.f32 0.0, %v2398
    %2400 = vmatmul.f32.gmra.mxu0 %v2373
    %v2401 = vpop.f32.mrf.mxu0
    %v2402 = vadd.f32 0.0, %v2401
    %2403 = vdwg.mxu0
    %2412 = vrot.lane.b32.xlu0 %v1468, 8
    %v2413 = vpop.permute.xlu0 %2412
    %2414 = vrot.lane.b32.xlu0 %v1471, 8
    %v2415 = vpop.permute.xlu0 %2414
    %2416 = vrot.lane.b32.xlu0 %v1474, 8
    %v2417 = vpop.permute.xlu0 %2416
    %2418 = vrot.lane.b32.xlu0 %v1477, 8
    %v2419 = vpop.permute.xlu0 %2418
    %2420 = vrot.lane.b32.xlu0 %v1521, 8
    %v2421 = vpop.permute.xlu0 %2420
    %2422 = vrot.lane.b32.xlu0 %v1524, 8
    %v2423 = vpop.permute.xlu0 %2422
    %2424 = vrot.lane.b32.xlu0 %v1527, 8
    %v2425 = vpop.permute.xlu0 %2424
    %2426 = vrot.lane.b32.xlu0 %v1530, 8
    %v2427 = vpop.permute.xlu0 %2426
    %2444 = vrot.lane.b32.xlu0 %v1904, 16
    %v2445 = vpop.permute.xlu0 %2444
    %2446 = vrot.lane.b32.xlu0 %v1907, 16
    %v2447 = vpop.permute.xlu0 %2446
    %2448 = vrot.lane.b32.xlu0 %v1910, 16
    %v2449 = vpop.permute.xlu0 %2448
    %2450 = vrot.lane.b32.xlu0 %v1913, 16
    %v2451 = vpop.permute.xlu0 %2450
    %2452 = vrot.lane.b32.xlu0 %v1957, 16
    %v2453 = vpop.permute.xlu0 %2452
    %2454 = vrot.lane.b32.xlu0 %v1960, 16
    %v2455 = vpop.permute.xlu0 %2454
    %2456 = vrot.lane.b32.xlu0 %v1963, 16
    %v2457 = vpop.permute.xlu0 %2456
    %2458 = vrot.lane.b32.xlu0 %v1966, 16
    %v2459 = vpop.permute.xlu0 %2458
    %2476 = vrot.lane.b32.xlu0 %v2340, 24
    %v2477 = vpop.permute.xlu0 %2476
    %2478 = vrot.lane.b32.xlu0 %v2343, 24
    %v2479 = vpop.permute.xlu0 %2478
    %2480 = vrot.lane.b32.xlu0 %v2346, 24
    %v2481 = vpop.permute.xlu0 %2480
    %2482 = vrot.lane.b32.xlu0 %v2349, 24
    %v2483 = vpop.permute.xlu0 %2482
    %2484 = vrot.lane.b32.xlu0 %v2393, 24
    %v2485 = vpop.permute.xlu0 %2484
    %2486 = vrot.lane.b32.xlu0 %v2396, 24
    %v2487 = vpop.permute.xlu0 %2486
    %2488 = vrot.lane.b32.xlu0 %v2399, 24
    %v2489 = vpop.permute.xlu0 %2488
    %2490 = vrot.lane.b32.xlu0 %v2402, 24
    %v2491 = vpop.permute.xlu0 %2490
    %v2500 = vsel %vm679, %v1032, %v2413
    %v2501 = vsel %vm679, %v1035, %v2415
    %v2502 = vsel %vm679, %v1038, %v2417
    %v2503 = vsel %vm679, %v1041, %v2419
    %v2504 = vsel %vm679, %v1085, %v2421
    %v2505 = vsel %vm679, %v1088, %v2423
    %v2506 = vsel %vm679, %v1091, %v2425
    %v2507 = vsel %vm679, %v1094, %v2427
    %vm2508 = vcmask 130048
    %v2509 = vsel %vm2508, %v2500, %v2445
    %v2510 = vsel %vm2508, %v2501, %v2447
    %v2511 = vsel %vm2508, %v2502, %v2449
    %v2512 = vsel %vm2508, %v2503, %v2451
    %v2513 = vsel %vm2508, %v2504, %v2453
    %v2514 = vsel %vm2508, %v2505, %v2455
    %v2515 = vsel %vm2508, %v2506, %v2457
    %v2516 = vsel %vm2508, %v2507, %v2459
    %vm2517 = vcmask 195584
    %v2518 = vsel %vm2517, %v2509, %v2477
    %v2519 = vsel %vm2517, %v2510, %v2479
    %v2520 = vsel %vm2517, %v2511, %v2481
    %v2521 = vsel %vm2517, %v2512, %v2483
    %v2522 = vsel %vm2517, %v2513, %v2485
    %v2523 = vsel %vm2517, %v2514, %v2487
    %v2524 = vsel %vm2517, %v2515, %v2489
    %v2525 = vsel %vm2517, %v2516, %v2491
    %v2526 = vpack.c.bf16 %v2519, %v2518
    %v2527 = vpack.c.bf16 %v2521, %v2520
    %v2528 = vpack.c.bf16 %v2523, %v2522
    %v2529 = vpack.c.bf16 %v2525, %v2524
    %v2530 = vld [vmem:[%s33] sm:$0xf]
    %v2531 = vld [vmem:[%s33 + $0x4] sm:$0xf]
    %v2532 = vld [vmem:[%s33 + $0x8] sm:$0xf]
    %v2533 = vld [vmem:[%s33 + $0xc] sm:$0xf]
    %v2534 = vld [vmem:[%s35] sm:$0x1]
    %v2536 = vperm.slane %v2534, 0
    %v2542 = vunpack.c.l.b16 %v2530
    %v2543 = vunpack.c.l.b16 %v2531
    %v2544 = vunpack.c.l.b16 %v2532
    %v2545 = vunpack.c.l.b16 %v2533
    %v2546 = vpack.c.b16 %v2543, %v2542
    %v2547 = vpack.c.b16 %v2545, %v2544
    %v2551 = vsel %vm244, %v2526, 0
    %v2554 = vsel %vm244, %v2527, 0
    %v2557 = vsel %vm244, %v2528, 0
    %v2560 = vsel %vm244, %v2529, 0
    %2562 = vmatpush.bf16.msra.mxu0 0
    %2563 = vmatpush.bf16.msra.mxu0 0
    %2564 = vmatpush.bf16.msra.mxu0 0
    %2565 = vmatpush.bf16.msra.mxu0 0
    %2566 = vmatpush.bf16.msra.mxu0 0
    %2567 = vmatpush.bf16.msra.mxu0 0
    %2568 = vmatpush.bf16.msra.mxu0 %v2547
    %2569 = vmatpush.bf16.msra.mxu0 %v2546
    %2570 = vmatmul.bf16.gmra.mxu0 %v2551
    %v2571 = vpop.f32.mrf.mxu0
    %v2572 = vadd.f32 %v2536, %v2571
    %v2573 = vpop.f32.mrf.mxu0
    %v2574 = vadd.f32 %v2536, %v2573
    %2575 = vmatmul.bf16.gmra.mxu0 %v2554
    %v2576 = vpop.f32.mrf.mxu0
    %v2577 = vadd.f32 %v2536, %v2576
    %v2578 = vpop.f32.mrf.mxu0
    %v2579 = vadd.f32 %v2536, %v2578
    %2580 = vmatmul.bf16.gmra.mxu0 %v2557
    %v2581 = vpop.f32.mrf.mxu0
    %v2582 = vadd.f32 %v2536, %v2581
    %v2583 = vpop.f32.mrf.mxu0
    %v2584 = vadd.f32 %v2536, %v2583
    %2585 = vmatmul.bf16.gmra.mxu0 %v2560
    %v2586 = vpop.f32.mrf.mxu0
    %v2587 = vadd.f32 %v2536, %v2586
    %v2588 = vpop.f32.mrf.mxu0
    %v2589 = vadd.f32 %v2536, %v2588
    %2590 = vdwg.mxu0
    %v2591 = vadd.f32 %v304, %v2572
    %v2592 = vadd.f32 %v390, %v2574
    %v2593 = vadd.f32 %v380, %v2577
    %v2594 = vadd.f32 %v392, %v2579
    %v2595 = vadd.f32 %v305, %v2582
    %v2596 = vadd.f32 %v391, %v2584
    %v2597 = vadd.f32 %v383, %v2587
    %v2598 = vadd.f32 %v393, %v2589
    %v2599 = vld [vmem:[%s37] sm:$0x1]
    %v2600 = vld [vmem:[%s39] sm:$0x1]
    %v2601 = vsel %vm244, %v2591, 0.0
    %2602 = vadd.xlane.f32.xlu0 %v2601
    %v2603 = vpop.xlane.xlu0 %2602
    %v2604 = vsel %vm244, %v2592, 0.0
    %2605 = vadd.xlane.f32.xlu0 %v2604
    %v2606 = vpop.xlane.xlu0 %2605
    %v2607 = vsel %vm244, %v2593, 0.0
    %2608 = vadd.xlane.f32.xlu0 %v2607
    %v2609 = vpop.xlane.xlu0 %2608
    %v2610 = vsel %vm244, %v2594, 0.0
    %2611 = vadd.xlane.f32.xlu0 %v2610
    %v2612 = vpop.xlane.xlu0 %2611
    %v2613 = vsel %vm244, %v2595, 0.0
    %2614 = vadd.xlane.f32.xlu0 %v2613
    %v2615 = vpop.xlane.xlu0 %2614
    %v2616 = vsel %vm244, %v2596, 0.0
    %2617 = vadd.xlane.f32.xlu0 %v2616
    %v2618 = vpop.xlane.xlu0 %2617
    %v2619 = vsel %vm244, %v2597, 0.0
    %2620 = vadd.xlane.f32.xlu0 %v2619
    %v2621 = vpop.xlane.xlu0 %2620
    %v2622 = vsel %vm244, %v2598, 0.0
    %2623 = vadd.xlane.f32.xlu0 %v2622
    %v2624 = vpop.xlane.xlu0 %2623
    %v2625 = vmul.f32 %v2603, %v257
    %v2626 = vmul.f32 %v2606, %v257
    %v2627 = vmul.f32 %v2609, %v257
    %v2628 = vmul.f32 %v2612, %v257
    %v2629 = vmul.f32 %v2615, %v257
    %v2630 = vmul.f32 %v2618, %v257
    %v2631 = vmul.f32 %v2621, %v257
    %v2632 = vmul.f32 %v2624, %v257
    %v2633 = vsub.f32 %v2591, %v2625
    %v2634 = vsub.f32 %v2592, %v2626
    %v2635 = vsub.f32 %v2593, %v2627
    %v2636 = vsub.f32 %v2594, %v2628
    %v2637 = vsub.f32 %v2595, %v2629
    %v2638 = vsub.f32 %v2596, %v2630
    %v2639 = vsub.f32 %v2597, %v2631
    %v2640 = vsub.f32 %v2598, %v2632
    %v2641 = vmul.f32 %v2633, %v2633
    %v2642 = vmul.f32 %v2634, %v2634
    %v2643 = vmul.f32 %v2635, %v2635
    %v2644 = vmul.f32 %v2636, %v2636
    %v2645 = vmul.f32 %v2637, %v2637
    %v2646 = vmul.f32 %v2638, %v2638
    %v2647 = vmul.f32 %v2639, %v2639
    %v2648 = vmul.f32 %v2640, %v2640
    %v2649 = vsel %vm244, %v2641, 0.0
    %2650 = vadd.xlane.f32.xlu0 %v2649
    %v2651 = vpop.xlane.xlu0 %2650
    %v2652 = vsel %vm244, %v2642, 0.0
    %2653 = vadd.xlane.f32.xlu0 %v2652
    %v2654 = vpop.xlane.xlu0 %2653
    %v2655 = vsel %vm244, %v2643, 0.0
    %2656 = vadd.xlane.f32.xlu0 %v2655
    %v2657 = vpop.xlane.xlu0 %2656
    %v2658 = vsel %vm244, %v2644, 0.0
    %2659 = vadd.xlane.f32.xlu0 %v2658
    %v2660 = vpop.xlane.xlu0 %2659
    %v2661 = vsel %vm244, %v2645, 0.0
    %2662 = vadd.xlane.f32.xlu0 %v2661
    %v2663 = vpop.xlane.xlu0 %2662
    %v2664 = vsel %vm244, %v2646, 0.0
    %2665 = vadd.xlane.f32.xlu0 %v2664
    %v2666 = vpop.xlane.xlu0 %2665
    %v2667 = vsel %vm244, %v2647, 0.0
    %2668 = vadd.xlane.f32.xlu0 %v2667
    %v2669 = vpop.xlane.xlu0 %2668
    %v2670 = vsel %vm244, %v2648, 0.0
    %2671 = vadd.xlane.f32.xlu0 %v2670
    %v2672 = vpop.xlane.xlu0 %2671
    %v2673 = vmul.f32 %v2651, %v257
    %v2674 = vmul.f32 %v2654, %v257
    %v2675 = vmul.f32 %v2657, %v257
    %v2676 = vmul.f32 %v2660, %v257
    %v2677 = vmul.f32 %v2663, %v257
    %v2678 = vmul.f32 %v2666, %v257
    %v2679 = vmul.f32 %v2669, %v257
    %v2680 = vmul.f32 %v2672, %v257
    %v2681 = vadd.f32 %v2673, 1e-12
    %v2682 = vadd.f32 %v2674, 1e-12
    %v2683 = vadd.f32 %v2675, 1e-12
    %v2684 = vadd.f32 %v2676, 1e-12
    %v2685 = vadd.f32 %v2677, 1e-12
    %v2686 = vadd.f32 %v2678, 1e-12
    %v2687 = vadd.f32 %v2679, 1e-12
    %v2688 = vadd.f32 %v2680, 1e-12
    %v2689 = vrsqrt.pop %v2681
    %v2690 = vmul.f32 %v2689, %v2681
    %v2691 = vmul.f32 %v2690, %v2689
    %v2692 = vmul.f32 0.5, %v2691
    %v2693 = vsub.f32 1.5, %v2692
    %v2694 = vmul.f32 %v2689, %v2693
    %vm2695 = vweird.f32 %v2681
    %vm2696 = vweird.f32 %v2689
    %vm2697 = vmor %vm2695, %vm2696
    %v2698 = vsel %vm2697, %v2689, %v2694
    %v2699 = vrsqrt.pop %v2682
    %v2700 = vmul.f32 %v2699, %v2682
    %v2701 = vmul.f32 %v2700, %v2699
    %v2702 = vmul.f32 0.5, %v2701
    %v2703 = vsub.f32 1.5, %v2702
    %v2704 = vmul.f32 %v2699, %v2703
    %vm2705 = vweird.f32 %v2682
    %vm2706 = vweird.f32 %v2699
    %vm2707 = vmor %vm2705, %vm2706
    %v2708 = vsel %vm2707, %v2699, %v2704
    %v2709 = vrsqrt.pop %v2683
    %v2710 = vmul.f32 %v2709, %v2683
    %v2711 = vmul.f32 %v2710, %v2709
    %v2712 = vmul.f32 0.5, %v2711
    %v2713 = vsub.f32 1.5, %v2712
    %v2714 = vmul.f32 %v2709, %v2713
    %vm2715 = vweird.f32 %v2683
    %vm2716 = vweird.f32 %v2709
    %vm2717 = vmor %vm2715, %vm2716
    %v2718 = vsel %vm2717, %v2709, %v2714
    %v2719 = vrsqrt.pop %v2684
    %v2720 = vmul.f32 %v2719, %v2684
    %v2721 = vmul.f32 %v2720, %v2719
    %v2722 = vmul.f32 0.5, %v2721
    %v2723 = vsub.f32 1.5, %v2722
    %v2724 = vmul.f32 %v2719, %v2723
    %vm2725 = vweird.f32 %v2684
    %vm2726 = vweird.f32 %v2719
    %vm2727 = vmor %vm2725, %vm2726
    %v2728 = vsel %vm2727, %v2719, %v2724
    %v2729 = vrsqrt.pop %v2685
    %v2730 = vmul.f32 %v2729, %v2685
    %v2731 = vmul.f32 %v2730, %v2729
    %v2732 = vmul.f32 0.5, %v2731
    %v2733 = vsub.f32 1.5, %v2732
    %v2734 = vmul.f32 %v2729, %v2733
    %vm2735 = vweird.f32 %v2685
    %vm2736 = vweird.f32 %v2729
    %vm2737 = vmor %vm2735, %vm2736
    %v2738 = vsel %vm2737, %v2729, %v2734
    %v2739 = vrsqrt.pop %v2686
    %v2740 = vmul.f32 %v2739, %v2686
    %v2741 = vmul.f32 %v2740, %v2739
    %v2742 = vmul.f32 0.5, %v2741
    %v2743 = vsub.f32 1.5, %v2742
    %v2744 = vmul.f32 %v2739, %v2743
    %vm2745 = vweird.f32 %v2686
    %vm2746 = vweird.f32 %v2739
    %vm2747 = vmor %vm2745, %vm2746
    %v2748 = vsel %vm2747, %v2739, %v2744
    %v2749 = vrsqrt.pop %v2687
    %v2750 = vmul.f32 %v2749, %v2687
    %v2751 = vmul.f32 %v2750, %v2749
    %v2752 = vmul.f32 0.5, %v2751
    %v2753 = vsub.f32 1.5, %v2752
    %v2754 = vmul.f32 %v2749, %v2753
    %vm2755 = vweird.f32 %v2687
    %vm2756 = vweird.f32 %v2749
    %vm2757 = vmor %vm2755, %vm2756
    %v2758 = vsel %vm2757, %v2749, %v2754
    %v2759 = vrsqrt.pop %v2688
    %v2760 = vmul.f32 %v2759, %v2688
    %v2761 = vmul.f32 %v2760, %v2759
    %v2762 = vmul.f32 0.5, %v2761
    %v2763 = vsub.f32 1.5, %v2762
    %v2764 = vmul.f32 %v2759, %v2763
    %vm2765 = vweird.f32 %v2688
    %vm2766 = vweird.f32 %v2759
    %vm2767 = vmor %vm2765, %vm2766
    %v2768 = vsel %vm2767, %v2759, %v2764
    %v2769 = vmul.f32 %v2633, %v2698
    %v2770 = vmul.f32 %v2634, %v2708
    %v2771 = vmul.f32 %v2635, %v2718
    %v2772 = vmul.f32 %v2636, %v2728
    %v2773 = vmul.f32 %v2637, %v2738
    %v2774 = vmul.f32 %v2638, %v2748
    %v2775 = vmul.f32 %v2639, %v2758
    %v2776 = vmul.f32 %v2640, %v2768
    %v2778 = vperm.slane %v2599, 0
    %v2780 = vmul.f32 %v2769, %v2778
    %v2781 = vmul.f32 %v2770, %v2778
    %v2782 = vmul.f32 %v2771, %v2778
    %v2783 = vmul.f32 %v2772, %v2778
    %v2784 = vmul.f32 %v2773, %v2778
    %v2785 = vmul.f32 %v2774, %v2778
    %v2786 = vmul.f32 %v2775, %v2778
    %v2787 = vmul.f32 %v2776, %v2778
    %v2789 = vperm.slane %v2600, 0
    %v2791 = vadd.f32 %v2780, %v2789
    %v2792 = vadd.f32 %v2781, %v2789
    %v2793 = vadd.f32 %v2782, %v2789
    %v2794 = vadd.f32 %v2783, %v2789
    %v2795 = vadd.f32 %v2784, %v2789
    %v2796 = vadd.f32 %v2785, %v2789
    %v2797 = vadd.f32 %v2786, %v2789
    %v2798 = vadd.f32 %v2787, %v2789
    %v2799 = vpack.c.bf16 %v2792, %v2791
    %v2800 = vpack.c.bf16 %v2794, %v2793
    %v2801 = vpack.c.bf16 %v2796, %v2795
    %v2802 = vpack.c.bf16 %v2798, %v2797
    %v2803 = vld [vmem:[%s41] sm:$0xf]
    %v2804 = vld [vmem:[%s41 + $0x4] sm:$0xf]
    %v2805 = vld [vmem:[%s41 + $0x8] sm:$0xf]
    %v2806 = vld [vmem:[%s41 + $0xc] sm:$0xf]
    %v2807 = vld [vmem:[%s43] sm:$0x1]
    %v2809 = vperm.slane %v2807, 0
    %v2815 = vunpack.c.l.b16 %v2803
    %v2816 = vunpack.c.l.b16 %v2804
    %v2817 = vunpack.c.l.b16 %v2805
    %v2818 = vunpack.c.l.b16 %v2806
    %v2819 = vpack.c.b16 %v2816, %v2815
    %v2820 = vpack.c.b16 %v2818, %v2817
    %v2824 = vsel %vm244, %v2799, 0
    %v2827 = vsel %vm244, %v2800, 0
    %v2830 = vsel %vm244, %v2801, 0
    %v2833 = vsel %vm244, %v2802, 0
    %2835 = vmatpush.bf16.msra.mxu0 0
    %2836 = vmatpush.bf16.msra.mxu0 0
    %2837 = vmatpush.bf16.msra.mxu0 0
    %2838 = vmatpush.bf16.msra.mxu0 0
    %2839 = vmatpush.bf16.msra.mxu0 0
    %2840 = vmatpush.bf16.msra.mxu0 0
    %2841 = vmatpush.bf16.msra.mxu0 %v2820
    %2842 = vmatpush.bf16.msra.mxu0 %v2819
    %2843 = vmatmul.bf16.gmra.mxu0 %v2824
    %v2844 = vpop.f32.mrf.mxu0
    %v2845 = vadd.f32 %v2809, %v2844
    %v2846 = vpop.f32.mrf.mxu0
    %v2847 = vadd.f32 %v2809, %v2846
    %2848 = vmatmul.bf16.gmra.mxu0 %v2827
    %v2849 = vpop.f32.mrf.mxu0
    %v2850 = vadd.f32 %v2809, %v2849
    %v2851 = vpop.f32.mrf.mxu0
    %v2852 = vadd.f32 %v2809, %v2851
    %2853 = vmatmul.bf16.gmra.mxu0 %v2830
    %v2854 = vpop.f32.mrf.mxu0
    %v2855 = vadd.f32 %v2809, %v2854
    %v2856 = vpop.f32.mrf.mxu0
    %v2857 = vadd.f32 %v2809, %v2856
    %2858 = vmatmul.bf16.gmra.mxu0 %v2833
    %v2859 = vpop.f32.mrf.mxu0
    %v2860 = vadd.f32 %v2809, %v2859
    %v2861 = vpop.f32.mrf.mxu0
    %v2862 = vadd.f32 %v2809, %v2861
    %2863 = vdwg.mxu0
    %v2864 = vmul.f32 %v2845, 0.5
    %v2865 = vmul.f32 %v2847, 0.5
    %v2866 = vmul.f32 %v2850, 0.5
    %v2867 = vmul.f32 %v2852, 0.5
    %v2868 = vmul.f32 %v2855, 0.5
    %v2869 = vmul.f32 %v2857, 0.5
    %v2870 = vmul.f32 %v2860, 0.5
    %v2871 = vmul.f32 %v2862, 0.5
    %v2872 = vmul.f32 %v2845, 0.70710677
    %v2873 = vmul.f32 %v2847, 0.70710677
    %v2874 = vmul.f32 %v2850, 0.70710677
    %v2875 = vmul.f32 %v2852, 0.70710677
    %v2876 = vmul.f32 %v2855, 0.70710677
    %v2877 = vmul.f32 %v2857, 0.70710677
    %v2878 = vmul.f32 %v2860, 0.70710677
    %v2879 = vmul.f32 %v2862, 0.70710677
    %vm2880 = vcmp.ge.f32.partialorder %v2872, 0.0
    %vm2881 = vcmp.ge.f32.partialorder %v2873, 0.0
    %vm2882 = vcmp.ge.f32.partialorder %v2874, 0.0
    %vm2883 = vcmp.ge.f32.partialorder %v2875, 0.0
    %vm2884 = vcmp.ge.f32.partialorder %v2876, 0.0
    %vm2885 = vcmp.ge.f32.partialorder %v2877, 0.0
    %vm2886 = vcmp.ge.f32.partialorder %v2878, 0.0
    %vm2887 = vcmp.ge.f32.partialorder %v2879, 0.0
    %v2888 = vsel %vm2880, 1.0, -1.0
    %v2889 = vsel %vm2881, 1.0, -1.0
    %v2890 = vsel %vm2882, 1.0, -1.0
    %v2891 = vsel %vm2883, 1.0, -1.0
    %v2892 = vsel %vm2884, 1.0, -1.0
    %v2893 = vsel %vm2885, 1.0, -1.0
    %v2894 = vsel %vm2886, 1.0, -1.0
    %v2895 = vsel %vm2887, 1.0, -1.0
    %v2896 = vand.u32 2147483647, %v2872
    %v2897 = vand.u32 2147483647, %v2873
    %v2898 = vand.u32 2147483647, %v2874
    %v2899 = vand.u32 2147483647, %v2875
    %v2900 = vand.u32 2147483647, %v2876
    %v2901 = vand.u32 2147483647, %v2877
    %v2902 = vand.u32 2147483647, %v2878
    %v2903 = vand.u32 2147483647, %v2879
    %v2904 = vmul.f32 %v2896, 0.3275911
    %v2905 = vmul.f32 %v2897, 0.3275911
    %v2906 = vmul.f32 %v2898, 0.3275911
    %v2907 = vmul.f32 %v2899, 0.3275911
    %v2908 = vmul.f32 %v2900, 0.3275911
    %v2909 = vmul.f32 %v2901, 0.3275911
    %v2910 = vmul.f32 %v2902, 0.3275911
    %v2911 = vmul.f32 %v2903, 0.3275911
    %v2912 = vadd.f32 %v2904, 1.0
    %v2913 = vadd.f32 %v2905, 1.0
    %v2914 = vadd.f32 %v2906, 1.0
    %v2915 = vadd.f32 %v2907, 1.0
    %v2916 = vadd.f32 %v2908, 1.0
    %v2917 = vadd.f32 %v2909, 1.0
    %v2918 = vadd.f32 %v2910, 1.0
    %v2919 = vadd.f32 %v2911, 1.0
    %v2920 = vrcp.pop %v2912
    %v2921 = vmul.f32 %v2912, %v2920
    %v2922 = vsub.f32 1.0, %v2921
    %v2923 = vmul.f32 %v2920, %v2922
    %v2924 = vadd.f32 %v2920, %v2923
    %vm2925 = vweird.f32 %v2912
    %vm2926 = vweird.f32 %v2920
    %vm2927 = vmor %vm2925, %vm2926
    %v2928 = vsel %vm2927, %v2920, %v2924
    %v2929 = vand.u32 2147483647, %v2912
    %vm2930 = vcmp.eq.f32.partialorder %v2929, 8.507059e+37
    %v2931 = vand.u32 %v2912, 2147483648
    %v2932 = vor.u32 1.1754944e-38, %v2931
    %v2933 = vsel %vm2930, %v2932, %v2928
    %v2934 = vmul.f32 1.0, %v2933
    %v2935 = vrcp.pop %v2913
    %v2936 = vmul.f32 %v2913, %v2935
    %v2937 = vsub.f32 1.0, %v2936
    %v2938 = vmul.f32 %v2935, %v2937
    %v2939 = vadd.f32 %v2935, %v2938
    %vm2940 = vweird.f32 %v2913
    %vm2941 = vweird.f32 %v2935
    %vm2942 = vmor %vm2940, %vm2941
    %v2943 = vsel %vm2942, %v2935, %v2939
    %v2944 = vand.u32 2147483647, %v2913
    %vm2945 = vcmp.eq.f32.partialorder %v2944, 8.507059e+37
    %v2946 = vand.u32 %v2913, 2147483648
    %v2947 = vor.u32 1.1754944e-38, %v2946
    %v2948 = vsel %vm2945, %v2947, %v2943
    %v2949 = vmul.f32 1.0, %v2948
    %v2950 = vrcp.pop %v2914
    %v2951 = vmul.f32 %v2914, %v2950
    %v2952 = vsub.f32 1.0, %v2951
    %v2953 = vmul.f32 %v2950, %v2952
    %v2954 = vadd.f32 %v2950, %v2953
    %vm2955 = vweird.f32 %v2914
    %vm2956 = vweird.f32 %v2950
    %vm2957 = vmor %vm2955, %vm2956
    %v2958 = vsel %vm2957, %v2950, %v2954
    %v2959 = vand.u32 2147483647, %v2914
    %vm2960 = vcmp.eq.f32.partialorder %v2959, 8.507059e+37
    %v2961 = vand.u32 %v2914, 2147483648
    %v2962 = vor.u32 1.1754944e-38, %v2961
    %v2963 = vsel %vm2960, %v2962, %v2958
    %v2964 = vmul.f32 1.0, %v2963
    %v2965 = vrcp.pop %v2915
    %v2966 = vmul.f32 %v2915, %v2965
    %v2967 = vsub.f32 1.0, %v2966
    %v2968 = vmul.f32 %v2965, %v2967
    %v2969 = vadd.f32 %v2965, %v2968
    %vm2970 = vweird.f32 %v2915
    %vm2971 = vweird.f32 %v2965
    %vm2972 = vmor %vm2970, %vm2971
    %v2973 = vsel %vm2972, %v2965, %v2969
    %v2974 = vand.u32 2147483647, %v2915
    %vm2975 = vcmp.eq.f32.partialorder %v2974, 8.507059e+37
    %v2976 = vand.u32 %v2915, 2147483648
    %v2977 = vor.u32 1.1754944e-38, %v2976
    %v2978 = vsel %vm2975, %v2977, %v2973
    %v2979 = vmul.f32 1.0, %v2978
    %v2980 = vrcp.pop %v2916
    %v2981 = vmul.f32 %v2916, %v2980
    %v2982 = vsub.f32 1.0, %v2981
    %v2983 = vmul.f32 %v2980, %v2982
    %v2984 = vadd.f32 %v2980, %v2983
    %vm2985 = vweird.f32 %v2916
    %vm2986 = vweird.f32 %v2980
    %vm2987 = vmor %vm2985, %vm2986
    %v2988 = vsel %vm2987, %v2980, %v2984
    %v2989 = vand.u32 2147483647, %v2916
    %vm2990 = vcmp.eq.f32.partialorder %v2989, 8.507059e+37
    %v2991 = vand.u32 %v2916, 2147483648
    %v2992 = vor.u32 1.1754944e-38, %v2991
    %v2993 = vsel %vm2990, %v2992, %v2988
    %v2994 = vmul.f32 1.0, %v2993
    %v2995 = vrcp.pop %v2917
    %v2996 = vmul.f32 %v2917, %v2995
    %v2997 = vsub.f32 1.0, %v2996
    %v2998 = vmul.f32 %v2995, %v2997
    %v2999 = vadd.f32 %v2995, %v2998
    %vm3000 = vweird.f32 %v2917
    %vm3001 = vweird.f32 %v2995
    %vm3002 = vmor %vm3000, %vm3001
    %v3003 = vsel %vm3002, %v2995, %v2999
    %v3004 = vand.u32 2147483647, %v2917
    %vm3005 = vcmp.eq.f32.partialorder %v3004, 8.507059e+37
    %v3006 = vand.u32 %v2917, 2147483648
    %v3007 = vor.u32 1.1754944e-38, %v3006
    %v3008 = vsel %vm3005, %v3007, %v3003
    %v3009 = vmul.f32 1.0, %v3008
    %v3010 = vrcp.pop %v2918
    %v3011 = vmul.f32 %v2918, %v3010
    %v3012 = vsub.f32 1.0, %v3011
    %v3013 = vmul.f32 %v3010, %v3012
    %v3014 = vadd.f32 %v3010, %v3013
    %vm3015 = vweird.f32 %v2918
    %vm3016 = vweird.f32 %v3010
    %vm3017 = vmor %vm3015, %vm3016
    %v3018 = vsel %vm3017, %v3010, %v3014
    %v3019 = vand.u32 2147483647, %v2918
    %vm3020 = vcmp.eq.f32.partialorder %v3019, 8.507059e+37
    %v3021 = vand.u32 %v2918, 2147483648
    %v3022 = vor.u32 1.1754944e-38, %v3021
    %v3023 = vsel %vm3020, %v3022, %v3018
    %v3024 = vmul.f32 1.0, %v3023
    %v3025 = vrcp.pop %v2919
    %v3026 = vmul.f32 %v2919, %v3025
    %v3027 = vsub.f32 1.0, %v3026
    %v3028 = vmul.f32 %v3025, %v3027
    %v3029 = vadd.f32 %v3025, %v3028
    %vm3030 = vweird.f32 %v2919
    %vm3031 = vweird.f32 %v3025
    %vm3032 = vmor %vm3030, %vm3031
    %v3033 = vsel %vm3032, %v3025, %v3029
    %v3034 = vand.u32 2147483647, %v2919
    %vm3035 = vcmp.eq.f32.partialorder %v3034, 8.507059e+37
    %v3036 = vand.u32 %v2919, 2147483648
    %v3037 = vor.u32 1.1754944e-38, %v3036
    %v3038 = vsel %vm3035, %v3037, %v3033
    %v3039 = vmul.f32 1.0, %v3038
    %v3040 = vmul.f32 %v2934, 1.0614054
    %v3041 = vmul.f32 %v2949, 1.0614054
    %v3042 = vmul.f32 %v2964, 1.0614054
    %v3043 = vmul.f32 %v2979, 1.0614054
    %v3044 = vmul.f32 %v2994, 1.0614054
    %v3045 = vmul.f32 %v3009, 1.0614054
    %v3046 = vmul.f32 %v3024, 1.0614054
    %v3047 = vmul.f32 %v3039, 1.0614054
    %v3048 = vadd.f32 %v3040, -1.4531521
    %v3049 = vadd.f32 %v3041, -1.4531521
    %v3050 = vadd.f32 %v3042, -1.4531521
    %v3051 = vadd.f32 %v3043, -1.4531521
    %v3052 = vadd.f32 %v3044, -1.4531521
    %v3053 = vadd.f32 %v3045, -1.4531521
    %v3054 = vadd.f32 %v3046, -1.4531521
    %v3055 = vadd.f32 %v3047, -1.4531521
    %v3056 = vmul.f32 %v3048, %v2934
    %v3057 = vmul.f32 %v3049, %v2949
    %v3058 = vmul.f32 %v3050, %v2964
    %v3059 = vmul.f32 %v3051, %v2979
    %v3060 = vmul.f32 %v3052, %v2994
    %v3061 = vmul.f32 %v3053, %v3009
    %v3062 = vmul.f32 %v3054, %v3024
    %v3063 = vmul.f32 %v3055, %v3039
    %v3064 = vadd.f32 %v3056, 1.4214138
    %v3065 = vadd.f32 %v3057, 1.4214138
    %v3066 = vadd.f32 %v3058, 1.4214138
    %v3067 = vadd.f32 %v3059, 1.4214138
    %v3068 = vadd.f32 %v3060, 1.4214138
    %v3069 = vadd.f32 %v3061, 1.4214138
    %v3070 = vadd.f32 %v3062, 1.4214138
    %v3071 = vadd.f32 %v3063, 1.4214138
    %v3072 = vmul.f32 %v3064, %v2934
    %v3073 = vmul.f32 %v3065, %v2949
    %v3074 = vmul.f32 %v3066, %v2964
    %v3075 = vmul.f32 %v3067, %v2979
    %v3076 = vmul.f32 %v3068, %v2994
    %v3077 = vmul.f32 %v3069, %v3009
    %v3078 = vmul.f32 %v3070, %v3024
    %v3079 = vmul.f32 %v3071, %v3039
    %v3080 = vadd.f32 %v3072, -0.28449672
    %v3081 = vadd.f32 %v3073, -0.28449672
    %v3082 = vadd.f32 %v3074, -0.28449672
    %v3083 = vadd.f32 %v3075, -0.28449672
    %v3084 = vadd.f32 %v3076, -0.28449672
    %v3085 = vadd.f32 %v3077, -0.28449672
    %v3086 = vadd.f32 %v3078, -0.28449672
    %v3087 = vadd.f32 %v3079, -0.28449672
    %v3088 = vmul.f32 %v3080, %v2934
    %v3089 = vmul.f32 %v3081, %v2949
    %v3090 = vmul.f32 %v3082, %v2964
    %v3091 = vmul.f32 %v3083, %v2979
    %v3092 = vmul.f32 %v3084, %v2994
    %v3093 = vmul.f32 %v3085, %v3009
    %v3094 = vmul.f32 %v3086, %v3024
    %v3095 = vmul.f32 %v3087, %v3039
    %v3096 = vadd.f32 %v3088, 0.2548296
    %v3097 = vadd.f32 %v3089, 0.2548296
    %v3098 = vadd.f32 %v3090, 0.2548296
    %v3099 = vadd.f32 %v3091, 0.2548296
    %v3100 = vadd.f32 %v3092, 0.2548296
    %v3101 = vadd.f32 %v3093, 0.2548296
    %v3102 = vadd.f32 %v3094, 0.2548296
    %v3103 = vadd.f32 %v3095, 0.2548296
    %v3104 = vmul.f32 %v3096, %v2934
    %v3105 = vmul.f32 %v3097, %v2949
    %v3106 = vmul.f32 %v3098, %v2964
    %v3107 = vmul.f32 %v3099, %v2979
    %v3108 = vmul.f32 %v3100, %v2994
    %v3109 = vmul.f32 %v3101, %v3009
    %v3110 = vmul.f32 %v3102, %v3024
    %v3111 = vmul.f32 %v3103, %v3039
    %v3112 = vsub.f32 0.0, %v2896
    %v3113 = vsub.f32 0.0, %v2897
    %v3114 = vsub.f32 0.0, %v2898
    %v3115 = vsub.f32 0.0, %v2899
    %v3116 = vsub.f32 0.0, %v2900
    %v3117 = vsub.f32 0.0, %v2901
    %v3118 = vsub.f32 0.0, %v2902
    %v3119 = vsub.f32 0.0, %v2903
    %v3120 = vmul.f32 %v3112, %v2896
    %v3121 = vmul.f32 %v3113, %v2897
    %v3122 = vmul.f32 %v3114, %v2898
    %v3123 = vmul.f32 %v3115, %v2899
    %v3124 = vmul.f32 %v3116, %v2900
    %v3125 = vmul.f32 %v3117, %v2901
    %v3126 = vmul.f32 %v3118, %v2902
    %v3127 = vmul.f32 %v3119, %v2903
    %v3128 = vmul.f32 %v3120, 1.442695
    %v3129 = vpow.pop %v3128
    %v3130 = vmul.f32 %v3121, 1.442695
    %v3131 = vpow.pop %v3130
    %v3132 = vmul.f32 %v3122, 1.442695
    %v3133 = vpow.pop %v3132
    %v3134 = vmul.f32 %v3123, 1.442695
    %v3135 = vpow.pop %v3134
    %v3136 = vmul.f32 %v3124, 1.442695
    %v3137 = vpow.pop %v3136
    %v3138 = vmul.f32 %v3125, 1.442695
    %v3139 = vpow.pop %v3138
    %v3140 = vmul.f32 %v3126, 1.442695
    %v3141 = vpow.pop %v3140
    %v3142 = vmul.f32 %v3127, 1.442695
    %v3143 = vpow.pop %v3142
    %v3144 = vmul.f32 %v3104, %v3129
    %v3145 = vmul.f32 %v3105, %v3131
    %v3146 = vmul.f32 %v3106, %v3133
    %v3147 = vmul.f32 %v3107, %v3135
    %v3148 = vmul.f32 %v3108, %v3137
    %v3149 = vmul.f32 %v3109, %v3139
    %v3150 = vmul.f32 %v3110, %v3141
    %v3151 = vmul.f32 %v3111, %v3143
    %v3152 = vsub.f32 1.0, %v3144
    %v3153 = vsub.f32 1.0, %v3145
    %v3154 = vsub.f32 1.0, %v3146
    %v3155 = vsub.f32 1.0, %v3147
    %v3156 = vsub.f32 1.0, %v3148
    %v3157 = vsub.f32 1.0, %v3149
    %v3158 = vsub.f32 1.0, %v3150
    %v3159 = vsub.f32 1.0, %v3151
    %v3160 = vmul.f32 %v2888, %v3152
    %v3161 = vmul.f32 %v2889, %v3153
    %v3162 = vmul.f32 %v2890, %v3154
    %v3163 = vmul.f32 %v2891, %v3155
    %v3164 = vmul.f32 %v2892, %v3156
    %v3165 = vmul.f32 %v2893, %v3157
    %v3166 = vmul.f32 %v2894, %v3158
    %v3167 = vmul.f32 %v2895, %v3159
    %v3168 = vadd.f32 %v3160, 1.0
    %v3169 = vadd.f32 %v3161, 1.0
    %v3170 = vadd.f32 %v3162, 1.0
    %v3171 = vadd.f32 %v3163, 1.0
    %v3172 = vadd.f32 %v3164, 1.0
    %v3173 = vadd.f32 %v3165, 1.0
    %v3174 = vadd.f32 %v3166, 1.0
    %v3175 = vadd.f32 %v3167, 1.0
    %v3176 = vmul.f32 %v2864, %v3168
    %v3177 = vmul.f32 %v2865, %v3169
    %v3178 = vmul.f32 %v2866, %v3170
    %v3179 = vmul.f32 %v2867, %v3171
    %v3180 = vmul.f32 %v2868, %v3172
    %v3181 = vmul.f32 %v2869, %v3173
    %v3182 = vmul.f32 %v2870, %v3174
    %v3183 = vmul.f32 %v2871, %v3175
    %v3184 = vpack.c.bf16 %v3177, %v3176
    %v3185 = vpack.c.bf16 %v3179, %v3178
    %v3186 = vpack.c.bf16 %v3181, %v3180
    %v3187 = vpack.c.bf16 %v3183, %v3182
    %v3188 = vld [vmem:[%s45] sm:$0xf]
    %v3189 = vld [vmem:[%s45 + $0x4] sm:$0xf]
    %v3190 = vld [vmem:[%s45 + $0x8] sm:$0xf]
    %v3191 = vld [vmem:[%s45 + $0xc] sm:$0xf]
    %v3192 = vld [vmem:[%s45 + $0x10] sm:$0xf]
    %v3193 = vld [vmem:[%s45 + $0x14] sm:$0xf]
    %v3194 = vld [vmem:[%s45 + $0x18] sm:$0xf]
    %v3195 = vld [vmem:[%s45 + $0x1c] sm:$0xf]
    %v3204 = vunpack.c.l.b16 %v3188
    %v3205 = vunpack.c.l.b16 %v3189
    %v3206 = vunpack.c.l.b16 %v3190
    %v3207 = vunpack.c.l.b16 %v3191
    %v3208 = vunpack.c.l.b16 %v3192
    %v3209 = vunpack.c.l.b16 %v3193
    %v3210 = vunpack.c.l.b16 %v3194
    %v3211 = vunpack.c.l.b16 %v3195
    %v3212 = vpack.c.b16 %v3205, %v3204
    %v3213 = vpack.c.b16 %v3207, %v3206
    %v3214 = vpack.c.b16 %v3209, %v3208
    %v3215 = vpack.c.b16 %v3211, %v3210
    %vm3220 = vcmask 523264
    %v3222 = vsel %vm3220, %v3184, 0
    %v3225 = vsel %vm3220, %v3185, 0
    %v3228 = vsel %vm3220, %v3186, 0
    %v3231 = vsel %vm3220, %v3187, 0
    %3233 = vmatpush.bf16.msra.mxu0 0
    %3234 = vmatpush.bf16.msra.mxu0 0
    %3235 = vmatpush.bf16.msra.mxu0 0
    %3236 = vmatpush.bf16.msra.mxu0 0
    %3237 = vmatpush.bf16.msra.mxu0 %v3215
    %3238 = vmatpush.bf16.msra.mxu0 %v3214
    %3239 = vmatpush.bf16.msra.mxu0 %v3213
    %3240 = vmatpush.bf16.msra.mxu0 %v3212
    %3241 = vmatmul.bf16.gmra.mxu0 %v3222
    %v3242 = vpop.f32.mrf.mxu0
    %v3243 = vadd.f32 0.0, %v3242
    %v3244 = vpop.f32.mrf.mxu0
    %v3245 = vadd.f32 0.0, %v3244
    %3246 = vmatmul.bf16.gmra.mxu0 %v3225
    %v3247 = vpop.f32.mrf.mxu0
    %v3248 = vadd.f32 0.0, %v3247
    %v3249 = vpop.f32.mrf.mxu0
    %v3250 = vadd.f32 0.0, %v3249
    %3251 = vmatmul.bf16.gmra.mxu0 %v3228
    %v3252 = vpop.f32.mrf.mxu0
    %v3253 = vadd.f32 0.0, %v3252
    %v3254 = vpop.f32.mrf.mxu0
    %v3255 = vadd.f32 0.0, %v3254
    %3256 = vmatmul.bf16.gmra.mxu0 %v3231
    %v3257 = vpop.f32.mrf.mxu0
    %v3258 = vadd.f32 0.0, %v3257
    %v3259 = vpop.f32.mrf.mxu0
    %v3260 = vadd.f32 0.0, %v3259
    %3261 = vdwg.mxu0
    %v3262 = vadd.f32 %v2591, %v3243
    %v3263 = vadd.f32 %v2592, %v3245
    %v3264 = vadd.f32 %v2593, %v3248
    %v3265 = vadd.f32 %v2594, %v3250
    %v3266 = vadd.f32 %v2595, %v3253
    %v3267 = vadd.f32 %v2596, %v3255
    %v3268 = vadd.f32 %v2597, %v3258
    %v3269 = vadd.f32 %v2598, %v3260
    %v3270 = vld [vmem:[%s47] sm:$0x1]
    %v3272 = vperm.slane %v3270, 0
    %v3274 = vadd.f32 %v3262, %v3272
    %v3275 = vadd.f32 %v3263, %v3272
    %v3276 = vadd.f32 %v3264, %v3272
    %v3277 = vadd.f32 %v3265, %v3272
    %v3278 = vadd.f32 %v3266, %v3272
    %v3279 = vadd.f32 %v3267, %v3272
    %v3280 = vadd.f32 %v3268, %v3272
    %v3281 = vadd.f32 %v3269, %v3272
    %s3282 = scalar_lea.vmem %s25, 1
    %v3283 = vld [vmem:[%s3282] sm:$0x1]
    %s3284 = scalar_lea.vmem %s27, 1
    %v3285 = vld [vmem:[%s3284] sm:$0x1]
    %v3286 = vsel %vm244, %v3274, 0.0
    %3287 = vadd.xlane.f32.xlu0 %v3286
    %v3288 = vpop.xlane.xlu0 %3287
    %v3289 = vsel %vm244, %v3275, 0.0
    %3290 = vadd.xlane.f32.xlu0 %v3289
    %v3291 = vpop.xlane.xlu0 %3290
    %v3292 = vsel %vm244, %v3276, 0.0
    %3293 = vadd.xlane.f32.xlu0 %v3292
    %v3294 = vpop.xlane.xlu0 %3293
    %v3295 = vsel %vm244, %v3277, 0.0
    %3296 = vadd.xlane.f32.xlu0 %v3295
    %v3297 = vpop.xlane.xlu0 %3296
    %v3298 = vsel %vm244, %v3278, 0.0
    %3299 = vadd.xlane.f32.xlu0 %v3298
    %v3300 = vpop.xlane.xlu0 %3299
    %v3301 = vsel %vm244, %v3279, 0.0
    %3302 = vadd.xlane.f32.xlu0 %v3301
    %v3303 = vpop.xlane.xlu0 %3302
    %v3304 = vsel %vm244, %v3280, 0.0
    %3305 = vadd.xlane.f32.xlu0 %v3304
    %v3306 = vpop.xlane.xlu0 %3305
    %v3307 = vsel %vm244, %v3281, 0.0
    %3308 = vadd.xlane.f32.xlu0 %v3307
    %v3309 = vpop.xlane.xlu0 %3308
    %v3310 = vmul.f32 %v3288, %v257
    %v3311 = vmul.f32 %v3291, %v257
    %v3312 = vmul.f32 %v3294, %v257
    %v3313 = vmul.f32 %v3297, %v257
    %v3314 = vmul.f32 %v3300, %v257
    %v3315 = vmul.f32 %v3303, %v257
    %v3316 = vmul.f32 %v3306, %v257
    %v3317 = vmul.f32 %v3309, %v257
    %v3318 = vsub.f32 %v3274, %v3310
    %v3319 = vsub.f32 %v3275, %v3311
    %v3320 = vsub.f32 %v3276, %v3312
    %v3321 = vsub.f32 %v3277, %v3313
    %v3322 = vsub.f32 %v3278, %v3314
    %v3323 = vsub.f32 %v3279, %v3315
    %v3324 = vsub.f32 %v3280, %v3316
    %v3325 = vsub.f32 %v3281, %v3317
    %v3326 = vmul.f32 %v3318, %v3318
    %v3327 = vmul.f32 %v3319, %v3319
    %v3328 = vmul.f32 %v3320, %v3320
    %v3329 = vmul.f32 %v3321, %v3321
    %v3330 = vmul.f32 %v3322, %v3322
    %v3331 = vmul.f32 %v3323, %v3323
    %v3332 = vmul.f32 %v3324, %v3324
    %v3333 = vmul.f32 %v3325, %v3325
    %v3334 = vsel %vm244, %v3326, 0.0
    %3335 = vadd.xlane.f32.xlu0 %v3334
    %v3336 = vpop.xlane.xlu0 %3335
    %v3337 = vsel %vm244, %v3327, 0.0
    %3338 = vadd.xlane.f32.xlu0 %v3337
    %v3339 = vpop.xlane.xlu0 %3338
    %v3340 = vsel %vm244, %v3328, 0.0
    %3341 = vadd.xlane.f32.xlu0 %v3340
    %v3342 = vpop.xlane.xlu0 %3341
    %v3343 = vsel %vm244, %v3329, 0.0
    %3344 = vadd.xlane.f32.xlu0 %v3343
    %v3345 = vpop.xlane.xlu0 %3344
    %v3346 = vsel %vm244, %v3330, 0.0
    %3347 = vadd.xlane.f32.xlu0 %v3346
    %v3348 = vpop.xlane.xlu0 %3347
    %v3349 = vsel %vm244, %v3331, 0.0
    %3350 = vadd.xlane.f32.xlu0 %v3349
    %v3351 = vpop.xlane.xlu0 %3350
    %v3352 = vsel %vm244, %v3332, 0.0
    %3353 = vadd.xlane.f32.xlu0 %v3352
    %v3354 = vpop.xlane.xlu0 %3353
    %v3355 = vsel %vm244, %v3333, 0.0
    %3356 = vadd.xlane.f32.xlu0 %v3355
    %v3357 = vpop.xlane.xlu0 %3356
    %v3358 = vmul.f32 %v3336, %v257
    %v3359 = vmul.f32 %v3339, %v257
    %v3360 = vmul.f32 %v3342, %v257
    %v3361 = vmul.f32 %v3345, %v257
    %v3362 = vmul.f32 %v3348, %v257
    %v3363 = vmul.f32 %v3351, %v257
    %v3364 = vmul.f32 %v3354, %v257
    %v3365 = vmul.f32 %v3357, %v257
    %v3366 = vadd.f32 %v3358, 1e-12
    %v3367 = vadd.f32 %v3359, 1e-12
    %v3368 = vadd.f32 %v3360, 1e-12
    %v3369 = vadd.f32 %v3361, 1e-12
    %v3370 = vadd.f32 %v3362, 1e-12
    %v3371 = vadd.f32 %v3363, 1e-12
    %v3372 = vadd.f32 %v3364, 1e-12
    %v3373 = vadd.f32 %v3365, 1e-12
    %v3374 = vrsqrt.pop %v3366
    %v3375 = vmul.f32 %v3374, %v3366
    %v3376 = vmul.f32 %v3375, %v3374
    %v3377 = vmul.f32 0.5, %v3376
    %v3378 = vsub.f32 1.5, %v3377
    %v3379 = vmul.f32 %v3374, %v3378
    %vm3380 = vweird.f32 %v3366
    %vm3381 = vweird.f32 %v3374
    %vm3382 = vmor %vm3380, %vm3381
    %v3383 = vsel %vm3382, %v3374, %v3379
    %v3384 = vrsqrt.pop %v3367
    %v3385 = vmul.f32 %v3384, %v3367
    %v3386 = vmul.f32 %v3385, %v3384
    %v3387 = vmul.f32 0.5, %v3386
    %v3388 = vsub.f32 1.5, %v3387
    %v3389 = vmul.f32 %v3384, %v3388
    %vm3390 = vweird.f32 %v3367
    %vm3391 = vweird.f32 %v3384
    %vm3392 = vmor %vm3390, %vm3391
    %v3393 = vsel %vm3392, %v3384, %v3389
    %v3394 = vrsqrt.pop %v3368
    %v3395 = vmul.f32 %v3394, %v3368
    %v3396 = vmul.f32 %v3395, %v3394
    %v3397 = vmul.f32 0.5, %v3396
    %v3398 = vsub.f32 1.5, %v3397
    %v3399 = vmul.f32 %v3394, %v3398
    %vm3400 = vweird.f32 %v3368
    %vm3401 = vweird.f32 %v3394
    %vm3402 = vmor %vm3400, %vm3401
    %v3403 = vsel %vm3402, %v3394, %v3399
    %v3404 = vrsqrt.pop %v3369
    %v3405 = vmul.f32 %v3404, %v3369
    %v3406 = vmul.f32 %v3405, %v3404
    %v3407 = vmul.f32 0.5, %v3406
    %v3408 = vsub.f32 1.5, %v3407
    %v3409 = vmul.f32 %v3404, %v3408
    %vm3410 = vweird.f32 %v3369
    %vm3411 = vweird.f32 %v3404
    %vm3412 = vmor %vm3410, %vm3411
    %v3413 = vsel %vm3412, %v3404, %v3409
    %v3414 = vrsqrt.pop %v3370
    %v3415 = vmul.f32 %v3414, %v3370
    %v3416 = vmul.f32 %v3415, %v3414
    %v3417 = vmul.f32 0.5, %v3416
    %v3418 = vsub.f32 1.5, %v3417
    %v3419 = vmul.f32 %v3414, %v3418
    %vm3420 = vweird.f32 %v3370
    %vm3421 = vweird.f32 %v3414
    %vm3422 = vmor %vm3420, %vm3421
    %v3423 = vsel %vm3422, %v3414, %v3419
    %v3424 = vrsqrt.pop %v3371
    %v3425 = vmul.f32 %v3424, %v3371
    %v3426 = vmul.f32 %v3425, %v3424
    %v3427 = vmul.f32 0.5, %v3426
    %v3428 = vsub.f32 1.5, %v3427
    %v3429 = vmul.f32 %v3424, %v3428
    %vm3430 = vweird.f32 %v3371
    %vm3431 = vweird.f32 %v3424
    %vm3432 = vmor %vm3430, %vm3431
    %v3433 = vsel %vm3432, %v3424, %v3429
    %v3434 = vrsqrt.pop %v3372
    %v3435 = vmul.f32 %v3434, %v3372
    %v3436 = vmul.f32 %v3435, %v3434
    %v3437 = vmul.f32 0.5, %v3436
    %v3438 = vsub.f32 1.5, %v3437
    %v3439 = vmul.f32 %v3434, %v3438
    %vm3440 = vweird.f32 %v3372
    %vm3441 = vweird.f32 %v3434
    %vm3442 = vmor %vm3440, %vm3441
    %v3443 = vsel %vm3442, %v3434, %v3439
    %v3444 = vrsqrt.pop %v3373
    %v3445 = vmul.f32 %v3444, %v3373
    %v3446 = vmul.f32 %v3445, %v3444
    %v3447 = vmul.f32 0.5, %v3446
    %v3448 = vsub.f32 1.5, %v3447
    %v3449 = vmul.f32 %v3444, %v3448
    %vm3450 = vweird.f32 %v3373
    %vm3451 = vweird.f32 %v3444
    %vm3452 = vmor %vm3450, %vm3451
    %v3453 = vsel %vm3452, %v3444, %v3449
    %v3454 = vmul.f32 %v3318, %v3383
    %v3455 = vmul.f32 %v3319, %v3393
    %v3456 = vmul.f32 %v3320, %v3403
    %v3457 = vmul.f32 %v3321, %v3413
    %v3458 = vmul.f32 %v3322, %v3423
    %v3459 = vmul.f32 %v3323, %v3433
    %v3460 = vmul.f32 %v3324, %v3443
    %v3461 = vmul.f32 %v3325, %v3453
    %v3463 = vperm.slane %v3283, 0
    %v3465 = vmul.f32 %v3454, %v3463
    %v3466 = vmul.f32 %v3455, %v3463
    %v3467 = vmul.f32 %v3456, %v3463
    %v3468 = vmul.f32 %v3457, %v3463
    %v3469 = vmul.f32 %v3458, %v3463
    %v3470 = vmul.f32 %v3459, %v3463
    %v3471 = vmul.f32 %v3460, %v3463
    %v3472 = vmul.f32 %v3461, %v3463
    %v3474 = vperm.slane %v3285, 0
    %v3476 = vadd.f32 %v3465, %v3474
    %v3477 = vadd.f32 %v3466, %v3474
    %v3478 = vadd.f32 %v3467, %v3474
    %v3479 = vadd.f32 %v3468, %v3474
    %v3480 = vadd.f32 %v3469, %v3474
    %v3481 = vadd.f32 %v3470, %v3474
    %v3482 = vadd.f32 %v3471, %v3474
    %v3483 = vadd.f32 %v3472, %v3474
    %v3484 = vpack.c.bf16 %v3477, %v3476
    %v3485 = vpack.c.bf16 %v3479, %v3478
    %v3486 = vpack.c.bf16 %v3481, %v3480
    %v3487 = vpack.c.bf16 %v3483, %v3482
    %s3488 = scalar_lea.vmem %s29, 16
    %v3489 = vld [vmem:[%s3488] sm:$0xf]
    %v3490 = vld [vmem:[%s3488 + $0x4] sm:$0xf]
    %v3491 = vld [vmem:[%s3488 + $0x8] sm:$0xf]
    %v3492 = vld [vmem:[%s3488 + $0xc] sm:$0xf]
    %s3493 = scalar_lea.vmem %s31, 1
    %v3494 = vld [vmem:[%s3493] sm:$0x1]
    %v3496 = vperm.slane %v3494, 0
    %v3502 = vunpack.c.l.b16 %v3489
    %v3503 = vunpack.c.l.b16 %v3490
    %v3504 = vunpack.c.l.b16 %v3491
    %v3505 = vunpack.c.l.b16 %v3492
    %v3506 = vpack.c.b16 %v3503, %v3502
    %v3507 = vpack.c.b16 %v3505, %v3504
    %v3511 = vsel %vm244, %v3484, 0
    %v3514 = vsel %vm244, %v3485, 0
    %v3517 = vsel %vm244, %v3486, 0
    %v3520 = vsel %vm244, %v3487, 0
    %3522 = vmatpush.bf16.msra.mxu0 0
    %3523 = vmatpush.bf16.msra.mxu0 0
    %3524 = vmatpush.bf16.msra.mxu0 0
    %3525 = vmatpush.bf16.msra.mxu0 0
    %3526 = vmatpush.bf16.msra.mxu0 0
    %3527 = vmatpush.bf16.msra.mxu0 0
    %3528 = vmatpush.bf16.msra.mxu0 %v3507
    %3529 = vmatpush.bf16.msra.mxu0 %v3506
    %3530 = vmatmul.bf16.gmra.mxu0 %v3511
    %v3531 = vpop.f32.mrf.mxu0
    %v3532 = vadd.f32 %v3496, %v3531
    %v3533 = vpop.f32.mrf.mxu0
    %v3534 = vadd.f32 %v3496, %v3533
    %3535 = vmatmul.bf16.gmra.mxu0 %v3514
    %v3536 = vpop.f32.mrf.mxu0
    %v3537 = vadd.f32 %v3496, %v3536
    %v3538 = vpop.f32.mrf.mxu0
    %v3539 = vadd.f32 %v3496, %v3538
    %3540 = vmatmul.bf16.gmra.mxu0 %v3517
    %v3541 = vpop.f32.mrf.mxu0
    %v3542 = vadd.f32 %v3496, %v3541
    %v3543 = vpop.f32.mrf.mxu0
    %v3544 = vadd.f32 %v3496, %v3543
    %3545 = vmatmul.bf16.gmra.mxu0 %v3520
    %v3546 = vpop.f32.mrf.mxu0
    %v3547 = vadd.f32 %v3496, %v3546
    %v3548 = vpop.f32.mrf.mxu0
    %v3549 = vadd.f32 %v3496, %v3548
    %3550 = vdwg.mxu0
    %3555 = vrot.lane.b32.xlu0 %v3532, 96
    %v3556 = vpop.permute.xlu0 %3555
    %3557 = vrot.lane.b32.xlu0 %v3534, 96
    %v3558 = vpop.permute.xlu0 %3557
    %3559 = vrot.lane.b32.xlu0 %v3537, 96
    %v3560 = vpop.permute.xlu0 %3559
    %3561 = vrot.lane.b32.xlu0 %v3539, 96
    %v3562 = vpop.permute.xlu0 %3561
    %v3563 = vsel %vm679, %v3532, 0
    %v3565 = vsel %vm679, %v3534, 0
    %v3567 = vsel %vm679, %v3537, 0
    %v3569 = vsel %vm679, %v3539, 0
    %v3571 = vsel %vm679, %v3556, 0
    %v3573 = vsel %vm679, %v3558, 0
    %v3575 = vsel %vm679, %v3560, 0
    %v3577 = vsel %vm679, %v3562, 0
    %3579 = vmatpush.xpose.msra.mxu0 0.0
    %3580 = vmatpush.xpose.msra.mxu0 0.0
    %3581 = vmatpush.xpose.msra.mxu0 0.0
    %3582 = vmatpush.xpose.msra.mxu0 0.0
    %3583 = vmatpush.xpose.msra.mxu0 0.0
    %3584 = vmatpush.xpose.msra.mxu0 0.0
    %3585 = vmatpush.xpose.msra.mxu0 0.0
    %3586 = vmatpush.xpose.msra.mxu0 0.0
    %3587 = vmatpush.xpose.msra.mxu0 0.0
    %3588 = vmatpush.xpose.msra.mxu0 0.0
    %3589 = vmatpush.xpose.msra.mxu0 0.0
    %3590 = vmatpush.xpose.msra.mxu0 0.0
    %3591 = vmatpush.xpose.msra.mxu0 %v3577
    %3592 = vmatpush.xpose.msra.mxu0 %v3575
    %3593 = vmatpush.xpose.msra.mxu0 %v3573
    %3594 = vmatpush.xpose.msra.mxu0 %v3571
    %3595 = vmatmul.f32.gmra.mxu0 %v3563
    %v3596 = vpop.f32.mrf.mxu0
    %v3597 = vadd.f32 0.0, %v3596
    %3598 = vmatmul.f32.gmra.mxu0 %v3565
    %v3599 = vpop.f32.mrf.mxu0
    %v3600 = vadd.f32 0.0, %v3599
    %3601 = vmatmul.f32.gmra.mxu0 %v3567
    %v3602 = vpop.f32.mrf.mxu0
    %v3603 = vadd.f32 0.0, %v3602
    %3604 = vmatmul.f32.gmra.mxu0 %v3569
    %v3605 = vpop.f32.mrf.mxu0
    %v3606 = vadd.f32 0.0, %v3605
    %3607 = vdwg.mxu0
    %3612 = vrot.lane.b32.xlu0 %v3542, 96
    %v3613 = vpop.permute.xlu0 %3612
    %3614 = vrot.lane.b32.xlu0 %v3544, 96
    %v3615 = vpop.permute.xlu0 %3614
    %3616 = vrot.lane.b32.xlu0 %v3547, 96
    %v3617 = vpop.permute.xlu0 %3616
    %3618 = vrot.lane.b32.xlu0 %v3549, 96
    %v3619 = vpop.permute.xlu0 %3618
    %v3620 = vsel %vm679, %v3542, 0
    %v3622 = vsel %vm679, %v3544, 0
    %v3624 = vsel %vm679, %v3547, 0
    %v3626 = vsel %vm679, %v3549, 0
    %v3628 = vsel %vm679, %v3613, 0
    %v3630 = vsel %vm679, %v3615, 0
    %v3632 = vsel %vm679, %v3617, 0
    %v3634 = vsel %vm679, %v3619, 0
    %3636 = vmatpush.xpose.msra.mxu0 0.0
    %3637 = vmatpush.xpose.msra.mxu0 0.0
    %3638 = vmatpush.xpose.msra.mxu0 0.0
    %3639 = vmatpush.xpose.msra.mxu0 0.0
    %3640 = vmatpush.xpose.msra.mxu0 0.0
    %3641 = vmatpush.xpose.msra.mxu0 0.0
    %3642 = vmatpush.xpose.msra.mxu0 0.0
    %3643 = vmatpush.xpose.msra.mxu0 0.0
    %3644 = vmatpush.xpose.msra.mxu0 0.0
    %3645 = vmatpush.xpose.msra.mxu0 0.0
    %3646 = vmatpush.xpose.msra.mxu0 0.0
    %3647 = vmatpush.xpose.msra.mxu0 0.0
    %3648 = vmatpush.xpose.msra.mxu0 %v3634
    %3649 = vmatpush.xpose.msra.mxu0 %v3632
    %3650 = vmatpush.xpose.msra.mxu0 %v3630
    %3651 = vmatpush.xpose.msra.mxu0 %v3628
    %3652 = vmatmul.f32.gmra.mxu0 %v3620
    %v3653 = vpop.f32.mrf.mxu0
    %v3654 = vadd.f32 0.0, %v3653
    %3655 = vmatmul.f32.gmra.mxu0 %v3622
    %v3656 = vpop.f32.mrf.mxu0
    %v3657 = vadd.f32 0.0, %v3656
    %3658 = vmatmul.f32.gmra.mxu0 %v3624
    %v3659 = vpop.f32.mrf.mxu0
    %v3660 = vadd.f32 0.0, %v3659
    %3661 = vmatmul.f32.gmra.mxu0 %v3626
    %v3662 = vpop.f32.mrf.mxu0
    %v3663 = vadd.f32 0.0, %v3662
    %3664 = vdwg.mxu0
    %v3665 = vmul.f32 %v3597, 0.35355338
    %v3666 = vmul.f32 %v3600, 0.35355338
    %v3667 = vmul.f32 %v3603, 0.35355338
    %v3668 = vmul.f32 %v3606, 0.35355338
    %v3669 = vmul.f32 %v3654, 0.35355338
    %v3670 = vmul.f32 %v3657, 0.35355338
    %v3671 = vmul.f32 %v3660, 0.35355338
    %v3672 = vmul.f32 %v3663, 0.35355338
    %v3673 = vadd.f32 %v3665, %v398
    %v3674 = vadd.f32 %v3666, %v398
    %v3675 = vadd.f32 %v3667, %v398
    %v3676 = vadd.f32 %v3668, %v398
    %v3677 = vadd.f32 %v3669, %v399
    %v3678 = vadd.f32 %v3670, %v399
    %v3679 = vadd.f32 %v3671, %v399
    %v3680 = vadd.f32 %v3672, %v399
    %v3681 = vsel %vm244, %v3673, -inf
    %3682 = vmax.xlane.f32.xlu0 %v3681
    %v3683 = vpop.xlane.xlu0 %3682
    %v3684 = vsel %vm244, %v3674, -inf
    %3685 = vmax.xlane.f32.xlu0 %v3684
    %v3686 = vpop.xlane.xlu0 %3685
    %v3687 = vsel %vm244, %v3675, -inf
    %3688 = vmax.xlane.f32.xlu0 %v3687
    %v3689 = vpop.xlane.xlu0 %3688
    %v3690 = vsel %vm244, %v3676, -inf
    %3691 = vmax.xlane.f32.xlu0 %v3690
    %v3692 = vpop.xlane.xlu0 %3691
    %v3693 = vsel %vm244, %v3677, -inf
    %3694 = vmax.xlane.f32.xlu0 %v3693
    %v3695 = vpop.xlane.xlu0 %3694
    %v3696 = vsel %vm244, %v3678, -inf
    %3697 = vmax.xlane.f32.xlu0 %v3696
    %v3698 = vpop.xlane.xlu0 %3697
    %v3699 = vsel %vm244, %v3679, -inf
    %3700 = vmax.xlane.f32.xlu0 %v3699
    %v3701 = vpop.xlane.xlu0 %3700
    %v3702 = vsel %vm244, %v3680, -inf
    %3703 = vmax.xlane.f32.xlu0 %v3702
    %v3704 = vpop.xlane.xlu0 %3703
    %v3705 = vsub.f32 %v3673, %v3683
    %v3706 = vsub.f32 %v3674, %v3686
    %v3707 = vsub.f32 %v3675, %v3689
    %v3708 = vsub.f32 %v3676, %v3692
    %v3709 = vsub.f32 %v3677, %v3695
    %v3710 = vsub.f32 %v3678, %v3698
    %v3711 = vsub.f32 %v3679, %v3701
    %v3712 = vsub.f32 %v3680, %v3704
    %v3713 = vmul.f32 %v3705, 1.442695
    %v3714 = vpow.pop %v3713
    %v3715 = vmul.f32 %v3706, 1.442695
    %v3716 = vpow.pop %v3715
    %v3717 = vmul.f32 %v3707, 1.442695
    %v3718 = vpow.pop %v3717
    %v3719 = vmul.f32 %v3708, 1.442695
    %v3720 = vpow.pop %v3719
    %v3721 = vmul.f32 %v3709, 1.442695
    %v3722 = vpow.pop %v3721
    %v3723 = vmul.f32 %v3710, 1.442695
    %v3724 = vpow.pop %v3723
    %v3725 = vmul.f32 %v3711, 1.442695
    %v3726 = vpow.pop %v3725
    %v3727 = vmul.f32 %v3712, 1.442695
    %v3728 = vpow.pop %v3727
    %v3729 = vsel %vm244, %v3714, 0.0
    %3730 = vadd.xlane.f32.xlu0 %v3729
    %v3731 = vpop.xlane.xlu0 %3730
    %v3732 = vsel %vm244, %v3716, 0.0
    %3733 = vadd.xlane.f32.xlu0 %v3732
    %v3734 = vpop.xlane.xlu0 %3733
    %v3735 = vsel %vm244, %v3718, 0.0
    %3736 = vadd.xlane.f32.xlu0 %v3735
    %v3737 = vpop.xlane.xlu0 %3736
    %v3738 = vsel %vm244, %v3720, 0.0
    %3739 = vadd.xlane.f32.xlu0 %v3738
    %v3740 = vpop.xlane.xlu0 %3739
    %v3741 = vsel %vm244, %v3722, 0.0
    %3742 = vadd.xlane.f32.xlu0 %v3741
    %v3743 = vpop.xlane.xlu0 %3742
    %v3744 = vsel %vm244, %v3724, 0.0
    %3745 = vadd.xlane.f32.xlu0 %v3744
    %v3746 = vpop.xlane.xlu0 %3745
    %v3747 = vsel %vm244, %v3726, 0.0
    %3748 = vadd.xlane.f32.xlu0 %v3747
    %v3749 = vpop.xlane.xlu0 %3748
    %v3750 = vsel %vm244, %v3728, 0.0
    %3751 = vadd.xlane.f32.xlu0 %v3750
    %v3752 = vpop.xlane.xlu0 %3751
    %v3753 = vrcp.pop %v3731
    %v3754 = vmul.f32 %v3731, %v3753
    %v3755 = vsub.f32 1.0, %v3754
    %v3756 = vmul.f32 %v3753, %v3755
    %v3757 = vadd.f32 %v3753, %v3756
    %vm3758 = vweird.f32 %v3731
    %vm3759 = vweird.f32 %v3753
    %vm3760 = vmor %vm3758, %vm3759
    %v3761 = vsel %vm3760, %v3753, %v3757
    %v3762 = vand.u32 2147483647, %v3731
    %vm3763 = vcmp.eq.f32.partialorder %v3762, 8.507059e+37
    %v3764 = vand.u32 %v3731, 2147483648
    %v3765 = vor.u32 1.1754944e-38, %v3764
    %v3766 = vsel %vm3763, %v3765, %v3761
    %v3767 = vmul.f32 %v3714, %v3766
    %v3768 = vrcp.pop %v3734
    %v3769 = vmul.f32 %v3734, %v3768
    %v3770 = vsub.f32 1.0, %v3769
    %v3771 = vmul.f32 %v3768, %v3770
    %v3772 = vadd.f32 %v3768, %v3771
    %vm3773 = vweird.f32 %v3734
    %vm3774 = vweird.f32 %v3768
    %vm3775 = vmor %vm3773, %vm3774
    %v3776 = vsel %vm3775, %v3768, %v3772
    %v3777 = vand.u32 2147483647, %v3734
    %vm3778 = vcmp.eq.f32.partialorder %v3777, 8.507059e+37
    %v3779 = vand.u32 %v3734, 2147483648
    %v3780 = vor.u32 1.1754944e-38, %v3779
    %v3781 = vsel %vm3778, %v3780, %v3776
    %v3782 = vmul.f32 %v3716, %v3781
    %v3783 = vrcp.pop %v3737
    %v3784 = vmul.f32 %v3737, %v3783
    %v3785 = vsub.f32 1.0, %v3784
    %v3786 = vmul.f32 %v3783, %v3785
    %v3787 = vadd.f32 %v3783, %v3786
    %vm3788 = vweird.f32 %v3737
    %vm3789 = vweird.f32 %v3783
    %vm3790 = vmor %vm3788, %vm3789
    %v3791 = vsel %vm3790, %v3783, %v3787
    %v3792 = vand.u32 2147483647, %v3737
    %vm3793 = vcmp.eq.f32.partialorder %v3792, 8.507059e+37
    %v3794 = vand.u32 %v3737, 2147483648
    %v3795 = vor.u32 1.1754944e-38, %v3794
    %v3796 = vsel %vm3793, %v3795, %v3791
    %v3797 = vmul.f32 %v3718, %v3796
    %v3798 = vrcp.pop %v3740
    %v3799 = vmul.f32 %v3740, %v3798
    %v3800 = vsub.f32 1.0, %v3799
    %v3801 = vmul.f32 %v3798, %v3800
    %v3802 = vadd.f32 %v3798, %v3801
    %vm3803 = vweird.f32 %v3740
    %vm3804 = vweird.f32 %v3798
    %vm3805 = vmor %vm3803, %vm3804
    %v3806 = vsel %vm3805, %v3798, %v3802
    %v3807 = vand.u32 2147483647, %v3740
    %vm3808 = vcmp.eq.f32.partialorder %v3807, 8.507059e+37
    %v3809 = vand.u32 %v3740, 2147483648
    %v3810 = vor.u32 1.1754944e-38, %v3809
    %v3811 = vsel %vm3808, %v3810, %v3806
    %v3812 = vmul.f32 %v3720, %v3811
    %v3813 = vrcp.pop %v3743
    %v3814 = vmul.f32 %v3743, %v3813
    %v3815 = vsub.f32 1.0, %v3814
    %v3816 = vmul.f32 %v3813, %v3815
    %v3817 = vadd.f32 %v3813, %v3816
    %vm3818 = vweird.f32 %v3743
    %vm3819 = vweird.f32 %v3813
    %vm3820 = vmor %vm3818, %vm3819
    %v3821 = vsel %vm3820, %v3813, %v3817
    %v3822 = vand.u32 2147483647, %v3743
    %vm3823 = vcmp.eq.f32.partialorder %v3822, 8.507059e+37
    %v3824 = vand.u32 %v3743, 2147483648
    %v3825 = vor.u32 1.1754944e-38, %v3824
    %v3826 = vsel %vm3823, %v3825, %v3821
    %v3827 = vmul.f32 %v3722, %v3826
    %v3828 = vrcp.pop %v3746
    %v3829 = vmul.f32 %v3746, %v3828
    %v3830 = vsub.f32 1.0, %v3829
    %v3831 = vmul.f32 %v3828, %v3830
    %v3832 = vadd.f32 %v3828, %v3831
    %vm3833 = vweird.f32 %v3746
    %vm3834 = vweird.f32 %v3828
    %vm3835 = vmor %vm3833, %vm3834
    %v3836 = vsel %vm3835, %v3828, %v3832
    %v3837 = vand.u32 2147483647, %v3746
    %vm3838 = vcmp.eq.f32.partialorder %v3837, 8.507059e+37
    %v3839 = vand.u32 %v3746, 2147483648
    %v3840 = vor.u32 1.1754944e-38, %v3839
    %v3841 = vsel %vm3838, %v3840, %v3836
    %v3842 = vmul.f32 %v3724, %v3841
    %v3843 = vrcp.pop %v3749
    %v3844 = vmul.f32 %v3749, %v3843
    %v3845 = vsub.f32 1.0, %v3844
    %v3846 = vmul.f32 %v3843, %v3845
    %v3847 = vadd.f32 %v3843, %v3846
    %vm3848 = vweird.f32 %v3749
    %vm3849 = vweird.f32 %v3843
    %vm3850 = vmor %vm3848, %vm3849
    %v3851 = vsel %vm3850, %v3843, %v3847
    %v3852 = vand.u32 2147483647, %v3749
    %vm3853 = vcmp.eq.f32.partialorder %v3852, 8.507059e+37
    %v3854 = vand.u32 %v3749, 2147483648
    %v3855 = vor.u32 1.1754944e-38, %v3854
    %v3856 = vsel %vm3853, %v3855, %v3851
    %v3857 = vmul.f32 %v3726, %v3856
    %v3858 = vrcp.pop %v3752
    %v3859 = vmul.f32 %v3752, %v3858
    %v3860 = vsub.f32 1.0, %v3859
    %v3861 = vmul.f32 %v3858, %v3860
    %v3862 = vadd.f32 %v3858, %v3861
    %vm3863 = vweird.f32 %v3752
    %vm3864 = vweird.f32 %v3858
    %vm3865 = vmor %vm3863, %vm3864
    %v3866 = vsel %vm3865, %v3858, %v3862
    %v3867 = vand.u32 2147483647, %v3752
    %vm3868 = vcmp.eq.f32.partialorder %v3867, 8.507059e+37
    %v3869 = vand.u32 %v3752, 2147483648
    %v3870 = vor.u32 1.1754944e-38, %v3869
    %v3871 = vsel %vm3868, %v3870, %v3866
    %v3872 = vmul.f32 %v3728, %v3871
    %3873 = vrot.lane.b32.xlu0 %v3532, 64
    %v3874 = vpop.permute.xlu0 %3873
    %3875 = vrot.lane.b32.xlu0 %v3534, 64
    %v3876 = vpop.permute.xlu0 %3875
    %3877 = vrot.lane.b32.xlu0 %v3537, 64
    %v3878 = vpop.permute.xlu0 %3877
    %3879 = vrot.lane.b32.xlu0 %v3539, 64
    %v3880 = vpop.permute.xlu0 %3879
    %v3886 = vsel %vm244, %v3767, 0
    %v3889 = vsel %vm244, %v3782, 0
    %v3892 = vsel %vm244, %v3797, 0
    %v3895 = vsel %vm244, %v3812, 0
    %3897 = vmatpush.msra.mxu0 0.0
    %3898 = vmatpush.msra.mxu0 0.0
    %3899 = vmatpush.msra.mxu0 0.0
    %3900 = vmatpush.msra.mxu0 0.0
    %3901 = vmatpush.msra.mxu0 0.0
    %3902 = vmatpush.msra.mxu0 0.0
    %3903 = vmatpush.msra.mxu0 0.0
    %3904 = vmatpush.msra.mxu0 0.0
    %3905 = vmatpush.msra.mxu0 0.0
    %3906 = vmatpush.msra.mxu0 0.0
    %3907 = vmatpush.msra.mxu0 0.0
    %3908 = vmatpush.msra.mxu0 0.0
    %3909 = vmatpush.msra.mxu0 %v3880
    %3910 = vmatpush.msra.mxu0 %v3878
    %3911 = vmatpush.msra.mxu0 %v3876
    %3912 = vmatpush.msra.mxu0 %v3874
    %3913 = vmatmul.f32.gmra.mxu0 %v3886
    %v3914 = vpop.f32.mrf.mxu0
    %v3915 = vadd.f32 0.0, %v3914
    %3916 = vmatmul.f32.gmra.mxu0 %v3889
    %v3917 = vpop.f32.mrf.mxu0
    %v3918 = vadd.f32 0.0, %v3917
    %3919 = vmatmul.f32.gmra.mxu0 %v3892
    %v3920 = vpop.f32.mrf.mxu0
    %v3921 = vadd.f32 0.0, %v3920
    %3922 = vmatmul.f32.gmra.mxu0 %v3895
    %v3923 = vpop.f32.mrf.mxu0
    %v3924 = vadd.f32 0.0, %v3923
    %3925 = vdwg.mxu0
    %3926 = vrot.lane.b32.xlu0 %v3542, 64
    %v3927 = vpop.permute.xlu0 %3926
    %3928 = vrot.lane.b32.xlu0 %v3544, 64
    %v3929 = vpop.permute.xlu0 %3928
    %3930 = vrot.lane.b32.xlu0 %v3547, 64
    %v3931 = vpop.permute.xlu0 %3930
    %3932 = vrot.lane.b32.xlu0 %v3549, 64
    %v3933 = vpop.permute.xlu0 %3932
    %v3939 = vsel %vm244, %v3827, 0
    %v3942 = vsel %vm244, %v3842, 0
    %v3945 = vsel %vm244, %v3857, 0
    %v3948 = vsel %vm244, %v3872, 0
    %3950 = vmatpush.msra.mxu0 0.0
    %3951 = vmatpush.msra.mxu0 0.0
    %3952 = vmatpush.msra.mxu0 0.0
    %3953 = vmatpush.msra.mxu0 0.0
    %3954 = vmatpush.msra.mxu0 0.0
    %3955 = vmatpush.msra.mxu0 0.0
    %3956 = vmatpush.msra.mxu0 0.0
    %3957 = vmatpush.msra.mxu0 0.0
    %3958 = vmatpush.msra.mxu0 0.0
    %3959 = vmatpush.msra.mxu0 0.0
    %3960 = vmatpush.msra.mxu0 0.0
    %3961 = vmatpush.msra.mxu0 0.0
    %3962 = vmatpush.msra.mxu0 %v3933
    %3963 = vmatpush.msra.mxu0 %v3931
    %3964 = vmatpush.msra.mxu0 %v3929
    %3965 = vmatpush.msra.mxu0 %v3927
    %3966 = vmatmul.f32.gmra.mxu0 %v3939
    %v3967 = vpop.f32.mrf.mxu0
    %v3968 = vadd.f32 0.0, %v3967
    %3969 = vmatmul.f32.gmra.mxu0 %v3942
    %v3970 = vpop.f32.mrf.mxu0
    %v3971 = vadd.f32 0.0, %v3970
    %3972 = vmatmul.f32.gmra.mxu0 %v3945
    %v3973 = vpop.f32.mrf.mxu0
    %v3974 = vadd.f32 0.0, %v3973
    %3975 = vmatmul.f32.gmra.mxu0 %v3948
    %v3976 = vpop.f32.mrf.mxu0
    %v3977 = vadd.f32 0.0, %v3976
    %3978 = vdwg.mxu0
    %3979 = vrot.lane.b32.xlu0 %v3532, 120
    %v3980 = vpop.permute.xlu0 %3979
    %3981 = vrot.lane.b32.xlu0 %v3534, 120
    %v3982 = vpop.permute.xlu0 %3981
    %3983 = vrot.lane.b32.xlu0 %v3537, 120
    %v3984 = vpop.permute.xlu0 %3983
    %3985 = vrot.lane.b32.xlu0 %v3539, 120
    %v3986 = vpop.permute.xlu0 %3985
    %3987 = vrot.lane.b32.xlu0 %v3532, 88
    %v3988 = vpop.permute.xlu0 %3987
    %3989 = vrot.lane.b32.xlu0 %v3534, 88
    %v3990 = vpop.permute.xlu0 %3989
    %3991 = vrot.lane.b32.xlu0 %v3537, 88
    %v3992 = vpop.permute.xlu0 %3991
    %3993 = vrot.lane.b32.xlu0 %v3539, 88
    %v3994 = vpop.permute.xlu0 %3993
    %v3995 = vsel %vm679, %v3980, 0
    %v3997 = vsel %vm679, %v3982, 0
    %v3999 = vsel %vm679, %v3984, 0
    %v4001 = vsel %vm679, %v3986, 0
    %v4003 = vsel %vm679, %v3988, 0
    %v4005 = vsel %vm679, %v3990, 0
    %v4007 = vsel %vm679, %v3992, 0
    %v4009 = vsel %vm679, %v3994, 0
    %4011 = vmatpush.xpose.msra.mxu0 0.0
    %4012 = vmatpush.xpose.msra.mxu0 0.0
    %4013 = vmatpush.xpose.msra.mxu0 0.0
    %4014 = vmatpush.xpose.msra.mxu0 0.0
    %4015 = vmatpush.xpose.msra.mxu0 0.0
    %4016 = vmatpush.xpose.msra.mxu0 0.0
    %4017 = vmatpush.xpose.msra.mxu0 0.0
    %4018 = vmatpush.xpose.msra.mxu0 0.0
    %4019 = vmatpush.xpose.msra.mxu0 0.0
    %4020 = vmatpush.xpose.msra.mxu0 0.0
    %4021 = vmatpush.xpose.msra.mxu0 0.0
    %4022 = vmatpush.xpose.msra.mxu0 0.0
    %4023 = vmatpush.xpose.msra.mxu0 %v4009
    %4024 = vmatpush.xpose.msra.mxu0 %v4007
    %4025 = vmatpush.xpose.msra.mxu0 %v4005
    %4026 = vmatpush.xpose.msra.mxu0 %v4003
    %4027 = vmatmul.f32.gmra.mxu0 %v3995
    %v4028 = vpop.f32.mrf.mxu0
    %v4029 = vadd.f32 0.0, %v4028
    %4030 = vmatmul.f32.gmra.mxu0 %v3997
    %v4031 = vpop.f32.mrf.mxu0
    %v4032 = vadd.f32 0.0, %v4031
    %4033 = vmatmul.f32.gmra.mxu0 %v3999
    %v4034 = vpop.f32.mrf.mxu0
    %v4035 = vadd.f32 0.0, %v4034
    %4036 = vmatmul.f32.gmra.mxu0 %v4001
    %v4037 = vpop.f32.mrf.mxu0
    %v4038 = vadd.f32 0.0, %v4037
    %4039 = vdwg.mxu0
    %4040 = vrot.lane.b32.xlu0 %v3542, 120
    %v4041 = vpop.permute.xlu0 %4040
    %4042 = vrot.lane.b32.xlu0 %v3544, 120
    %v4043 = vpop.permute.xlu0 %4042
    %4044 = vrot.lane.b32.xlu0 %v3547, 120
    %v4045 = vpop.permute.xlu0 %4044
    %4046 = vrot.lane.b32.xlu0 %v3549, 120
    %v4047 = vpop.permute.xlu0 %4046
    %4048 = vrot.lane.b32.xlu0 %v3542, 88
    %v4049 = vpop.permute.xlu0 %4048
    %4050 = vrot.lane.b32.xlu0 %v3544, 88
    %v4051 = vpop.permute.xlu0 %4050
    %4052 = vrot.lane.b32.xlu0 %v3547, 88
    %v4053 = vpop.permute.xlu0 %4052
    %4054 = vrot.lane.b32.xlu0 %v3549, 88
    %v4055 = vpop.permute.xlu0 %4054
    %v4056 = vsel %vm679, %v4041, 0
    %v4058 = vsel %vm679, %v4043, 0
    %v4060 = vsel %vm679, %v4045, 0
    %v4062 = vsel %vm679, %v4047, 0
    %v4064 = vsel %vm679, %v4049, 0
    %v4066 = vsel %vm679, %v4051, 0
    %v4068 = vsel %vm679, %v4053, 0
    %v4070 = vsel %vm679, %v4055, 0
    %4072 = vmatpush.xpose.msra.mxu0 0.0
    %4073 = vmatpush.xpose.msra.mxu0 0.0
    %4074 = vmatpush.xpose.msra.mxu0 0.0
    %4075 = vmatpush.xpose.msra.mxu0 0.0
    %4076 = vmatpush.xpose.msra.mxu0 0.0
    %4077 = vmatpush.xpose.msra.mxu0 0.0
    %4078 = vmatpush.xpose.msra.mxu0 0.0
    %4079 = vmatpush.xpose.msra.mxu0 0.0
    %4080 = vmatpush.xpose.msra.mxu0 0.0
    %4081 = vmatpush.xpose.msra.mxu0 0.0
    %4082 = vmatpush.xpose.msra.mxu0 0.0
    %4083 = vmatpush.xpose.msra.mxu0 0.0
    %4084 = vmatpush.xpose.msra.mxu0 %v4070
    %4085 = vmatpush.xpose.msra.mxu0 %v4068
    %4086 = vmatpush.xpose.msra.mxu0 %v4066
    %4087 = vmatpush.xpose.msra.mxu0 %v4064
    %4088 = vmatmul.f32.gmra.mxu0 %v4056
    %v4089 = vpop.f32.mrf.mxu0
    %v4090 = vadd.f32 0.0, %v4089
    %4091 = vmatmul.f32.gmra.mxu0 %v4058
    %v4092 = vpop.f32.mrf.mxu0
    %v4093 = vadd.f32 0.0, %v4092
    %4094 = vmatmul.f32.gmra.mxu0 %v4060
    %v4095 = vpop.f32.mrf.mxu0
    %v4096 = vadd.f32 0.0, %v4095
    %4097 = vmatmul.f32.gmra.mxu0 %v4062
    %v4098 = vpop.f32.mrf.mxu0
    %v4099 = vadd.f32 0.0, %v4098
    %4100 = vdwg.mxu0
    %v4101 = vmul.f32 %v4029, 0.35355338
    %v4102 = vmul.f32 %v4032, 0.35355338
    %v4103 = vmul.f32 %v4035, 0.35355338
    %v4104 = vmul.f32 %v4038, 0.35355338
    %v4105 = vmul.f32 %v4090, 0.35355338
    %v4106 = vmul.f32 %v4093, 0.35355338
    %v4107 = vmul.f32 %v4096, 0.35355338
    %v4108 = vmul.f32 %v4099, 0.35355338
    %v4109 = vadd.f32 %v4101, %v398
    %v4110 = vadd.f32 %v4102, %v398
    %v4111 = vadd.f32 %v4103, %v398
    %v4112 = vadd.f32 %v4104, %v398
    %v4113 = vadd.f32 %v4105, %v399
    %v4114 = vadd.f32 %v4106, %v399
    %v4115 = vadd.f32 %v4107, %v399
    %v4116 = vadd.f32 %v4108, %v399
    %v4117 = vsel %vm244, %v4109, -inf
    %4118 = vmax.xlane.f32.xlu0 %v4117
    %v4119 = vpop.xlane.xlu0 %4118
    %v4120 = vsel %vm244, %v4110, -inf
    %4121 = vmax.xlane.f32.xlu0 %v4120
    %v4122 = vpop.xlane.xlu0 %4121
    %v4123 = vsel %vm244, %v4111, -inf
    %4124 = vmax.xlane.f32.xlu0 %v4123
    %v4125 = vpop.xlane.xlu0 %4124
    %v4126 = vsel %vm244, %v4112, -inf
    %4127 = vmax.xlane.f32.xlu0 %v4126
    %v4128 = vpop.xlane.xlu0 %4127
    %v4129 = vsel %vm244, %v4113, -inf
    %4130 = vmax.xlane.f32.xlu0 %v4129
    %v4131 = vpop.xlane.xlu0 %4130
    %v4132 = vsel %vm244, %v4114, -inf
    %4133 = vmax.xlane.f32.xlu0 %v4132
    %v4134 = vpop.xlane.xlu0 %4133
    %v4135 = vsel %vm244, %v4115, -inf
    %4136 = vmax.xlane.f32.xlu0 %v4135
    %v4137 = vpop.xlane.xlu0 %4136
    %v4138 = vsel %vm244, %v4116, -inf
    %4139 = vmax.xlane.f32.xlu0 %v4138
    %v4140 = vpop.xlane.xlu0 %4139
    %v4141 = vsub.f32 %v4109, %v4119
    %v4142 = vsub.f32 %v4110, %v4122
    %v4143 = vsub.f32 %v4111, %v4125
    %v4144 = vsub.f32 %v4112, %v4128
    %v4145 = vsub.f32 %v4113, %v4131
    %v4146 = vsub.f32 %v4114, %v4134
    %v4147 = vsub.f32 %v4115, %v4137
    %v4148 = vsub.f32 %v4116, %v4140
    %v4149 = vmul.f32 %v4141, 1.442695
    %v4150 = vpow.pop %v4149
    %v4151 = vmul.f32 %v4142, 1.442695
    %v4152 = vpow.pop %v4151
    %v4153 = vmul.f32 %v4143, 1.442695
    %v4154 = vpow.pop %v4153
    %v4155 = vmul.f32 %v4144, 1.442695
    %v4156 = vpow.pop %v4155
    %v4157 = vmul.f32 %v4145, 1.442695
    %v4158 = vpow.pop %v4157
    %v4159 = vmul.f32 %v4146, 1.442695
    %v4160 = vpow.pop %v4159
    %v4161 = vmul.f32 %v4147, 1.442695
    %v4162 = vpow.pop %v4161
    %v4163 = vmul.f32 %v4148, 1.442695
    %v4164 = vpow.pop %v4163
    %v4165 = vsel %vm244, %v4150, 0.0
    %4166 = vadd.xlane.f32.xlu0 %v4165
    %v4167 = vpop.xlane.xlu0 %4166
    %v4168 = vsel %vm244, %v4152, 0.0
    %4169 = vadd.xlane.f32.xlu0 %v4168
    %v4170 = vpop.xlane.xlu0 %4169
    %v4171 = vsel %vm244, %v4154, 0.0
    %4172 = vadd.xlane.f32.xlu0 %v4171
    %v4173 = vpop.xlane.xlu0 %4172
    %v4174 = vsel %vm244, %v4156, 0.0
    %4175 = vadd.xlane.f32.xlu0 %v4174
    %v4176 = vpop.xlane.xlu0 %4175
    %v4177 = vsel %vm244, %v4158, 0.0
    %4178 = vadd.xlane.f32.xlu0 %v4177
    %v4179 = vpop.xlane.xlu0 %4178
    %v4180 = vsel %vm244, %v4160, 0.0
    %4181 = vadd.xlane.f32.xlu0 %v4180
    %v4182 = vpop.xlane.xlu0 %4181
    %v4183 = vsel %vm244, %v4162, 0.0
    %4184 = vadd.xlane.f32.xlu0 %v4183
    %v4185 = vpop.xlane.xlu0 %4184
    %v4186 = vsel %vm244, %v4164, 0.0
    %4187 = vadd.xlane.f32.xlu0 %v4186
    %v4188 = vpop.xlane.xlu0 %4187
    %v4189 = vrcp.pop %v4167
    %v4190 = vmul.f32 %v4167, %v4189
    %v4191 = vsub.f32 1.0, %v4190
    %v4192 = vmul.f32 %v4189, %v4191
    %v4193 = vadd.f32 %v4189, %v4192
    %vm4194 = vweird.f32 %v4167
    %vm4195 = vweird.f32 %v4189
    %vm4196 = vmor %vm4194, %vm4195
    %v4197 = vsel %vm4196, %v4189, %v4193
    %v4198 = vand.u32 2147483647, %v4167
    %vm4199 = vcmp.eq.f32.partialorder %v4198, 8.507059e+37
    %v4200 = vand.u32 %v4167, 2147483648
    %v4201 = vor.u32 1.1754944e-38, %v4200
    %v4202 = vsel %vm4199, %v4201, %v4197
    %v4203 = vmul.f32 %v4150, %v4202
    %v4204 = vrcp.pop %v4170
    %v4205 = vmul.f32 %v4170, %v4204
    %v4206 = vsub.f32 1.0, %v4205
    %v4207 = vmul.f32 %v4204, %v4206
    %v4208 = vadd.f32 %v4204, %v4207
    %vm4209 = vweird.f32 %v4170
    %vm4210 = vweird.f32 %v4204
    %vm4211 = vmor %vm4209, %vm4210
    %v4212 = vsel %vm4211, %v4204, %v4208
    %v4213 = vand.u32 2147483647, %v4170
    %vm4214 = vcmp.eq.f32.partialorder %v4213, 8.507059e+37
    %v4215 = vand.u32 %v4170, 2147483648
    %v4216 = vor.u32 1.1754944e-38, %v4215
    %v4217 = vsel %vm4214, %v4216, %v4212
    %v4218 = vmul.f32 %v4152, %v4217
    %v4219 = vrcp.pop %v4173
    %v4220 = vmul.f32 %v4173, %v4219
    %v4221 = vsub.f32 1.0, %v4220
    %v4222 = vmul.f32 %v4219, %v4221
    %v4223 = vadd.f32 %v4219, %v4222
    %vm4224 = vweird.f32 %v4173
    %vm4225 = vweird.f32 %v4219
    %vm4226 = vmor %vm4224, %vm4225
    %v4227 = vsel %vm4226, %v4219, %v4223
    %v4228 = vand.u32 2147483647, %v4173
    %vm4229 = vcmp.eq.f32.partialorder %v4228, 8.507059e+37
    %v4230 = vand.u32 %v4173, 2147483648
    %v4231 = vor.u32 1.1754944e-38, %v4230
    %v4232 = vsel %vm4229, %v4231, %v4227
    %v4233 = vmul.f32 %v4154, %v4232
    %v4234 = vrcp.pop %v4176
    %v4235 = vmul.f32 %v4176, %v4234
    %v4236 = vsub.f32 1.0, %v4235
    %v4237 = vmul.f32 %v4234, %v4236
    %v4238 = vadd.f32 %v4234, %v4237
    %vm4239 = vweird.f32 %v4176
    %vm4240 = vweird.f32 %v4234
    %vm4241 = vmor %vm4239, %vm4240
    %v4242 = vsel %vm4241, %v4234, %v4238
    %v4243 = vand.u32 2147483647, %v4176
    %vm4244 = vcmp.eq.f32.partialorder %v4243, 8.507059e+37
    %v4245 = vand.u32 %v4176, 2147483648
    %v4246 = vor.u32 1.1754944e-38, %v4245
    %v4247 = vsel %vm4244, %v4246, %v4242
    %v4248 = vmul.f32 %v4156, %v4247
    %v4249 = vrcp.pop %v4179
    %v4250 = vmul.f32 %v4179, %v4249
    %v4251 = vsub.f32 1.0, %v4250
    %v4252 = vmul.f32 %v4249, %v4251
    %v4253 = vadd.f32 %v4249, %v4252
    %vm4254 = vweird.f32 %v4179
    %vm4255 = vweird.f32 %v4249
    %vm4256 = vmor %vm4254, %vm4255
    %v4257 = vsel %vm4256, %v4249, %v4253
    %v4258 = vand.u32 2147483647, %v4179
    %vm4259 = vcmp.eq.f32.partialorder %v4258, 8.507059e+37
    %v4260 = vand.u32 %v4179, 2147483648
    %v4261 = vor.u32 1.1754944e-38, %v4260
    %v4262 = vsel %vm4259, %v4261, %v4257
    %v4263 = vmul.f32 %v4158, %v4262
    %v4264 = vrcp.pop %v4182
    %v4265 = vmul.f32 %v4182, %v4264
    %v4266 = vsub.f32 1.0, %v4265
    %v4267 = vmul.f32 %v4264, %v4266
    %v4268 = vadd.f32 %v4264, %v4267
    %vm4269 = vweird.f32 %v4182
    %vm4270 = vweird.f32 %v4264
    %vm4271 = vmor %vm4269, %vm4270
    %v4272 = vsel %vm4271, %v4264, %v4268
    %v4273 = vand.u32 2147483647, %v4182
    %vm4274 = vcmp.eq.f32.partialorder %v4273, 8.507059e+37
    %v4275 = vand.u32 %v4182, 2147483648
    %v4276 = vor.u32 1.1754944e-38, %v4275
    %v4277 = vsel %vm4274, %v4276, %v4272
    %v4278 = vmul.f32 %v4160, %v4277
    %v4279 = vrcp.pop %v4185
    %v4280 = vmul.f32 %v4185, %v4279
    %v4281 = vsub.f32 1.0, %v4280
    %v4282 = vmul.f32 %v4279, %v4281
    %v4283 = vadd.f32 %v4279, %v4282
    %vm4284 = vweird.f32 %v4185
    %vm4285 = vweird.f32 %v4279
    %vm4286 = vmor %vm4284, %vm4285
    %v4287 = vsel %vm4286, %v4279, %v4283
    %v4288 = vand.u32 2147483647, %v4185
    %vm4289 = vcmp.eq.f32.partialorder %v4288, 8.507059e+37
    %v4290 = vand.u32 %v4185, 2147483648
    %v4291 = vor.u32 1.1754944e-38, %v4290
    %v4292 = vsel %vm4289, %v4291, %v4287
    %v4293 = vmul.f32 %v4162, %v4292
    %v4294 = vrcp.pop %v4188
    %v4295 = vmul.f32 %v4188, %v4294
    %v4296 = vsub.f32 1.0, %v4295
    %v4297 = vmul.f32 %v4294, %v4296
    %v4298 = vadd.f32 %v4294, %v4297
    %vm4299 = vweird.f32 %v4188
    %vm4300 = vweird.f32 %v4294
    %vm4301 = vmor %vm4299, %vm4300
    %v4302 = vsel %vm4301, %v4294, %v4298
    %v4303 = vand.u32 2147483647, %v4188
    %vm4304 = vcmp.eq.f32.partialorder %v4303, 8.507059e+37
    %v4305 = vand.u32 %v4188, 2147483648
    %v4306 = vor.u32 1.1754944e-38, %v4305
    %v4307 = vsel %vm4304, %v4306, %v4302
    %v4308 = vmul.f32 %v4164, %v4307
    %4309 = vrot.lane.b32.xlu0 %v3532, 56
    %v4310 = vpop.permute.xlu0 %4309
    %4311 = vrot.lane.b32.xlu0 %v3534, 56
    %v4312 = vpop.permute.xlu0 %4311
    %4313 = vrot.lane.b32.xlu0 %v3537, 56
    %v4314 = vpop.permute.xlu0 %4313
    %4315 = vrot.lane.b32.xlu0 %v3539, 56
    %v4316 = vpop.permute.xlu0 %4315
    %v4322 = vsel %vm244, %v4203, 0
    %v4325 = vsel %vm244, %v4218, 0
    %v4328 = vsel %vm244, %v4233, 0
    %v4331 = vsel %vm244, %v4248, 0
    %4333 = vmatpush.msra.mxu0 0.0
    %4334 = vmatpush.msra.mxu0 0.0
    %4335 = vmatpush.msra.mxu0 0.0
    %4336 = vmatpush.msra.mxu0 0.0
    %4337 = vmatpush.msra.mxu0 0.0
    %4338 = vmatpush.msra.mxu0 0.0
    %4339 = vmatpush.msra.mxu0 0.0
    %4340 = vmatpush.msra.mxu0 0.0
    %4341 = vmatpush.msra.mxu0 0.0
    %4342 = vmatpush.msra.mxu0 0.0
    %4343 = vmatpush.msra.mxu0 0.0
    %4344 = vmatpush.msra.mxu0 0.0
    %4345 = vmatpush.msra.mxu0 %v4316
    %4346 = vmatpush.msra.mxu0 %v4314
    %4347 = vmatpush.msra.mxu0 %v4312
    %4348 = vmatpush.msra.mxu0 %v4310
    %4349 = vmatmul.f32.gmra.mxu0 %v4322
    %v4350 = vpop.f32.mrf.mxu0
    %v4351 = vadd.f32 0.0, %v4350
    %4352 = vmatmul.f32.gmra.mxu0 %v4325
    %v4353 = vpop.f32.mrf.mxu0
    %v4354 = vadd.f32 0.0, %v4353
    %4355 = vmatmul.f32.gmra.mxu0 %v4328
    %v4356 = vpop.f32.mrf.mxu0
    %v4357 = vadd.f32 0.0, %v4356
    %4358 = vmatmul.f32.gmra.mxu0 %v4331
    %v4359 = vpop.f32.mrf.mxu0
    %v4360 = vadd.f32 0.0, %v4359
    %4361 = vdwg.mxu0
    %4362 = vrot.lane.b32.xlu0 %v3542, 56
    %v4363 = vpop.permute.xlu0 %4362
    %4364 = vrot.lane.b32.xlu0 %v3544, 56
    %v4365 = vpop.permute.xlu0 %4364
    %4366 = vrot.lane.b32.xlu0 %v3547, 56
    %v4367 = vpop.permute.xlu0 %4366
    %4368 = vrot.lane.b32.xlu0 %v3549, 56
    %v4369 = vpop.permute.xlu0 %4368
    %v4375 = vsel %vm244, %v4263, 0
    %v4378 = vsel %vm244, %v4278, 0
    %v4381 = vsel %vm244, %v4293, 0
    %v4384 = vsel %vm244, %v4308, 0
    %4386 = vmatpush.msra.mxu0 0.0
    %4387 = vmatpush.msra.mxu0 0.0
    %4388 = vmatpush.msra.mxu0 0.0
    %4389 = vmatpush.msra.mxu0 0.0
    %4390 = vmatpush.msra.mxu0 0.0
    %4391 = vmatpush.msra.mxu0 0.0
    %4392 = vmatpush.msra.mxu0 0.0
    %4393 = vmatpush.msra.mxu0 0.0
    %4394 = vmatpush.msra.mxu0 0.0
    %4395 = vmatpush.msra.mxu0 0.0
    %4396 = vmatpush.msra.mxu0 0.0
    %4397 = vmatpush.msra.mxu0 0.0
    %4398 = vmatpush.msra.mxu0 %v4369
    %4399 = vmatpush.msra.mxu0 %v4367
    %4400 = vmatpush.msra.mxu0 %v4365
    %4401 = vmatpush.msra.mxu0 %v4363
    %4402 = vmatmul.f32.gmra.mxu0 %v4375
    %v4403 = vpop.f32.mrf.mxu0
    %v4404 = vadd.f32 0.0, %v4403
    %4405 = vmatmul.f32.gmra.mxu0 %v4378
    %v4406 = vpop.f32.mrf.mxu0
    %v4407 = vadd.f32 0.0, %v4406
    %4408 = vmatmul.f32.gmra.mxu0 %v4381
    %v4409 = vpop.f32.mrf.mxu0
    %v4410 = vadd.f32 0.0, %v4409
    %4411 = vmatmul.f32.gmra.mxu0 %v4384
    %v4412 = vpop.f32.mrf.mxu0
    %v4413 = vadd.f32 0.0, %v4412
    %4414 = vdwg.mxu0
    %4415 = vrot.lane.b32.xlu0 %v3532, 112
    %v4416 = vpop.permute.xlu0 %4415
    %4417 = vrot.lane.b32.xlu0 %v3534, 112
    %v4418 = vpop.permute.xlu0 %4417
    %4419 = vrot.lane.b32.xlu0 %v3537, 112
    %v4420 = vpop.permute.xlu0 %4419
    %4421 = vrot.lane.b32.xlu0 %v3539, 112
    %v4422 = vpop.permute.xlu0 %4421
    %4423 = vrot.lane.b32.xlu0 %v3532, 80
    %v4424 = vpop.permute.xlu0 %4423
    %4425 = vrot.lane.b32.xlu0 %v3534, 80
    %v4426 = vpop.permute.xlu0 %4425
    %4427 = vrot.lane.b32.xlu0 %v3537, 80
    %v4428 = vpop.permute.xlu0 %4427
    %4429 = vrot.lane.b32.xlu0 %v3539, 80
    %v4430 = vpop.permute.xlu0 %4429
    %v4431 = vsel %vm679, %v4416, 0
    %v4433 = vsel %vm679, %v4418, 0
    %v4435 = vsel %vm679, %v4420, 0
    %v4437 = vsel %vm679, %v4422, 0
    %v4439 = vsel %vm679, %v4424, 0
    %v4441 = vsel %vm679, %v4426, 0
    %v4443 = vsel %vm679, %v4428, 0
    %v4445 = vsel %vm679, %v4430, 0
    %4447 = vmatpush.xpose.msra.mxu0 0.0
    %4448 = vmatpush.xpose.msra.mxu0 0.0
    %4449 = vmatpush.xpose.msra.mxu0 0.0
    %4450 = vmatpush.xpose.msra.mxu0 0.0
    %4451 = vmatpush.xpose.msra.mxu0 0.0
    %4452 = vmatpush.xpose.msra.mxu0 0.0
    %4453 = vmatpush.xpose.msra.mxu0 0.0
    %4454 = vmatpush.xpose.msra.mxu0 0.0
    %4455 = vmatpush.xpose.msra.mxu0 0.0
    %4456 = vmatpush.xpose.msra.mxu0 0.0
    %4457 = vmatpush.xpose.msra.mxu0 0.0
    %4458 = vmatpush.xpose.msra.mxu0 0.0
    %4459 = vmatpush.xpose.msra.mxu0 %v4445
    %4460 = vmatpush.xpose.msra.mxu0 %v4443
    %4461 = vmatpush.xpose.msra.mxu0 %v4441
    %4462 = vmatpush.xpose.msra.mxu0 %v4439
    %4463 = vmatmul.f32.gmra.mxu0 %v4431
    %v4464 = vpop.f32.mrf.mxu0
    %v4465 = vadd.f32 0.0, %v4464
    %4466 = vmatmul.f32.gmra.mxu0 %v4433
    %v4467 = vpop.f32.mrf.mxu0
    %v4468 = vadd.f32 0.0, %v4467
    %4469 = vmatmul.f32.gmra.mxu0 %v4435
    %v4470 = vpop.f32.mrf.mxu0
    %v4471 = vadd.f32 0.0, %v4470
    %4472 = vmatmul.f32.gmra.mxu0 %v4437
    %v4473 = vpop.f32.mrf.mxu0
    %v4474 = vadd.f32 0.0, %v4473
    %4475 = vdwg.mxu0
    %4476 = vrot.lane.b32.xlu0 %v3542, 112
    %v4477 = vpop.permute.xlu0 %4476
    %4478 = vrot.lane.b32.xlu0 %v3544, 112
    %v4479 = vpop.permute.xlu0 %4478
    %4480 = vrot.lane.b32.xlu0 %v3547, 112
    %v4481 = vpop.permute.xlu0 %4480
    %4482 = vrot.lane.b32.xlu0 %v3549, 112
    %v4483 = vpop.permute.xlu0 %4482
    %4484 = vrot.lane.b32.xlu0 %v3542, 80
    %v4485 = vpop.permute.xlu0 %4484
    %4486 = vrot.lane.b32.xlu0 %v3544, 80
    %v4487 = vpop.permute.xlu0 %4486
    %4488 = vrot.lane.b32.xlu0 %v3547, 80
    %v4489 = vpop.permute.xlu0 %4488
    %4490 = vrot.lane.b32.xlu0 %v3549, 80
    %v4491 = vpop.permute.xlu0 %4490
    %v4492 = vsel %vm679, %v4477, 0
    %v4494 = vsel %vm679, %v4479, 0
    %v4496 = vsel %vm679, %v4481, 0
    %v4498 = vsel %vm679, %v4483, 0
    %v4500 = vsel %vm679, %v4485, 0
    %v4502 = vsel %vm679, %v4487, 0
    %v4504 = vsel %vm679, %v4489, 0
    %v4506 = vsel %vm679, %v4491, 0
    %4508 = vmatpush.xpose.msra.mxu0 0.0
    %4509 = vmatpush.xpose.msra.mxu0 0.0
    %4510 = vmatpush.xpose.msra.mxu0 0.0
    %4511 = vmatpush.xpose.msra.mxu0 0.0
    %4512 = vmatpush.xpose.msra.mxu0 0.0
    %4513 = vmatpush.xpose.msra.mxu0 0.0
    %4514 = vmatpush.xpose.msra.mxu0 0.0
    %4515 = vmatpush.xpose.msra.mxu0 0.0
    %4516 = vmatpush.xpose.msra.mxu0 0.0
    %4517 = vmatpush.xpose.msra.mxu0 0.0
    %4518 = vmatpush.xpose.msra.mxu0 0.0
    %4519 = vmatpush.xpose.msra.mxu0 0.0
    %4520 = vmatpush.xpose.msra.mxu0 %v4506
    %4521 = vmatpush.xpose.msra.mxu0 %v4504
    %4522 = vmatpush.xpose.msra.mxu0 %v4502
    %4523 = vmatpush.xpose.msra.mxu0 %v4500
    %4524 = vmatmul.f32.gmra.mxu0 %v4492
    %v4525 = vpop.f32.mrf.mxu0
    %v4526 = vadd.f32 0.0, %v4525
    %4527 = vmatmul.f32.gmra.mxu0 %v4494
    %v4528 = vpop.f32.mrf.mxu0
    %v4529 = vadd.f32 0.0, %v4528
    %4530 = vmatmul.f32.gmra.mxu0 %v4496
    %v4531 = vpop.f32.mrf.mxu0
    %v4532 = vadd.f32 0.0, %v4531
    %4533 = vmatmul.f32.gmra.mxu0 %v4498
    %v4534 = vpop.f32.mrf.mxu0
    %v4535 = vadd.f32 0.0, %v4534
    %4536 = vdwg.mxu0
    %v4537 = vmul.f32 %v4465, 0.35355338
    %v4538 = vmul.f32 %v4468, 0.35355338
    %v4539 = vmul.f32 %v4471, 0.35355338
    %v4540 = vmul.f32 %v4474, 0.35355338
    %v4541 = vmul.f32 %v4526, 0.35355338
    %v4542 = vmul.f32 %v4529, 0.35355338
    %v4543 = vmul.f32 %v4532, 0.35355338
    %v4544 = vmul.f32 %v4535, 0.35355338
    %v4545 = vadd.f32 %v4537, %v398
    %v4546 = vadd.f32 %v4538, %v398
    %v4547 = vadd.f32 %v4539, %v398
    %v4548 = vadd.f32 %v4540, %v398
    %v4549 = vadd.f32 %v4541, %v399
    %v4550 = vadd.f32 %v4542, %v399
    %v4551 = vadd.f32 %v4543, %v399
    %v4552 = vadd.f32 %v4544, %v399
    %v4553 = vsel %vm244, %v4545, -inf
    %4554 = vmax.xlane.f32.xlu0 %v4553
    %v4555 = vpop.xlane.xlu0 %4554
    %v4556 = vsel %vm244, %v4546, -inf
    %4557 = vmax.xlane.f32.xlu0 %v4556
    %v4558 = vpop.xlane.xlu0 %4557
    %v4559 = vsel %vm244, %v4547, -inf
    %4560 = vmax.xlane.f32.xlu0 %v4559
    %v4561 = vpop.xlane.xlu0 %4560
    %v4562 = vsel %vm244, %v4548, -inf
    %4563 = vmax.xlane.f32.xlu0 %v4562
    %v4564 = vpop.xlane.xlu0 %4563
    %v4565 = vsel %vm244, %v4549, -inf
    %4566 = vmax.xlane.f32.xlu0 %v4565
    %v4567 = vpop.xlane.xlu0 %4566
    %v4568 = vsel %vm244, %v4550, -inf
    %4569 = vmax.xlane.f32.xlu0 %v4568
    %v4570 = vpop.xlane.xlu0 %4569
    %v4571 = vsel %vm244, %v4551, -inf
    %4572 = vmax.xlane.f32.xlu0 %v4571
    %v4573 = vpop.xlane.xlu0 %4572
    %v4574 = vsel %vm244, %v4552, -inf
    %4575 = vmax.xlane.f32.xlu0 %v4574
    %v4576 = vpop.xlane.xlu0 %4575
    %v4577 = vsub.f32 %v4545, %v4555
    %v4578 = vsub.f32 %v4546, %v4558
    %v4579 = vsub.f32 %v4547, %v4561
    %v4580 = vsub.f32 %v4548, %v4564
    %v4581 = vsub.f32 %v4549, %v4567
    %v4582 = vsub.f32 %v4550, %v4570
    %v4583 = vsub.f32 %v4551, %v4573
    %v4584 = vsub.f32 %v4552, %v4576
    %v4585 = vmul.f32 %v4577, 1.442695
    %v4586 = vpow.pop %v4585
    %v4587 = vmul.f32 %v4578, 1.442695
    %v4588 = vpow.pop %v4587
    %v4589 = vmul.f32 %v4579, 1.442695
    %v4590 = vpow.pop %v4589
    %v4591 = vmul.f32 %v4580, 1.442695
    %v4592 = vpow.pop %v4591
    %v4593 = vmul.f32 %v4581, 1.442695
    %v4594 = vpow.pop %v4593
    %v4595 = vmul.f32 %v4582, 1.442695
    %v4596 = vpow.pop %v4595
    %v4597 = vmul.f32 %v4583, 1.442695
    %v4598 = vpow.pop %v4597
    %v4599 = vmul.f32 %v4584, 1.442695
    %v4600 = vpow.pop %v4599
    %v4601 = vsel %vm244, %v4586, 0.0
    %4602 = vadd.xlane.f32.xlu0 %v4601
    %v4603 = vpop.xlane.xlu0 %4602
    %v4604 = vsel %vm244, %v4588, 0.0
    %4605 = vadd.xlane.f32.xlu0 %v4604
    %v4606 = vpop.xlane.xlu0 %4605
    %v4607 = vsel %vm244, %v4590, 0.0
    %4608 = vadd.xlane.f32.xlu0 %v4607
    %v4609 = vpop.xlane.xlu0 %4608
    %v4610 = vsel %vm244, %v4592, 0.0
    %4611 = vadd.xlane.f32.xlu0 %v4610
    %v4612 = vpop.xlane.xlu0 %4611
    %v4613 = vsel %vm244, %v4594, 0.0
    %4614 = vadd.xlane.f32.xlu0 %v4613
    %v4615 = vpop.xlane.xlu0 %4614
    %v4616 = vsel %vm244, %v4596, 0.0
    %4617 = vadd.xlane.f32.xlu0 %v4616
    %v4618 = vpop.xlane.xlu0 %4617
    %v4619 = vsel %vm244, %v4598, 0.0
    %4620 = vadd.xlane.f32.xlu0 %v4619
    %v4621 = vpop.xlane.xlu0 %4620
    %v4622 = vsel %vm244, %v4600, 0.0
    %4623 = vadd.xlane.f32.xlu0 %v4622
    %v4624 = vpop.xlane.xlu0 %4623
    %v4625 = vrcp.pop %v4603
    %v4626 = vmul.f32 %v4603, %v4625
    %v4627 = vsub.f32 1.0, %v4626
    %v4628 = vmul.f32 %v4625, %v4627
    %v4629 = vadd.f32 %v4625, %v4628
    %vm4630 = vweird.f32 %v4603
    %vm4631 = vweird.f32 %v4625
    %vm4632 = vmor %vm4630, %vm4631
    %v4633 = vsel %vm4632, %v4625, %v4629
    %v4634 = vand.u32 2147483647, %v4603
    %vm4635 = vcmp.eq.f32.partialorder %v4634, 8.507059e+37
    %v4636 = vand.u32 %v4603, 2147483648
    %v4637 = vor.u32 1.1754944e-38, %v4636
    %v4638 = vsel %vm4635, %v4637, %v4633
    %v4639 = vmul.f32 %v4586, %v4638
    %v4640 = vrcp.pop %v4606
    %v4641 = vmul.f32 %v4606, %v4640
    %v4642 = vsub.f32 1.0, %v4641
    %v4643 = vmul.f32 %v4640, %v4642
    %v4644 = vadd.f32 %v4640, %v4643
    %vm4645 = vweird.f32 %v4606
    %vm4646 = vweird.f32 %v4640
    %vm4647 = vmor %vm4645, %vm4646
    %v4648 = vsel %vm4647, %v4640, %v4644
    %v4649 = vand.u32 2147483647, %v4606
    %vm4650 = vcmp.eq.f32.partialorder %v4649, 8.507059e+37
    %v4651 = vand.u32 %v4606, 2147483648
    %v4652 = vor.u32 1.1754944e-38, %v4651
    %v4653 = vsel %vm4650, %v4652, %v4648
    %v4654 = vmul.f32 %v4588, %v4653
    %v4655 = vrcp.pop %v4609
    %v4656 = vmul.f32 %v4609, %v4655
    %v4657 = vsub.f32 1.0, %v4656
    %v4658 = vmul.f32 %v4655, %v4657
    %v4659 = vadd.f32 %v4655, %v4658
    %vm4660 = vweird.f32 %v4609
    %vm4661 = vweird.f32 %v4655
    %vm4662 = vmor %vm4660, %vm4661
    %v4663 = vsel %vm4662, %v4655, %v4659
    %v4664 = vand.u32 2147483647, %v4609
    %vm4665 = vcmp.eq.f32.partialorder %v4664, 8.507059e+37
    %v4666 = vand.u32 %v4609, 2147483648
    %v4667 = vor.u32 1.1754944e-38, %v4666
    %v4668 = vsel %vm4665, %v4667, %v4663
    %v4669 = vmul.f32 %v4590, %v4668
    %v4670 = vrcp.pop %v4612
    %v4671 = vmul.f32 %v4612, %v4670
    %v4672 = vsub.f32 1.0, %v4671
    %v4673 = vmul.f32 %v4670, %v4672
    %v4674 = vadd.f32 %v4670, %v4673
    %vm4675 = vweird.f32 %v4612
    %vm4676 = vweird.f32 %v4670
    %vm4677 = vmor %vm4675, %vm4676
    %v4678 = vsel %vm4677, %v4670, %v4674
    %v4679 = vand.u32 2147483647, %v4612
    %vm4680 = vcmp.eq.f32.partialorder %v4679, 8.507059e+37
    %v4681 = vand.u32 %v4612, 2147483648
    %v4682 = vor.u32 1.1754944e-38, %v4681
    %v4683 = vsel %vm4680, %v4682, %v4678
    %v4684 = vmul.f32 %v4592, %v4683
    %v4685 = vrcp.pop %v4615
    %v4686 = vmul.f32 %v4615, %v4685
    %v4687 = vsub.f32 1.0, %v4686
    %v4688 = vmul.f32 %v4685, %v4687
    %v4689 = vadd.f32 %v4685, %v4688
    %vm4690 = vweird.f32 %v4615
    %vm4691 = vweird.f32 %v4685
    %vm4692 = vmor %vm4690, %vm4691
    %v4693 = vsel %vm4692, %v4685, %v4689
    %v4694 = vand.u32 2147483647, %v4615
    %vm4695 = vcmp.eq.f32.partialorder %v4694, 8.507059e+37
    %v4696 = vand.u32 %v4615, 2147483648
    %v4697 = vor.u32 1.1754944e-38, %v4696
    %v4698 = vsel %vm4695, %v4697, %v4693
    %v4699 = vmul.f32 %v4594, %v4698
    %v4700 = vrcp.pop %v4618
    %v4701 = vmul.f32 %v4618, %v4700
    %v4702 = vsub.f32 1.0, %v4701
    %v4703 = vmul.f32 %v4700, %v4702
    %v4704 = vadd.f32 %v4700, %v4703
    %vm4705 = vweird.f32 %v4618
    %vm4706 = vweird.f32 %v4700
    %vm4707 = vmor %vm4705, %vm4706
    %v4708 = vsel %vm4707, %v4700, %v4704
    %v4709 = vand.u32 2147483647, %v4618
    %vm4710 = vcmp.eq.f32.partialorder %v4709, 8.507059e+37
    %v4711 = vand.u32 %v4618, 2147483648
    %v4712 = vor.u32 1.1754944e-38, %v4711
    %v4713 = vsel %vm4710, %v4712, %v4708
    %v4714 = vmul.f32 %v4596, %v4713
    %v4715 = vrcp.pop %v4621
    %v4716 = vmul.f32 %v4621, %v4715
    %v4717 = vsub.f32 1.0, %v4716
    %v4718 = vmul.f32 %v4715, %v4717
    %v4719 = vadd.f32 %v4715, %v4718
    %vm4720 = vweird.f32 %v4621
    %vm4721 = vweird.f32 %v4715
    %vm4722 = vmor %vm4720, %vm4721
    %v4723 = vsel %vm4722, %v4715, %v4719
    %v4724 = vand.u32 2147483647, %v4621
    %vm4725 = vcmp.eq.f32.partialorder %v4724, 8.507059e+37
    %v4726 = vand.u32 %v4621, 2147483648
    %v4727 = vor.u32 1.1754944e-38, %v4726
    %v4728 = vsel %vm4725, %v4727, %v4723
    %v4729 = vmul.f32 %v4598, %v4728
    %v4730 = vrcp.pop %v4624
    %v4731 = vmul.f32 %v4624, %v4730
    %v4732 = vsub.f32 1.0, %v4731
    %v4733 = vmul.f32 %v4730, %v4732
    %v4734 = vadd.f32 %v4730, %v4733
    %vm4735 = vweird.f32 %v4624
    %vm4736 = vweird.f32 %v4730
    %vm4737 = vmor %vm4735, %vm4736
    %v4738 = vsel %vm4737, %v4730, %v4734
    %v4739 = vand.u32 2147483647, %v4624
    %vm4740 = vcmp.eq.f32.partialorder %v4739, 8.507059e+37
    %v4741 = vand.u32 %v4624, 2147483648
    %v4742 = vor.u32 1.1754944e-38, %v4741
    %v4743 = vsel %vm4740, %v4742, %v4738
    %v4744 = vmul.f32 %v4600, %v4743
    %4745 = vrot.lane.b32.xlu0 %v3532, 48
    %v4746 = vpop.permute.xlu0 %4745
    %4747 = vrot.lane.b32.xlu0 %v3534, 48
    %v4748 = vpop.permute.xlu0 %4747
    %4749 = vrot.lane.b32.xlu0 %v3537, 48
    %v4750 = vpop.permute.xlu0 %4749
    %4751 = vrot.lane.b32.xlu0 %v3539, 48
    %v4752 = vpop.permute.xlu0 %4751
    %v4758 = vsel %vm244, %v4639, 0
    %v4761 = vsel %vm244, %v4654, 0
    %v4764 = vsel %vm244, %v4669, 0
    %v4767 = vsel %vm244, %v4684, 0
    %4769 = vmatpush.msra.mxu0 0.0
    %4770 = vmatpush.msra.mxu0 0.0
    %4771 = vmatpush.msra.mxu0 0.0
    %4772 = vmatpush.msra.mxu0 0.0
    %4773 = vmatpush.msra.mxu0 0.0
    %4774 = vmatpush.msra.mxu0 0.0
    %4775 = vmatpush.msra.mxu0 0.0
    %4776 = vmatpush.msra.mxu0 0.0
    %4777 = vmatpush.msra.mxu0 0.0
    %4778 = vmatpush.msra.mxu0 0.0
    %4779 = vmatpush.msra.mxu0 0.0
    %4780 = vmatpush.msra.mxu0 0.0
    %4781 = vmatpush.msra.mxu0 %v4752
    %4782 = vmatpush.msra.mxu0 %v4750
    %4783 = vmatpush.msra.mxu0 %v4748
    %4784 = vmatpush.msra.mxu0 %v4746
    %4785 = vmatmul.f32.gmra.mxu0 %v4758
    %v4786 = vpop.f32.mrf.mxu0
    %v4787 = vadd.f32 0.0, %v4786
    %4788 = vmatmul.f32.gmra.mxu0 %v4761
    %v4789 = vpop.f32.mrf.mxu0
    %v4790 = vadd.f32 0.0, %v4789
    %4791 = vmatmul.f32.gmra.mxu0 %v4764
    %v4792 = vpop.f32.mrf.mxu0
    %v4793 = vadd.f32 0.0, %v4792
    %4794 = vmatmul.f32.gmra.mxu0 %v4767
    %v4795 = vpop.f32.mrf.mxu0
    %v4796 = vadd.f32 0.0, %v4795
    %4797 = vdwg.mxu0
    %4798 = vrot.lane.b32.xlu0 %v3542, 48
    %v4799 = vpop.permute.xlu0 %4798
    %4800 = vrot.lane.b32.xlu0 %v3544, 48
    %v4801 = vpop.permute.xlu0 %4800
    %4802 = vrot.lane.b32.xlu0 %v3547, 48
    %v4803 = vpop.permute.xlu0 %4802
    %4804 = vrot.lane.b32.xlu0 %v3549, 48
    %v4805 = vpop.permute.xlu0 %4804
    %v4811 = vsel %vm244, %v4699, 0
    %v4814 = vsel %vm244, %v4714, 0
    %v4817 = vsel %vm244, %v4729, 0
    %v4820 = vsel %vm244, %v4744, 0
    %4822 = vmatpush.msra.mxu0 0.0
    %4823 = vmatpush.msra.mxu0 0.0
    %4824 = vmatpush.msra.mxu0 0.0
    %4825 = vmatpush.msra.mxu0 0.0
    %4826 = vmatpush.msra.mxu0 0.0
    %4827 = vmatpush.msra.mxu0 0.0
    %4828 = vmatpush.msra.mxu0 0.0
    %4829 = vmatpush.msra.mxu0 0.0
    %4830 = vmatpush.msra.mxu0 0.0
    %4831 = vmatpush.msra.mxu0 0.0
    %4832 = vmatpush.msra.mxu0 0.0
    %4833 = vmatpush.msra.mxu0 0.0
    %4834 = vmatpush.msra.mxu0 %v4805
    %4835 = vmatpush.msra.mxu0 %v4803
    %4836 = vmatpush.msra.mxu0 %v4801
    %4837 = vmatpush.msra.mxu0 %v4799
    %4838 = vmatmul.f32.gmra.mxu0 %v4811
    %v4839 = vpop.f32.mrf.mxu0
    %v4840 = vadd.f32 0.0, %v4839
    %4841 = vmatmul.f32.gmra.mxu0 %v4814
    %v4842 = vpop.f32.mrf.mxu0
    %v4843 = vadd.f32 0.0, %v4842
    %4844 = vmatmul.f32.gmra.mxu0 %v4817
    %v4845 = vpop.f32.mrf.mxu0
    %v4846 = vadd.f32 0.0, %v4845
    %4847 = vmatmul.f32.gmra.mxu0 %v4820
    %v4848 = vpop.f32.mrf.mxu0
    %v4849 = vadd.f32 0.0, %v4848
    %4850 = vdwg.mxu0
    %4851 = vrot.lane.b32.xlu0 %v3532, 104
    %v4852 = vpop.permute.xlu0 %4851
    %4853 = vrot.lane.b32.xlu0 %v3534, 104
    %v4854 = vpop.permute.xlu0 %4853
    %4855 = vrot.lane.b32.xlu0 %v3537, 104
    %v4856 = vpop.permute.xlu0 %4855
    %4857 = vrot.lane.b32.xlu0 %v3539, 104
    %v4858 = vpop.permute.xlu0 %4857
    %4859 = vrot.lane.b32.xlu0 %v3532, 72
    %v4860 = vpop.permute.xlu0 %4859
    %4861 = vrot.lane.b32.xlu0 %v3534, 72
    %v4862 = vpop.permute.xlu0 %4861
    %4863 = vrot.lane.b32.xlu0 %v3537, 72
    %v4864 = vpop.permute.xlu0 %4863
    %4865 = vrot.lane.b32.xlu0 %v3539, 72
    %v4866 = vpop.permute.xlu0 %4865
    %v4867 = vsel %vm679, %v4852, 0
    %v4869 = vsel %vm679, %v4854, 0
    %v4871 = vsel %vm679, %v4856, 0
    %v4873 = vsel %vm679, %v4858, 0
    %v4875 = vsel %vm679, %v4860, 0
    %v4877 = vsel %vm679, %v4862, 0
    %v4879 = vsel %vm679, %v4864, 0
    %v4881 = vsel %vm679, %v4866, 0
    %4883 = vmatpush.xpose.msra.mxu0 0.0
    %4884 = vmatpush.xpose.msra.mxu0 0.0
    %4885 = vmatpush.xpose.msra.mxu0 0.0
    %4886 = vmatpush.xpose.msra.mxu0 0.0
    %4887 = vmatpush.xpose.msra.mxu0 0.0
    %4888 = vmatpush.xpose.msra.mxu0 0.0
    %4889 = vmatpush.xpose.msra.mxu0 0.0
    %4890 = vmatpush.xpose.msra.mxu0 0.0
    %4891 = vmatpush.xpose.msra.mxu0 0.0
    %4892 = vmatpush.xpose.msra.mxu0 0.0
    %4893 = vmatpush.xpose.msra.mxu0 0.0
    %4894 = vmatpush.xpose.msra.mxu0 0.0
    %4895 = vmatpush.xpose.msra.mxu0 %v4881
    %4896 = vmatpush.xpose.msra.mxu0 %v4879
    %4897 = vmatpush.xpose.msra.mxu0 %v4877
    %4898 = vmatpush.xpose.msra.mxu0 %v4875
    %4899 = vmatmul.f32.gmra.mxu0 %v4867
    %v4900 = vpop.f32.mrf.mxu0
    %v4901 = vadd.f32 0.0, %v4900
    %4902 = vmatmul.f32.gmra.mxu0 %v4869
    %v4903 = vpop.f32.mrf.mxu0
    %v4904 = vadd.f32 0.0, %v4903
    %4905 = vmatmul.f32.gmra.mxu0 %v4871
    %v4906 = vpop.f32.mrf.mxu0
    %v4907 = vadd.f32 0.0, %v4906
    %4908 = vmatmul.f32.gmra.mxu0 %v4873
    %v4909 = vpop.f32.mrf.mxu0
    %v4910 = vadd.f32 0.0, %v4909
    %4911 = vdwg.mxu0
    %4912 = vrot.lane.b32.xlu0 %v3542, 104
    %v4913 = vpop.permute.xlu0 %4912
    %4914 = vrot.lane.b32.xlu0 %v3544, 104
    %v4915 = vpop.permute.xlu0 %4914
    %4916 = vrot.lane.b32.xlu0 %v3547, 104
    %v4917 = vpop.permute.xlu0 %4916
    %4918 = vrot.lane.b32.xlu0 %v3549, 104
    %v4919 = vpop.permute.xlu0 %4918
    %4920 = vrot.lane.b32.xlu0 %v3542, 72
    %v4921 = vpop.permute.xlu0 %4920
    %4922 = vrot.lane.b32.xlu0 %v3544, 72
    %v4923 = vpop.permute.xlu0 %4922
    %4924 = vrot.lane.b32.xlu0 %v3547, 72
    %v4925 = vpop.permute.xlu0 %4924
    %4926 = vrot.lane.b32.xlu0 %v3549, 72
    %v4927 = vpop.permute.xlu0 %4926
    %v4928 = vsel %vm679, %v4913, 0
    %v4930 = vsel %vm679, %v4915, 0
    %v4932 = vsel %vm679, %v4917, 0
    %v4934 = vsel %vm679, %v4919, 0
    %v4936 = vsel %vm679, %v4921, 0
    %v4938 = vsel %vm679, %v4923, 0
    %v4940 = vsel %vm679, %v4925, 0
    %v4942 = vsel %vm679, %v4927, 0
    %4944 = vmatpush.xpose.msra.mxu0 0.0
    %4945 = vmatpush.xpose.msra.mxu0 0.0
    %4946 = vmatpush.xpose.msra.mxu0 0.0
    %4947 = vmatpush.xpose.msra.mxu0 0.0
    %4948 = vmatpush.xpose.msra.mxu0 0.0
    %4949 = vmatpush.xpose.msra.mxu0 0.0
    %4950 = vmatpush.xpose.msra.mxu0 0.0
    %4951 = vmatpush.xpose.msra.mxu0 0.0
    %4952 = vmatpush.xpose.msra.mxu0 0.0
    %4953 = vmatpush.xpose.msra.mxu0 0.0
    %4954 = vmatpush.xpose.msra.mxu0 0.0
    %4955 = vmatpush.xpose.msra.mxu0 0.0
    %4956 = vmatpush.xpose.msra.mxu0 %v4942
    %4957 = vmatpush.xpose.msra.mxu0 %v4940
    %4958 = vmatpush.xpose.msra.mxu0 %v4938
    %4959 = vmatpush.xpose.msra.mxu0 %v4936
    %4960 = vmatmul.f32.gmra.mxu0 %v4928
    %v4961 = vpop.f32.mrf.mxu0
    %v4962 = vadd.f32 0.0, %v4961
    %4963 = vmatmul.f32.gmra.mxu0 %v4930
    %v4964 = vpop.f32.mrf.mxu0
    %v4965 = vadd.f32 0.0, %v4964
    %4966 = vmatmul.f32.gmra.mxu0 %v4932
    %v4967 = vpop.f32.mrf.mxu0
    %v4968 = vadd.f32 0.0, %v4967
    %4969 = vmatmul.f32.gmra.mxu0 %v4934
    %v4970 = vpop.f32.mrf.mxu0
    %v4971 = vadd.f32 0.0, %v4970
    %4972 = vdwg.mxu0
    %v4973 = vmul.f32 %v4901, 0.35355338
    %v4974 = vmul.f32 %v4904, 0.35355338
    %v4975 = vmul.f32 %v4907, 0.35355338
    %v4976 = vmul.f32 %v4910, 0.35355338
    %v4977 = vmul.f32 %v4962, 0.35355338
    %v4978 = vmul.f32 %v4965, 0.35355338
    %v4979 = vmul.f32 %v4968, 0.35355338
    %v4980 = vmul.f32 %v4971, 0.35355338
    %v4981 = vadd.f32 %v4973, %v398
    %v4982 = vadd.f32 %v4974, %v398
    %v4983 = vadd.f32 %v4975, %v398
    %v4984 = vadd.f32 %v4976, %v398
    %v4985 = vadd.f32 %v4977, %v399
    %v4986 = vadd.f32 %v4978, %v399
    %v4987 = vadd.f32 %v4979, %v399
    %v4988 = vadd.f32 %v4980, %v399
    %v4989 = vsel %vm244, %v4981, -inf
    %4990 = vmax.xlane.f32.xlu0 %v4989
    %v4991 = vpop.xlane.xlu0 %4990
    %v4992 = vsel %vm244, %v4982, -inf
    %4993 = vmax.xlane.f32.xlu0 %v4992
    %v4994 = vpop.xlane.xlu0 %4993
    %v4995 = vsel %vm244, %v4983, -inf
    %4996 = vmax.xlane.f32.xlu0 %v4995
    %v4997 = vpop.xlane.xlu0 %4996
    %v4998 = vsel %vm244, %v4984, -inf
    %4999 = vmax.xlane.f32.xlu0 %v4998
    %v5000 = vpop.xlane.xlu0 %4999
    %v5001 = vsel %vm244, %v4985, -inf
    %5002 = vmax.xlane.f32.xlu0 %v5001
    %v5003 = vpop.xlane.xlu0 %5002
    %v5004 = vsel %vm244, %v4986, -inf
    %5005 = vmax.xlane.f32.xlu0 %v5004
    %v5006 = vpop.xlane.xlu0 %5005
    %v5007 = vsel %vm244, %v4987, -inf
    %5008 = vmax.xlane.f32.xlu0 %v5007
    %v5009 = vpop.xlane.xlu0 %5008
    %v5010 = vsel %vm244, %v4988, -inf
    %5011 = vmax.xlane.f32.xlu0 %v5010
    %v5012 = vpop.xlane.xlu0 %5011
    %v5013 = vsub.f32 %v4981, %v4991
    %v5014 = vsub.f32 %v4982, %v4994
    %v5015 = vsub.f32 %v4983, %v4997
    %v5016 = vsub.f32 %v4984, %v5000
    %v5017 = vsub.f32 %v4985, %v5003
    %v5018 = vsub.f32 %v4986, %v5006
    %v5019 = vsub.f32 %v4987, %v5009
    %v5020 = vsub.f32 %v4988, %v5012
    %v5021 = vmul.f32 %v5013, 1.442695
    %v5022 = vpow.pop %v5021
    %v5023 = vmul.f32 %v5014, 1.442695
    %v5024 = vpow.pop %v5023
    %v5025 = vmul.f32 %v5015, 1.442695
    %v5026 = vpow.pop %v5025
    %v5027 = vmul.f32 %v5016, 1.442695
    %v5028 = vpow.pop %v5027
    %v5029 = vmul.f32 %v5017, 1.442695
    %v5030 = vpow.pop %v5029
    %v5031 = vmul.f32 %v5018, 1.442695
    %v5032 = vpow.pop %v5031
    %v5033 = vmul.f32 %v5019, 1.442695
    %v5034 = vpow.pop %v5033
    %v5035 = vmul.f32 %v5020, 1.442695
    %v5036 = vpow.pop %v5035
    %v5037 = vsel %vm244, %v5022, 0.0
    %5038 = vadd.xlane.f32.xlu0 %v5037
    %v5039 = vpop.xlane.xlu0 %5038
    %v5040 = vsel %vm244, %v5024, 0.0
    %5041 = vadd.xlane.f32.xlu0 %v5040
    %v5042 = vpop.xlane.xlu0 %5041
    %v5043 = vsel %vm244, %v5026, 0.0
    %5044 = vadd.xlane.f32.xlu0 %v5043
    %v5045 = vpop.xlane.xlu0 %5044
    %v5046 = vsel %vm244, %v5028, 0.0
    %5047 = vadd.xlane.f32.xlu0 %v5046
    %v5048 = vpop.xlane.xlu0 %5047
    %v5049 = vsel %vm244, %v5030, 0.0
    %5050 = vadd.xlane.f32.xlu0 %v5049
    %v5051 = vpop.xlane.xlu0 %5050
    %v5052 = vsel %vm244, %v5032, 0.0
    %5053 = vadd.xlane.f32.xlu0 %v5052
    %v5054 = vpop.xlane.xlu0 %5053
    %v5055 = vsel %vm244, %v5034, 0.0
    %5056 = vadd.xlane.f32.xlu0 %v5055
    %v5057 = vpop.xlane.xlu0 %5056
    %v5058 = vsel %vm244, %v5036, 0.0
    %5059 = vadd.xlane.f32.xlu0 %v5058
    %v5060 = vpop.xlane.xlu0 %5059
    %v5061 = vrcp.pop %v5039
    %v5062 = vmul.f32 %v5039, %v5061
    %v5063 = vsub.f32 1.0, %v5062
    %v5064 = vmul.f32 %v5061, %v5063
    %v5065 = vadd.f32 %v5061, %v5064
    %vm5066 = vweird.f32 %v5039
    %vm5067 = vweird.f32 %v5061
    %vm5068 = vmor %vm5066, %vm5067
    %v5069 = vsel %vm5068, %v5061, %v5065
    %v5070 = vand.u32 2147483647, %v5039
    %vm5071 = vcmp.eq.f32.partialorder %v5070, 8.507059e+37
    %v5072 = vand.u32 %v5039, 2147483648
    %v5073 = vor.u32 1.1754944e-38, %v5072
    %v5074 = vsel %vm5071, %v5073, %v5069
    %v5075 = vmul.f32 %v5022, %v5074
    %v5076 = vrcp.pop %v5042
    %v5077 = vmul.f32 %v5042, %v5076
    %v5078 = vsub.f32 1.0, %v5077
    %v5079 = vmul.f32 %v5076, %v5078
    %v5080 = vadd.f32 %v5076, %v5079
    %vm5081 = vweird.f32 %v5042
    %vm5082 = vweird.f32 %v5076
    %vm5083 = vmor %vm5081, %vm5082
    %v5084 = vsel %vm5083, %v5076, %v5080
    %v5085 = vand.u32 2147483647, %v5042
    %vm5086 = vcmp.eq.f32.partialorder %v5085, 8.507059e+37
    %v5087 = vand.u32 %v5042, 2147483648
    %v5088 = vor.u32 1.1754944e-38, %v5087
    %v5089 = vsel %vm5086, %v5088, %v5084
    %v5090 = vmul.f32 %v5024, %v5089
    %v5091 = vrcp.pop %v5045
    %v5092 = vmul.f32 %v5045, %v5091
    %v5093 = vsub.f32 1.0, %v5092
    %v5094 = vmul.f32 %v5091, %v5093
    %v5095 = vadd.f32 %v5091, %v5094
    %vm5096 = vweird.f32 %v5045
    %vm5097 = vweird.f32 %v5091
    %vm5098 = vmor %vm5096, %vm5097
    %v5099 = vsel %vm5098, %v5091, %v5095
    %v5100 = vand.u32 2147483647, %v5045
    %vm5101 = vcmp.eq.f32.partialorder %v5100, 8.507059e+37
    %v5102 = vand.u32 %v5045, 2147483648
    %v5103 = vor.u32 1.1754944e-38, %v5102
    %v5104 = vsel %vm5101, %v5103, %v5099
    %v5105 = vmul.f32 %v5026, %v5104
    %v5106 = vrcp.pop %v5048
    %v5107 = vmul.f32 %v5048, %v5106
    %v5108 = vsub.f32 1.0, %v5107
    %v5109 = vmul.f32 %v5106, %v5108
    %v5110 = vadd.f32 %v5106, %v5109
    %vm5111 = vweird.f32 %v5048
    %vm5112 = vweird.f32 %v5106
    %vm5113 = vmor %vm5111, %vm5112
    %v5114 = vsel %vm5113, %v5106, %v5110
    %v5115 = vand.u32 2147483647, %v5048
    %vm5116 = vcmp.eq.f32.partialorder %v5115, 8.507059e+37
    %v5117 = vand.u32 %v5048, 2147483648
    %v5118 = vor.u32 1.1754944e-38, %v5117
    %v5119 = vsel %vm5116, %v5118, %v5114
    %v5120 = vmul.f32 %v5028, %v5119
    %v5121 = vrcp.pop %v5051
    %v5122 = vmul.f32 %v5051, %v5121
    %v5123 = vsub.f32 1.0, %v5122
    %v5124 = vmul.f32 %v5121, %v5123
    %v5125 = vadd.f32 %v5121, %v5124
    %vm5126 = vweird.f32 %v5051
    %vm5127 = vweird.f32 %v5121
    %vm5128 = vmor %vm5126, %vm5127
    %v5129 = vsel %vm5128, %v5121, %v5125
    %v5130 = vand.u32 2147483647, %v5051
    %vm5131 = vcmp.eq.f32.partialorder %v5130, 8.507059e+37
    %v5132 = vand.u32 %v5051, 2147483648
    %v5133 = vor.u32 1.1754944e-38, %v5132
    %v5134 = vsel %vm5131, %v5133, %v5129
    %v5135 = vmul.f32 %v5030, %v5134
    %v5136 = vrcp.pop %v5054
    %v5137 = vmul.f32 %v5054, %v5136
    %v5138 = vsub.f32 1.0, %v5137
    %v5139 = vmul.f32 %v5136, %v5138
    %v5140 = vadd.f32 %v5136, %v5139
    %vm5141 = vweird.f32 %v5054
    %vm5142 = vweird.f32 %v5136
    %vm5143 = vmor %vm5141, %vm5142
    %v5144 = vsel %vm5143, %v5136, %v5140
    %v5145 = vand.u32 2147483647, %v5054
    %vm5146 = vcmp.eq.f32.partialorder %v5145, 8.507059e+37
    %v5147 = vand.u32 %v5054, 2147483648
    %v5148 = vor.u32 1.1754944e-38, %v5147
    %v5149 = vsel %vm5146, %v5148, %v5144
    %v5150 = vmul.f32 %v5032, %v5149
    %v5151 = vrcp.pop %v5057
    %v5152 = vmul.f32 %v5057, %v5151
    %v5153 = vsub.f32 1.0, %v5152
    %v5154 = vmul.f32 %v5151, %v5153
    %v5155 = vadd.f32 %v5151, %v5154
    %vm5156 = vweird.f32 %v5057
    %vm5157 = vweird.f32 %v5151
    %vm5158 = vmor %vm5156, %vm5157
    %v5159 = vsel %vm5158, %v5151, %v5155
    %v5160 = vand.u32 2147483647, %v5057
    %vm5161 = vcmp.eq.f32.partialorder %v5160, 8.507059e+37
    %v5162 = vand.u32 %v5057, 2147483648
    %v5163 = vor.u32 1.1754944e-38, %v5162
    %v5164 = vsel %vm5161, %v5163, %v5159
    %v5165 = vmul.f32 %v5034, %v5164
    %v5166 = vrcp.pop %v5060
    %v5167 = vmul.f32 %v5060, %v5166
    %v5168 = vsub.f32 1.0, %v5167
    %v5169 = vmul.f32 %v5166, %v5168
    %v5170 = vadd.f32 %v5166, %v5169
    %vm5171 = vweird.f32 %v5060
    %vm5172 = vweird.f32 %v5166
    %vm5173 = vmor %vm5171, %vm5172
    %v5174 = vsel %vm5173, %v5166, %v5170
    %v5175 = vand.u32 2147483647, %v5060
    %vm5176 = vcmp.eq.f32.partialorder %v5175, 8.507059e+37
    %v5177 = vand.u32 %v5060, 2147483648
    %v5178 = vor.u32 1.1754944e-38, %v5177
    %v5179 = vsel %vm5176, %v5178, %v5174
    %v5180 = vmul.f32 %v5036, %v5179
    %5181 = vrot.lane.b32.xlu0 %v3532, 40
    %v5182 = vpop.permute.xlu0 %5181
    %5183 = vrot.lane.b32.xlu0 %v3534, 40
    %v5184 = vpop.permute.xlu0 %5183
    %5185 = vrot.lane.b32.xlu0 %v3537, 40
    %v5186 = vpop.permute.xlu0 %5185
    %5187 = vrot.lane.b32.xlu0 %v3539, 40
    %v5188 = vpop.permute.xlu0 %5187
    %v5194 = vsel %vm244, %v5075, 0
    %v5197 = vsel %vm244, %v5090, 0
    %v5200 = vsel %vm244, %v5105, 0
    %v5203 = vsel %vm244, %v5120, 0
    %5205 = vmatpush.msra.mxu0 0.0
    %5206 = vmatpush.msra.mxu0 0.0
    %5207 = vmatpush.msra.mxu0 0.0
    %5208 = vmatpush.msra.mxu0 0.0
    %5209 = vmatpush.msra.mxu0 0.0
    %5210 = vmatpush.msra.mxu0 0.0
    %5211 = vmatpush.msra.mxu0 0.0
    %5212 = vmatpush.msra.mxu0 0.0
    %5213 = vmatpush.msra.mxu0 0.0
    %5214 = vmatpush.msra.mxu0 0.0
    %5215 = vmatpush.msra.mxu0 0.0
    %5216 = vmatpush.msra.mxu0 0.0
    %5217 = vmatpush.msra.mxu0 %v5188
    %5218 = vmatpush.msra.mxu0 %v5186
    %5219 = vmatpush.msra.mxu0 %v5184
    %5220 = vmatpush.msra.mxu0 %v5182
    %5221 = vmatmul.f32.gmra.mxu0 %v5194
    %v5222 = vpop.f32.mrf.mxu0
    %v5223 = vadd.f32 0.0, %v5222
    %5224 = vmatmul.f32.gmra.mxu0 %v5197
    %v5225 = vpop.f32.mrf.mxu0
    %v5226 = vadd.f32 0.0, %v5225
    %5227 = vmatmul.f32.gmra.mxu0 %v5200
    %v5228 = vpop.f32.mrf.mxu0
    %v5229 = vadd.f32 0.0, %v5228
    %5230 = vmatmul.f32.gmra.mxu0 %v5203
    %v5231 = vpop.f32.mrf.mxu0
    %v5232 = vadd.f32 0.0, %v5231
    %5233 = vdwg.mxu0
    %5234 = vrot.lane.b32.xlu0 %v3542, 40
    %v5235 = vpop.permute.xlu0 %5234
    %5236 = vrot.lane.b32.xlu0 %v3544, 40
    %v5237 = vpop.permute.xlu0 %5236
    %5238 = vrot.lane.b32.xlu0 %v3547, 40
    %v5239 = vpop.permute.xlu0 %5238
    %5240 = vrot.lane.b32.xlu0 %v3549, 40
    %v5241 = vpop.permute.xlu0 %5240
    %v5247 = vsel %vm244, %v5135, 0
    %v5250 = vsel %vm244, %v5150, 0
    %v5253 = vsel %vm244, %v5165, 0
    %v5256 = vsel %vm244, %v5180, 0
    %5258 = vmatpush.msra.mxu0 0.0
    %5259 = vmatpush.msra.mxu0 0.0
    %5260 = vmatpush.msra.mxu0 0.0
    %5261 = vmatpush.msra.mxu0 0.0
    %5262 = vmatpush.msra.mxu0 0.0
    %5263 = vmatpush.msra.mxu0 0.0
    %5264 = vmatpush.msra.mxu0 0.0
    %5265 = vmatpush.msra.mxu0 0.0
    %5266 = vmatpush.msra.mxu0 0.0
    %5267 = vmatpush.msra.mxu0 0.0
    %5268 = vmatpush.msra.mxu0 0.0
    %5269 = vmatpush.msra.mxu0 0.0
    %5270 = vmatpush.msra.mxu0 %v5241
    %5271 = vmatpush.msra.mxu0 %v5239
    %5272 = vmatpush.msra.mxu0 %v5237
    %5273 = vmatpush.msra.mxu0 %v5235
    %5274 = vmatmul.f32.gmra.mxu0 %v5247
    %v5275 = vpop.f32.mrf.mxu0
    %v5276 = vadd.f32 0.0, %v5275
    %5277 = vmatmul.f32.gmra.mxu0 %v5250
    %v5278 = vpop.f32.mrf.mxu0
    %v5279 = vadd.f32 0.0, %v5278
    %5280 = vmatmul.f32.gmra.mxu0 %v5253
    %v5281 = vpop.f32.mrf.mxu0
    %v5282 = vadd.f32 0.0, %v5281
    %5283 = vmatmul.f32.gmra.mxu0 %v5256
    %v5284 = vpop.f32.mrf.mxu0
    %v5285 = vadd.f32 0.0, %v5284
    %5286 = vdwg.mxu0
    %5295 = vrot.lane.b32.xlu0 %v4351, 8
    %v5296 = vpop.permute.xlu0 %5295
    %5297 = vrot.lane.b32.xlu0 %v4354, 8
    %v5298 = vpop.permute.xlu0 %5297
    %5299 = vrot.lane.b32.xlu0 %v4357, 8
    %v5300 = vpop.permute.xlu0 %5299
    %5301 = vrot.lane.b32.xlu0 %v4360, 8
    %v5302 = vpop.permute.xlu0 %5301
    %5303 = vrot.lane.b32.xlu0 %v4404, 8
    %v5304 = vpop.permute.xlu0 %5303
    %5305 = vrot.lane.b32.xlu0 %v4407, 8
    %v5306 = vpop.permute.xlu0 %5305
    %5307 = vrot.lane.b32.xlu0 %v4410, 8
    %v5308 = vpop.permute.xlu0 %5307
    %5309 = vrot.lane.b32.xlu0 %v4413, 8
    %v5310 = vpop.permute.xlu0 %5309
    %5327 = vrot.lane.b32.xlu0 %v4787, 16
    %v5328 = vpop.permute.xlu0 %5327
    %5329 = vrot.lane.b32.xlu0 %v4790, 16
    %v5330 = vpop.permute.xlu0 %5329
    %5331 = vrot.lane.b32.xlu0 %v4793, 16
    %v5332 = vpop.permute.xlu0 %5331
    %5333 = vrot.lane.b32.xlu0 %v4796, 16
    %v5334 = vpop.permute.xlu0 %5333
    %5335 = vrot.lane.b32.xlu0 %v4840, 16
    %v5336 = vpop.permute.xlu0 %5335
    %5337 = vrot.lane.b32.xlu0 %v4843, 16
    %v5338 = vpop.permute.xlu0 %5337
    %5339 = vrot.lane.b32.xlu0 %v4846, 16
    %v5340 = vpop.permute.xlu0 %5339
    %5341 = vrot.lane.b32.xlu0 %v4849, 16
    %v5342 = vpop.permute.xlu0 %5341
    %5359 = vrot.lane.b32.xlu0 %v5223, 24
    %v5360 = vpop.permute.xlu0 %5359
    %5361 = vrot.lane.b32.xlu0 %v5226, 24
    %v5362 = vpop.permute.xlu0 %5361
    %5363 = vrot.lane.b32.xlu0 %v5229, 24
    %v5364 = vpop.permute.xlu0 %5363
    %5365 = vrot.lane.b32.xlu0 %v5232, 24
    %v5366 = vpop.permute.xlu0 %5365
    %5367 = vrot.lane.b32.xlu0 %v5276, 24
    %v5368 = vpop.permute.xlu0 %5367
    %5369 = vrot.lane.b32.xlu0 %v5279, 24
    %v5370 = vpop.permute.xlu0 %5369
    %5371 = vrot.lane.b32.xlu0 %v5282, 24
    %v5372 = vpop.permute.xlu0 %5371
    %5373 = vrot.lane.b32.xlu0 %v5285, 24
    %v5374 = vpop.permute.xlu0 %5373
    %v5383 = vsel %vm679, %v3915, %v5296
    %v5384 = vsel %vm679, %v3918, %v5298
    %v5385 = vsel %vm679, %v3921, %v5300
    %v5386 = vsel %vm679, %v3924, %v5302
    %v5387 = vsel %vm679, %v3968, %v5304
    %v5388 = vsel %vm679, %v3971, %v5306
    %v5389 = vsel %vm679, %v3974, %v5308
    %v5390 = vsel %vm679, %v3977, %v5310
    %v5391 = vsel %vm2508, %v5383, %v5328
    %v5392 = vsel %vm2508, %v5384, %v5330
    %v5393 = vsel %vm2508, %v5385, %v5332
    %v5394 = vsel %vm2508, %v5386, %v5334
    %v5395 = vsel %vm2508, %v5387, %v5336
    %v5396 = vsel %vm2508, %v5388, %v5338
    %v5397 = vsel %vm2508, %v5389, %v5340
    %v5398 = vsel %vm2508, %v5390, %v5342
    %v5399 = vsel %vm2517, %v5391, %v5360
    %v5400 = vsel %vm2517, %v5392, %v5362
    %v5401 = vsel %vm2517, %v5393, %v5364
    %v5402 = vsel %vm2517, %v5394, %v5366
    %v5403 = vsel %vm2517, %v5395, %v5368
    %v5404 = vsel %vm2517, %v5396, %v5370
    %v5405 = vsel %vm2517, %v5397, %v5372
    %v5406 = vsel %vm2517, %v5398, %v5374
    %v5407 = vpack.c.bf16 %v5400, %v5399
    %v5408 = vpack.c.bf16 %v5402, %v5401
    %v5409 = vpack.c.bf16 %v5404, %v5403
    %v5410 = vpack.c.bf16 %v5406, %v5405
    %s5411 = scalar_lea.vmem %s33, 16
    %v5412 = vld [vmem:[%s5411] sm:$0xf]
    %v5413 = vld [vmem:[%s5411 + $0x4] sm:$0xf]
    %v5414 = vld [vmem:[%s5411 + $0x8] sm:$0xf]
    %v5415 = vld [vmem:[%s5411 + $0xc] sm:$0xf]
    %s5416 = scalar_lea.vmem %s35, 1
    %v5417 = vld [vmem:[%s5416] sm:$0x1]
    %v5419 = vperm.slane %v5417, 0
    %v5425 = vunpack.c.l.b16 %v5412
    %v5426 = vunpack.c.l.b16 %v5413
    %v5427 = vunpack.c.l.b16 %v5414
    %v5428 = vunpack.c.l.b16 %v5415
    %v5429 = vpack.c.b16 %v5426, %v5425
    %v5430 = vpack.c.b16 %v5428, %v5427
    %v5434 = vsel %vm244, %v5407, 0
    %v5437 = vsel %vm244, %v5408, 0
    %v5440 = vsel %vm244, %v5409, 0
    %v5443 = vsel %vm244, %v5410, 0
    %5445 = vmatpush.bf16.msra.mxu0 0
    %5446 = vmatpush.bf16.msra.mxu0 0
    %5447 = vmatpush.bf16.msra.mxu0 0
    %5448 = vmatpush.bf16.msra.mxu0 0
    %5449 = vmatpush.bf16.msra.mxu0 0
    %5450 = vmatpush.bf16.msra.mxu0 0
    %5451 = vmatpush.bf16.msra.mxu0 %v5430
    %5452 = vmatpush.bf16.msra.mxu0 %v5429
    %5453 = vmatmul.bf16.gmra.mxu0 %v5434
    %v5454 = vpop.f32.mrf.mxu0
    %v5455 = vadd.f32 %v5419, %v5454
    %v5456 = vpop.f32.mrf.mxu0
    %v5457 = vadd.f32 %v5419, %v5456
    %5458 = vmatmul.bf16.gmra.mxu0 %v5437
    %v5459 = vpop.f32.mrf.mxu0
    %v5460 = vadd.f32 %v5419, %v5459
    %v5461 = vpop.f32.mrf.mxu0
    %v5462 = vadd.f32 %v5419, %v5461
    %5463 = vmatmul.bf16.gmra.mxu0 %v5440
    %v5464 = vpop.f32.mrf.mxu0
    %v5465 = vadd.f32 %v5419, %v5464
    %v5466 = vpop.f32.mrf.mxu0
    %v5467 = vadd.f32 %v5419, %v5466
    %5468 = vmatmul.bf16.gmra.mxu0 %v5443
    %v5469 = vpop.f32.mrf.mxu0
    %v5470 = vadd.f32 %v5419, %v5469
    %v5471 = vpop.f32.mrf.mxu0
    %v5472 = vadd.f32 %v5419, %v5471
    %5473 = vdwg.mxu0
    %v5474 = vadd.f32 %v3274, %v5455
    %v5475 = vadd.f32 %v3275, %v5457
    %v5476 = vadd.f32 %v3276, %v5460
    %v5477 = vadd.f32 %v3277, %v5462
    %v5478 = vadd.f32 %v3278, %v5465
    %v5479 = vadd.f32 %v3279, %v5467
    %v5480 = vadd.f32 %v3280, %v5470
    %v5481 = vadd.f32 %v3281, %v5472
    %s5482 = scalar_lea.vmem %s37, 1
    %v5483 = vld [vmem:[%s5482] sm:$0x1]
    %s5484 = scalar_lea.vmem %s39, 1
    %v5485 = vld [vmem:[%s5484] sm:$0x1]
    %v5486 = vsel %vm244, %v5474, 0.0
    %5487 = vadd.xlane.f32.xlu0 %v5486
    %v5488 = vpop.xlane.xlu0 %5487
    %v5489 = vsel %vm244, %v5475, 0.0
    %5490 = vadd.xlane.f32.xlu0 %v5489
    %v5491 = vpop.xlane.xlu0 %5490
    %v5492 = vsel %vm244, %v5476, 0.0
    %5493 = vadd.xlane.f32.xlu0 %v5492
    %v5494 = vpop.xlane.xlu0 %5493
    %v5495 = vsel %vm244, %v5477, 0.0
    %5496 = vadd.xlane.f32.xlu0 %v5495
    %v5497 = vpop.xlane.xlu0 %5496
    %v5498 = vsel %vm244, %v5478, 0.0
    %5499 = vadd.xlane.f32.xlu0 %v5498
    %v5500 = vpop.xlane.xlu0 %5499
    %v5501 = vsel %vm244, %v5479, 0.0
    %5502 = vadd.xlane.f32.xlu0 %v5501
    %v5503 = vpop.xlane.xlu0 %5502
    %v5504 = vsel %vm244, %v5480, 0.0
    %5505 = vadd.xlane.f32.xlu0 %v5504
    %v5506 = vpop.xlane.xlu0 %5505
    %v5507 = vsel %vm244, %v5481, 0.0
    %5508 = vadd.xlane.f32.xlu0 %v5507
    %v5509 = vpop.xlane.xlu0 %5508
    %v5510 = vmul.f32 %v5488, %v257
    %v5511 = vmul.f32 %v5491, %v257
    %v5512 = vmul.f32 %v5494, %v257
    %v5513 = vmul.f32 %v5497, %v257
    %v5514 = vmul.f32 %v5500, %v257
    %v5515 = vmul.f32 %v5503, %v257
    %v5516 = vmul.f32 %v5506, %v257
    %v5517 = vmul.f32 %v5509, %v257
    %v5518 = vsub.f32 %v5474, %v5510
    %v5519 = vsub.f32 %v5475, %v5511
    %v5520 = vsub.f32 %v5476, %v5512
    %v5521 = vsub.f32 %v5477, %v5513
    %v5522 = vsub.f32 %v5478, %v5514
    %v5523 = vsub.f32 %v5479, %v5515
    %v5524 = vsub.f32 %v5480, %v5516
    %v5525 = vsub.f32 %v5481, %v5517
    %v5526 = vmul.f32 %v5518, %v5518
    %v5527 = vmul.f32 %v5519, %v5519
    %v5528 = vmul.f32 %v5520, %v5520
    %v5529 = vmul.f32 %v5521, %v5521
    %v5530 = vmul.f32 %v5522, %v5522
    %v5531 = vmul.f32 %v5523, %v5523
    %v5532 = vmul.f32 %v5524, %v5524
    %v5533 = vmul.f32 %v5525, %v5525
    %v5534 = vsel %vm244, %v5526, 0.0
    %5535 = vadd.xlane.f32.xlu0 %v5534
    %v5536 = vpop.xlane.xlu0 %5535
    %v5537 = vsel %vm244, %v5527, 0.0
    %5538 = vadd.xlane.f32.xlu0 %v5537
    %v5539 = vpop.xlane.xlu0 %5538
    %v5540 = vsel %vm244, %v5528, 0.0
    %5541 = vadd.xlane.f32.xlu0 %v5540
    %v5542 = vpop.xlane.xlu0 %5541
    %v5543 = vsel %vm244, %v5529, 0.0
    %5544 = vadd.xlane.f32.xlu0 %v5543
    %v5545 = vpop.xlane.xlu0 %5544
    %v5546 = vsel %vm244, %v5530, 0.0
    %5547 = vadd.xlane.f32.xlu0 %v5546
    %v5548 = vpop.xlane.xlu0 %5547
    %v5549 = vsel %vm244, %v5531, 0.0
    %5550 = vadd.xlane.f32.xlu0 %v5549
    %v5551 = vpop.xlane.xlu0 %5550
    %v5552 = vsel %vm244, %v5532, 0.0
    %5553 = vadd.xlane.f32.xlu0 %v5552
    %v5554 = vpop.xlane.xlu0 %5553
    %v5555 = vsel %vm244, %v5533, 0.0
    %5556 = vadd.xlane.f32.xlu0 %v5555
    %v5557 = vpop.xlane.xlu0 %5556
    %v5558 = vmul.f32 %v5536, %v257
    %v5559 = vmul.f32 %v5539, %v257
    %v5560 = vmul.f32 %v5542, %v257
    %v5561 = vmul.f32 %v5545, %v257
    %v5562 = vmul.f32 %v5548, %v257
    %v5563 = vmul.f32 %v5551, %v257
    %v5564 = vmul.f32 %v5554, %v257
    %v5565 = vmul.f32 %v5557, %v257
    %v5566 = vadd.f32 %v5558, 1e-12
    %v5567 = vadd.f32 %v5559, 1e-12
    %v5568 = vadd.f32 %v5560, 1e-12
    %v5569 = vadd.f32 %v5561, 1e-12
    %v5570 = vadd.f32 %v5562, 1e-12
    %v5571 = vadd.f32 %v5563, 1e-12
    %v5572 = vadd.f32 %v5564, 1e-12
    %v5573 = vadd.f32 %v5565, 1e-12
    %v5574 = vrsqrt.pop %v5566
    %v5575 = vmul.f32 %v5574, %v5566
    %v5576 = vmul.f32 %v5575, %v5574
    %v5577 = vmul.f32 0.5, %v5576
    %v5578 = vsub.f32 1.5, %v5577
    %v5579 = vmul.f32 %v5574, %v5578
    %vm5580 = vweird.f32 %v5566
    %vm5581 = vweird.f32 %v5574
    %vm5582 = vmor %vm5580, %vm5581
    %v5583 = vsel %vm5582, %v5574, %v5579
    %v5584 = vrsqrt.pop %v5567
    %v5585 = vmul.f32 %v5584, %v5567
    %v5586 = vmul.f32 %v5585, %v5584
    %v5587 = vmul.f32 0.5, %v5586
    %v5588 = vsub.f32 1.5, %v5587
    %v5589 = vmul.f32 %v5584, %v5588
    %vm5590 = vweird.f32 %v5567
    %vm5591 = vweird.f32 %v5584
    %vm5592 = vmor %vm5590, %vm5591
    %v5593 = vsel %vm5592, %v5584, %v5589
    %v5594 = vrsqrt.pop %v5568
    %v5595 = vmul.f32 %v5594, %v5568
    %v5596 = vmul.f32 %v5595, %v5594
    %v5597 = vmul.f32 0.5, %v5596
    %v5598 = vsub.f32 1.5, %v5597
    %v5599 = vmul.f32 %v5594, %v5598
    %vm5600 = vweird.f32 %v5568
    %vm5601 = vweird.f32 %v5594
    %vm5602 = vmor %vm5600, %vm5601
    %v5603 = vsel %vm5602, %v5594, %v5599
    %v5604 = vrsqrt.pop %v5569
    %v5605 = vmul.f32 %v5604, %v5569
    %v5606 = vmul.f32 %v5605, %v5604
    %v5607 = vmul.f32 0.5, %v5606
    %v5608 = vsub.f32 1.5, %v5607
    %v5609 = vmul.f32 %v5604, %v5608
    %vm5610 = vweird.f32 %v5569
    %vm5611 = vweird.f32 %v5604
    %vm5612 = vmor %vm5610, %vm5611
    %v5613 = vsel %vm5612, %v5604, %v5609
    %v5614 = vrsqrt.pop %v5570
    %v5615 = vmul.f32 %v5614, %v5570
    %v5616 = vmul.f32 %v5615, %v5614
    %v5617 = vmul.f32 0.5, %v5616
    %v5618 = vsub.f32 1.5, %v5617
    %v5619 = vmul.f32 %v5614, %v5618
    %vm5620 = vweird.f32 %v5570
    %vm5621 = vweird.f32 %v5614
    %vm5622 = vmor %vm5620, %vm5621
    %v5623 = vsel %vm5622, %v5614, %v5619
    %v5624 = vrsqrt.pop %v5571
    %v5625 = vmul.f32 %v5624, %v5571
    %v5626 = vmul.f32 %v5625, %v5624
    %v5627 = vmul.f32 0.5, %v5626
    %v5628 = vsub.f32 1.5, %v5627
    %v5629 = vmul.f32 %v5624, %v5628
    %vm5630 = vweird.f32 %v5571
    %vm5631 = vweird.f32 %v5624
    %vm5632 = vmor %vm5630, %vm5631
    %v5633 = vsel %vm5632, %v5624, %v5629
    %v5634 = vrsqrt.pop %v5572
    %v5635 = vmul.f32 %v5634, %v5572
    %v5636 = vmul.f32 %v5635, %v5634
    %v5637 = vmul.f32 0.5, %v5636
    %v5638 = vsub.f32 1.5, %v5637
    %v5639 = vmul.f32 %v5634, %v5638
    %vm5640 = vweird.f32 %v5572
    %vm5641 = vweird.f32 %v5634
    %vm5642 = vmor %vm5640, %vm5641
    %v5643 = vsel %vm5642, %v5634, %v5639
    %v5644 = vrsqrt.pop %v5573
    %v5645 = vmul.f32 %v5644, %v5573
    %v5646 = vmul.f32 %v5645, %v5644
    %v5647 = vmul.f32 0.5, %v5646
    %v5648 = vsub.f32 1.5, %v5647
    %v5649 = vmul.f32 %v5644, %v5648
    %vm5650 = vweird.f32 %v5573
    %vm5651 = vweird.f32 %v5644
    %vm5652 = vmor %vm5650, %vm5651
    %v5653 = vsel %vm5652, %v5644, %v5649
    %v5654 = vmul.f32 %v5518, %v5583
    %v5655 = vmul.f32 %v5519, %v5593
    %v5656 = vmul.f32 %v5520, %v5603
    %v5657 = vmul.f32 %v5521, %v5613
    %v5658 = vmul.f32 %v5522, %v5623
    %v5659 = vmul.f32 %v5523, %v5633
    %v5660 = vmul.f32 %v5524, %v5643
    %v5661 = vmul.f32 %v5525, %v5653
    %v5663 = vperm.slane %v5483, 0
    %v5665 = vmul.f32 %v5654, %v5663
    %v5666 = vmul.f32 %v5655, %v5663
    %v5667 = vmul.f32 %v5656, %v5663
    %v5668 = vmul.f32 %v5657, %v5663
    %v5669 = vmul.f32 %v5658, %v5663
    %v5670 = vmul.f32 %v5659, %v5663
    %v5671 = vmul.f32 %v5660, %v5663
    %v5672 = vmul.f32 %v5661, %v5663
    %v5674 = vperm.slane %v5485, 0
    %v5676 = vadd.f32 %v5665, %v5674
    %v5677 = vadd.f32 %v5666, %v5674
    %v5678 = vadd.f32 %v5667, %v5674
    %v5679 = vadd.f32 %v5668, %v5674
    %v5680 = vadd.f32 %v5669, %v5674
    %v5681 = vadd.f32 %v5670, %v5674
    %v5682 = vadd.f32 %v5671, %v5674
    %v5683 = vadd.f32 %v5672, %v5674
    %v5684 = vpack.c.bf16 %v5677, %v5676
    %v5685 = vpack.c.bf16 %v5679, %v5678
    %v5686 = vpack.c.bf16 %v5681, %v5680
    %v5687 = vpack.c.bf16 %v5683, %v5682
    %s5688 = scalar_lea.vmem %s41, 16
    %v5689 = vld [vmem:[%s5688] sm:$0xf]
    %v5690 = vld [vmem:[%s5688 + $0x4] sm:$0xf]
    %v5691 = vld [vmem:[%s5688 + $0x8] sm:$0xf]
    %v5692 = vld [vmem:[%s5688 + $0xc] sm:$0xf]
    %s5693 = scalar_lea.vmem %s43, 1
    %v5694 = vld [vmem:[%s5693] sm:$0x1]
    %v5696 = vperm.slane %v5694, 0
    %v5702 = vunpack.c.l.b16 %v5689
    %v5703 = vunpack.c.l.b16 %v5690
    %v5704 = vunpack.c.l.b16 %v5691
    %v5705 = vunpack.c.l.b16 %v5692
    %v5706 = vpack.c.b16 %v5703, %v5702
    %v5707 = vpack.c.b16 %v5705, %v5704
    %v5711 = vsel %vm244, %v5684, 0
    %v5714 = vsel %vm244, %v5685, 0
    %v5717 = vsel %vm244, %v5686, 0
    %v5720 = vsel %vm244, %v5687, 0
    %5722 = vmatpush.bf16.msra.mxu0 0
    %5723 = vmatpush.bf16.msra.mxu0 0
    %5724 = vmatpush.bf16.msra.mxu0 0
    %5725 = vmatpush.bf16.msra.mxu0 0
    %5726 = vmatpush.bf16.msra.mxu0 0
    %5727 = vmatpush.bf16.msra.mxu0 0
    %5728 = vmatpush.bf16.msra.mxu0 %v5707
    %5729 = vmatpush.bf16.msra.mxu0 %v5706
    %5730 = vmatmul.bf16.gmra.mxu0 %v5711
    %v5731 = vpop.f32.mrf.mxu0
    %v5732 = vadd.f32 %v5696, %v5731
    %v5733 = vpop.f32.mrf.mxu0
    %v5734 = vadd.f32 %v5696, %v5733
    %5735 = vmatmul.bf16.gmra.mxu0 %v5714
    %v5736 = vpop.f32.mrf.mxu0
    %v5737 = vadd.f32 %v5696, %v5736
    %v5738 = vpop.f32.mrf.mxu0
    %v5739 = vadd.f32 %v5696, %v5738
    %5740 = vmatmul.bf16.gmra.mxu0 %v5717
    %v5741 = vpop.f32.mrf.mxu0
    %v5742 = vadd.f32 %v5696, %v5741
    %v5743 = vpop.f32.mrf.mxu0
    %v5744 = vadd.f32 %v5696, %v5743
    %5745 = vmatmul.bf16.gmra.mxu0 %v5720
    %v5746 = vpop.f32.mrf.mxu0
    %v5747 = vadd.f32 %v5696, %v5746
    %v5748 = vpop.f32.mrf.mxu0
    %v5749 = vadd.f32 %v5696, %v5748
    %5750 = vdwg.mxu0
    %v5751 = vmul.f32 %v5732, 0.5
    %v5752 = vmul.f32 %v5734, 0.5
    %v5753 = vmul.f32 %v5737, 0.5
    %v5754 = vmul.f32 %v5739, 0.5
    %v5755 = vmul.f32 %v5742, 0.5
    %v5756 = vmul.f32 %v5744, 0.5
    %v5757 = vmul.f32 %v5747, 0.5
    %v5758 = vmul.f32 %v5749, 0.5
    %v5759 = vmul.f32 %v5732, 0.70710677
    %v5760 = vmul.f32 %v5734, 0.70710677
    %v5761 = vmul.f32 %v5737, 0.70710677
    %v5762 = vmul.f32 %v5739, 0.70710677
    %v5763 = vmul.f32 %v5742, 0.70710677
    %v5764 = vmul.f32 %v5744, 0.70710677
    %v5765 = vmul.f32 %v5747, 0.70710677
    %v5766 = vmul.f32 %v5749, 0.70710677
    %vm5767 = vcmp.ge.f32.partialorder %v5759, 0.0
    %vm5768 = vcmp.ge.f32.partialorder %v5760, 0.0
    %vm5769 = vcmp.ge.f32.partialorder %v5761, 0.0
    %vm5770 = vcmp.ge.f32.partialorder %v5762, 0.0
    %vm5771 = vcmp.ge.f32.partialorder %v5763, 0.0
    %vm5772 = vcmp.ge.f32.partialorder %v5764, 0.0
    %vm5773 = vcmp.ge.f32.partialorder %v5765, 0.0
    %vm5774 = vcmp.ge.f32.partialorder %v5766, 0.0
    %v5775 = vsel %vm5767, 1.0, -1.0
    %v5776 = vsel %vm5768, 1.0, -1.0
    %v5777 = vsel %vm5769, 1.0, -1.0
    %v5778 = vsel %vm5770, 1.0, -1.0
    %v5779 = vsel %vm5771, 1.0, -1.0
    %v5780 = vsel %vm5772, 1.0, -1.0
    %v5781 = vsel %vm5773, 1.0, -1.0
    %v5782 = vsel %vm5774, 1.0, -1.0
    %v5783 = vand.u32 2147483647, %v5759
    %v5784 = vand.u32 2147483647, %v5760
    %v5785 = vand.u32 2147483647, %v5761
    %v5786 = vand.u32 2147483647, %v5762
    %v5787 = vand.u32 2147483647, %v5763
    %v5788 = vand.u32 2147483647, %v5764
    %v5789 = vand.u32 2147483647, %v5765
    %v5790 = vand.u32 2147483647, %v5766
    %v5791 = vmul.f32 %v5783, 0.3275911
    %v5792 = vmul.f32 %v5784, 0.3275911
    %v5793 = vmul.f32 %v5785, 0.3275911
    %v5794 = vmul.f32 %v5786, 0.3275911
    %v5795 = vmul.f32 %v5787, 0.3275911
    %v5796 = vmul.f32 %v5788, 0.3275911
    %v5797 = vmul.f32 %v5789, 0.3275911
    %v5798 = vmul.f32 %v5790, 0.3275911
    %v5799 = vadd.f32 %v5791, 1.0
    %v5800 = vadd.f32 %v5792, 1.0
    %v5801 = vadd.f32 %v5793, 1.0
    %v5802 = vadd.f32 %v5794, 1.0
    %v5803 = vadd.f32 %v5795, 1.0
    %v5804 = vadd.f32 %v5796, 1.0
    %v5805 = vadd.f32 %v5797, 1.0
    %v5806 = vadd.f32 %v5798, 1.0
    %v5807 = vrcp.pop %v5799
    %v5808 = vmul.f32 %v5799, %v5807
    %v5809 = vsub.f32 1.0, %v5808
    %v5810 = vmul.f32 %v5807, %v5809
    %v5811 = vadd.f32 %v5807, %v5810
    %vm5812 = vweird.f32 %v5799
    %vm5813 = vweird.f32 %v5807
    %vm5814 = vmor %vm5812, %vm5813
    %v5815 = vsel %vm5814, %v5807, %v5811
    %v5816 = vand.u32 2147483647, %v5799
    %vm5817 = vcmp.eq.f32.partialorder %v5816, 8.507059e+37
    %v5818 = vand.u32 %v5799, 2147483648
    %v5819 = vor.u32 1.1754944e-38, %v5818
    %v5820 = vsel %vm5817, %v5819, %v5815
    %v5821 = vmul.f32 1.0, %v5820
    %v5822 = vrcp.pop %v5800
    %v5823 = vmul.f32 %v5800, %v5822
    %v5824 = vsub.f32 1.0, %v5823
    %v5825 = vmul.f32 %v5822, %v5824
    %v5826 = vadd.f32 %v5822, %v5825
    %vm5827 = vweird.f32 %v5800
    %vm5828 = vweird.f32 %v5822
    %vm5829 = vmor %vm5827, %vm5828
    %v5830 = vsel %vm5829, %v5822, %v5826
    %v5831 = vand.u32 2147483647, %v5800
    %vm5832 = vcmp.eq.f32.partialorder %v5831, 8.507059e+37
    %v5833 = vand.u32 %v5800, 2147483648
    %v5834 = vor.u32 1.1754944e-38, %v5833
    %v5835 = vsel %vm5832, %v5834, %v5830
    %v5836 = vmul.f32 1.0, %v5835
    %v5837 = vrcp.pop %v5801
    %v5838 = vmul.f32 %v5801, %v5837
    %v5839 = vsub.f32 1.0, %v5838
    %v5840 = vmul.f32 %v5837, %v5839
    %v5841 = vadd.f32 %v5837, %v5840
    %vm5842 = vweird.f32 %v5801
    %vm5843 = vweird.f32 %v5837
    %vm5844 = vmor %vm5842, %vm5843
    %v5845 = vsel %vm5844, %v5837, %v5841
    %v5846 = vand.u32 2147483647, %v5801
    %vm5847 = vcmp.eq.f32.partialorder %v5846, 8.507059e+37
    %v5848 = vand.u32 %v5801, 2147483648
    %v5849 = vor.u32 1.1754944e-38, %v5848
    %v5850 = vsel %vm5847, %v5849, %v5845
    %v5851 = vmul.f32 1.0, %v5850
    %v5852 = vrcp.pop %v5802
    %v5853 = vmul.f32 %v5802, %v5852
    %v5854 = vsub.f32 1.0, %v5853
    %v5855 = vmul.f32 %v5852, %v5854
    %v5856 = vadd.f32 %v5852, %v5855
    %vm5857 = vweird.f32 %v5802
    %vm5858 = vweird.f32 %v5852
    %vm5859 = vmor %vm5857, %vm5858
    %v5860 = vsel %vm5859, %v5852, %v5856
    %v5861 = vand.u32 2147483647, %v5802
    %vm5862 = vcmp.eq.f32.partialorder %v5861, 8.507059e+37
    %v5863 = vand.u32 %v5802, 2147483648
    %v5864 = vor.u32 1.1754944e-38, %v5863
    %v5865 = vsel %vm5862, %v5864, %v5860
    %v5866 = vmul.f32 1.0, %v5865
    %v5867 = vrcp.pop %v5803
    %v5868 = vmul.f32 %v5803, %v5867
    %v5869 = vsub.f32 1.0, %v5868
    %v5870 = vmul.f32 %v5867, %v5869
    %v5871 = vadd.f32 %v5867, %v5870
    %vm5872 = vweird.f32 %v5803
    %vm5873 = vweird.f32 %v5867
    %vm5874 = vmor %vm5872, %vm5873
    %v5875 = vsel %vm5874, %v5867, %v5871
    %v5876 = vand.u32 2147483647, %v5803
    %vm5877 = vcmp.eq.f32.partialorder %v5876, 8.507059e+37
    %v5878 = vand.u32 %v5803, 2147483648
    %v5879 = vor.u32 1.1754944e-38, %v5878
    %v5880 = vsel %vm5877, %v5879, %v5875
    %v5881 = vmul.f32 1.0, %v5880
    %v5882 = vrcp.pop %v5804
    %v5883 = vmul.f32 %v5804, %v5882
    %v5884 = vsub.f32 1.0, %v5883
    %v5885 = vmul.f32 %v5882, %v5884
    %v5886 = vadd.f32 %v5882, %v5885
    %vm5887 = vweird.f32 %v5804
    %vm5888 = vweird.f32 %v5882
    %vm5889 = vmor %vm5887, %vm5888
    %v5890 = vsel %vm5889, %v5882, %v5886
    %v5891 = vand.u32 2147483647, %v5804
    %vm5892 = vcmp.eq.f32.partialorder %v5891, 8.507059e+37
    %v5893 = vand.u32 %v5804, 2147483648
    %v5894 = vor.u32 1.1754944e-38, %v5893
    %v5895 = vsel %vm5892, %v5894, %v5890
    %v5896 = vmul.f32 1.0, %v5895
    %v5897 = vrcp.pop %v5805
    %v5898 = vmul.f32 %v5805, %v5897
    %v5899 = vsub.f32 1.0, %v5898
    %v5900 = vmul.f32 %v5897, %v5899
    %v5901 = vadd.f32 %v5897, %v5900
    %vm5902 = vweird.f32 %v5805
    %vm5903 = vweird.f32 %v5897
    %vm5904 = vmor %vm5902, %vm5903
    %v5905 = vsel %vm5904, %v5897, %v5901
    %v5906 = vand.u32 2147483647, %v5805
    %vm5907 = vcmp.eq.f32.partialorder %v5906, 8.507059e+37
    %v5908 = vand.u32 %v5805, 2147483648
    %v5909 = vor.u32 1.1754944e-38, %v5908
    %v5910 = vsel %vm5907, %v5909, %v5905
    %v5911 = vmul.f32 1.0, %v5910
    %v5912 = vrcp.pop %v5806
    %v5913 = vmul.f32 %v5806, %v5912
    %v5914 = vsub.f32 1.0, %v5913
    %v5915 = vmul.f32 %v5912, %v5914
    %v5916 = vadd.f32 %v5912, %v5915
    %vm5917 = vweird.f32 %v5806
    %vm5918 = vweird.f32 %v5912
    %vm5919 = vmor %vm5917, %vm5918
    %v5920 = vsel %vm5919, %v5912, %v5916
    %v5921 = vand.u32 2147483647, %v5806
    %vm5922 = vcmp.eq.f32.partialorder %v5921, 8.507059e+37
    %v5923 = vand.u32 %v5806, 2147483648
    %v5924 = vor.u32 1.1754944e-38, %v5923
    %v5925 = vsel %vm5922, %v5924, %v5920
    %v5926 = vmul.f32 1.0, %v5925
    %v5927 = vmul.f32 %v5821, 1.0614054
    %v5928 = vmul.f32 %v5836, 1.0614054
    %v5929 = vmul.f32 %v5851, 1.0614054
    %v5930 = vmul.f32 %v5866, 1.0614054
    %v5931 = vmul.f32 %v5881, 1.0614054
    %v5932 = vmul.f32 %v5896, 1.0614054
    %v5933 = vmul.f32 %v5911, 1.0614054
    %v5934 = vmul.f32 %v5926, 1.0614054
    %v5935 = vadd.f32 %v5927, -1.4531521
    %v5936 = vadd.f32 %v5928, -1.4531521
    %v5937 = vadd.f32 %v5929, -1.4531521
    %v5938 = vadd.f32 %v5930, -1.4531521
    %v5939 = vadd.f32 %v5931, -1.4531521
    %v5940 = vadd.f32 %v5932, -1.4531521
    %v5941 = vadd.f32 %v5933, -1.4531521
    %v5942 = vadd.f32 %v5934, -1.4531521
    %v5943 = vmul.f32 %v5935, %v5821
    %v5944 = vmul.f32 %v5936, %v5836
    %v5945 = vmul.f32 %v5937, %v5851
    %v5946 = vmul.f32 %v5938, %v5866
    %v5947 = vmul.f32 %v5939, %v5881
    %v5948 = vmul.f32 %v5940, %v5896
    %v5949 = vmul.f32 %v5941, %v5911
    %v5950 = vmul.f32 %v5942, %v5926
    %v5951 = vadd.f32 %v5943, 1.4214138
    %v5952 = vadd.f32 %v5944, 1.4214138
    %v5953 = vadd.f32 %v5945, 1.4214138
    %v5954 = vadd.f32 %v5946, 1.4214138
    %v5955 = vadd.f32 %v5947, 1.4214138
    %v5956 = vadd.f32 %v5948, 1.4214138
    %v5957 = vadd.f32 %v5949, 1.4214138
    %v5958 = vadd.f32 %v5950, 1.4214138
    %v5959 = vmul.f32 %v5951, %v5821
    %v5960 = vmul.f32 %v5952, %v5836
    %v5961 = vmul.f32 %v5953, %v5851
    %v5962 = vmul.f32 %v5954, %v5866
    %v5963 = vmul.f32 %v5955, %v5881
    %v5964 = vmul.f32 %v5956, %v5896
    %v5965 = vmul.f32 %v5957, %v5911
    %v5966 = vmul.f32 %v5958, %v5926
    %v5967 = vadd.f32 %v5959, -0.28449672
    %v5968 = vadd.f32 %v5960, -0.28449672
    %v5969 = vadd.f32 %v5961, -0.28449672
    %v5970 = vadd.f32 %v5962, -0.28449672
    %v5971 = vadd.f32 %v5963, -0.28449672
    %v5972 = vadd.f32 %v5964, -0.28449672
    %v5973 = vadd.f32 %v5965, -0.28449672
    %v5974 = vadd.f32 %v5966, -0.28449672
    %v5975 = vmul.f32 %v5967, %v5821
    %v5976 = vmul.f32 %v5968, %v5836
    %v5977 = vmul.f32 %v5969, %v5851
    %v5978 = vmul.f32 %v5970, %v5866
    %v5979 = vmul.f32 %v5971, %v5881
    %v5980 = vmul.f32 %v5972, %v5896
    %v5981 = vmul.f32 %v5973, %v5911
    %v5982 = vmul.f32 %v5974, %v5926
    %v5983 = vadd.f32 %v5975, 0.2548296
    %v5984 = vadd.f32 %v5976, 0.2548296
    %v5985 = vadd.f32 %v5977, 0.2548296
    %v5986 = vadd.f32 %v5978, 0.2548296
    %v5987 = vadd.f32 %v5979, 0.2548296
    %v5988 = vadd.f32 %v5980, 0.2548296
    %v5989 = vadd.f32 %v5981, 0.2548296
    %v5990 = vadd.f32 %v5982, 0.2548296
    %v5991 = vmul.f32 %v5983, %v5821
    %v5992 = vmul.f32 %v5984, %v5836
    %v5993 = vmul.f32 %v5985, %v5851
    %v5994 = vmul.f32 %v5986, %v5866
    %v5995 = vmul.f32 %v5987, %v5881
    %v5996 = vmul.f32 %v5988, %v5896
    %v5997 = vmul.f32 %v5989, %v5911
    %v5998 = vmul.f32 %v5990, %v5926
    %v5999 = vsub.f32 0.0, %v5783
    %v6000 = vsub.f32 0.0, %v5784
    %v6001 = vsub.f32 0.0, %v5785
    %v6002 = vsub.f32 0.0, %v5786
    %v6003 = vsub.f32 0.0, %v5787
    %v6004 = vsub.f32 0.0, %v5788
    %v6005 = vsub.f32 0.0, %v5789
    %v6006 = vsub.f32 0.0, %v5790
    %v6007 = vmul.f32 %v5999, %v5783
    %v6008 = vmul.f32 %v6000, %v5784
    %v6009 = vmul.f32 %v6001, %v5785
    %v6010 = vmul.f32 %v6002, %v5786
    %v6011 = vmul.f32 %v6003, %v5787
    %v6012 = vmul.f32 %v6004, %v5788
    %v6013 = vmul.f32 %v6005, %v5789
    %v6014 = vmul.f32 %v6006, %v5790
    %v6015 = vmul.f32 %v6007, 1.442695
    %v6016 = vpow.pop %v6015
    %v6017 = vmul.f32 %v6008, 1.442695
    %v6018 = vpow.pop %v6017
    %v6019 = vmul.f32 %v6009, 1.442695
    %v6020 = vpow.pop %v6019
    %v6021 = vmul.f32 %v6010, 1.442695
    %v6022 = vpow.pop %v6021
    %v6023 = vmul.f32 %v6011, 1.442695
    %v6024 = vpow.pop %v6023
    %v6025 = vmul.f32 %v6012, 1.442695
    %v6026 = vpow.pop %v6025
    %v6027 = vmul.f32 %v6013, 1.442695
    %v6028 = vpow.pop %v6027
    %v6029 = vmul.f32 %v6014, 1.442695
    %v6030 = vpow.pop %v6029
    %v6031 = vmul.f32 %v5991, %v6016
    %v6032 = vmul.f32 %v5992, %v6018
    %v6033 = vmul.f32 %v5993, %v6020
    %v6034 = vmul.f32 %v5994, %v6022
    %v6035 = vmul.f32 %v5995, %v6024
    %v6036 = vmul.f32 %v5996, %v6026
    %v6037 = vmul.f32 %v5997, %v6028
    %v6038 = vmul.f32 %v5998, %v6030
    %v6039 = vsub.f32 1.0, %v6031
    %v6040 = vsub.f32 1.0, %v6032
    %v6041 = vsub.f32 1.0, %v6033
    %v6042 = vsub.f32 1.0, %v6034
    %v6043 = vsub.f32 1.0, %v6035
    %v6044 = vsub.f32 1.0, %v6036
    %v6045 = vsub.f32 1.0, %v6037
    %v6046 = vsub.f32 1.0, %v6038
    %v6047 = vmul.f32 %v5775, %v6039
    %v6048 = vmul.f32 %v5776, %v6040
    %v6049 = vmul.f32 %v5777, %v6041
    %v6050 = vmul.f32 %v5778, %v6042
    %v6051 = vmul.f32 %v5779, %v6043
    %v6052 = vmul.f32 %v5780, %v6044
    %v6053 = vmul.f32 %v5781, %v6045
    %v6054 = vmul.f32 %v5782, %v6046
    %v6055 = vadd.f32 %v6047, 1.0
    %v6056 = vadd.f32 %v6048, 1.0
    %v6057 = vadd.f32 %v6049, 1.0
    %v6058 = vadd.f32 %v6050, 1.0
    %v6059 = vadd.f32 %v6051, 1.0
    %v6060 = vadd.f32 %v6052, 1.0
    %v6061 = vadd.f32 %v6053, 1.0
    %v6062 = vadd.f32 %v6054, 1.0
    %v6063 = vmul.f32 %v5751, %v6055
    %v6064 = vmul.f32 %v5752, %v6056
    %v6065 = vmul.f32 %v5753, %v6057
    %v6066 = vmul.f32 %v5754, %v6058
    %v6067 = vmul.f32 %v5755, %v6059
    %v6068 = vmul.f32 %v5756, %v6060
    %v6069 = vmul.f32 %v5757, %v6061
    %v6070 = vmul.f32 %v5758, %v6062
    %v6071 = vpack.c.bf16 %v6064, %v6063
    %v6072 = vpack.c.bf16 %v6066, %v6065
    %v6073 = vpack.c.bf16 %v6068, %v6067
    %v6074 = vpack.c.bf16 %v6070, %v6069
    %s6075 = scalar_lea.vmem %s45, 32
    %v6076 = vld [vmem:[%s6075] sm:$0xf]
    %v6077 = vld [vmem:[%s6075 + $0x4] sm:$0xf]
    %v6078 = vld [vmem:[%s6075 + $0x8] sm:$0xf]
    %v6079 = vld [vmem:[%s6075 + $0xc] sm:$0xf]
    %v6080 = vld [vmem:[%s6075 + $0x10] sm:$0xf]
    %v6081 = vld [vmem:[%s6075 + $0x14] sm:$0xf]
    %v6082 = vld [vmem:[%s6075 + $0x18] sm:$0xf]
    %v6083 = vld [vmem:[%s6075 + $0x1c] sm:$0xf]
    %v6092 = vunpack.c.l.b16 %v6076
    %v6093 = vunpack.c.l.b16 %v6077
    %v6094 = vunpack.c.l.b16 %v6078
    %v6095 = vunpack.c.l.b16 %v6079
    %v6096 = vunpack.c.l.b16 %v6080
    %v6097 = vunpack.c.l.b16 %v6081
    %v6098 = vunpack.c.l.b16 %v6082
    %v6099 = vunpack.c.l.b16 %v6083
    %v6100 = vpack.c.b16 %v6093, %v6092
    %v6101 = vpack.c.b16 %v6095, %v6094
    %v6102 = vpack.c.b16 %v6097, %v6096
    %v6103 = vpack.c.b16 %v6099, %v6098
    %v6109 = vsel %vm3220, %v6071, 0
    %v6112 = vsel %vm3220, %v6072, 0
    %v6115 = vsel %vm3220, %v6073, 0
    %v6118 = vsel %vm3220, %v6074, 0
    %6120 = vmatpush.bf16.msra.mxu0 0
    %6121 = vmatpush.bf16.msra.mxu0 0
    %6122 = vmatpush.bf16.msra.mxu0 0
    %6123 = vmatpush.bf16.msra.mxu0 0
    %6124 = vmatpush.bf16.msra.mxu0 %v6103
    %6125 = vmatpush.bf16.msra.mxu0 %v6102
    %6126 = vmatpush.bf16.msra.mxu0 %v6101
    %6127 = vmatpush.bf16.msra.mxu0 %v6100
    %6128 = vmatmul.bf16.gmra.mxu0 %v6109
    %v6129 = vpop.f32.mrf.mxu0
    %v6130 = vadd.f32 0.0, %v6129
    %v6131 = vpop.f32.mrf.mxu0
    %6132 = vmatmul.bf16.gmra.mxu0 %v6112
    %v6133 = vpop.f32.mrf.mxu0
    %v6134 = vpop.f32.mrf.mxu0
    %6135 = vmatmul.bf16.gmra.mxu0 %v6115
    %v6136 = vpop.f32.mrf.mxu0
    %v6137 = vadd.f32 0.0, %v6136
    %v6138 = vpop.f32.mrf.mxu0
    %6139 = vmatmul.bf16.gmra.mxu0 %v6118
    %v6140 = vpop.f32.mrf.mxu0
    %v6141 = vpop.f32.mrf.mxu0
    %6142 = vdwg.mxu0
    %v6143 = vadd.f32 %v5474, %v6130
    %v6144 = vadd.f32 %v5478, %v6137
    %s6145 = scalar_lea.vmem %s47, 1
    %v6146 = vld [vmem:[%s6145] sm:$0x1]
    %v6148 = vperm.slane %v6146, 0
    %v6150 = vadd.f32 %v6143, %v6148
    %v6151 = vadd.f32 %v6144, %v6148
    %v6152 = vld [vmem:[%s49] sm:$0x1]
    %v6153 = vld [vmem:[%s51] sm:$0x1]
    %v6154 = vsel %vm244, %v6150, 0.0
    %6155 = vadd.xlane.f32.xlu0 %v6154
    %v6156 = vpop.xlane.xlu0 %6155
    %v6157 = vsel %vm244, %v6151, 0.0
    %6158 = vadd.xlane.f32.xlu0 %v6157
    %v6159 = vpop.xlane.xlu0 %6158
    %v6160 = vmul.f32 %v6156, %v257
    %v6161 = vmul.f32 %v6159, %v257
    %v6162 = vsub.f32 %v6150, %v6160
    %v6163 = vsub.f32 %v6151, %v6161
    %v6164 = vmul.f32 %v6162, %v6162
    %v6165 = vmul.f32 %v6163, %v6163
    %v6166 = vsel %vm244, %v6164, 0.0
    %6167 = vadd.xlane.f32.xlu0 %v6166
    %v6168 = vpop.xlane.xlu0 %6167
    %v6169 = vsel %vm244, %v6165, 0.0
    %6170 = vadd.xlane.f32.xlu0 %v6169
    %v6171 = vpop.xlane.xlu0 %6170
    %v6172 = vmul.f32 %v6168, %v257
    %v6173 = vmul.f32 %v6171, %v257
    %v6174 = vadd.f32 %v6172, 1e-12
    %v6175 = vadd.f32 %v6173, 1e-12
    %v6176 = vrsqrt.pop %v6174
    %v6177 = vmul.f32 %v6176, %v6174
    %v6178 = vmul.f32 %v6177, %v6176
    %v6179 = vmul.f32 0.5, %v6178
    %v6180 = vsub.f32 1.5, %v6179
    %v6181 = vmul.f32 %v6176, %v6180
    %vm6182 = vweird.f32 %v6174
    %vm6183 = vweird.f32 %v6176
    %vm6184 = vmor %vm6182, %vm6183
    %v6185 = vsel %vm6184, %v6176, %v6181
    %v6186 = vrsqrt.pop %v6175
    %v6187 = vmul.f32 %v6186, %v6175
    %v6188 = vmul.f32 %v6187, %v6186
    %v6189 = vmul.f32 0.5, %v6188
    %v6190 = vsub.f32 1.5, %v6189
    %v6191 = vmul.f32 %v6186, %v6190
    %vm6192 = vweird.f32 %v6175
    %vm6193 = vweird.f32 %v6186
    %vm6194 = vmor %vm6192, %vm6193
    %v6195 = vsel %vm6194, %v6186, %v6191
    %v6196 = vmul.f32 %v6162, %v6185
    %v6197 = vmul.f32 %v6163, %v6195
    %v6199 = vperm.slane %v6152, 0
    %v6201 = vmul.f32 %v6196, %v6199
    %v6202 = vmul.f32 %v6197, %v6199
    %v6204 = vperm.slane %v6153, 0
    %v6206 = vadd.f32 %v6201, %v6204
    %v6207 = vadd.f32 %v6202, %v6204
    %v6208 = vpack.c.bf16 %v6206, %v6206
    %v6209 = vpack.c.bf16 %v6207, %v6207
    %v6210 = vld [vmem:[%s53] sm:$0xf]
    %v6211 = vld [vmem:[%s53 + $0x4] sm:$0xf]
    %v6212 = vld [vmem:[%s53 + $0x8] sm:$0xf]
    %v6213 = vld [vmem:[%s53 + $0xc] sm:$0xf]
    %v6214 = vld [vmem:[%s55] sm:$0x1]
    %v6216 = vperm.slane %v6214, 0
    %v6220 = vunpack.c.l.b16 %v6208
    %v6221 = vunpack.c.l.b16 %v6209
    %v6222 = vrot.slane %v6221, 7
    %vm6223 = vcmask 1041409
    %v6224 = vsel %vm6223, %v6222, %v6220
    %v6225 = vpack.c.b16 %v6224, %v6224
    %v6230 = vunpack.c.l.b16 %v6210
    %v6231 = vunpack.c.l.b16 %v6211
    %v6232 = vunpack.c.l.b16 %v6212
    %v6233 = vunpack.c.l.b16 %v6213
    %v6234 = vpack.c.b16 %v6231, %v6230
    %v6235 = vpack.c.b16 %v6233, %v6232
    %v6239 = vsel %vm244, %v6225, 0
    %6241 = vmatpush.bf16.msra.mxu0 0
    %6242 = vmatpush.bf16.msra.mxu0 0
    %6243 = vmatpush.bf16.msra.mxu0 0
    %6244 = vmatpush.bf16.msra.mxu0 0
    %6245 = vmatpush.bf16.msra.mxu0 0
    %6246 = vmatpush.bf16.msra.mxu0 0
    %6247 = vmatpush.bf16.msra.mxu0 %v6235
    %6248 = vmatpush.bf16.msra.mxu0 %v6234
    %6249 = vmatmul.bf16.gmra.mxu0 %v6239
    %v6250 = vpop.f32.mrf.mxu0
    %v6251 = vadd.f32 %v6216, %v6250
    %v6252 = vpop.f32.mrf.mxu0
    %6253 = vdwg.mxu0
    %v6254 = vtanh.pop %v6251
    %v6255 = vpack.c.bf16 %v6254, %v6254
    %v6256 = vld [vmem:[%s57] sm:$0xf]
    %v6257 = vld [vmem:[%s57 + $0x4] sm:$0xf]
    %v6258 = vld [vmem:[%s57 + $0x8] sm:$0xf]
    %v6259 = vld [vmem:[%s57 + $0xc] sm:$0xf]
    %v6260 = vld [vmem:[%s59] sm:$0x1]
    %v6262 = vperm.slane %v6260, 0
    %v6268 = vunpack.c.l.b16 %v6256
    %v6269 = vunpack.c.l.b16 %v6257
    %v6270 = vunpack.c.l.b16 %v6258
    %v6271 = vunpack.c.l.b16 %v6259
    %v6272 = vpack.c.b16 %v6269, %v6268
    %v6273 = vpack.c.b16 %v6271, %v6270
    %v6277 = vsel %vm244, %v6255, 0
    %6279 = vmatpush.bf16.msra.mxu0 0
    %6280 = vmatpush.bf16.msra.mxu0 0
    %6281 = vmatpush.bf16.msra.mxu0 0
    %6282 = vmatpush.bf16.msra.mxu0 0
    %6283 = vmatpush.bf16.msra.mxu0 0
    %6284 = vmatpush.bf16.msra.mxu0 0
    %6285 = vmatpush.bf16.msra.mxu0 %v6273
    %6286 = vmatpush.bf16.msra.mxu0 %v6272
    %6287 = vmatmul.bf16.gmra.mxu0 %v6277
    %v6288 = vpop.f32.mrf.mxu0
    %v6289 = vadd.f32 %v6262, %v6288
    %v6290 = vpop.f32.mrf.mxu0
    %6291 = vdwg.mxu0
    %6292 = vst [vmem:[#allocation2] sm:$0x3] %v6289
    %v6293 = vld [vmem:[%s7] sm:$0x3]
    %v6294 = vmax.f32 %v6289, 0.0
    %v6295 = vmul.f32 %v6289, %v6293
    %v6296 = vsub.f32 %v6294, %v6295
    %v6297 = vand.u32 2147483647, %v6289
    %v6298 = vsub.f32 0.0, %v6297
    %v6299 = vmul.f32 %v6298, 1.442695
    %v6300 = vpow.pop %v6299
    %v6301 = vadd.f32 %v6300, 1.0
    %v6302 = vlog2.pop %v6301
    %v6303 = vmul.f32 %v6302, 0.6931472
    %v6304 = vadd.f32 %v6296, %v6303
    %vm6305 = vcmask 33792
    %v6306 = vsel %vm6305, %v6304, 0.0
    %6307 = vadd.xlane.f32.xlu0 %v6306
    %v6308 = vpop.xlane.xlu0 %6307
    %v6309 = vrot.slane %v6308, 4
    %v6310 = vadd.f32 %v6308, %v6309
    %v6311 = vrot.slane %v6310, 2
    %v6312 = vadd.f32 %v6310, %v6311
    %v6313 = vrot.slane %v6312, 1
    %v6314 = vadd.f32 %v6312, %v6313
    %s6315 = vtos %v6314
    %v6316 = vstv %s6315
    %v6317 = vrcp.pop 10.0
    %v6318 = vmul.f32 10.0, %v6317
    %v6319 = vsub.f32 1.0, %v6318
    %v6320 = vmul.f32 %v6317, %v6319
    %v6321 = vadd.f32 %v6317, %v6320
    %vm6322 = vweird.f32 %v6317
    %v6323 = vsel %vm6322, %v6317, %v6321
    %v6324 = vmul.f32 %v6316, %v6323
    %vm6325 = vcmask 0
    %6326 = vst.msk [vmem:[#allocation4] sm:$0x1] %vm6325, %v6324
    // Predicated region
    $region122: #{vilt_forward.1} parent=1 // pred_check
      _
    $region123: #{vilt_forward.1} parent=1 // pred_check_branch
      %6328 = sbr.rel (0) target = $region125
    $region124: #{vilt_forward.1} parent=1 // pred_region
      %6330 = vsyncadd [#allocation3], 0
      %s6332 = sshll.u32 [#allocation2], 4
      %s6333 = int_to_ptr.vmem [resolvable:$true] %s6332
      %s6334 = sshll.u32 %s61, 4
      %s6335 = int_to_ptr.hbm [resolvable:$true] %s6334
      %6337 = dma.vmem_to_hbm [thread:$0]  %s6333, 32, %s6335, [#allocation3]
    $region125: #{vilt_forward.1} parent=1 // pred_fallthru
      _
    // Predicated region
    $region126: #{vilt_forward.1} parent=1 // pred_check
      _
    $region127: #{vilt_forward.1} parent=1 // pred_check_branch
      %6339 = sbr.rel (0) target = $region129
    $region128: #{vilt_forward.1} parent=1 // pred_region
      %6341 = vsyncadd [#allocation5], 0
      %s6343 = sshll.u32 [#allocation4], 4
      %s6344 = int_to_ptr.vmem [resolvable:$true] %s6343
      %s6345 = sshll.u32 %s63, 4
      %s6346 = int_to_ptr.hbm [resolvable:$true] %s6345
      %6348 = dma.vmem_to_hbm [thread:$0]  %s6344, 16, %s6346, [#allocation5]
    $region129: #{vilt_forward.1} parent=1 // pred_fallthru
      _
    // Predicated region
    $region130: #{vilt_forward.1} parent=1 // pred_check
      _
    $region131: #{vilt_forward.1} parent=1 // pred_check_branch
      %6350 = sbr.rel (0) target = $region133
    $region132: #{vilt_forward.1} parent=1 // pred_region
      %6352 = dma.done [#allocation3], 32
    $region133: #{vilt_forward.1} parent=1 // pred_fallthru
      _
    // Predicated region
    $region134: #{vilt_forward.1} parent=1 // pred_check
      _
    $region135: #{vilt_forward.1} parent=1 // pred_check_branch
      %6354 = sbr.rel (0) target = $region137
    $region136: #{vilt_forward.1} parent=1 // pred_region
      %6356 = dma.done [#allocation5], 16
    $region137: #{vilt_forward.1} parent=1 // pred_fallthru
      _
    %6357 = vsyncpa [#allocation3], 1
    %6358 = vsyncpa [#allocation5], 1

</llo_original>
